<compile_context>
chip_gen: v7x
topology: tpu7x:2x2x1
jax: 0.10.0
libtpu: 0.0.40
codegen_flags: <defaults>
</compile_context>

<pallas_src>
import functools

import numpy as np
import jax
import jax.numpy as jnp
from jax import lax
from jax.experimental import pallas as pl
from jax.experimental.pallas import tpu as pltpu


def _g_block_kernel(x_ref, w1_ref, b1_ref, w2_ref, b2_ref, o_ref,
                    xp1_ref, xp2_ref, *, H, W, slope, eps):
    """One batch sample per grid step.

    x_ref : (1, C_in,  H*W)   flattened NCHW sample (channels on sublane)
    wK_ref: (9, C_out, C_K)   pre-scaled 3x3 weights, tap-major
    bK_ref: (C_out, 1)        bias
    o_ref : (1, C_out, H*W)
    xpK   : (C, H*W + 2*(W+1)) VMEM scratch = zero-padded flat activation
    """
    HW = H * W
    P = W + 1                                   # flat pad on each side (covers |shift| <= W+1)
    C_out = o_ref.shape[1]

    # Column index of every flat pixel, used to mask row-wrap on horizontal taps.
    px = lax.broadcasted_iota(jnp.int32, (1, HW), 1) % W

    def conv3x3(xp_ref, src, w_ref, b_ref):
        # Zero-padded flat copy of the activation in VMEM scratch.
        xp_ref[...] = jnp.zeros(xp_ref.shape, xp_ref.dtype)
        xp_ref[:, P:P + HW] = src
        acc = jnp.zeros((C_out, HW), jnp.float32)
        for t in range(9):
            dy, dx = t // 3, t % 3
            s = (dy - 1) * W + (dx - 1)          # flat shift of this tap
            xs = xp_ref[:, P + s:P + s + HW]     # (C_in, HW), lane-dense
            if dx == 0:                          # tap reads column x-1: mask x == 0
                xs = jnp.where(px >= 1, xs, 0.0)
            elif dx == 2:                        # tap reads column x+1: mask x == W-1
                xs = jnp.where(px <= W - 2, xs, 0.0)
            # (C_out, C_in) @ (C_in, HW) -> (C_out, HW); big dim on lanes.
            acc = acc + jnp.dot(w_ref[t], xs, preferred_element_type=jnp.float32)
        return acc + b_ref[...]                  # bias broadcast along lanes

    def lrelu_pixelnorm(a):
        a = jnp.maximum(a, slope * a)                           # LeakyReLU(0.2)
        ms = jnp.mean(a * a, axis=0, keepdims=True)             # mean over channels
        return a * lax.rsqrt(ms + eps)                          # pixel-wise norm

    x2d = x_ref[0].astype(jnp.float32)                          # (C_in, HW)
    h = lrelu_pixelnorm(conv3x3(xp1_ref, x2d, w1_ref, b1_ref))  # conv1 path
    y = lrelu_pixelnorm(conv3x3(xp2_ref, h, w2_ref, b2_ref))    # conv2 path
    o_ref[0] = y.astype(o_ref.dtype)


def g_block_forward(x, w1, b1, w2, b2, *, leaky_slope=0.2, eps=1e-8):
    """Equivalent of G_Block.forward (initial_block=False).

    x : (N, in_ch, H0, W0) float32
    w1: (out_ch, in_ch, 3, 3)   raw (un-scaled) weights, as stored by PyTorch
    b1: (out_ch,)
    w2: (out_ch, out_ch, 3, 3)
    b2: (out_ch,)
    returns (N, out_ch, 2*H0, 2*W0) float32
    """
    N, C_in, H0, W0 = x.shape
    C_out = w1.shape[0]
    H, W = 2 * H0, 2 * W0
    HW = H * W

    # Nearest-neighbour 2x upsample + flatten spatial (contiguous reshape).
    x2d = jnp.broadcast_to(
        x[:, :, :, None, :, None], (N, C_in, H0, 2, W0, 2)
    ).reshape(N, C_in, HW)

    # Fold the equalized-LR scales into the weights; reorder tap-major so the
    # kernel can slice one (C_out, C_in) matrix per tap.
    scale1 = np.sqrt(2.0 / (C_in * 9)).astype(np.float32)
    scale2 = np.sqrt(2.0 / (C_out * 9)).astype(np.float32)
    w1_t = (jnp.transpose(w1, (2, 3, 0, 1)) * scale1).reshape(9, C_out, C_in).astype(jnp.float32)
    w2_t = (jnp.transpose(w2, (2, 3, 0, 1)) * scale2).reshape(9, C_out, C_out).astype(jnp.float32)
    b1_t = b1.reshape(C_out, 1).astype(jnp.float32)
    b2_t = b2.reshape(C_out, 1).astype(jnp.float32)

    L = HW + 2 * (W + 1)      # flat-padded scratch length

    kernel = functools.partial(_g_block_kernel, H=H, W=W, slope=leaky_slope, eps=eps)

    out2d = pl.pallas_call(
        kernel,
        out_shape=jax.ShapeDtypeStruct((N, C_out, HW), x.dtype),
        grid_spec=pltpu.PrefetchScalarGridSpec(
            num_scalar_prefetch=0,
            grid=(N,),
            in_specs=[
                pl.BlockSpec((1, C_in, HW), lambda n: (n, 0, 0)),     # one sample
                pl.BlockSpec((9, C_out, C_in), lambda n: (0, 0, 0)),  # conv1 weights (resident)
                pl.BlockSpec((C_out, 1), lambda n: (0, 0)),           # conv1 bias
                pl.BlockSpec((9, C_out, C_out), lambda n: (0, 0, 0)), # conv2 weights (resident)
                pl.BlockSpec((C_out, 1), lambda n: (0, 0)),           # conv2 bias
            ],
            out_specs=pl.BlockSpec((1, C_out, HW), lambda n: (n, 0, 0)),
            scratch_shapes=[
                pltpu.VMEM((C_in, L), jnp.float32),    # padded input of conv1
                pltpu.VMEM((C_out, L), jnp.float32),   # padded input of conv2
            ],
        ),
        compiler_params=pltpu.CompilerParams(
            dimension_semantics=("parallel",)),
    )(x2d, w1_t, b1_t, w2_t, b2_t)

    return out2d.reshape(N, C_out, H, W)


def _reference(x, w1, b1, w2, b2):
    """Plain-JAX reference of G_Block.forward (no Pallas)."""
    C_in = x.shape[1]
    C_out = w1.shape[0]
    up = jnp.repeat(jnp.repeat(x, 2, axis=2), 2, axis=3)
    s1 = np.sqrt(2.0 / (C_in * 9)).astype(np.float32)
    s2 = np.sqrt(2.0 / (C_out * 9)).astype(np.float32)

    def conv(z, w, b, s):
        y = lax.conv_general_dilated(z, w * s, (1, 1), ((1, 1), (1, 1)),
                                     dimension_numbers=("NCHW", "OIHW", "NCHW"))
        return y + b.reshape(1, -1, 1, 1)

    def act(z):
        z = jnp.where(z >= 0, z, 0.2 * z)
        return z / jnp.sqrt(jnp.mean(z * z, axis=1, keepdims=True) + 1e-8)

    h = act(conv(up, w1, b1, s1))
    return act(conv(h, w2, b2, s2))


if __name__ == "__main__":
    N, in_ch, out_ch, H0, W0 = 2, 4, 8, 16, 16

    key = jax.random.PRNGKey(0)
    kx, k1, k2 = jax.random.split(key, 3)
    x = jax.random.normal(kx, (N, in_ch, H0, W0), dtype=jnp.float32)
    # nn.init.normal_ on weights, nn.init.zeros_ on biases (as in the module).
    w1 = jax.random.normal(k1, (out_ch, in_ch, 3, 3), dtype=jnp.float32)
    w2 = jax.random.normal(k2, (out_ch, out_ch, 3, 3), dtype=jnp.float32)
    b1 = jnp.zeros((out_ch,), dtype=jnp.float32)
    b2 = jnp.zeros((out_ch,), dtype=jnp.float32)

    out = g_block_forward(x, w1, b1, w2, b2)
    jax.block_until_ready(out)

    ref = _reference(x, w1, b1, w2, b2)
    np.testing.assert_allclose(np.asarray(out), np.asarray(ref), rtol=2e-3, atol=2e-3)
    assert out.shape == (N, out_ch, 2 * H0, 2 * W0)
    print("KERNEL_OK")
</pallas_src>

<mosaic_0001>
module attributes {stable_mosaic.version = 11 : i64} {
  func.func @_g_block_kernel(%arg0: i32, %arg1: memref<1x4x1024xf32, #tpu.memory_space<vmem>>, %arg2: memref<9x8x4xf32, #tpu.memory_space<vmem>>, %arg3: memref<8x1xf32, #tpu.memory_space<vmem>>, %arg4: memref<9x8x8xf32, #tpu.memory_space<vmem>>, %arg5: memref<8x1xf32, #tpu.memory_space<vmem>>, %arg6: memref<1x8x1024xf32, #tpu.memory_space<vmem>>, %arg7: memref<4x1090xf32, #tpu.memory_space<vmem>>, %arg8: memref<8x1090xf32, #tpu.memory_space<vmem>>) attributes {dimension_semantics = [#tpu.dimension_semantics<parallel>], iteration_bounds = array<i64: 2>, scalar_prefetch = 0 : i64, scratch_operands = 2 : i64, tpu.core_type = #tpu.core_type<tc>, window_params = [{transform_indices = @transform_0, window_bounds = array<i64: 1, 4, 1024>}, {pipeline_mode = #tpu.pipeline_mode<synchronous>, transform_indices = @transform_1, window_bounds = array<i64: 9, 8, 4>}, {pipeline_mode = #tpu.pipeline_mode<synchronous>, transform_indices = @transform_2, window_bounds = array<i64: 8, 1>}, {pipeline_mode = #tpu.pipeline_mode<synchronous>, transform_indices = @transform_3, window_bounds = array<i64: 9, 8, 8>}, {pipeline_mode = #tpu.pipeline_mode<synchronous>, transform_indices = @transform_4, window_bounds = array<i64: 8, 1>}, {transform_indices = @transform_5, window_bounds = array<i64: 1, 8, 1024>}]} {
    %0 = tpu.iota {dimensions = array<i32: 1>} : vector<1x1024xi32>
    %c32_i32 = arith.constant 32 : i32
    %c0_i32 = arith.constant 0 : i32
    %1 = arith.cmpi eq, %c32_i32, %c0_i32 : i32
    %c1_i32 = arith.constant 1 : i32
    %2 = arith.select %1, %c1_i32, %c32_i32 : i32
    %3 = vector.broadcast %2 : i32 to vector<1x1024xi32>
    %4 = arith.remsi %0, %3 : vector<1x1024xi32>
    %c0_i32_0 = arith.constant 0 : i32
    %5 = vector.broadcast %c0_i32_0 : i32 to vector<1x1024xi32>
    %6 = arith.cmpi ne, %4, %5 : vector<1x1024xi32>
    %c0_i32_1 = arith.constant 0 : i32
    %7 = vector.broadcast %c0_i32_1 : i32 to vector<1x1024xi32>
    %8 = arith.cmpi slt, %4, %7 : vector<1x1024xi32>
    %c0_i32_2 = arith.constant 0 : i32
    %9 = arith.cmpi slt, %2, %c0_i32_2 : i32
    %10 = vector.broadcast %9 : i1 to vector<1x1024xi1>
    %11 = vector.broadcast %10 : vector<1x1024xi1> to vector<1x1024xi1>
    %12 = arith.xori %8, %11 : vector<1x1024xi1>
    %13 = arith.andi %12, %6 : vector<1x1024xi1>
    %14 = vector.broadcast %2 : i32 to vector<1x1024xi32>
    %15 = arith.addi %4, %14 : vector<1x1024xi32>
    %16 = arith.select %13, %15, %4 : vector<1x1024xi1>, vector<1x1024xi32>
    %c0 = arith.constant 0 : index
    %c0_3 = arith.constant 0 : index
    %c0_4 = arith.constant 0 : index
    %17 = vector.load %arg1[%c0, %c0_3, %c0_4] : memref<1x4x1024xf32, #tpu.memory_space<vmem>>, vector<1x4x1024xf32>
    %18 = vector.shape_cast %17 : vector<1x4x1024xf32> to vector<4x1024xf32>
    %cst = arith.constant 0.000000e+00 : f32
    %19 = vector.broadcast %cst : f32 to vector<4x1090xf32>
    %c0_5 = arith.constant 0 : index
    %c0_6 = arith.constant 0 : index
    %20 = vector.load %arg7[%c0_5, %c0_6] : memref<4x1090xf32, #tpu.memory_space<vmem>>, vector<4x1090xf32>
    tpu.vector_store %arg7[%c0_5, %c0_6], %19 {strides = array<i32>} : memref<4x1090xf32, #tpu.memory_space<vmem>>, vector<4x1090xf32>,
    %c0_7 = arith.constant 0 : index
    %c33 = arith.constant 33 : index
    %21 = vector.load %arg7[%c0_7, %c33] : memref<4x1090xf32, #tpu.memory_space<vmem>>, vector<4x1024xf32>
    tpu.vector_store %arg7[%c0_7, %c33], %18 {strides = array<i32>} : memref<4x1090xf32, #tpu.memory_space<vmem>>, vector<4x1024xf32>,
    %cst_8 = arith.constant 0.000000e+00 : f32
    %22 = vector.broadcast %cst_8 : f32 to vector<8x1024xf32>
    %c0_9 = arith.constant 0 : index
    %c0_10 = arith.constant 0 : index
    %23 = vector.load %arg7[%c0_9, %c0_10] : memref<4x1090xf32, #tpu.memory_space<vmem>>, vector<4x1024xf32>
    %c1_i32_11 = arith.constant 1 : i32
    %24 = vector.broadcast %c1_i32_11 : i32 to vector<1x1024xi32>
    %25 = arith.cmpi sge, %16, %24 : vector<1x1024xi32>
    %cst_12 = arith.constant 0.000000e+00 : f32
    %26 = vector.shape_cast %25 : vector<1x1024xi1> to vector<1x1024xi1>
    %27 = vector.broadcast %26 : vector<1x1024xi1> to vector<4x1024xi1>
    %28 = vector.broadcast %cst_12 : f32 to vector<4x1024xf32>
    %29 = arith.select %27, %23, %28 : vector<4x1024xi1>, vector<4x1024xf32>
    %c0_13 = arith.constant 0 : index
    %c0_14 = arith.constant 0 : index
    %c0_15 = arith.constant 0 : index
    %30 = vector.load %arg2[%c0_13, %c0_14, %c0_15] : memref<9x8x4xf32, #tpu.memory_space<vmem>>, vector<1x8x4xf32>
    %31 = vector.shape_cast %30 : vector<1x8x4xf32> to vector<8x4xf32>
    %cst_16 = arith.constant dense<0.000000e+00> : vector<8x1024xf32>
    %32 = tpu.matmul %31, %29, %cst_16 {dimension_numbers = #tpu.dot_dimension_numbers<[1], [0], [0], [1], [0, 0, 1, 1], [], []>} : vector<8x4xf32>, vector<4x1024xf32>, vector<8x1024xf32> -> vector<8x1024xf32>
    %33 = arith.addf %22, %32 : vector<8x1024xf32>
    %c0_17 = arith.constant 0 : index
    %c1 = arith.constant 1 : index
    %34 = vector.load %arg7[%c0_17, %c1] : memref<4x1090xf32, #tpu.memory_space<vmem>>, vector<4x1024xf32>
    %c1_18 = arith.constant 1 : index
    %c0_19 = arith.constant 0 : index
    %c0_20 = arith.constant 0 : index
    %35 = vector.load %arg2[%c1_18, %c0_19, %c0_20] : memref<9x8x4xf32, #tpu.memory_space<vmem>>, vector<1x8x4xf32>
    %36 = vector.shape_cast %35 : vector<1x8x4xf32> to vector<8x4xf32>
    %cst_21 = arith.constant dense<0.000000e+00> : vector<8x1024xf32>
    %37 = tpu.matmul %36, %34, %cst_21 {dimension_numbers = #tpu.dot_dimension_numbers<[1], [0], [0], [1], [0, 0, 1, 1], [], []>} : vector<8x4xf32>, vector<4x1024xf32>, vector<8x1024xf32> -> vector<8x1024xf32>
    %38 = arith.addf %33, %37 : vector<8x1024xf32>
    %c0_22 = arith.constant 0 : index
    %c2 = arith.constant 2 : index
    %39 = vector.load %arg7[%c0_22, %c2] : memref<4x1090xf32, #tpu.memory_space<vmem>>, vector<4x1024xf32>
    %c30_i32 = arith.constant 30 : i32
    %40 = vector.broadcast %c30_i32 : i32 to vector<1x1024xi32>
    %41 = arith.cmpi sle, %16, %40 : vector<1x1024xi32>
    %cst_23 = arith.constant 0.000000e+00 : f32
    %42 = vector.shape_cast %41 : vector<1x1024xi1> to vector<1x1024xi1>
    %43 = vector.broadcast %42 : vector<1x1024xi1> to vector<4x1024xi1>
    %44 = vector.broadcast %cst_23 : f32 to vector<4x1024xf32>
    %45 = arith.select %43, %39, %44 : vector<4x1024xi1>, vector<4x1024xf32>
    %c2_24 = arith.constant 2 : index
    %c0_25 = arith.constant 0 : index
    %c0_26 = arith.constant 0 : index
    %46 = vector.load %arg2[%c2_24, %c0_25, %c0_26] : memref<9x8x4xf32, #tpu.memory_space<vmem>>, vector<1x8x4xf32>
    %47 = vector.shape_cast %46 : vector<1x8x4xf32> to vector<8x4xf32>
    %cst_27 = arith.constant dense<0.000000e+00> : vector<8x1024xf32>
    %48 = tpu.matmul %47, %45, %cst_27 {dimension_numbers = #tpu.dot_dimension_numbers<[1], [0], [0], [1], [0, 0, 1, 1], [], []>} : vector<8x4xf32>, vector<4x1024xf32>, vector<8x1024xf32> -> vector<8x1024xf32>
    %49 = arith.addf %38, %48 : vector<8x1024xf32>
    %c0_28 = arith.constant 0 : index
    %c32 = arith.constant 32 : index
    %50 = vector.load %arg7[%c0_28, %c32] : memref<4x1090xf32, #tpu.memory_space<vmem>>, vector<4x1024xf32>
    %c1_i32_29 = arith.constant 1 : i32
    %51 = vector.broadcast %c1_i32_29 : i32 to vector<1x1024xi32>
    %52 = arith.cmpi sge, %16, %51 : vector<1x1024xi32>
    %cst_30 = arith.constant 0.000000e+00 : f32
    %53 = vector.shape_cast %52 : vector<1x1024xi1> to vector<1x1024xi1>
    %54 = vector.broadcast %53 : vector<1x1024xi1> to vector<4x1024xi1>
    %55 = vector.broadcast %cst_30 : f32 to vector<4x1024xf32>
    %56 = arith.select %54, %50, %55 : vector<4x1024xi1>, vector<4x1024xf32>
    %c3 = arith.constant 3 : index
    %c0_31 = arith.constant 0 : index
    %c0_32 = arith.constant 0 : index
    %57 = vector.load %arg2[%c3, %c0_31, %c0_32] : memref<9x8x4xf32, #tpu.memory_space<vmem>>, vector<1x8x4xf32>
    %58 = vector.shape_cast %57 : vector<1x8x4xf32> to vector<8x4xf32>
    %cst_33 = arith.constant dense<0.000000e+00> : vector<8x1024xf32>
    %59 = tpu.matmul %58, %56, %cst_33 {dimension_numbers = #tpu.dot_dimension_numbers<[1], [0], [0], [1], [0, 0, 1, 1], [], []>} : vector<8x4xf32>, vector<4x1024xf32>, vector<8x1024xf32> -> vector<8x1024xf32>
    %60 = arith.addf %49, %59 : vector<8x1024xf32>
    %c0_34 = arith.constant 0 : index
    %c33_35 = arith.constant 33 : index
    %61 = vector.load %arg7[%c0_34, %c33_35] : memref<4x1090xf32, #tpu.memory_space<vmem>>, vector<4x1024xf32>
    %c4 = arith.constant 4 : index
    %c0_36 = arith.constant 0 : index
    %c0_37 = arith.constant 0 : index
    %62 = vector.load %arg2[%c4, %c0_36, %c0_37] : memref<9x8x4xf32, #tpu.memory_space<vmem>>, vector<1x8x4xf32>
    %63 = vector.shape_cast %62 : vector<1x8x4xf32> to vector<8x4xf32>
    %cst_38 = arith.constant dense<0.000000e+00> : vector<8x1024xf32>
    %64 = tpu.matmul %63, %61, %cst_38 {dimension_numbers = #tpu.dot_dimension_numbers<[1], [0], [0], [1], [0, 0, 1, 1], [], []>} : vector<8x4xf32>, vector<4x1024xf32>, vector<8x1024xf32> -> vector<8x1024xf32>
    %65 = arith.addf %60, %64 : vector<8x1024xf32>
    %c0_39 = arith.constant 0 : index
    %c34 = arith.constant 34 : index
    %66 = vector.load %arg7[%c0_39, %c34] : memref<4x1090xf32, #tpu.memory_space<vmem>>, vector<4x1024xf32>
    %c30_i32_40 = arith.constant 30 : i32
    %67 = vector.broadcast %c30_i32_40 : i32 to vector<1x1024xi32>
    %68 = arith.cmpi sle, %16, %67 : vector<1x1024xi32>
    %cst_41 = arith.constant 0.000000e+00 : f32
    %69 = vector.shape_cast %68 : vector<1x1024xi1> to vector<1x1024xi1>
    %70 = vector.broadcast %69 : vector<1x1024xi1> to vector<4x1024xi1>
    %71 = vector.broadcast %cst_41 : f32 to vector<4x1024xf32>
    %72 = arith.select %70, %66, %71 : vector<4x1024xi1>, vector<4x1024xf32>
    %c5 = arith.constant 5 : index
    %c0_42 = arith.constant 0 : index
    %c0_43 = arith.constant 0 : index
    %73 = vector.load %arg2[%c5, %c0_42, %c0_43] : memref<9x8x4xf32, #tpu.memory_space<vmem>>, vector<1x8x4xf32>
    %74 = vector.shape_cast %73 : vector<1x8x4xf32> to vector<8x4xf32>
    %cst_44 = arith.constant dense<0.000000e+00> : vector<8x1024xf32>
    %75 = tpu.matmul %74, %72, %cst_44 {dimension_numbers = #tpu.dot_dimension_numbers<[1], [0], [0], [1], [0, 0, 1, 1], [], []>} : vector<8x4xf32>, vector<4x1024xf32>, vector<8x1024xf32> -> vector<8x1024xf32>
    %76 = arith.addf %65, %75 : vector<8x1024xf32>
    %c0_45 = arith.constant 0 : index
    %c64 = arith.constant 64 : index
    %77 = vector.load %arg7[%c0_45, %c64] : memref<4x1090xf32, #tpu.memory_space<vmem>>, vector<4x1024xf32>
    %c1_i32_46 = arith.constant 1 : i32
    %78 = vector.broadcast %c1_i32_46 : i32 to vector<1x1024xi32>
    %79 = arith.cmpi sge, %16, %78 : vector<1x1024xi32>
    %cst_47 = arith.constant 0.000000e+00 : f32
    %80 = vector.shape_cast %79 : vector<1x1024xi1> to vector<1x1024xi1>
    %81 = vector.broadcast %80 : vector<1x1024xi1> to vector<4x1024xi1>
    %82 = vector.broadcast %cst_47 : f32 to vector<4x1024xf32>
    %83 = arith.select %81, %77, %82 : vector<4x1024xi1>, vector<4x1024xf32>
    %c6 = arith.constant 6 : index
    %c0_48 = arith.constant 0 : index
    %c0_49 = arith.constant 0 : index
    %84 = vector.load %arg2[%c6, %c0_48, %c0_49] : memref<9x8x4xf32, #tpu.memory_space<vmem>>, vector<1x8x4xf32>
    %85 = vector.shape_cast %84 : vector<1x8x4xf32> to vector<8x4xf32>
    %cst_50 = arith.constant dense<0.000000e+00> : vector<8x1024xf32>
    %86 = tpu.matmul %85, %83, %cst_50 {dimension_numbers = #tpu.dot_dimension_numbers<[1], [0], [0], [1], [0, 0, 1, 1], [], []>} : vector<8x4xf32>, vector<4x1024xf32>, vector<8x1024xf32> -> vector<8x1024xf32>
    %87 = arith.addf %76, %86 : vector<8x1024xf32>
    %c0_51 = arith.constant 0 : index
    %c65 = arith.constant 65 : index
    %88 = vector.load %arg7[%c0_51, %c65] : memref<4x1090xf32, #tpu.memory_space<vmem>>, vector<4x1024xf32>
    %c7 = arith.constant 7 : index
    %c0_52 = arith.constant 0 : index
    %c0_53 = arith.constant 0 : index
    %89 = vector.load %arg2[%c7, %c0_52, %c0_53] : memref<9x8x4xf32, #tpu.memory_space<vmem>>, vector<1x8x4xf32>
    %90 = vector.shape_cast %89 : vector<1x8x4xf32> to vector<8x4xf32>
    %cst_54 = arith.constant dense<0.000000e+00> : vector<8x1024xf32>
    %91 = tpu.matmul %90, %88, %cst_54 {dimension_numbers = #tpu.dot_dimension_numbers<[1], [0], [0], [1], [0, 0, 1, 1], [], []>} : vector<8x4xf32>, vector<4x1024xf32>, vector<8x1024xf32> -> vector<8x1024xf32>
    %92 = arith.addf %87, %91 : vector<8x1024xf32>
    %c0_55 = arith.constant 0 : index
    %c66 = arith.constant 66 : index
    %93 = vector.load %arg7[%c0_55, %c66] : memref<4x1090xf32, #tpu.memory_space<vmem>>, vector<4x1024xf32>
    %c30_i32_56 = arith.constant 30 : i32
    %94 = vector.broadcast %c30_i32_56 : i32 to vector<1x1024xi32>
    %95 = arith.cmpi sle, %16, %94 : vector<1x1024xi32>
    %cst_57 = arith.constant 0.000000e+00 : f32
    %96 = vector.shape_cast %95 : vector<1x1024xi1> to vector<1x1024xi1>
    %97 = vector.broadcast %96 : vector<1x1024xi1> to vector<4x1024xi1>
    %98 = vector.broadcast %cst_57 : f32 to vector<4x1024xf32>
    %99 = arith.select %97, %93, %98 : vector<4x1024xi1>, vector<4x1024xf32>
    %c8 = arith.constant 8 : index
    %c0_58 = arith.constant 0 : index
    %c0_59 = arith.constant 0 : index
    %100 = vector.load %arg2[%c8, %c0_58, %c0_59] : memref<9x8x4xf32, #tpu.memory_space<vmem>>, vector<1x8x4xf32>
    %101 = vector.shape_cast %100 : vector<1x8x4xf32> to vector<8x4xf32>
    %cst_60 = arith.constant dense<0.000000e+00> : vector<8x1024xf32>
    %102 = tpu.matmul %101, %99, %cst_60 {dimension_numbers = #tpu.dot_dimension_numbers<[1], [0], [0], [1], [0, 0, 1, 1], [], []>} : vector<8x4xf32>, vector<4x1024xf32>, vector<8x1024xf32> -> vector<8x1024xf32>
    %103 = arith.addf %92, %102 : vector<8x1024xf32>
    %c0_61 = arith.constant 0 : index
    %c0_62 = arith.constant 0 : index
    %104 = vector.load %arg3[%c0_61, %c0_62] : memref<8x1xf32, #tpu.memory_space<vmem>>, vector<8x1xf32>
    %105 = vector.broadcast %104 : vector<8x1xf32> to vector<8x1024xf32>
    %106 = arith.addf %103, %105 : vector<8x1024xf32>
    %cst_63 = arith.constant 2.000000e-01 : f32
    %107 = vector.broadcast %cst_63 : f32 to vector<8x1024xf32>
    %108 = arith.mulf %107, %106 : vector<8x1024xf32>
    %109 = arith.maximumf %106, %108 : vector<8x1024xf32>
    %110 = arith.mulf %109, %109 : vector<8x1024xf32>
    %cst_64 = arith.constant dense<0.000000e+00> : vector<1024xf32>
    %111 = vector.multi_reduction <add>, %110, %cst_64 [0] : vector<8x1024xf32> to vector<1024xf32>
    %112 = vector.shape_cast %111 : vector<1024xf32> to vector<1x1024xf32>
    %cst_65 = arith.constant 8.000000e+00 : f32
    %113 = vector.broadcast %cst_65 : f32 to vector<1x1024xf32>
    %114 = arith.divf %112, %113 : vector<1x1024xf32>
    %cst_66 = arith.constant 9.99999993E-9 : f32
    %115 = vector.broadcast %cst_66 : f32 to vector<1x1024xf32>
    %116 = arith.addf %114, %115 : vector<1x1024xf32>
    %117 = math.rsqrt %116 : vector<1x1024xf32>
    %118 = vector.broadcast %117 : vector<1x1024xf32> to vector<8x1024xf32>
    %119 = arith.mulf %109, %118 : vector<8x1024xf32>
    %cst_67 = arith.constant 0.000000e+00 : f32
    %120 = vector.broadcast %cst_67 : f32 to vector<8x1090xf32>
    %c0_68 = arith.constant 0 : index
    %c0_69 = arith.constant 0 : index
    %121 = vector.load %arg8[%c0_68, %c0_69] : memref<8x1090xf32, #tpu.memory_space<vmem>>, vector<8x1090xf32>
    tpu.vector_store %arg8[%c0_68, %c0_69], %120 {strides = array<i32>} : memref<8x1090xf32, #tpu.memory_space<vmem>>, vector<8x1090xf32>,
    %c0_70 = arith.constant 0 : index
    %c33_71 = arith.constant 33 : index
    %122 = vector.load %arg8[%c0_70, %c33_71] : memref<8x1090xf32, #tpu.memory_space<vmem>>, vector<8x1024xf32>
    tpu.vector_store %arg8[%c0_70, %c33_71], %119 {strides = array<i32>} : memref<8x1090xf32, #tpu.memory_space<vmem>>, vector<8x1024xf32>,
    %cst_72 = arith.constant 0.000000e+00 : f32
    %123 = vector.broadcast %cst_72 : f32 to vector<8x1024xf32>
    %c0_73 = arith.constant 0 : index
    %c0_74 = arith.constant 0 : index
    %124 = vector.load %arg8[%c0_73, %c0_74] : memref<8x1090xf32, #tpu.memory_space<vmem>>, vector<8x1024xf32>
    %c1_i32_75 = arith.constant 1 : i32
    %125 = vector.broadcast %c1_i32_75 : i32 to vector<1x1024xi32>
    %126 = arith.cmpi sge, %16, %125 : vector<1x1024xi32>
    %cst_76 = arith.constant 0.000000e+00 : f32
    %127 = vector.shape_cast %126 : vector<1x1024xi1> to vector<1x1024xi1>
    %128 = vector.broadcast %127 : vector<1x1024xi1> to vector<8x1024xi1>
    %129 = vector.broadcast %cst_76 : f32 to vector<8x1024xf32>
    %130 = arith.select %128, %124, %129 : vector<8x1024xi1>, vector<8x1024xf32>
    %c0_77 = arith.constant 0 : index
    %c0_78 = arith.constant 0 : index
    %c0_79 = arith.constant 0 : index
    %131 = vector.load %arg4[%c0_77, %c0_78, %c0_79] : memref<9x8x8xf32, #tpu.memory_space<vmem>>, vector<1x8x8xf32>
    %132 = vector.shape_cast %131 : vector<1x8x8xf32> to vector<8x8xf32>
    %cst_80 = arith.constant dense<0.000000e+00> : vector<8x1024xf32>
    %133 = tpu.matmul %132, %130, %cst_80 {dimension_numbers = #tpu.dot_dimension_numbers<[1], [0], [0], [1], [0, 0, 1, 1], [], []>} : vector<8x8xf32>, vector<8x1024xf32>, vector<8x1024xf32> -> vector<8x1024xf32>
    %134 = arith.addf %123, %133 : vector<8x1024xf32>
    %c0_81 = arith.constant 0 : index
    %c1_82 = arith.constant 1 : index
    %135 = vector.load %arg8[%c0_81, %c1_82] : memref<8x1090xf32, #tpu.memory_space<vmem>>, vector<8x1024xf32>
    %c1_83 = arith.constant 1 : index
    %c0_84 = arith.constant 0 : index
    %c0_85 = arith.constant 0 : index
    %136 = vector.load %arg4[%c1_83, %c0_84, %c0_85] : memref<9x8x8xf32, #tpu.memory_space<vmem>>, vector<1x8x8xf32>
    %137 = vector.shape_cast %136 : vector<1x8x8xf32> to vector<8x8xf32>
    %cst_86 = arith.constant dense<0.000000e+00> : vector<8x1024xf32>
    %138 = tpu.matmul %137, %135, %cst_86 {dimension_numbers = #tpu.dot_dimension_numbers<[1], [0], [0], [1], [0, 0, 1, 1], [], []>} : vector<8x8xf32>, vector<8x1024xf32>, vector<8x1024xf32> -> vector<8x1024xf32>
    %139 = arith.addf %134, %138 : vector<8x1024xf32>
    %c0_87 = arith.constant 0 : index
    %c2_88 = arith.constant 2 : index
    %140 = vector.load %arg8[%c0_87, %c2_88] : memref<8x1090xf32, #tpu.memory_space<vmem>>, vector<8x1024xf32>
    %c30_i32_89 = arith.constant 30 : i32
    %141 = vector.broadcast %c30_i32_89 : i32 to vector<1x1024xi32>
    %142 = arith.cmpi sle, %16, %141 : vector<1x1024xi32>
    %cst_90 = arith.constant 0.000000e+00 : f32
    %143 = vector.shape_cast %142 : vector<1x1024xi1> to vector<1x1024xi1>
    %144 = vector.broadcast %143 : vector<1x1024xi1> to vector<8x1024xi1>
    %145 = vector.broadcast %cst_90 : f32 to vector<8x1024xf32>
    %146 = arith.select %144, %140, %145 : vector<8x1024xi1>, vector<8x1024xf32>
    %c2_91 = arith.constant 2 : index
    %c0_92 = arith.constant 0 : index
    %c0_93 = arith.constant 0 : index
    %147 = vector.load %arg4[%c2_91, %c0_92, %c0_93] : memref<9x8x8xf32, #tpu.memory_space<vmem>>, vector<1x8x8xf32>
    %148 = vector.shape_cast %147 : vector<1x8x8xf32> to vector<8x8xf32>
    %cst_94 = arith.constant dense<0.000000e+00> : vector<8x1024xf32>
    %149 = tpu.matmul %148, %146, %cst_94 {dimension_numbers = #tpu.dot_dimension_numbers<[1], [0], [0], [1], [0, 0, 1, 1], [], []>} : vector<8x8xf32>, vector<8x1024xf32>, vector<8x1024xf32> -> vector<8x1024xf32>
    %150 = arith.addf %139, %149 : vector<8x1024xf32>
    %c0_95 = arith.constant 0 : index
    %c32_96 = arith.constant 32 : index
    %151 = vector.load %arg8[%c0_95, %c32_96] : memref<8x1090xf32, #tpu.memory_space<vmem>>, vector<8x1024xf32>
    %c1_i32_97 = arith.constant 1 : i32
    %152 = vector.broadcast %c1_i32_97 : i32 to vector<1x1024xi32>
    %153 = arith.cmpi sge, %16, %152 : vector<1x1024xi32>
    %cst_98 = arith.constant 0.000000e+00 : f32
    %154 = vector.shape_cast %153 : vector<1x1024xi1> to vector<1x1024xi1>
    %155 = vector.broadcast %154 : vector<1x1024xi1> to vector<8x1024xi1>
    %156 = vector.broadcast %cst_98 : f32 to vector<8x1024xf32>
    %157 = arith.select %155, %151, %156 : vector<8x1024xi1>, vector<8x1024xf32>
    %c3_99 = arith.constant 3 : index
    %c0_100 = arith.constant 0 : index
    %c0_101 = arith.constant 0 : index
    %158 = vector.load %arg4[%c3_99, %c0_100, %c0_101] : memref<9x8x8xf32, #tpu.memory_space<vmem>>, vector<1x8x8xf32>
    %159 = vector.shape_cast %158 : vector<1x8x8xf32> to vector<8x8xf32>
    %cst_102 = arith.constant dense<0.000000e+00> : vector<8x1024xf32>
    %160 = tpu.matmul %159, %157, %cst_102 {dimension_numbers = #tpu.dot_dimension_numbers<[1], [0], [0], [1], [0, 0, 1, 1], [], []>} : vector<8x8xf32>, vector<8x1024xf32>, vector<8x1024xf32> -> vector<8x1024xf32>
    %161 = arith.addf %150, %160 : vector<8x1024xf32>
    %c0_103 = arith.constant 0 : index
    %c33_104 = arith.constant 33 : index
    %162 = vector.load %arg8[%c0_103, %c33_104] : memref<8x1090xf32, #tpu.memory_space<vmem>>, vector<8x1024xf32>
    %c4_105 = arith.constant 4 : index
    %c0_106 = arith.constant 0 : index
    %c0_107 = arith.constant 0 : index
    %163 = vector.load %arg4[%c4_105, %c0_106, %c0_107] : memref<9x8x8xf32, #tpu.memory_space<vmem>>, vector<1x8x8xf32>
    %164 = vector.shape_cast %163 : vector<1x8x8xf32> to vector<8x8xf32>
    %cst_108 = arith.constant dense<0.000000e+00> : vector<8x1024xf32>
    %165 = tpu.matmul %164, %162, %cst_108 {dimension_numbers = #tpu.dot_dimension_numbers<[1], [0], [0], [1], [0, 0, 1, 1], [], []>} : vector<8x8xf32>, vector<8x1024xf32>, vector<8x1024xf32> -> vector<8x1024xf32>
    %166 = arith.addf %161, %165 : vector<8x1024xf32>
    %c0_109 = arith.constant 0 : index
    %c34_110 = arith.constant 34 : index
    %167 = vector.load %arg8[%c0_109, %c34_110] : memref<8x1090xf32, #tpu.memory_space<vmem>>, vector<8x1024xf32>
    %c30_i32_111 = arith.constant 30 : i32
    %168 = vector.broadcast %c30_i32_111 : i32 to vector<1x1024xi32>
    %169 = arith.cmpi sle, %16, %168 : vector<1x1024xi32>
    %cst_112 = arith.constant 0.000000e+00 : f32
    %170 = vector.shape_cast %169 : vector<1x1024xi1> to vector<1x1024xi1>
    %171 = vector.broadcast %170 : vector<1x1024xi1> to vector<8x1024xi1>
    %172 = vector.broadcast %cst_112 : f32 to vector<8x1024xf32>
    %173 = arith.select %171, %167, %172 : vector<8x1024xi1>, vector<8x1024xf32>
    %c5_113 = arith.constant 5 : index
    %c0_114 = arith.constant 0 : index
    %c0_115 = arith.constant 0 : index
    %174 = vector.load %arg4[%c5_113, %c0_114, %c0_115] : memref<9x8x8xf32, #tpu.memory_space<vmem>>, vector<1x8x8xf32>
    %175 = vector.shape_cast %174 : vector<1x8x8xf32> to vector<8x8xf32>
    %cst_116 = arith.constant dense<0.000000e+00> : vector<8x1024xf32>
    %176 = tpu.matmul %175, %173, %cst_116 {dimension_numbers = #tpu.dot_dimension_numbers<[1], [0], [0], [1], [0, 0, 1, 1], [], []>} : vector<8x8xf32>, vector<8x1024xf32>, vector<8x1024xf32> -> vector<8x1024xf32>
    %177 = arith.addf %166, %176 : vector<8x1024xf32>
    %c0_117 = arith.constant 0 : index
    %c64_118 = arith.constant 64 : index
    %178 = vector.load %arg8[%c0_117, %c64_118] : memref<8x1090xf32, #tpu.memory_space<vmem>>, vector<8x1024xf32>
    %c1_i32_119 = arith.constant 1 : i32
    %179 = vector.broadcast %c1_i32_119 : i32 to vector<1x1024xi32>
    %180 = arith.cmpi sge, %16, %179 : vector<1x1024xi32>
    %cst_120 = arith.constant 0.000000e+00 : f32
    %181 = vector.shape_cast %180 : vector<1x1024xi1> to vector<1x1024xi1>
    %182 = vector.broadcast %181 : vector<1x1024xi1> to vector<8x1024xi1>
    %183 = vector.broadcast %cst_120 : f32 to vector<8x1024xf32>
    %184 = arith.select %182, %178, %183 : vector<8x1024xi1>, vector<8x1024xf32>
    %c6_121 = arith.constant 6 : index
    %c0_122 = arith.constant 0 : index
    %c0_123 = arith.constant 0 : index
    %185 = vector.load %arg4[%c6_121, %c0_122, %c0_123] : memref<9x8x8xf32, #tpu.memory_space<vmem>>, vector<1x8x8xf32>
    %186 = vector.shape_cast %185 : vector<1x8x8xf32> to vector<8x8xf32>
    %cst_124 = arith.constant dense<0.000000e+00> : vector<8x1024xf32>
    %187 = tpu.matmul %186, %184, %cst_124 {dimension_numbers = #tpu.dot_dimension_numbers<[1], [0], [0], [1], [0, 0, 1, 1], [], []>} : vector<8x8xf32>, vector<8x1024xf32>, vector<8x1024xf32> -> vector<8x1024xf32>
    %188 = arith.addf %177, %187 : vector<8x1024xf32>
    %c0_125 = arith.constant 0 : index
    %c65_126 = arith.constant 65 : index
    %189 = vector.load %arg8[%c0_125, %c65_126] : memref<8x1090xf32, #tpu.memory_space<vmem>>, vector<8x1024xf32>
    %c7_127 = arith.constant 7 : index
    %c0_128 = arith.constant 0 : index
    %c0_129 = arith.constant 0 : index
    %190 = vector.load %arg4[%c7_127, %c0_128, %c0_129] : memref<9x8x8xf32, #tpu.memory_space<vmem>>, vector<1x8x8xf32>
    %191 = vector.shape_cast %190 : vector<1x8x8xf32> to vector<8x8xf32>
    %cst_130 = arith.constant dense<0.000000e+00> : vector<8x1024xf32>
    %192 = tpu.matmul %191, %189, %cst_130 {dimension_numbers = #tpu.dot_dimension_numbers<[1], [0], [0], [1], [0, 0, 1, 1], [], []>} : vector<8x8xf32>, vector<8x1024xf32>, vector<8x1024xf32> -> vector<8x1024xf32>
    %193 = arith.addf %188, %192 : vector<8x1024xf32>
    %c0_131 = arith.constant 0 : index
    %c66_132 = arith.constant 66 : index
    %194 = vector.load %arg8[%c0_131, %c66_132] : memref<8x1090xf32, #tpu.memory_space<vmem>>, vector<8x1024xf32>
    %c30_i32_133 = arith.constant 30 : i32
    %195 = vector.broadcast %c30_i32_133 : i32 to vector<1x1024xi32>
    %196 = arith.cmpi sle, %16, %195 : vector<1x1024xi32>
    %cst_134 = arith.constant 0.000000e+00 : f32
    %197 = vector.shape_cast %196 : vector<1x1024xi1> to vector<1x1024xi1>
    %198 = vector.broadcast %197 : vector<1x1024xi1> to vector<8x1024xi1>
    %199 = vector.broadcast %cst_134 : f32 to vector<8x1024xf32>
    %200 = arith.select %198, %194, %199 : vector<8x1024xi1>, vector<8x1024xf32>
    %c8_135 = arith.constant 8 : index
    %c0_136 = arith.constant 0 : index
    %c0_137 = arith.constant 0 : index
    %201 = vector.load %arg4[%c8_135, %c0_136, %c0_137] : memref<9x8x8xf32, #tpu.memory_space<vmem>>, vector<1x8x8xf32>
    %202 = vector.shape_cast %201 : vector<1x8x8xf32> to vector<8x8xf32>
    %cst_138 = arith.constant dense<0.000000e+00> : vector<8x1024xf32>
    %203 = tpu.matmul %202, %200, %cst_138 {dimension_numbers = #tpu.dot_dimension_numbers<[1], [0], [0], [1], [0, 0, 1, 1], [], []>} : vector<8x8xf32>, vector<8x1024xf32>, vector<8x1024xf32> -> vector<8x1024xf32>
    %204 = arith.addf %193, %203 : vector<8x1024xf32>
    %c0_139 = arith.constant 0 : index
    %c0_140 = arith.constant 0 : index
    %205 = vector.load %arg5[%c0_139, %c0_140] : memref<8x1xf32, #tpu.memory_space<vmem>>, vector<8x1xf32>
    %206 = vector.broadcast %205 : vector<8x1xf32> to vector<8x1024xf32>
    %207 = arith.addf %204, %206 : vector<8x1024xf32>
    %cst_141 = arith.constant 2.000000e-01 : f32
    %208 = vector.broadcast %cst_141 : f32 to vector<8x1024xf32>
    %209 = arith.mulf %208, %207 : vector<8x1024xf32>
    %210 = arith.maximumf %207, %209 : vector<8x1024xf32>
    %211 = arith.mulf %210, %210 : vector<8x1024xf32>
    %cst_142 = arith.constant dense<0.000000e+00> : vector<1024xf32>
    %212 = vector.multi_reduction <add>, %211, %cst_142 [0] : vector<8x1024xf32> to vector<1024xf32>
    %213 = vector.shape_cast %212 : vector<1024xf32> to vector<1x1024xf32>
    %cst_143 = arith.constant 8.000000e+00 : f32
    %214 = vector.broadcast %cst_143 : f32 to vector<1x1024xf32>
    %215 = arith.divf %213, %214 : vector<1x1024xf32>
    %cst_144 = arith.constant 9.99999993E-9 : f32
    %216 = vector.broadcast %cst_144 : f32 to vector<1x1024xf32>
    %217 = arith.addf %215, %216 : vector<1x1024xf32>
    %218 = math.rsqrt %217 : vector<1x1024xf32>
    %219 = vector.broadcast %218 : vector<1x1024xf32> to vector<8x1024xf32>
    %220 = arith.mulf %210, %219 : vector<8x1024xf32>
    %c0_145 = arith.constant 0 : index
    %c0_146 = arith.constant 0 : index
    %c0_147 = arith.constant 0 : index
    %221 = vector.load %arg6[%c0_145, %c0_146, %c0_147] : memref<1x8x1024xf32, #tpu.memory_space<vmem>>, vector<1x8x1024xf32>
    %222 = vector.shape_cast %221 : vector<1x8x1024xf32> to vector<8x1024xf32>
    %223 = vector.shape_cast %220 : vector<8x1024xf32> to vector<1x8x1024xf32>
    tpu.vector_store %arg6[%c0_145, %c0_146, %c0_147], %223 {strides = array<i32>} : memref<1x8x1024xf32, #tpu.memory_space<vmem>>, vector<1x8x1024xf32>,
    return
  }
  func.func @transform_0(%arg0: i32) -> (i32, i32, i32) {
    %c0_i32 = arith.constant 0 : i32
    %c0_i32_0 = arith.constant 0 : i32
    %c0_i32_1 = arith.constant 0 : i32
    return %arg0, %c0_i32, %c0_i32_0 : i32, i32, i32
  }
  func.func @transform_1(%arg0: i32) -> (i32, i32, i32) {
    %c0_i32 = arith.constant 0 : i32
    %c0_i32_0 = arith.constant 0 : i32
    %c0_i32_1 = arith.constant 0 : i32
    %c0_i32_2 = arith.constant 0 : i32
    return %c0_i32, %c0_i32_0, %c0_i32_1 : i32, i32, i32
  }
  func.func @transform_2(%arg0: i32) -> (i32, i32) {
    %c0_i32 = arith.constant 0 : i32
    %c0_i32_0 = arith.constant 0 : i32
    %c0_i32_1 = arith.constant 0 : i32
    return %c0_i32, %c0_i32_0 : i32, i32
  }
  func.func @transform_3(%arg0: i32) -> (i32, i32, i32) {
    %c0_i32 = arith.constant 0 : i32
    %c0_i32_0 = arith.constant 0 : i32
    %c0_i32_1 = arith.constant 0 : i32
    %c0_i32_2 = arith.constant 0 : i32
    return %c0_i32, %c0_i32_0, %c0_i32_1 : i32, i32, i32
  }
  func.func @transform_4(%arg0: i32) -> (i32, i32) {
    %c0_i32 = arith.constant 0 : i32
    %c0_i32_0 = arith.constant 0 : i32
    %c0_i32_1 = arith.constant 0 : i32
    return %c0_i32, %c0_i32_0 : i32, i32
  }
  func.func @transform_5(%arg0: i32) -> (i32, i32, i32) {
    %c0_i32 = arith.constant 0 : i32
    %c0_i32_0 = arith.constant 0 : i32
    %c0_i32_1 = arith.constant 0 : i32
    return %arg0, %c0_i32, %c0_i32_0 : i32, i32, i32
  }
}

</mosaic_0001>

<llo_original>
// kernel: tpu_custom_call.1
$region0: #{tpu_custom_call.1}
  #allocation0 [shape = 'u32[]', space=smem, size = 0x4, offset = 0x4, fixed_abs, tag = 'smem constant byte address 0x4 - core index']
  #allocation1 [shape = 'u32[144,128]{1,0:T(1,128)}', space=vmem, size = 0x12000, scoped, tag = 'internal scratch']
  #allocation2 [shape = 'f32[4,1090]{1,0:T(4,128)}', space=vmem, size = 0x4800, scoped, tag = 'scratch operand']
  #allocation3 [shape = 'f32[8,1090]{1,0:T(8,128)}', space=vmem, size = 0x9000, scoped, tag = 'scratch operand']
  %s0 = inlined_call_operand.vmem [shape: f32[2,4,1024], index: 0, kind: input, shape index: {}]
  %s1 = inlined_call_operand.vmem [shape: f32[9,8,4], index: 1, kind: input, shape index: {}]
  %s2 = inlined_call_operand.vmem [shape: f32[8,1], index: 2, kind: input, shape index: {}]
  %s3 = inlined_call_operand.vmem [shape: f32[9,8,8], index: 3, kind: input, shape index: {}]
  %s4 = inlined_call_operand.vmem [shape: f32[8,1], index: 4, kind: input, shape index: {}]
  %s5 = inlined_call_operand.hbm [shape: f32[2,8,1024], index: 5, kind: output, shape index: {}]
  %s6 = sld [smem:[#allocation0]]
  $region53: #{tpu_custom_call.1} parent=0
    _
  %s8 = ssub.s32 1, %s6
  %s9 = scalar_select 0, %s8, %s6
  $region1: #{tpu_custom_call.1} parent=0
    #allocation4 [shape = 'u8[65536]{0}', space=vmem, size = 0x10000, scoped, tag = 'output window, operand 0']
    #allocation5 [shape = 's32[2]{0}', space=sflag, size = 0x8, scoped, tag = 'scoped memory for tpu_custom_call.1']
    %10 = vsyncpa [#allocation5], 0
    %s11 = scalar_lea.sflag [#allocation5], 1
    %12 = vsyncpa %s11, 0
    loop: start=0, step=1, limit=4
    $region2: #{tpu_custom_call.1} parent=1 // loop_pre_header
      _
    $region3: #{tpu_custom_call.1} parent=1 // loop_header
      %s14 = sphi 0, %s18
      %p15 = scmp.ge.s32.totalorder %s14, 4
      %s24 = sphi 0, %s26
      %s27 = sphi 0, %s24
      %s28 = sphi 0, %s27
      %s44 = sphi 0, %s28
      %s48 = sphi 0, %s48
      %s50 = sphi 0, %s48
      %s51 = sphi 0, %s50
      %s65 = sphi 0, %s51
      %s69 = sphi 0, %s69
      %s71 = sphi 0, %s69
      %s72 = sphi 0, %s71
      %s86 = sphi 0, %s72
      %s90 = sphi 0, %s90
      %s92 = sphi 0, %s90
      %s93 = sphi 0, %s92
      %s107 = sphi 0, %s93
      %s111 = sphi 0, %s111
      %s113 = sphi 0, %s111
      %s114 = sphi 0, %s113
      %s128 = sphi 0, %s114
      %s134 = sphi 0, %s136
      %s137 = sphi 0, %s134
      %s138 = sphi 0, %s137
      %s154 = sphi 0, %s138
    $region4: #{tpu_custom_call.1} parent=1 // loop_header_branch
      %17 = sbr.rel (%p15) target = $region8
    $region5: #{tpu_custom_call.1} parent=1 // loop_body
      %s19 = ssub.s32 %s14, 1
      %s20 = ssub.s32 %s14, 2
      %s21 = sadd.s32 %s14, 1
      %s22 = ssub.s32 %s14, %s21
      %p23 = scmp.eq.s32.totalorder %s22, 0
      %s25 = sadd.s32 %s24, 1
      %s26 = scalar_select %p23, %s24, %s25
      %p29 = pneg %p23
      %p30 = scmp.eq.s32.totalorder %s14, 1
      %p31 = por %p29, %p30
      %p32 = scmp.ne.s32.totalorder %s24, %s27
      %p33 = scmp.eq.s32.totalorder %s14, 0
      %p34 = por %p32, %p33
      %p35 = scmp.ne.s32.totalorder %s24, %s27
      %p36 = scmp.eq.s32.totalorder %s19, 1
      %p37 = por %p35, %p36
      %p38 = scmp.ne.s32.totalorder %s27, %s28
      %p39 = scmp.eq.s32.totalorder %s19, 0
      %p40 = por %p38, %p39
      %p41 = scmp.ne.s32.totalorder %s27, %s28
      %p42 = scmp.eq.s32.totalorder %s20, 1
      %p43 = por %p41, %p42
      %p45 = scmp.ne.s32.totalorder %s28, %s44
      %p46 = scmp.eq.s32.totalorder %s20, 0
      %p47 = por %p45, %p46
      %s49 = sadd.s32 %s48, 1
      %p52 = scmp.eq.s32.totalorder %s14, 1
      %p53 = scmp.ne.s32.totalorder %s48, %s50
      %p54 = scmp.eq.s32.totalorder %s14, 0
      %p55 = por %p53, %p54
      %p56 = scmp.ne.s32.totalorder %s48, %s50
      %p57 = scmp.eq.s32.totalorder %s19, 1
      %p58 = por %p56, %p57
      %p59 = scmp.ne.s32.totalorder %s50, %s51
      %p60 = scmp.eq.s32.totalorder %s19, 0
      %p61 = por %p59, %p60
      %p62 = scmp.ne.s32.totalorder %s50, %s51
      %p63 = scmp.eq.s32.totalorder %s20, 1
      %p64 = por %p62, %p63
      %p66 = scmp.ne.s32.totalorder %s51, %s65
      %p67 = scmp.eq.s32.totalorder %s20, 0
      %p68 = por %p66, %p67
      %s70 = sadd.s32 %s69, 1
      %p73 = scmp.eq.s32.totalorder %s14, 1
      %p74 = scmp.ne.s32.totalorder %s69, %s71
      %p75 = scmp.eq.s32.totalorder %s14, 0
      %p76 = por %p74, %p75
      %p77 = scmp.ne.s32.totalorder %s69, %s71
      %p78 = scmp.eq.s32.totalorder %s19, 1
      %p79 = por %p77, %p78
      %p80 = scmp.ne.s32.totalorder %s71, %s72
      %p81 = scmp.eq.s32.totalorder %s19, 0
      %p82 = por %p80, %p81
      %p83 = scmp.ne.s32.totalorder %s71, %s72
      %p84 = scmp.eq.s32.totalorder %s20, 1
      %p85 = por %p83, %p84
      %p87 = scmp.ne.s32.totalorder %s72, %s86
      %p88 = scmp.eq.s32.totalorder %s20, 0
      %p89 = por %p87, %p88
      %s91 = sadd.s32 %s90, 1
      %p94 = scmp.eq.s32.totalorder %s14, 1
      %p95 = scmp.ne.s32.totalorder %s90, %s92
      %p96 = scmp.eq.s32.totalorder %s14, 0
      %p97 = por %p95, %p96
      %p98 = scmp.ne.s32.totalorder %s90, %s92
      %p99 = scmp.eq.s32.totalorder %s19, 1
      %p100 = por %p98, %p99
      %p101 = scmp.ne.s32.totalorder %s92, %s93
      %p102 = scmp.eq.s32.totalorder %s19, 0
      %p103 = por %p101, %p102
      %p104 = scmp.ne.s32.totalorder %s92, %s93
      %p105 = scmp.eq.s32.totalorder %s20, 1
      %p106 = por %p104, %p105
      %p108 = scmp.ne.s32.totalorder %s93, %s107
      %p109 = scmp.eq.s32.totalorder %s20, 0
      %p110 = por %p108, %p109
      %s112 = sadd.s32 %s111, 1
      %p115 = scmp.eq.s32.totalorder %s14, 1
      %p116 = scmp.ne.s32.totalorder %s111, %s113
      %p117 = scmp.eq.s32.totalorder %s14, 0
      %p118 = por %p116, %p117
      %p119 = scmp.ne.s32.totalorder %s111, %s113
      %p120 = scmp.eq.s32.totalorder %s19, 1
      %p121 = por %p119, %p120
      %p122 = scmp.ne.s32.totalorder %s113, %s114
      %p123 = scmp.eq.s32.totalorder %s19, 0
      %p124 = por %p122, %p123
      %p125 = scmp.ne.s32.totalorder %s113, %s114
      %p126 = scmp.eq.s32.totalorder %s20, 1
      %p127 = por %p125, %p126
      %p129 = scmp.ne.s32.totalorder %s114, %s128
      %p130 = scmp.eq.s32.totalorder %s20, 0
      %p131 = por %p129, %p130
      %s132 = ssub.s32 %s14, %s21
      %p133 = scmp.eq.s32.totalorder %s132, 0
      %s135 = sadd.s32 %s134, 1
      %s136 = scalar_select %p133, %s134, %s135
      %p139 = pneg %p133
      %p140 = scmp.eq.s32.totalorder %s14, 1
      %p141 = por %p139, %p140
      %p142 = scmp.ne.s32.totalorder %s134, %s137
      %p143 = scmp.eq.s32.totalorder %s14, 0
      %p144 = por %p142, %p143
      %p145 = scmp.ne.s32.totalorder %s134, %s137
      %p146 = scmp.eq.s32.totalorder %s19, 1
      %p147 = por %p145, %p146
      %p148 = scmp.ne.s32.totalorder %s137, %s138
      %p149 = scmp.eq.s32.totalorder %s19, 0
      %p150 = por %p148, %p149
      %p151 = scmp.ne.s32.totalorder %s137, %s138
      %p152 = scmp.eq.s32.totalorder %s20, 1
      %p153 = por %p151, %p152
      %p155 = scmp.ne.s32.totalorder %s138, %s154
      %p156 = scmp.eq.s32.totalorder %s20, 0
      %p157 = por %p155, %p156
      %p158 = scmp.le.s32.totalorder 1, %s14
      %p159 = scmp.lt.s32.totalorder %s14, 3
      %p160 = pnand %p158, %p159
      %p161 = pneg %p160
      // Predicated region
      $region9: #{tpu_custom_call.1} parent=5 // pred_check
        _
      $region10: #{tpu_custom_call.1} parent=5 // pred_check_branch
        %163 = sbr.rel (%p160) target = $region12
      $region11: #{tpu_custom_call.1} parent=5 // pred_region
        %s164 = ssub.s32 %s14, 1
        // Predicated region
        $region13: #{tpu_custom_call.1} parent=11 // pred_check
          %p165 = pneg %p61
        $region14: #{tpu_custom_call.1} parent=11 // pred_check_branch
          %167 = sbr.rel (%p165) target = $region16
        $region15: #{tpu_custom_call.1} parent=11 // pred_region
          _
        $region16: #{tpu_custom_call.1} parent=11 // pred_fallthru
          _
        // Predicated region
        $region17: #{tpu_custom_call.1} parent=11 // pred_check
          %p168 = pneg %p82
        $region18: #{tpu_custom_call.1} parent=11 // pred_check_branch
          %170 = sbr.rel (%p168) target = $region20
        $region19: #{tpu_custom_call.1} parent=11 // pred_region
          _
        $region20: #{tpu_custom_call.1} parent=11 // pred_fallthru
          _
        // Predicated region
        $region21: #{tpu_custom_call.1} parent=11 // pred_check
          %p171 = pneg %p103
        $region22: #{tpu_custom_call.1} parent=11 // pred_check_branch
          %173 = sbr.rel (%p171) target = $region24
        $region23: #{tpu_custom_call.1} parent=11 // pred_region
          _
        $region24: #{tpu_custom_call.1} parent=11 // pred_fallthru
          _
        // Predicated region
        $region25: #{tpu_custom_call.1} parent=11 // pred_check
          %p174 = pneg %p124
        $region26: #{tpu_custom_call.1} parent=11 // pred_check_branch
          %176 = sbr.rel (%p174) target = $region28
        $region27: #{tpu_custom_call.1} parent=11 // pred_region
          _
        $region28: #{tpu_custom_call.1} parent=11 // pred_fallthru
          _
      $region12: #{tpu_custom_call.1} parent=5 // pred_fallthru
        _
      %p177 = scmp.lt.s32.totalorder %s14, 2
      // Predicated region
      $region29: #{tpu_custom_call.1} parent=5 // pred_check
        %p178 = pneg %p177
      $region30: #{tpu_custom_call.1} parent=5 // pred_check_branch
        %180 = sbr.rel (%p178) target = $region32
      $region31: #{tpu_custom_call.1} parent=5 // pred_region
        // Predicated region
        $region33: #{tpu_custom_call.1} parent=31 // pred_check
          %p181 = pneg %p34
        $region34: #{tpu_custom_call.1} parent=31 // pred_check_branch
          %183 = sbr.rel (%p181) target = $region36
        $region35: #{tpu_custom_call.1} parent=31 // pred_region
          %p184 = scmp.lt.s32.totalorder %s14, 1
          %s185 = scalar_select %p184, %s14, 1
          %s186 = smul.addr %s185, 8
          %s187 = smul.addr %s186, 4
          %s188 = scalar_lea.vmem %s0, %s187
        $region36: #{tpu_custom_call.1} parent=31 // pred_fallthru
          _
      $region32: #{tpu_custom_call.1} parent=5 // pred_fallthru
        _
      %p189 = scmp.le.s32.totalorder 1, %s14
      %p190 = scmp.lt.s32.totalorder %s14, 3
      %p191 = pnand %p189, %p190
      %p192 = pneg %p191
      // Predicated region
      $region37: #{tpu_custom_call.1} parent=5 // pred_check
        _
      $region38: #{tpu_custom_call.1} parent=5 // pred_check_branch
        %194 = sbr.rel (%p191) target = $region40
      $region39: #{tpu_custom_call.1} parent=5 // pred_region
        %s195 = ssub.s32 %s14, 1
        %p196 = scmp.lt.s32.totalorder %s19, 1
        %s197 = scalar_select %p196, %s19, 1
        %s198 = smul.addr %s197, 8
        %s199 = smul.addr %s198, 4
        %s200 = scalar_lea.vmem %s0, %s199
        %p201 = pneg %p40
        %p202 = pneg %p37
        %p203 = pneg %p61
        %p204 = pneg %p58
        %p205 = pneg %p82
        %p206 = pneg %p79
        %p207 = pneg %p103
        %p208 = pneg %p100
        %p209 = pneg %p124
        %p210 = pneg %p121
        %p211 = pneg %p150
        %p212 = pneg %p147
        %s213 = sand.u32 %s137, 1
        %s214 = scalar_lea.sflag [#allocation5], %s213
        %s215 = sand.u32 %s137, 1
        %s216 = smul.addr %s215, 64
        %s217 = scalar_lea.vmem [#allocation4], %s216
        %p218 = scmp.lt.s32.totalorder %s19, 1
        %s219 = scalar_select %p218, %s19, 1
        %s220 = smul.addr %s219, 8
        %s221 = smul.addr %s220, 4
        %s222 = scalar_lea.vmem %s0, %s221
        %v223 = vlaneseq
        %v224 = vand.u32 %v223, 127
        %v225 = vadd.s32 %v224, 128
        %v226 = vadd.s32 %v224, 256
        %v227 = vadd.s32 %v224, 384
        %v228 = vadd.s32 %v224, 512
        %v229 = vadd.s32 %v224, 640
        %v230 = vadd.s32 %v224, 768
        %v231 = vadd.s32 %v224, 896
        %vm232 = vcmp.lt.s32.totalorder %v224, 0
        %v233 = vsub.s32 0, %v224
        %v234 = vsel %vm232, %v233, %v224
        %v235 = vshrl.u32 %v234, 5
        %v236 = vand.u32 %v234, 31
        %v237 = vsub.s32 0, %v236
        %v238 = vsel %vm232, %v237, %v236
        %vm239 = vcmp.lt.s32.totalorder %v225, 0
        %v240 = vsub.s32 0, %v225
        %v241 = vsel %vm239, %v240, %v225
        %v242 = vshrl.u32 %v241, 5
        %v243 = vand.u32 %v241, 31
        %v244 = vsub.s32 0, %v243
        %v245 = vsel %vm239, %v244, %v243
        %vm246 = vcmp.lt.s32.totalorder %v226, 0
        %v247 = vsub.s32 0, %v226
        %v248 = vsel %vm246, %v247, %v226
        %v249 = vshrl.u32 %v248, 5
        %v250 = vand.u32 %v248, 31
        %v251 = vsub.s32 0, %v250
        %v252 = vsel %vm246, %v251, %v250
        %vm253 = vcmp.lt.s32.totalorder %v227, 0
        %v254 = vsub.s32 0, %v227
        %v255 = vsel %vm253, %v254, %v227
        %v256 = vshrl.u32 %v255, 5
        %v257 = vand.u32 %v255, 31
        %v258 = vsub.s32 0, %v257
        %v259 = vsel %vm253, %v258, %v257
        %vm260 = vcmp.lt.s32.totalorder %v228, 0
        %v261 = vsub.s32 0, %v228
        %v262 = vsel %vm260, %v261, %v228
        %v263 = vshrl.u32 %v262, 5
        %v264 = vand.u32 %v262, 31
        %v265 = vsub.s32 0, %v264
        %v266 = vsel %vm260, %v265, %v264
        %vm267 = vcmp.lt.s32.totalorder %v229, 0
        %v268 = vsub.s32 0, %v229
        %v269 = vsel %vm267, %v268, %v229
        %v270 = vshrl.u32 %v269, 5
        %v271 = vand.u32 %v269, 31
        %v272 = vsub.s32 0, %v271
        %v273 = vsel %vm267, %v272, %v271
        %vm274 = vcmp.lt.s32.totalorder %v230, 0
        %v275 = vsub.s32 0, %v230
        %v276 = vsel %vm274, %v275, %v230
        %v277 = vshrl.u32 %v276, 5
        %v278 = vand.u32 %v276, 31
        %v279 = vsub.s32 0, %v278
        %v280 = vsel %vm274, %v279, %v278
        %vm281 = vcmp.lt.s32.totalorder %v231, 0
        %v282 = vsub.s32 0, %v231
        %v283 = vsel %vm281, %v282, %v231
        %v284 = vshrl.u32 %v283, 5
        %v285 = vand.u32 %v283, 31
        %v286 = vsub.s32 0, %v285
        %v287 = vsel %vm281, %v286, %v285
        %vm288 = vcmp.ne.s32.totalorder %v238, 0
        %vm289 = vcmp.ne.s32.totalorder %v245, 0
        %vm290 = vcmp.ne.s32.totalorder %v252, 0
        %vm291 = vcmp.ne.s32.totalorder %v259, 0
        %vm292 = vcmp.ne.s32.totalorder %v266, 0
        %vm293 = vcmp.ne.s32.totalorder %v273, 0
        %vm294 = vcmp.ne.s32.totalorder %v280, 0
        %vm295 = vcmp.ne.s32.totalorder %v287, 0
        %vm296 = vcmp.lt.s32.totalorder %v238, 0
        %vm297 = vcmp.lt.s32.totalorder %v245, 0
        %vm298 = vcmp.lt.s32.totalorder %v252, 0
        %vm299 = vcmp.lt.s32.totalorder %v259, 0
        %vm300 = vcmp.lt.s32.totalorder %v266, 0
        %vm301 = vcmp.lt.s32.totalorder %v273, 0
        %vm302 = vcmp.lt.s32.totalorder %v280, 0
        %vm303 = vcmp.lt.s32.totalorder %v287, 0
        %vm304 = vmand %vm296, %vm288
        %vm305 = vmand %vm297, %vm289
        %vm306 = vmand %vm298, %vm290
        %vm307 = vmand %vm299, %vm291
        %vm308 = vmand %vm300, %vm292
        %vm309 = vmand %vm301, %vm293
        %vm310 = vmand %vm302, %vm294
        %vm311 = vmand %vm303, %vm295
        %v312 = vadd.s32 %v238, 32
        %v313 = vadd.s32 %v245, 32
        %v314 = vadd.s32 %v252, 32
        %v315 = vadd.s32 %v259, 32
        %v316 = vadd.s32 %v266, 32
        %v317 = vadd.s32 %v273, 32
        %v318 = vadd.s32 %v280, 32
        %v319 = vadd.s32 %v287, 32
        %v320 = vsel %vm304, %v312, %v238
        %v321 = vsel %vm305, %v313, %v245
        %v322 = vsel %vm306, %v314, %v252
        %v323 = vsel %vm307, %v315, %v259
        %v324 = vsel %vm308, %v316, %v266
        %v325 = vsel %vm309, %v317, %v273
        %v326 = vsel %vm310, %v318, %v280
        %v327 = vsel %vm311, %v319, %v287
        %v328 = vld [vmem:[%s222] sm:$0xff]
        %v329 = vld [vmem:[%s222 + $0x8] sm:$0xff]
        %v330 = vld [vmem:[%s222 + $0x10] sm:$0xff]
        %v331 = vld [vmem:[%s222 + $0x18] sm:$0xff]
        %332 = vst [vmem:[#allocation2] sm:$0xff] 0.0
        %333 = vst [vmem:[#allocation2 + $0x8] sm:$0xff] 0.0
        %334 = vst [vmem:[#allocation2 + $0x10] sm:$0xff] 0.0
        %335 = vst [vmem:[#allocation2 + $0x18] sm:$0xff] 0.0
        %vm336 = vcmask 535552
        %337 = vst.msk [vmem:[#allocation2 + $0x20] sm:$0xf] %vm336, 0.0
        %342 = vrot.lane.b32.xlu0 %v328, 33
        %v343 = vpop.permute.xlu0 %342
        %344 = vrot.lane.b32.xlu0 %v329, 33
        %v345 = vpop.permute.xlu0 %344
        %346 = vrot.lane.b32.xlu0 %v330, 33
        %v347 = vpop.permute.xlu0 %346
        %348 = vrot.lane.b32.xlu0 %v331, 33
        %v349 = vpop.permute.xlu0 %348
        %v350 = vrot.slane %v343, 4
        %v351 = vrot.slane %v345, 4
        %v352 = vrot.slane %v347, 4
        %v353 = vrot.slane %v349, 4
        %vm354 = vcmask 269312
        %v355 = vsel %vm354, %v350, %v343
        %vm356 = vcmask 1043456
        %v357 = vsel %vm356, %v350, %v351
        %v358 = vsel %vm354, %v357, %v345
        %v359 = vsel %vm356, %v351, %v352
        %v360 = vsel %vm354, %v359, %v347
        %v361 = vsel %vm356, %v352, %v353
        %v362 = vsel %vm354, %v361, %v349
        %vm368 = vcmask 1043720
        %vm369 = vcmask 1047556
        %vm370 = vmor %vm369, %vm368
        %371 = vst.msk [vmem:[#allocation2] sm:$0xff] %vm370, %v355
        %372 = vst [vmem:[#allocation2 + $0x8] sm:$0xff] %v358
        %373 = vst [vmem:[#allocation2 + $0x10] sm:$0xff] %v360
        %374 = vst [vmem:[#allocation2 + $0x18] sm:$0xff] %v362
        %vm375 = vcmask 265216
        %376 = vst.msk [vmem:[#allocation2 + $0x20] sm:$0xf] %vm375, %v353
        %v377 = vld [vmem:[#allocation2] sm:$0xff]
        %v378 = vld [vmem:[#allocation2 + $0x8] sm:$0xff]
        %v379 = vld [vmem:[#allocation2 + $0x10] sm:$0xff]
        %v380 = vld [vmem:[#allocation2 + $0x18] sm:$0xff]
        %vm381 = vcmp.ge.s32.totalorder %v320, 1
        %vm382 = vcmp.ge.s32.totalorder %v321, 1
        %vm383 = vcmp.ge.s32.totalorder %v322, 1
        %vm384 = vcmp.ge.s32.totalorder %v323, 1
        %vm385 = vcmp.ge.s32.totalorder %v324, 1
        %vm386 = vcmp.ge.s32.totalorder %v325, 1
        %vm387 = vcmp.ge.s32.totalorder %v326, 1
        %vm388 = vcmp.ge.s32.totalorder %v327, 1
        %v389 = vsel %vm381, 1, 0
        %v390 = vsel %vm382, 1, 0
        %v391 = vsel %vm383, 1, 0
        %v392 = vsel %vm384, 1, 0
        %v393 = vsel %vm385, 1, 0
        %v394 = vsel %vm386, 1, 0
        %v395 = vsel %vm387, 1, 0
        %v396 = vsel %vm388, 1, 0
        %vm397 = vcmp.eq.s32.totalorder %v389, 1
        %vm398 = vcmp.eq.s32.totalorder %v390, 1
        %vm399 = vcmp.eq.s32.totalorder %v391, 1
        %vm400 = vcmp.eq.s32.totalorder %v392, 1
        %vm401 = vcmp.eq.s32.totalorder %v393, 1
        %vm402 = vcmp.eq.s32.totalorder %v394, 1
        %vm403 = vcmp.eq.s32.totalorder %v395, 1
        %vm404 = vcmp.eq.s32.totalorder %v396, 1
        %v409 = vcombine.high %v377, %v377
        %v410 = vcombine.high %v378, %v378
        %v411 = vcombine.high %v379, %v379
        %v412 = vcombine.high %v380, %v380
        %v417 = vsel %vm397, %v377, 0.0
        %v418 = vsel %vm398, %v409, 0.0
        %v419 = vsel %vm399, %v378, 0.0
        %v420 = vsel %vm400, %v410, 0.0
        %v421 = vsel %vm401, %v379, 0.0
        %v422 = vsel %vm402, %v411, 0.0
        %v423 = vsel %vm403, %v380, 0.0
        %v424 = vsel %vm404, %v412, 0.0
        %v425 = vld [vmem:[%s1] sm:$0xff]
        %v426 = vld [vmem:[#allocation2 + $0x20] sm:$0xf]
        %s427 = scalar_lea.vmem %s1, 8
        %v428 = vld [vmem:[%s427] sm:$0xff]
        %430 = vrot.lane.b32.xlu0 %v377, 127
        %v431 = vpop.permute.xlu0 %430
        %432 = vrot.lane.b32.xlu0 %v409, 127
        %v433 = vpop.permute.xlu0 %432
        %434 = vrot.lane.b32.xlu0 %v378, 127
        %v435 = vpop.permute.xlu0 %434
        %436 = vrot.lane.b32.xlu0 %v410, 127
        %v437 = vpop.permute.xlu0 %436
        %438 = vrot.lane.b32.xlu0 %v379, 127
        %v439 = vpop.permute.xlu0 %438
        %440 = vrot.lane.b32.xlu0 %v411, 127
        %v441 = vpop.permute.xlu0 %440
        %442 = vrot.lane.b32.xlu0 %v380, 127
        %v443 = vpop.permute.xlu0 %442
        %444 = vrot.lane.b32.xlu0 %v412, 127
        %v445 = vpop.permute.xlu0 %444
        %446 = vrot.lane.b32.xlu0 %v426, 127
        %v447 = vpop.permute.xlu0 %446
        %vm448 = vcmask 1039360
        %v449 = vsel %vm448, %v431, %v433
        %v450 = vsel %vm448, %v433, %v435
        %v451 = vsel %vm448, %v435, %v437
        %v452 = vsel %vm448, %v437, %v439
        %v453 = vsel %vm448, %v439, %v441
        %v454 = vsel %vm448, %v441, %v443
        %v455 = vsel %vm448, %v443, %v445
        %v456 = vsel %vm448, %v445, %v447
        %vm457 = vcmask 31744
        %v459 = vsel %vm457, %v428, 0
        %v461 = vsel %vm356, %v449, 0
        %v463 = vsel %vm356, %v450, 0
        %v465 = vsel %vm356, %v451, 0
        %v467 = vsel %vm356, %v452, 0
        %v469 = vsel %vm356, %v453, 0
        %v471 = vsel %vm356, %v454, 0
        %v473 = vsel %vm356, %v455, 0
        %v475 = vsel %vm356, %v456, 0
        %477 = vmatprep.subr.mxu0 %v463
        %478 = vmatpush1.msra.mxu0 %v461
        %479 = vmatprep.subr.mxu0 0.0
        %480 = vmatpush1.msra.mxu0 0.0
        %481 = vmatprep.subr.mxu0 0.0
        %482 = vmatpush1.msra.mxu0 0.0
        %483 = vmatprep.subr.mxu0 0.0
        %484 = vmatpush1.msra.mxu0 0.0
        %485 = vmatprep.subr.mxu0 0.0
        %486 = vmatpush1.msra.mxu0 0.0
        %487 = vmatprep.subr.mxu0 0.0
        %488 = vmatpush1.msra.mxu0 0.0
        %489 = vmatprep.subr.mxu0 0.0
        %490 = vmatpush1.msra.mxu0 0.0
        %491 = vmatprep.subr.mxu0 0.0
        %492 = vmatpush1.msra.mxu0 0.0
        %493 = vmatprep.subr.mxu0 0.0
        %494 = vmatpush1.msra.mxu0 0.0
        %495 = vmatprep.subr.mxu0 0.0
        %496 = vmatpush1.msra.mxu0 0.0
        %497 = vmatprep.subr.mxu0 0.0
        %498 = vmatpush1.msra.mxu0 0.0
        %499 = vmatprep.subr.mxu0 0.0
        %500 = vmatpush1.msra.mxu0 0.0
        %501 = vmatprep.subr.mxu0 0.0
        %502 = vmatpush1.msra.mxu0 0.0
        %503 = vmatprep.subr.mxu0 0.0
        %504 = vmatpush1.msra.mxu0 0.0
        %505 = vmatprep.subr.mxu0 0.0
        %506 = vmatpush1.msra.mxu0 0.0
        %507 = vmatprep.subr.mxu0 0.0
        %508 = vmatpush1.msra.mxu0 0.0
        %509 = vmatprep.subr.mxu0 0.0
        %510 = vmatpush1.msra.mxu0 0.0
        %511 = vmatprep.subr.mxu0 0.0
        %512 = vmatpush1.msra.mxu0 0.0
        %513 = vmatprep.subr.mxu0 0.0
        %514 = vmatpush1.msra.mxu0 0.0
        %515 = vmatprep.subr.mxu0 0.0
        %516 = vmatpush1.msra.mxu0 0.0
        %517 = vmatprep.subr.mxu0 0.0
        %518 = vmatpush1.msra.mxu0 0.0
        %519 = vmatprep.subr.mxu0 0.0
        %520 = vmatpush1.msra.mxu0 0.0
        %521 = vmatprep.subr.mxu0 0.0
        %522 = vmatpush1.msra.mxu0 0.0
        %523 = vmatprep.subr.mxu0 0.0
        %524 = vmatpush1.msra.mxu0 0.0
        %525 = vmatprep.subr.mxu0 0.0
        %526 = vmatpush1.msra.mxu0 0.0
        %527 = vmatprep.subr.mxu0 0.0
        %528 = vmatpush1.msra.mxu0 0.0
        %529 = vmatprep.subr.mxu0 0.0
        %530 = vmatpush1.msra.mxu0 0.0
        %531 = vmatprep.subr.mxu0 0.0
        %532 = vmatpush1.msra.mxu0 0.0
        %533 = vmatprep.subr.mxu0 0.0
        %534 = vmatpush1.msra.mxu0 0.0
        %535 = vmatprep.subr.mxu0 0.0
        %536 = vmatpush1.msra.mxu0 0.0
        %537 = vmatprep.subr.mxu0 0.0
        %538 = vmatpush1.msra.mxu0 0.0
        %539 = vmatprep.subr.mxu0 0.0
        %540 = vmatpush1.msra.mxu0 0.0
        %541 = vmatprep.mubr.f32.mxu0 0.0
        %542 = vmatmul.mubr.f32.gmra.mrb[0].mxu0 %v459
        %v543 = vpop.f32.mrb[0].mxu0
        %v544 = vadd.f32 0.0, %v543
        %v545 = vpop.f32.mrb[0].mxu0
        %v546 = vadd.f32 0.0, %v545
        %547 = vdwg.mxu0
        %548 = vmatprep.subr.mxu0 %v467
        %549 = vmatpush1.msra.mxu0 %v465
        %550 = vmatprep.subr.mxu0 0.0
        %551 = vmatpush1.msra.mxu0 0.0
        %552 = vmatprep.subr.mxu0 0.0
        %553 = vmatpush1.msra.mxu0 0.0
        %554 = vmatprep.subr.mxu0 0.0
        %555 = vmatpush1.msra.mxu0 0.0
        %556 = vmatprep.subr.mxu0 0.0
        %557 = vmatpush1.msra.mxu0 0.0
        %558 = vmatprep.subr.mxu0 0.0
        %559 = vmatpush1.msra.mxu0 0.0
        %560 = vmatprep.subr.mxu0 0.0
        %561 = vmatpush1.msra.mxu0 0.0
        %562 = vmatprep.subr.mxu0 0.0
        %563 = vmatpush1.msra.mxu0 0.0
        %564 = vmatprep.subr.mxu0 0.0
        %565 = vmatpush1.msra.mxu0 0.0
        %566 = vmatprep.subr.mxu0 0.0
        %567 = vmatpush1.msra.mxu0 0.0
        %568 = vmatprep.subr.mxu0 0.0
        %569 = vmatpush1.msra.mxu0 0.0
        %570 = vmatprep.subr.mxu0 0.0
        %571 = vmatpush1.msra.mxu0 0.0
        %572 = vmatprep.subr.mxu0 0.0
        %573 = vmatpush1.msra.mxu0 0.0
        %574 = vmatprep.subr.mxu0 0.0
        %575 = vmatpush1.msra.mxu0 0.0
        %576 = vmatprep.subr.mxu0 0.0
        %577 = vmatpush1.msra.mxu0 0.0
        %578 = vmatprep.subr.mxu0 0.0
        %579 = vmatpush1.msra.mxu0 0.0
        %580 = vmatprep.subr.mxu0 0.0
        %581 = vmatpush1.msra.mxu0 0.0
        %582 = vmatprep.subr.mxu0 0.0
        %583 = vmatpush1.msra.mxu0 0.0
        %584 = vmatprep.subr.mxu0 0.0
        %585 = vmatpush1.msra.mxu0 0.0
        %586 = vmatprep.subr.mxu0 0.0
        %587 = vmatpush1.msra.mxu0 0.0
        %588 = vmatprep.subr.mxu0 0.0
        %589 = vmatpush1.msra.mxu0 0.0
        %590 = vmatprep.subr.mxu0 0.0
        %591 = vmatpush1.msra.mxu0 0.0
        %592 = vmatprep.subr.mxu0 0.0
        %593 = vmatpush1.msra.mxu0 0.0
        %594 = vmatprep.subr.mxu0 0.0
        %595 = vmatpush1.msra.mxu0 0.0
        %596 = vmatprep.subr.mxu0 0.0
        %597 = vmatpush1.msra.mxu0 0.0
        %598 = vmatprep.subr.mxu0 0.0
        %599 = vmatpush1.msra.mxu0 0.0
        %600 = vmatprep.subr.mxu0 0.0
        %601 = vmatpush1.msra.mxu0 0.0
        %602 = vmatprep.subr.mxu0 0.0
        %603 = vmatpush1.msra.mxu0 0.0
        %604 = vmatprep.subr.mxu0 0.0
        %605 = vmatpush1.msra.mxu0 0.0
        %606 = vmatprep.subr.mxu0 0.0
        %607 = vmatpush1.msra.mxu0 0.0
        %608 = vmatprep.subr.mxu0 0.0
        %609 = vmatpush1.msra.mxu0 0.0
        %610 = vmatprep.subr.mxu0 0.0
        %611 = vmatpush1.msra.mxu0 0.0
        %612 = vmatprep.mubr.f32.mxu0 0.0
        %613 = vmatmul.mubr.f32.gmra.mrb[0].mxu0 %v459
        %v614 = vpop.f32.mrb[0].mxu0
        %v615 = vadd.f32 0.0, %v614
        %v616 = vpop.f32.mrb[0].mxu0
        %v617 = vadd.f32 0.0, %v616
        %618 = vdwg.mxu0
        %619 = vmatprep.subr.mxu0 %v471
        %620 = vmatpush1.msra.mxu0 %v469
        %621 = vmatprep.subr.mxu0 0.0
        %622 = vmatpush1.msra.mxu0 0.0
        %623 = vmatprep.subr.mxu0 0.0
        %624 = vmatpush1.msra.mxu0 0.0
        %625 = vmatprep.subr.mxu0 0.0
        %626 = vmatpush1.msra.mxu0 0.0
        %627 = vmatprep.subr.mxu0 0.0
        %628 = vmatpush1.msra.mxu0 0.0
        %629 = vmatprep.subr.mxu0 0.0
        %630 = vmatpush1.msra.mxu0 0.0
        %631 = vmatprep.subr.mxu0 0.0
        %632 = vmatpush1.msra.mxu0 0.0
        %633 = vmatprep.subr.mxu0 0.0
        %634 = vmatpush1.msra.mxu0 0.0
        %635 = vmatprep.subr.mxu0 0.0
        %636 = vmatpush1.msra.mxu0 0.0
        %637 = vmatprep.subr.mxu0 0.0
        %638 = vmatpush1.msra.mxu0 0.0
        %639 = vmatprep.subr.mxu0 0.0
        %640 = vmatpush1.msra.mxu0 0.0
        %641 = vmatprep.subr.mxu0 0.0
        %642 = vmatpush1.msra.mxu0 0.0
        %643 = vmatprep.subr.mxu0 0.0
        %644 = vmatpush1.msra.mxu0 0.0
        %645 = vmatprep.subr.mxu0 0.0
        %646 = vmatpush1.msra.mxu0 0.0
        %647 = vmatprep.subr.mxu0 0.0
        %648 = vmatpush1.msra.mxu0 0.0
        %649 = vmatprep.subr.mxu0 0.0
        %650 = vmatpush1.msra.mxu0 0.0
        %651 = vmatprep.subr.mxu0 0.0
        %652 = vmatpush1.msra.mxu0 0.0
        %653 = vmatprep.subr.mxu0 0.0
        %654 = vmatpush1.msra.mxu0 0.0
        %655 = vmatprep.subr.mxu0 0.0
        %656 = vmatpush1.msra.mxu0 0.0
        %657 = vmatprep.subr.mxu0 0.0
        %658 = vmatpush1.msra.mxu0 0.0
        %659 = vmatprep.subr.mxu0 0.0
        %660 = vmatpush1.msra.mxu0 0.0
        %661 = vmatprep.subr.mxu0 0.0
        %662 = vmatpush1.msra.mxu0 0.0
        %663 = vmatprep.subr.mxu0 0.0
        %664 = vmatpush1.msra.mxu0 0.0
        %665 = vmatprep.subr.mxu0 0.0
        %666 = vmatpush1.msra.mxu0 0.0
        %667 = vmatprep.subr.mxu0 0.0
        %668 = vmatpush1.msra.mxu0 0.0
        %669 = vmatprep.subr.mxu0 0.0
        %670 = vmatpush1.msra.mxu0 0.0
        %671 = vmatprep.subr.mxu0 0.0
        %672 = vmatpush1.msra.mxu0 0.0
        %673 = vmatprep.subr.mxu0 0.0
        %674 = vmatpush1.msra.mxu0 0.0
        %675 = vmatprep.subr.mxu0 0.0
        %676 = vmatpush1.msra.mxu0 0.0
        %677 = vmatprep.subr.mxu0 0.0
        %678 = vmatpush1.msra.mxu0 0.0
        %679 = vmatprep.subr.mxu0 0.0
        %680 = vmatpush1.msra.mxu0 0.0
        %681 = vmatprep.subr.mxu0 0.0
        %682 = vmatpush1.msra.mxu0 0.0
        %683 = vmatprep.mubr.f32.mxu0 0.0
        %684 = vmatmul.mubr.f32.gmra.mrb[0].mxu0 %v459
        %v685 = vpop.f32.mrb[0].mxu0
        %v686 = vadd.f32 0.0, %v685
        %v687 = vpop.f32.mrb[0].mxu0
        %v688 = vadd.f32 0.0, %v687
        %689 = vdwg.mxu0
        %690 = vmatprep.subr.mxu0 %v475
        %691 = vmatpush1.msra.mxu0 %v473
        %692 = vmatprep.subr.mxu0 0.0
        %693 = vmatpush1.msra.mxu0 0.0
        %694 = vmatprep.subr.mxu0 0.0
        %695 = vmatpush1.msra.mxu0 0.0
        %696 = vmatprep.subr.mxu0 0.0
        %697 = vmatpush1.msra.mxu0 0.0
        %698 = vmatprep.subr.mxu0 0.0
        %699 = vmatpush1.msra.mxu0 0.0
        %700 = vmatprep.subr.mxu0 0.0
        %701 = vmatpush1.msra.mxu0 0.0
        %702 = vmatprep.subr.mxu0 0.0
        %703 = vmatpush1.msra.mxu0 0.0
        %704 = vmatprep.subr.mxu0 0.0
        %705 = vmatpush1.msra.mxu0 0.0
        %706 = vmatprep.subr.mxu0 0.0
        %707 = vmatpush1.msra.mxu0 0.0
        %708 = vmatprep.subr.mxu0 0.0
        %709 = vmatpush1.msra.mxu0 0.0
        %710 = vmatprep.subr.mxu0 0.0
        %711 = vmatpush1.msra.mxu0 0.0
        %712 = vmatprep.subr.mxu0 0.0
        %713 = vmatpush1.msra.mxu0 0.0
        %714 = vmatprep.subr.mxu0 0.0
        %715 = vmatpush1.msra.mxu0 0.0
        %716 = vmatprep.subr.mxu0 0.0
        %717 = vmatpush1.msra.mxu0 0.0
        %718 = vmatprep.subr.mxu0 0.0
        %719 = vmatpush1.msra.mxu0 0.0
        %720 = vmatprep.subr.mxu0 0.0
        %721 = vmatpush1.msra.mxu0 0.0
        %722 = vmatprep.subr.mxu0 0.0
        %723 = vmatpush1.msra.mxu0 0.0
        %724 = vmatprep.subr.mxu0 0.0
        %725 = vmatpush1.msra.mxu0 0.0
        %726 = vmatprep.subr.mxu0 0.0
        %727 = vmatpush1.msra.mxu0 0.0
        %728 = vmatprep.subr.mxu0 0.0
        %729 = vmatpush1.msra.mxu0 0.0
        %730 = vmatprep.subr.mxu0 0.0
        %731 = vmatpush1.msra.mxu0 0.0
        %732 = vmatprep.subr.mxu0 0.0
        %733 = vmatpush1.msra.mxu0 0.0
        %734 = vmatprep.subr.mxu0 0.0
        %735 = vmatpush1.msra.mxu0 0.0
        %736 = vmatprep.subr.mxu0 0.0
        %737 = vmatpush1.msra.mxu0 0.0
        %738 = vmatprep.subr.mxu0 0.0
        %739 = vmatpush1.msra.mxu0 0.0
        %740 = vmatprep.subr.mxu0 0.0
        %741 = vmatpush1.msra.mxu0 0.0
        %742 = vmatprep.subr.mxu0 0.0
        %743 = vmatpush1.msra.mxu0 0.0
        %744 = vmatprep.subr.mxu0 0.0
        %745 = vmatpush1.msra.mxu0 0.0
        %746 = vmatprep.subr.mxu0 0.0
        %747 = vmatpush1.msra.mxu0 0.0
        %748 = vmatprep.subr.mxu0 0.0
        %749 = vmatpush1.msra.mxu0 0.0
        %750 = vmatprep.subr.mxu0 0.0
        %751 = vmatpush1.msra.mxu0 0.0
        %752 = vmatprep.subr.mxu0 0.0
        %753 = vmatpush1.msra.mxu0 0.0
        %754 = vmatprep.mubr.f32.mxu0 0.0
        %755 = vmatmul.mubr.f32.gmra.mrb[0].mxu0 %v459
        %v756 = vpop.f32.mrb[0].mxu0
        %v757 = vadd.f32 0.0, %v756
        %v758 = vpop.f32.mrb[0].mxu0
        %v759 = vadd.f32 0.0, %v758
        %760 = vdwg.mxu0
        %v762 = vsel %vm457, %v425, 0
        %v765 = vsel %vm356, %v417, 0
        %v768 = vsel %vm356, %v418, 0
        %v771 = vsel %vm356, %v419, 0
        %v774 = vsel %vm356, %v420, 0
        %v777 = vsel %vm356, %v421, 0
        %v780 = vsel %vm356, %v422, 0
        %v783 = vsel %vm356, %v423, 0
        %v786 = vsel %vm356, %v424, 0
        %788 = vmatprep.subr.mxu0 %v768
        %789 = vmatpush1.msra.mxu0 %v765
        %790 = vmatprep.subr.mxu0 0.0
        %791 = vmatpush1.msra.mxu0 0.0
        %792 = vmatprep.subr.mxu0 0.0
        %793 = vmatpush1.msra.mxu0 0.0
        %794 = vmatprep.subr.mxu0 0.0
        %795 = vmatpush1.msra.mxu0 0.0
        %796 = vmatprep.subr.mxu0 0.0
        %797 = vmatpush1.msra.mxu0 0.0
        %798 = vmatprep.subr.mxu0 0.0
        %799 = vmatpush1.msra.mxu0 0.0
        %800 = vmatprep.subr.mxu0 0.0
        %801 = vmatpush1.msra.mxu0 0.0
        %802 = vmatprep.subr.mxu0 0.0
        %803 = vmatpush1.msra.mxu0 0.0
        %804 = vmatprep.subr.mxu0 0.0
        %805 = vmatpush1.msra.mxu0 0.0
        %806 = vmatprep.subr.mxu0 0.0
        %807 = vmatpush1.msra.mxu0 0.0
        %808 = vmatprep.subr.mxu0 0.0
        %809 = vmatpush1.msra.mxu0 0.0
        %810 = vmatprep.subr.mxu0 0.0
        %811 = vmatpush1.msra.mxu0 0.0
        %812 = vmatprep.subr.mxu0 0.0
        %813 = vmatpush1.msra.mxu0 0.0
        %814 = vmatprep.subr.mxu0 0.0
        %815 = vmatpush1.msra.mxu0 0.0
        %816 = vmatprep.subr.mxu0 0.0
        %817 = vmatpush1.msra.mxu0 0.0
        %818 = vmatprep.subr.mxu0 0.0
        %819 = vmatpush1.msra.mxu0 0.0
        %820 = vmatprep.subr.mxu0 0.0
        %821 = vmatpush1.msra.mxu0 0.0
        %822 = vmatprep.subr.mxu0 0.0
        %823 = vmatpush1.msra.mxu0 0.0
        %824 = vmatprep.subr.mxu0 0.0
        %825 = vmatpush1.msra.mxu0 0.0
        %826 = vmatprep.subr.mxu0 0.0
        %827 = vmatpush1.msra.mxu0 0.0
        %828 = vmatprep.subr.mxu0 0.0
        %829 = vmatpush1.msra.mxu0 0.0
        %830 = vmatprep.subr.mxu0 0.0
        %831 = vmatpush1.msra.mxu0 0.0
        %832 = vmatprep.subr.mxu0 0.0
        %833 = vmatpush1.msra.mxu0 0.0
        %834 = vmatprep.subr.mxu0 0.0
        %835 = vmatpush1.msra.mxu0 0.0
        %836 = vmatprep.subr.mxu0 0.0
        %837 = vmatpush1.msra.mxu0 0.0
        %838 = vmatprep.subr.mxu0 0.0
        %839 = vmatpush1.msra.mxu0 0.0
        %840 = vmatprep.subr.mxu0 0.0
        %841 = vmatpush1.msra.mxu0 0.0
        %842 = vmatprep.subr.mxu0 0.0
        %843 = vmatpush1.msra.mxu0 0.0
        %844 = vmatprep.subr.mxu0 0.0
        %845 = vmatpush1.msra.mxu0 0.0
        %846 = vmatprep.subr.mxu0 0.0
        %847 = vmatpush1.msra.mxu0 0.0
        %848 = vmatprep.subr.mxu0 0.0
        %849 = vmatpush1.msra.mxu0 0.0
        %850 = vmatprep.subr.mxu0 0.0
        %851 = vmatpush1.msra.mxu0 0.0
        %852 = vmatprep.mubr.f32.mxu0 0.0
        %853 = vmatmul.mubr.f32.gmra.mrb[0].mxu0 %v762
        %v854 = vpop.f32.mrb[0].mxu0
        %v855 = vadd.f32 %v544, %v854
        %v856 = vpop.f32.mrb[0].mxu0
        %v857 = vadd.f32 %v546, %v856
        %858 = vdwg.mxu0
        %859 = vmatprep.subr.mxu0 %v774
        %860 = vmatpush1.msra.mxu0 %v771
        %861 = vmatprep.subr.mxu0 0.0
        %862 = vmatpush1.msra.mxu0 0.0
        %863 = vmatprep.subr.mxu0 0.0
        %864 = vmatpush1.msra.mxu0 0.0
        %865 = vmatprep.subr.mxu0 0.0
        %866 = vmatpush1.msra.mxu0 0.0
        %867 = vmatprep.subr.mxu0 0.0
        %868 = vmatpush1.msra.mxu0 0.0
        %869 = vmatprep.subr.mxu0 0.0
        %870 = vmatpush1.msra.mxu0 0.0
        %871 = vmatprep.subr.mxu0 0.0
        %872 = vmatpush1.msra.mxu0 0.0
        %873 = vmatprep.subr.mxu0 0.0
        %874 = vmatpush1.msra.mxu0 0.0
        %875 = vmatprep.subr.mxu0 0.0
        %876 = vmatpush1.msra.mxu0 0.0
        %877 = vmatprep.subr.mxu0 0.0
        %878 = vmatpush1.msra.mxu0 0.0
        %879 = vmatprep.subr.mxu0 0.0
        %880 = vmatpush1.msra.mxu0 0.0
        %881 = vmatprep.subr.mxu0 0.0
        %882 = vmatpush1.msra.mxu0 0.0
        %883 = vmatprep.subr.mxu0 0.0
        %884 = vmatpush1.msra.mxu0 0.0
        %885 = vmatprep.subr.mxu0 0.0
        %886 = vmatpush1.msra.mxu0 0.0
        %887 = vmatprep.subr.mxu0 0.0
        %888 = vmatpush1.msra.mxu0 0.0
        %889 = vmatprep.subr.mxu0 0.0
        %890 = vmatpush1.msra.mxu0 0.0
        %891 = vmatprep.subr.mxu0 0.0
        %892 = vmatpush1.msra.mxu0 0.0
        %893 = vmatprep.subr.mxu0 0.0
        %894 = vmatpush1.msra.mxu0 0.0
        %895 = vmatprep.subr.mxu0 0.0
        %896 = vmatpush1.msra.mxu0 0.0
        %897 = vmatprep.subr.mxu0 0.0
        %898 = vmatpush1.msra.mxu0 0.0
        %899 = vmatprep.subr.mxu0 0.0
        %900 = vmatpush1.msra.mxu0 0.0
        %901 = vmatprep.subr.mxu0 0.0
        %902 = vmatpush1.msra.mxu0 0.0
        %903 = vmatprep.subr.mxu0 0.0
        %904 = vmatpush1.msra.mxu0 0.0
        %905 = vmatprep.subr.mxu0 0.0
        %906 = vmatpush1.msra.mxu0 0.0
        %907 = vmatprep.subr.mxu0 0.0
        %908 = vmatpush1.msra.mxu0 0.0
        %909 = vmatprep.subr.mxu0 0.0
        %910 = vmatpush1.msra.mxu0 0.0
        %911 = vmatprep.subr.mxu0 0.0
        %912 = vmatpush1.msra.mxu0 0.0
        %913 = vmatprep.subr.mxu0 0.0
        %914 = vmatpush1.msra.mxu0 0.0
        %915 = vmatprep.subr.mxu0 0.0
        %916 = vmatpush1.msra.mxu0 0.0
        %917 = vmatprep.subr.mxu0 0.0
        %918 = vmatpush1.msra.mxu0 0.0
        %919 = vmatprep.subr.mxu0 0.0
        %920 = vmatpush1.msra.mxu0 0.0
        %921 = vmatprep.subr.mxu0 0.0
        %922 = vmatpush1.msra.mxu0 0.0
        %923 = vmatprep.mubr.f32.mxu0 0.0
        %924 = vmatmul.mubr.f32.gmra.mrb[0].mxu0 %v762
        %v925 = vpop.f32.mrb[0].mxu0
        %v926 = vadd.f32 %v615, %v925
        %v927 = vpop.f32.mrb[0].mxu0
        %v928 = vadd.f32 %v617, %v927
        %929 = vdwg.mxu0
        %930 = vmatprep.subr.mxu0 %v780
        %931 = vmatpush1.msra.mxu0 %v777
        %932 = vmatprep.subr.mxu0 0.0
        %933 = vmatpush1.msra.mxu0 0.0
        %934 = vmatprep.subr.mxu0 0.0
        %935 = vmatpush1.msra.mxu0 0.0
        %936 = vmatprep.subr.mxu0 0.0
        %937 = vmatpush1.msra.mxu0 0.0
        %938 = vmatprep.subr.mxu0 0.0
        %939 = vmatpush1.msra.mxu0 0.0
        %940 = vmatprep.subr.mxu0 0.0
        %941 = vmatpush1.msra.mxu0 0.0
        %942 = vmatprep.subr.mxu0 0.0
        %943 = vmatpush1.msra.mxu0 0.0
        %944 = vmatprep.subr.mxu0 0.0
        %945 = vmatpush1.msra.mxu0 0.0
        %946 = vmatprep.subr.mxu0 0.0
        %947 = vmatpush1.msra.mxu0 0.0
        %948 = vmatprep.subr.mxu0 0.0
        %949 = vmatpush1.msra.mxu0 0.0
        %950 = vmatprep.subr.mxu0 0.0
        %951 = vmatpush1.msra.mxu0 0.0
        %952 = vmatprep.subr.mxu0 0.0
        %953 = vmatpush1.msra.mxu0 0.0
        %954 = vmatprep.subr.mxu0 0.0
        %955 = vmatpush1.msra.mxu0 0.0
        %956 = vmatprep.subr.mxu0 0.0
        %957 = vmatpush1.msra.mxu0 0.0
        %958 = vmatprep.subr.mxu0 0.0
        %959 = vmatpush1.msra.mxu0 0.0
        %960 = vmatprep.subr.mxu0 0.0
        %961 = vmatpush1.msra.mxu0 0.0
        %962 = vmatprep.subr.mxu0 0.0
        %963 = vmatpush1.msra.mxu0 0.0
        %964 = vmatprep.subr.mxu0 0.0
        %965 = vmatpush1.msra.mxu0 0.0
        %966 = vmatprep.subr.mxu0 0.0
        %967 = vmatpush1.msra.mxu0 0.0
        %968 = vmatprep.subr.mxu0 0.0
        %969 = vmatpush1.msra.mxu0 0.0
        %970 = vmatprep.subr.mxu0 0.0
        %971 = vmatpush1.msra.mxu0 0.0
        %972 = vmatprep.subr.mxu0 0.0
        %973 = vmatpush1.msra.mxu0 0.0
        %974 = vmatprep.subr.mxu0 0.0
        %975 = vmatpush1.msra.mxu0 0.0
        %976 = vmatprep.subr.mxu0 0.0
        %977 = vmatpush1.msra.mxu0 0.0
        %978 = vmatprep.subr.mxu0 0.0
        %979 = vmatpush1.msra.mxu0 0.0
        %980 = vmatprep.subr.mxu0 0.0
        %981 = vmatpush1.msra.mxu0 0.0
        %982 = vmatprep.subr.mxu0 0.0
        %983 = vmatpush1.msra.mxu0 0.0
        %984 = vmatprep.subr.mxu0 0.0
        %985 = vmatpush1.msra.mxu0 0.0
        %986 = vmatprep.subr.mxu0 0.0
        %987 = vmatpush1.msra.mxu0 0.0
        %988 = vmatprep.subr.mxu0 0.0
        %989 = vmatpush1.msra.mxu0 0.0
        %990 = vmatprep.subr.mxu0 0.0
        %991 = vmatpush1.msra.mxu0 0.0
        %992 = vmatprep.subr.mxu0 0.0
        %993 = vmatpush1.msra.mxu0 0.0
        %994 = vmatprep.mubr.f32.mxu0 0.0
        %995 = vmatmul.mubr.f32.gmra.mrb[0].mxu0 %v762
        %v996 = vpop.f32.mrb[0].mxu0
        %v997 = vadd.f32 %v686, %v996
        %v998 = vpop.f32.mrb[0].mxu0
        %v999 = vadd.f32 %v688, %v998
        %1000 = vdwg.mxu0
        %1001 = vmatprep.subr.mxu0 %v786
        %1002 = vmatpush1.msra.mxu0 %v783
        %1003 = vmatprep.subr.mxu0 0.0
        %1004 = vmatpush1.msra.mxu0 0.0
        %1005 = vmatprep.subr.mxu0 0.0
        %1006 = vmatpush1.msra.mxu0 0.0
        %1007 = vmatprep.subr.mxu0 0.0
        %1008 = vmatpush1.msra.mxu0 0.0
        %1009 = vmatprep.subr.mxu0 0.0
        %1010 = vmatpush1.msra.mxu0 0.0
        %1011 = vmatprep.subr.mxu0 0.0
        %1012 = vmatpush1.msra.mxu0 0.0
        %1013 = vmatprep.subr.mxu0 0.0
        %1014 = vmatpush1.msra.mxu0 0.0
        %1015 = vmatprep.subr.mxu0 0.0
        %1016 = vmatpush1.msra.mxu0 0.0
        %1017 = vmatprep.subr.mxu0 0.0
        %1018 = vmatpush1.msra.mxu0 0.0
        %1019 = vmatprep.subr.mxu0 0.0
        %1020 = vmatpush1.msra.mxu0 0.0
        %1021 = vmatprep.subr.mxu0 0.0
        %1022 = vmatpush1.msra.mxu0 0.0
        %1023 = vmatprep.subr.mxu0 0.0
        %1024 = vmatpush1.msra.mxu0 0.0
        %1025 = vmatprep.subr.mxu0 0.0
        %1026 = vmatpush1.msra.mxu0 0.0
        %1027 = vmatprep.subr.mxu0 0.0
        %1028 = vmatpush1.msra.mxu0 0.0
        %1029 = vmatprep.subr.mxu0 0.0
        %1030 = vmatpush1.msra.mxu0 0.0
        %1031 = vmatprep.subr.mxu0 0.0
        %1032 = vmatpush1.msra.mxu0 0.0
        %1033 = vmatprep.subr.mxu0 0.0
        %1034 = vmatpush1.msra.mxu0 0.0
        %1035 = vmatprep.subr.mxu0 0.0
        %1036 = vmatpush1.msra.mxu0 0.0
        %1037 = vmatprep.subr.mxu0 0.0
        %1038 = vmatpush1.msra.mxu0 0.0
        %1039 = vmatprep.subr.mxu0 0.0
        %1040 = vmatpush1.msra.mxu0 0.0
        %1041 = vmatprep.subr.mxu0 0.0
        %1042 = vmatpush1.msra.mxu0 0.0
        %1043 = vmatprep.subr.mxu0 0.0
        %1044 = vmatpush1.msra.mxu0 0.0
        %1045 = vmatprep.subr.mxu0 0.0
        %1046 = vmatpush1.msra.mxu0 0.0
        %1047 = vmatprep.subr.mxu0 0.0
        %1048 = vmatpush1.msra.mxu0 0.0
        %1049 = vmatprep.subr.mxu0 0.0
        %1050 = vmatpush1.msra.mxu0 0.0
        %1051 = vmatprep.subr.mxu0 0.0
        %1052 = vmatpush1.msra.mxu0 0.0
        %1053 = vmatprep.subr.mxu0 0.0
        %1054 = vmatpush1.msra.mxu0 0.0
        %1055 = vmatprep.subr.mxu0 0.0
        %1056 = vmatpush1.msra.mxu0 0.0
        %1057 = vmatprep.subr.mxu0 0.0
        %1058 = vmatpush1.msra.mxu0 0.0
        %1059 = vmatprep.subr.mxu0 0.0
        %1060 = vmatpush1.msra.mxu0 0.0
        %1061 = vmatprep.subr.mxu0 0.0
        %1062 = vmatpush1.msra.mxu0 0.0
        %1063 = vmatprep.subr.mxu0 0.0
        %1064 = vmatpush1.msra.mxu0 0.0
        %1065 = vmatprep.mubr.f32.mxu0 0.0
        %1066 = vmatmul.mubr.f32.gmra.mrb[0].mxu0 %v762
        %v1067 = vpop.f32.mrb[0].mxu0
        %v1068 = vadd.f32 %v757, %v1067
        %v1069 = vpop.f32.mrb[0].mxu0
        %v1070 = vadd.f32 %v759, %v1069
        %1071 = vdwg.mxu0
        %v1072 = vld [vmem:[#allocation2] sm:$0xff]
        %v1073 = vld [vmem:[#allocation2 + $0x8] sm:$0xff]
        %v1074 = vld [vmem:[#allocation2 + $0x10] sm:$0xff]
        %v1075 = vld [vmem:[#allocation2 + $0x18] sm:$0xff]
        %v1076 = vld [vmem:[#allocation2 + $0x20] sm:$0xf]
        %vm1077 = vcmp.le.s32.totalorder %v320, 30
        %vm1078 = vcmp.le.s32.totalorder %v321, 30
        %vm1079 = vcmp.le.s32.totalorder %v322, 30
        %vm1080 = vcmp.le.s32.totalorder %v323, 30
        %vm1081 = vcmp.le.s32.totalorder %v324, 30
        %vm1082 = vcmp.le.s32.totalorder %v325, 30
        %vm1083 = vcmp.le.s32.totalorder %v326, 30
        %vm1084 = vcmp.le.s32.totalorder %v327, 30
        %v1085 = vsel %vm1077, 1, 0
        %v1086 = vsel %vm1078, 1, 0
        %v1087 = vsel %vm1079, 1, 0
        %v1088 = vsel %vm1080, 1, 0
        %v1089 = vsel %vm1081, 1, 0
        %v1090 = vsel %vm1082, 1, 0
        %v1091 = vsel %vm1083, 1, 0
        %v1092 = vsel %vm1084, 1, 0
        %vm1093 = vcmp.eq.s32.totalorder %v1085, 1
        %vm1094 = vcmp.eq.s32.totalorder %v1086, 1
        %vm1095 = vcmp.eq.s32.totalorder %v1087, 1
        %vm1096 = vcmp.eq.s32.totalorder %v1088, 1
        %vm1097 = vcmp.eq.s32.totalorder %v1089, 1
        %vm1098 = vcmp.eq.s32.totalorder %v1090, 1
        %vm1099 = vcmp.eq.s32.totalorder %v1091, 1
        %vm1100 = vcmp.eq.s32.totalorder %v1092, 1
        %v1106 = vcombine.high %v1072, %v1072
        %v1107 = vcombine.high %v1073, %v1073
        %v1108 = vcombine.high %v1074, %v1074
        %v1109 = vcombine.high %v1075, %v1075
        %1110 = vrot.lane.b32.xlu0 %v1072, 126
        %v1111 = vpop.permute.xlu0 %1110
        %1112 = vrot.lane.b32.xlu0 %v1106, 126
        %v1113 = vpop.permute.xlu0 %1112
        %1114 = vrot.lane.b32.xlu0 %v1073, 126
        %v1115 = vpop.permute.xlu0 %1114
        %1116 = vrot.lane.b32.xlu0 %v1107, 126
        %v1117 = vpop.permute.xlu0 %1116
        %1118 = vrot.lane.b32.xlu0 %v1074, 126
        %v1119 = vpop.permute.xlu0 %1118
        %1120 = vrot.lane.b32.xlu0 %v1108, 126
        %v1121 = vpop.permute.xlu0 %1120
        %1122 = vrot.lane.b32.xlu0 %v1075, 126
        %v1123 = vpop.permute.xlu0 %1122
        %1124 = vrot.lane.b32.xlu0 %v1109, 126
        %v1125 = vpop.permute.xlu0 %1124
        %1126 = vrot.lane.b32.xlu0 %v1076, 126
        %v1127 = vpop.permute.xlu0 %1126
        %vm1128 = vcmask 1031168
        %v1129 = vsel %vm1128, %v1111, %v1113
        %v1130 = vsel %vm1128, %v1113, %v1115
        %v1131 = vsel %vm1128, %v1115, %v1117
        %v1132 = vsel %vm1128, %v1117, %v1119
        %v1133 = vsel %vm1128, %v1119, %v1121
        %v1134 = vsel %vm1128, %v1121, %v1123
        %v1135 = vsel %vm1128, %v1123, %v1125
        %v1136 = vsel %vm1128, %v1125, %v1127
        %v1145 = vsel %vm1093, %v1129, 0.0
        %v1146 = vsel %vm1094, %v1130, 0.0
        %v1147 = vsel %vm1095, %v1131, 0.0
        %v1148 = vsel %vm1096, %v1132, 0.0
        %v1149 = vsel %vm1097, %v1133, 0.0
        %v1150 = vsel %vm1098, %v1134, 0.0
        %v1151 = vsel %vm1099, %v1135, 0.0
        %v1152 = vsel %vm1100, %v1136, 0.0
        %s1153 = scalar_lea.vmem %s1, 16
        %v1154 = vld [vmem:[%s1153] sm:$0xff]
        %v1156 = vsel %vm457, %v1154, 0
        %v1159 = vsel %vm356, %v1145, 0
        %v1162 = vsel %vm356, %v1146, 0
        %v1165 = vsel %vm356, %v1147, 0
        %v1168 = vsel %vm356, %v1148, 0
        %v1171 = vsel %vm356, %v1149, 0
        %v1174 = vsel %vm356, %v1150, 0
        %v1177 = vsel %vm356, %v1151, 0
        %v1180 = vsel %vm356, %v1152, 0
        %1182 = vmatprep.subr.mxu0 %v1162
        %1183 = vmatpush1.msra.mxu0 %v1159
        %1184 = vmatprep.subr.mxu0 0.0
        %1185 = vmatpush1.msra.mxu0 0.0
        %1186 = vmatprep.subr.mxu0 0.0
        %1187 = vmatpush1.msra.mxu0 0.0
        %1188 = vmatprep.subr.mxu0 0.0
        %1189 = vmatpush1.msra.mxu0 0.0
        %1190 = vmatprep.subr.mxu0 0.0
        %1191 = vmatpush1.msra.mxu0 0.0
        %1192 = vmatprep.subr.mxu0 0.0
        %1193 = vmatpush1.msra.mxu0 0.0
        %1194 = vmatprep.subr.mxu0 0.0
        %1195 = vmatpush1.msra.mxu0 0.0
        %1196 = vmatprep.subr.mxu0 0.0
        %1197 = vmatpush1.msra.mxu0 0.0
        %1198 = vmatprep.subr.mxu0 0.0
        %1199 = vmatpush1.msra.mxu0 0.0
        %1200 = vmatprep.subr.mxu0 0.0
        %1201 = vmatpush1.msra.mxu0 0.0
        %1202 = vmatprep.subr.mxu0 0.0
        %1203 = vmatpush1.msra.mxu0 0.0
        %1204 = vmatprep.subr.mxu0 0.0
        %1205 = vmatpush1.msra.mxu0 0.0
        %1206 = vmatprep.subr.mxu0 0.0
        %1207 = vmatpush1.msra.mxu0 0.0
        %1208 = vmatprep.subr.mxu0 0.0
        %1209 = vmatpush1.msra.mxu0 0.0
        %1210 = vmatprep.subr.mxu0 0.0
        %1211 = vmatpush1.msra.mxu0 0.0
        %1212 = vmatprep.subr.mxu0 0.0
        %1213 = vmatpush1.msra.mxu0 0.0
        %1214 = vmatprep.subr.mxu0 0.0
        %1215 = vmatpush1.msra.mxu0 0.0
        %1216 = vmatprep.subr.mxu0 0.0
        %1217 = vmatpush1.msra.mxu0 0.0
        %1218 = vmatprep.subr.mxu0 0.0
        %1219 = vmatpush1.msra.mxu0 0.0
        %1220 = vmatprep.subr.mxu0 0.0
        %1221 = vmatpush1.msra.mxu0 0.0
        %1222 = vmatprep.subr.mxu0 0.0
        %1223 = vmatpush1.msra.mxu0 0.0
        %1224 = vmatprep.subr.mxu0 0.0
        %1225 = vmatpush1.msra.mxu0 0.0
        %1226 = vmatprep.subr.mxu0 0.0
        %1227 = vmatpush1.msra.mxu0 0.0
        %1228 = vmatprep.subr.mxu0 0.0
        %1229 = vmatpush1.msra.mxu0 0.0
        %1230 = vmatprep.subr.mxu0 0.0
        %1231 = vmatpush1.msra.mxu0 0.0
        %1232 = vmatprep.subr.mxu0 0.0
        %1233 = vmatpush1.msra.mxu0 0.0
        %1234 = vmatprep.subr.mxu0 0.0
        %1235 = vmatpush1.msra.mxu0 0.0
        %1236 = vmatprep.subr.mxu0 0.0
        %1237 = vmatpush1.msra.mxu0 0.0
        %1238 = vmatprep.subr.mxu0 0.0
        %1239 = vmatpush1.msra.mxu0 0.0
        %1240 = vmatprep.subr.mxu0 0.0
        %1241 = vmatpush1.msra.mxu0 0.0
        %1242 = vmatprep.subr.mxu0 0.0
        %1243 = vmatpush1.msra.mxu0 0.0
        %1244 = vmatprep.subr.mxu0 0.0
        %1245 = vmatpush1.msra.mxu0 0.0
        %1246 = vmatprep.mubr.f32.mxu0 0.0
        %1247 = vmatmul.mubr.f32.gmra.mrb[0].mxu0 %v1156
        %v1248 = vpop.f32.mrb[0].mxu0
        %v1249 = vadd.f32 0.0, %v1248
        %v1250 = vpop.f32.mrb[0].mxu0
        %v1251 = vadd.f32 0.0, %v1250
        %1252 = vdwg.mxu0
        %1253 = vmatprep.subr.mxu0 %v1168
        %1254 = vmatpush1.msra.mxu0 %v1165
        %1255 = vmatprep.subr.mxu0 0.0
        %1256 = vmatpush1.msra.mxu0 0.0
        %1257 = vmatprep.subr.mxu0 0.0
        %1258 = vmatpush1.msra.mxu0 0.0
        %1259 = vmatprep.subr.mxu0 0.0
        %1260 = vmatpush1.msra.mxu0 0.0
        %1261 = vmatprep.subr.mxu0 0.0
        %1262 = vmatpush1.msra.mxu0 0.0
        %1263 = vmatprep.subr.mxu0 0.0
        %1264 = vmatpush1.msra.mxu0 0.0
        %1265 = vmatprep.subr.mxu0 0.0
        %1266 = vmatpush1.msra.mxu0 0.0
        %1267 = vmatprep.subr.mxu0 0.0
        %1268 = vmatpush1.msra.mxu0 0.0
        %1269 = vmatprep.subr.mxu0 0.0
        %1270 = vmatpush1.msra.mxu0 0.0
        %1271 = vmatprep.subr.mxu0 0.0
        %1272 = vmatpush1.msra.mxu0 0.0
        %1273 = vmatprep.subr.mxu0 0.0
        %1274 = vmatpush1.msra.mxu0 0.0
        %1275 = vmatprep.subr.mxu0 0.0
        %1276 = vmatpush1.msra.mxu0 0.0
        %1277 = vmatprep.subr.mxu0 0.0
        %1278 = vmatpush1.msra.mxu0 0.0
        %1279 = vmatprep.subr.mxu0 0.0
        %1280 = vmatpush1.msra.mxu0 0.0
        %1281 = vmatprep.subr.mxu0 0.0
        %1282 = vmatpush1.msra.mxu0 0.0
        %1283 = vmatprep.subr.mxu0 0.0
        %1284 = vmatpush1.msra.mxu0 0.0
        %1285 = vmatprep.subr.mxu0 0.0
        %1286 = vmatpush1.msra.mxu0 0.0
        %1287 = vmatprep.subr.mxu0 0.0
        %1288 = vmatpush1.msra.mxu0 0.0
        %1289 = vmatprep.subr.mxu0 0.0
        %1290 = vmatpush1.msra.mxu0 0.0
        %1291 = vmatprep.subr.mxu0 0.0
        %1292 = vmatpush1.msra.mxu0 0.0
        %1293 = vmatprep.subr.mxu0 0.0
        %1294 = vmatpush1.msra.mxu0 0.0
        %1295 = vmatprep.subr.mxu0 0.0
        %1296 = vmatpush1.msra.mxu0 0.0
        %1297 = vmatprep.subr.mxu0 0.0
        %1298 = vmatpush1.msra.mxu0 0.0
        %1299 = vmatprep.subr.mxu0 0.0
        %1300 = vmatpush1.msra.mxu0 0.0
        %1301 = vmatprep.subr.mxu0 0.0
        %1302 = vmatpush1.msra.mxu0 0.0
        %1303 = vmatprep.subr.mxu0 0.0
        %1304 = vmatpush1.msra.mxu0 0.0
        %1305 = vmatprep.subr.mxu0 0.0
        %1306 = vmatpush1.msra.mxu0 0.0
        %1307 = vmatprep.subr.mxu0 0.0
        %1308 = vmatpush1.msra.mxu0 0.0
        %1309 = vmatprep.subr.mxu0 0.0
        %1310 = vmatpush1.msra.mxu0 0.0
        %1311 = vmatprep.subr.mxu0 0.0
        %1312 = vmatpush1.msra.mxu0 0.0
        %1313 = vmatprep.subr.mxu0 0.0
        %1314 = vmatpush1.msra.mxu0 0.0
        %1315 = vmatprep.subr.mxu0 0.0
        %1316 = vmatpush1.msra.mxu0 0.0
        %1317 = vmatprep.mubr.f32.mxu0 0.0
        %1318 = vmatmul.mubr.f32.gmra.mrb[0].mxu0 %v1156
        %v1319 = vpop.f32.mrb[0].mxu0
        %v1320 = vadd.f32 0.0, %v1319
        %v1321 = vpop.f32.mrb[0].mxu0
        %v1322 = vadd.f32 0.0, %v1321
        %1323 = vdwg.mxu0
        %1324 = vmatprep.subr.mxu0 %v1174
        %1325 = vmatpush1.msra.mxu0 %v1171
        %1326 = vmatprep.subr.mxu0 0.0
        %1327 = vmatpush1.msra.mxu0 0.0
        %1328 = vmatprep.subr.mxu0 0.0
        %1329 = vmatpush1.msra.mxu0 0.0
        %1330 = vmatprep.subr.mxu0 0.0
        %1331 = vmatpush1.msra.mxu0 0.0
        %1332 = vmatprep.subr.mxu0 0.0
        %1333 = vmatpush1.msra.mxu0 0.0
        %1334 = vmatprep.subr.mxu0 0.0
        %1335 = vmatpush1.msra.mxu0 0.0
        %1336 = vmatprep.subr.mxu0 0.0
        %1337 = vmatpush1.msra.mxu0 0.0
        %1338 = vmatprep.subr.mxu0 0.0
        %1339 = vmatpush1.msra.mxu0 0.0
        %1340 = vmatprep.subr.mxu0 0.0
        %1341 = vmatpush1.msra.mxu0 0.0
        %1342 = vmatprep.subr.mxu0 0.0
        %1343 = vmatpush1.msra.mxu0 0.0
        %1344 = vmatprep.subr.mxu0 0.0
        %1345 = vmatpush1.msra.mxu0 0.0
        %1346 = vmatprep.subr.mxu0 0.0
        %1347 = vmatpush1.msra.mxu0 0.0
        %1348 = vmatprep.subr.mxu0 0.0
        %1349 = vmatpush1.msra.mxu0 0.0
        %1350 = vmatprep.subr.mxu0 0.0
        %1351 = vmatpush1.msra.mxu0 0.0
        %1352 = vmatprep.subr.mxu0 0.0
        %1353 = vmatpush1.msra.mxu0 0.0
        %1354 = vmatprep.subr.mxu0 0.0
        %1355 = vmatpush1.msra.mxu0 0.0
        %1356 = vmatprep.subr.mxu0 0.0
        %1357 = vmatpush1.msra.mxu0 0.0
        %1358 = vmatprep.subr.mxu0 0.0
        %1359 = vmatpush1.msra.mxu0 0.0
        %1360 = vmatprep.subr.mxu0 0.0
        %1361 = vmatpush1.msra.mxu0 0.0
        %1362 = vmatprep.subr.mxu0 0.0
        %1363 = vmatpush1.msra.mxu0 0.0
        %1364 = vmatprep.subr.mxu0 0.0
        %1365 = vmatpush1.msra.mxu0 0.0
        %1366 = vmatprep.subr.mxu0 0.0
        %1367 = vmatpush1.msra.mxu0 0.0
        %1368 = vmatprep.subr.mxu0 0.0
        %1369 = vmatpush1.msra.mxu0 0.0
        %1370 = vmatprep.subr.mxu0 0.0
        %1371 = vmatpush1.msra.mxu0 0.0
        %1372 = vmatprep.subr.mxu0 0.0
        %1373 = vmatpush1.msra.mxu0 0.0
        %1374 = vmatprep.subr.mxu0 0.0
        %1375 = vmatpush1.msra.mxu0 0.0
        %1376 = vmatprep.subr.mxu0 0.0
        %1377 = vmatpush1.msra.mxu0 0.0
        %1378 = vmatprep.subr.mxu0 0.0
        %1379 = vmatpush1.msra.mxu0 0.0
        %1380 = vmatprep.subr.mxu0 0.0
        %1381 = vmatpush1.msra.mxu0 0.0
        %1382 = vmatprep.subr.mxu0 0.0
        %1383 = vmatpush1.msra.mxu0 0.0
        %1384 = vmatprep.subr.mxu0 0.0
        %1385 = vmatpush1.msra.mxu0 0.0
        %1386 = vmatprep.subr.mxu0 0.0
        %1387 = vmatpush1.msra.mxu0 0.0
        %1388 = vmatprep.mubr.f32.mxu0 0.0
        %1389 = vmatmul.mubr.f32.gmra.mrb[0].mxu0 %v1156
        %v1390 = vpop.f32.mrb[0].mxu0
        %v1391 = vadd.f32 0.0, %v1390
        %v1392 = vpop.f32.mrb[0].mxu0
        %v1393 = vadd.f32 0.0, %v1392
        %1394 = vdwg.mxu0
        %1395 = vmatprep.subr.mxu0 %v1180
        %1396 = vmatpush1.msra.mxu0 %v1177
        %1397 = vmatprep.subr.mxu0 0.0
        %1398 = vmatpush1.msra.mxu0 0.0
        %1399 = vmatprep.subr.mxu0 0.0
        %1400 = vmatpush1.msra.mxu0 0.0
        %1401 = vmatprep.subr.mxu0 0.0
        %1402 = vmatpush1.msra.mxu0 0.0
        %1403 = vmatprep.subr.mxu0 0.0
        %1404 = vmatpush1.msra.mxu0 0.0
        %1405 = vmatprep.subr.mxu0 0.0
        %1406 = vmatpush1.msra.mxu0 0.0
        %1407 = vmatprep.subr.mxu0 0.0
        %1408 = vmatpush1.msra.mxu0 0.0
        %1409 = vmatprep.subr.mxu0 0.0
        %1410 = vmatpush1.msra.mxu0 0.0
        %1411 = vmatprep.subr.mxu0 0.0
        %1412 = vmatpush1.msra.mxu0 0.0
        %1413 = vmatprep.subr.mxu0 0.0
        %1414 = vmatpush1.msra.mxu0 0.0
        %1415 = vmatprep.subr.mxu0 0.0
        %1416 = vmatpush1.msra.mxu0 0.0
        %1417 = vmatprep.subr.mxu0 0.0
        %1418 = vmatpush1.msra.mxu0 0.0
        %1419 = vmatprep.subr.mxu0 0.0
        %1420 = vmatpush1.msra.mxu0 0.0
        %1421 = vmatprep.subr.mxu0 0.0
        %1422 = vmatpush1.msra.mxu0 0.0
        %1423 = vmatprep.subr.mxu0 0.0
        %1424 = vmatpush1.msra.mxu0 0.0
        %1425 = vmatprep.subr.mxu0 0.0
        %1426 = vmatpush1.msra.mxu0 0.0
        %1427 = vmatprep.subr.mxu0 0.0
        %1428 = vmatpush1.msra.mxu0 0.0
        %1429 = vmatprep.subr.mxu0 0.0
        %1430 = vmatpush1.msra.mxu0 0.0
        %1431 = vmatprep.subr.mxu0 0.0
        %1432 = vmatpush1.msra.mxu0 0.0
        %1433 = vmatprep.subr.mxu0 0.0
        %1434 = vmatpush1.msra.mxu0 0.0
        %1435 = vmatprep.subr.mxu0 0.0
        %1436 = vmatpush1.msra.mxu0 0.0
        %1437 = vmatprep.subr.mxu0 0.0
        %1438 = vmatpush1.msra.mxu0 0.0
        %1439 = vmatprep.subr.mxu0 0.0
        %1440 = vmatpush1.msra.mxu0 0.0
        %1441 = vmatprep.subr.mxu0 0.0
        %1442 = vmatpush1.msra.mxu0 0.0
        %1443 = vmatprep.subr.mxu0 0.0
        %1444 = vmatpush1.msra.mxu0 0.0
        %1445 = vmatprep.subr.mxu0 0.0
        %1446 = vmatpush1.msra.mxu0 0.0
        %1447 = vmatprep.subr.mxu0 0.0
        %1448 = vmatpush1.msra.mxu0 0.0
        %1449 = vmatprep.subr.mxu0 0.0
        %1450 = vmatpush1.msra.mxu0 0.0
        %1451 = vmatprep.subr.mxu0 0.0
        %1452 = vmatpush1.msra.mxu0 0.0
        %1453 = vmatprep.subr.mxu0 0.0
        %1454 = vmatpush1.msra.mxu0 0.0
        %1455 = vmatprep.subr.mxu0 0.0
        %1456 = vmatpush1.msra.mxu0 0.0
        %1457 = vmatprep.subr.mxu0 0.0
        %1458 = vmatpush1.msra.mxu0 0.0
        %1459 = vmatprep.mubr.f32.mxu0 0.0
        %1460 = vmatmul.mubr.f32.gmra.mrb[0].mxu0 %v1156
        %v1461 = vpop.f32.mrb[0].mxu0
        %v1462 = vadd.f32 0.0, %v1461
        %v1463 = vpop.f32.mrb[0].mxu0
        %v1464 = vadd.f32 0.0, %v1463
        %1465 = vdwg.mxu0
        %v1466 = vadd.f32 %v855, %v1249
        %v1467 = vadd.f32 %v857, %v1251
        %v1468 = vadd.f32 %v926, %v1320
        %v1469 = vadd.f32 %v928, %v1322
        %v1470 = vadd.f32 %v997, %v1391
        %v1471 = vadd.f32 %v999, %v1393
        %v1472 = vadd.f32 %v1068, %v1462
        %v1473 = vadd.f32 %v1070, %v1464
        %v1474 = vld [vmem:[#allocation2] sm:$0xff]
        %v1475 = vld [vmem:[#allocation2 + $0x8] sm:$0xff]
        %v1476 = vld [vmem:[#allocation2 + $0x10] sm:$0xff]
        %v1477 = vld [vmem:[#allocation2 + $0x18] sm:$0xff]
        %v1478 = vld [vmem:[#allocation2 + $0x20] sm:$0xf]
        %v1484 = vcombine.high %v1474, %v1474
        %v1485 = vcombine.high %v1475, %v1475
        %v1486 = vcombine.high %v1476, %v1476
        %v1487 = vcombine.high %v1477, %v1477
        %1488 = vrot.lane.b32.xlu0 %v1474, 96
        %v1489 = vpop.permute.xlu0 %1488
        %1490 = vrot.lane.b32.xlu0 %v1484, 96
        %v1491 = vpop.permute.xlu0 %1490
        %1492 = vrot.lane.b32.xlu0 %v1475, 96
        %v1493 = vpop.permute.xlu0 %1492
        %1494 = vrot.lane.b32.xlu0 %v1485, 96
        %v1495 = vpop.permute.xlu0 %1494
        %1496 = vrot.lane.b32.xlu0 %v1476, 96
        %v1497 = vpop.permute.xlu0 %1496
        %1498 = vrot.lane.b32.xlu0 %v1486, 96
        %v1499 = vpop.permute.xlu0 %1498
        %1500 = vrot.lane.b32.xlu0 %v1477, 96
        %v1501 = vpop.permute.xlu0 %1500
        %1502 = vrot.lane.b32.xlu0 %v1487, 96
        %v1503 = vpop.permute.xlu0 %1502
        %1504 = vrot.lane.b32.xlu0 %v1478, 96
        %v1505 = vpop.permute.xlu0 %1504
        %vm1506 = vcmask 785408
        %v1507 = vsel %vm1506, %v1489, %v1491
        %v1508 = vsel %vm1506, %v1491, %v1493
        %v1509 = vsel %vm1506, %v1493, %v1495
        %v1510 = vsel %vm1506, %v1495, %v1497
        %v1511 = vsel %vm1506, %v1497, %v1499
        %v1512 = vsel %vm1506, %v1499, %v1501
        %v1513 = vsel %vm1506, %v1501, %v1503
        %v1514 = vsel %vm1506, %v1503, %v1505
        %v1523 = vsel %vm397, %v1507, 0.0
        %v1524 = vsel %vm398, %v1508, 0.0
        %v1525 = vsel %vm399, %v1509, 0.0
        %v1526 = vsel %vm400, %v1510, 0.0
        %v1527 = vsel %vm401, %v1511, 0.0
        %v1528 = vsel %vm402, %v1512, 0.0
        %v1529 = vsel %vm403, %v1513, 0.0
        %v1530 = vsel %vm404, %v1514, 0.0
        %s1531 = scalar_lea.vmem %s1, 24
        %v1532 = vld [vmem:[%s1531] sm:$0xff]
        %v1534 = vsel %vm457, %v1532, 0
        %v1537 = vsel %vm356, %v1523, 0
        %v1540 = vsel %vm356, %v1524, 0
        %v1543 = vsel %vm356, %v1525, 0
        %v1546 = vsel %vm356, %v1526, 0
        %v1549 = vsel %vm356, %v1527, 0
        %v1552 = vsel %vm356, %v1528, 0
        %v1555 = vsel %vm356, %v1529, 0
        %v1558 = vsel %vm356, %v1530, 0
        %1560 = vmatprep.subr.mxu0 %v1540
        %1561 = vmatpush1.msra.mxu0 %v1537
        %1562 = vmatprep.subr.mxu0 0.0
        %1563 = vmatpush1.msra.mxu0 0.0
        %1564 = vmatprep.subr.mxu0 0.0
        %1565 = vmatpush1.msra.mxu0 0.0
        %1566 = vmatprep.subr.mxu0 0.0
        %1567 = vmatpush1.msra.mxu0 0.0
        %1568 = vmatprep.subr.mxu0 0.0
        %1569 = vmatpush1.msra.mxu0 0.0
        %1570 = vmatprep.subr.mxu0 0.0
        %1571 = vmatpush1.msra.mxu0 0.0
        %1572 = vmatprep.subr.mxu0 0.0
        %1573 = vmatpush1.msra.mxu0 0.0
        %1574 = vmatprep.subr.mxu0 0.0
        %1575 = vmatpush1.msra.mxu0 0.0
        %1576 = vmatprep.subr.mxu0 0.0
        %1577 = vmatpush1.msra.mxu0 0.0
        %1578 = vmatprep.subr.mxu0 0.0
        %1579 = vmatpush1.msra.mxu0 0.0
        %1580 = vmatprep.subr.mxu0 0.0
        %1581 = vmatpush1.msra.mxu0 0.0
        %1582 = vmatprep.subr.mxu0 0.0
        %1583 = vmatpush1.msra.mxu0 0.0
        %1584 = vmatprep.subr.mxu0 0.0
        %1585 = vmatpush1.msra.mxu0 0.0
        %1586 = vmatprep.subr.mxu0 0.0
        %1587 = vmatpush1.msra.mxu0 0.0
        %1588 = vmatprep.subr.mxu0 0.0
        %1589 = vmatpush1.msra.mxu0 0.0
        %1590 = vmatprep.subr.mxu0 0.0
        %1591 = vmatpush1.msra.mxu0 0.0
        %1592 = vmatprep.subr.mxu0 0.0
        %1593 = vmatpush1.msra.mxu0 0.0
        %1594 = vmatprep.subr.mxu0 0.0
        %1595 = vmatpush1.msra.mxu0 0.0
        %1596 = vmatprep.subr.mxu0 0.0
        %1597 = vmatpush1.msra.mxu0 0.0
        %1598 = vmatprep.subr.mxu0 0.0
        %1599 = vmatpush1.msra.mxu0 0.0
        %1600 = vmatprep.subr.mxu0 0.0
        %1601 = vmatpush1.msra.mxu0 0.0
        %1602 = vmatprep.subr.mxu0 0.0
        %1603 = vmatpush1.msra.mxu0 0.0
        %1604 = vmatprep.subr.mxu0 0.0
        %1605 = vmatpush1.msra.mxu0 0.0
        %1606 = vmatprep.subr.mxu0 0.0
        %1607 = vmatpush1.msra.mxu0 0.0
        %1608 = vmatprep.subr.mxu0 0.0
        %1609 = vmatpush1.msra.mxu0 0.0
        %1610 = vmatprep.subr.mxu0 0.0
        %1611 = vmatpush1.msra.mxu0 0.0
        %1612 = vmatprep.subr.mxu0 0.0
        %1613 = vmatpush1.msra.mxu0 0.0
        %1614 = vmatprep.subr.mxu0 0.0
        %1615 = vmatpush1.msra.mxu0 0.0
        %1616 = vmatprep.subr.mxu0 0.0
        %1617 = vmatpush1.msra.mxu0 0.0
        %1618 = vmatprep.subr.mxu0 0.0
        %1619 = vmatpush1.msra.mxu0 0.0
        %1620 = vmatprep.subr.mxu0 0.0
        %1621 = vmatpush1.msra.mxu0 0.0
        %1622 = vmatprep.subr.mxu0 0.0
        %1623 = vmatpush1.msra.mxu0 0.0
        %1624 = vmatprep.mubr.f32.mxu0 0.0
        %1625 = vmatmul.mubr.f32.gmra.mrb[0].mxu0 %v1534
        %v1626 = vpop.f32.mrb[0].mxu0
        %v1627 = vadd.f32 0.0, %v1626
        %v1628 = vpop.f32.mrb[0].mxu0
        %v1629 = vadd.f32 0.0, %v1628
        %1630 = vdwg.mxu0
        %1631 = vmatprep.subr.mxu0 %v1546
        %1632 = vmatpush1.msra.mxu0 %v1543
        %1633 = vmatprep.subr.mxu0 0.0
        %1634 = vmatpush1.msra.mxu0 0.0
        %1635 = vmatprep.subr.mxu0 0.0
        %1636 = vmatpush1.msra.mxu0 0.0
        %1637 = vmatprep.subr.mxu0 0.0
        %1638 = vmatpush1.msra.mxu0 0.0
        %1639 = vmatprep.subr.mxu0 0.0
        %1640 = vmatpush1.msra.mxu0 0.0
        %1641 = vmatprep.subr.mxu0 0.0
        %1642 = vmatpush1.msra.mxu0 0.0
        %1643 = vmatprep.subr.mxu0 0.0
        %1644 = vmatpush1.msra.mxu0 0.0
        %1645 = vmatprep.subr.mxu0 0.0
        %1646 = vmatpush1.msra.mxu0 0.0
        %1647 = vmatprep.subr.mxu0 0.0
        %1648 = vmatpush1.msra.mxu0 0.0
        %1649 = vmatprep.subr.mxu0 0.0
        %1650 = vmatpush1.msra.mxu0 0.0
        %1651 = vmatprep.subr.mxu0 0.0
        %1652 = vmatpush1.msra.mxu0 0.0
        %1653 = vmatprep.subr.mxu0 0.0
        %1654 = vmatpush1.msra.mxu0 0.0
        %1655 = vmatprep.subr.mxu0 0.0
        %1656 = vmatpush1.msra.mxu0 0.0
        %1657 = vmatprep.subr.mxu0 0.0
        %1658 = vmatpush1.msra.mxu0 0.0
        %1659 = vmatprep.subr.mxu0 0.0
        %1660 = vmatpush1.msra.mxu0 0.0
        %1661 = vmatprep.subr.mxu0 0.0
        %1662 = vmatpush1.msra.mxu0 0.0
        %1663 = vmatprep.subr.mxu0 0.0
        %1664 = vmatpush1.msra.mxu0 0.0
        %1665 = vmatprep.subr.mxu0 0.0
        %1666 = vmatpush1.msra.mxu0 0.0
        %1667 = vmatprep.subr.mxu0 0.0
        %1668 = vmatpush1.msra.mxu0 0.0
        %1669 = vmatprep.subr.mxu0 0.0
        %1670 = vmatpush1.msra.mxu0 0.0
        %1671 = vmatprep.subr.mxu0 0.0
        %1672 = vmatpush1.msra.mxu0 0.0
        %1673 = vmatprep.subr.mxu0 0.0
        %1674 = vmatpush1.msra.mxu0 0.0
        %1675 = vmatprep.subr.mxu0 0.0
        %1676 = vmatpush1.msra.mxu0 0.0
        %1677 = vmatprep.subr.mxu0 0.0
        %1678 = vmatpush1.msra.mxu0 0.0
        %1679 = vmatprep.subr.mxu0 0.0
        %1680 = vmatpush1.msra.mxu0 0.0
        %1681 = vmatprep.subr.mxu0 0.0
        %1682 = vmatpush1.msra.mxu0 0.0
        %1683 = vmatprep.subr.mxu0 0.0
        %1684 = vmatpush1.msra.mxu0 0.0
        %1685 = vmatprep.subr.mxu0 0.0
        %1686 = vmatpush1.msra.mxu0 0.0
        %1687 = vmatprep.subr.mxu0 0.0
        %1688 = vmatpush1.msra.mxu0 0.0
        %1689 = vmatprep.subr.mxu0 0.0
        %1690 = vmatpush1.msra.mxu0 0.0
        %1691 = vmatprep.subr.mxu0 0.0
        %1692 = vmatpush1.msra.mxu0 0.0
        %1693 = vmatprep.subr.mxu0 0.0
        %1694 = vmatpush1.msra.mxu0 0.0
        %1695 = vmatprep.mubr.f32.mxu0 0.0
        %1696 = vmatmul.mubr.f32.gmra.mrb[0].mxu0 %v1534
        %v1697 = vpop.f32.mrb[0].mxu0
        %v1698 = vadd.f32 0.0, %v1697
        %v1699 = vpop.f32.mrb[0].mxu0
        %v1700 = vadd.f32 0.0, %v1699
        %1701 = vdwg.mxu0
        %1702 = vmatprep.subr.mxu0 %v1552
        %1703 = vmatpush1.msra.mxu0 %v1549
        %1704 = vmatprep.subr.mxu0 0.0
        %1705 = vmatpush1.msra.mxu0 0.0
        %1706 = vmatprep.subr.mxu0 0.0
        %1707 = vmatpush1.msra.mxu0 0.0
        %1708 = vmatprep.subr.mxu0 0.0
        %1709 = vmatpush1.msra.mxu0 0.0
        %1710 = vmatprep.subr.mxu0 0.0
        %1711 = vmatpush1.msra.mxu0 0.0
        %1712 = vmatprep.subr.mxu0 0.0
        %1713 = vmatpush1.msra.mxu0 0.0
        %1714 = vmatprep.subr.mxu0 0.0
        %1715 = vmatpush1.msra.mxu0 0.0
        %1716 = vmatprep.subr.mxu0 0.0
        %1717 = vmatpush1.msra.mxu0 0.0
        %1718 = vmatprep.subr.mxu0 0.0
        %1719 = vmatpush1.msra.mxu0 0.0
        %1720 = vmatprep.subr.mxu0 0.0
        %1721 = vmatpush1.msra.mxu0 0.0
        %1722 = vmatprep.subr.mxu0 0.0
        %1723 = vmatpush1.msra.mxu0 0.0
        %1724 = vmatprep.subr.mxu0 0.0
        %1725 = vmatpush1.msra.mxu0 0.0
        %1726 = vmatprep.subr.mxu0 0.0
        %1727 = vmatpush1.msra.mxu0 0.0
        %1728 = vmatprep.subr.mxu0 0.0
        %1729 = vmatpush1.msra.mxu0 0.0
        %1730 = vmatprep.subr.mxu0 0.0
        %1731 = vmatpush1.msra.mxu0 0.0
        %1732 = vmatprep.subr.mxu0 0.0
        %1733 = vmatpush1.msra.mxu0 0.0
        %1734 = vmatprep.subr.mxu0 0.0
        %1735 = vmatpush1.msra.mxu0 0.0
        %1736 = vmatprep.subr.mxu0 0.0
        %1737 = vmatpush1.msra.mxu0 0.0
        %1738 = vmatprep.subr.mxu0 0.0
        %1739 = vmatpush1.msra.mxu0 0.0
        %1740 = vmatprep.subr.mxu0 0.0
        %1741 = vmatpush1.msra.mxu0 0.0
        %1742 = vmatprep.subr.mxu0 0.0
        %1743 = vmatpush1.msra.mxu0 0.0
        %1744 = vmatprep.subr.mxu0 0.0
        %1745 = vmatpush1.msra.mxu0 0.0
        %1746 = vmatprep.subr.mxu0 0.0
        %1747 = vmatpush1.msra.mxu0 0.0
        %1748 = vmatprep.subr.mxu0 0.0
        %1749 = vmatpush1.msra.mxu0 0.0
        %1750 = vmatprep.subr.mxu0 0.0
        %1751 = vmatpush1.msra.mxu0 0.0
        %1752 = vmatprep.subr.mxu0 0.0
        %1753 = vmatpush1.msra.mxu0 0.0
        %1754 = vmatprep.subr.mxu0 0.0
        %1755 = vmatpush1.msra.mxu0 0.0
        %1756 = vmatprep.subr.mxu0 0.0
        %1757 = vmatpush1.msra.mxu0 0.0
        %1758 = vmatprep.subr.mxu0 0.0
        %1759 = vmatpush1.msra.mxu0 0.0
        %1760 = vmatprep.subr.mxu0 0.0
        %1761 = vmatpush1.msra.mxu0 0.0
        %1762 = vmatprep.subr.mxu0 0.0
        %1763 = vmatpush1.msra.mxu0 0.0
        %1764 = vmatprep.subr.mxu0 0.0
        %1765 = vmatpush1.msra.mxu0 0.0
        %1766 = vmatprep.mubr.f32.mxu0 0.0
        %1767 = vmatmul.mubr.f32.gmra.mrb[0].mxu0 %v1534
        %v1768 = vpop.f32.mrb[0].mxu0
        %v1769 = vadd.f32 0.0, %v1768
        %v1770 = vpop.f32.mrb[0].mxu0
        %v1771 = vadd.f32 0.0, %v1770
        %1772 = vdwg.mxu0
        %1773 = vmatprep.subr.mxu0 %v1558
        %1774 = vmatpush1.msra.mxu0 %v1555
        %1775 = vmatprep.subr.mxu0 0.0
        %1776 = vmatpush1.msra.mxu0 0.0
        %1777 = vmatprep.subr.mxu0 0.0
        %1778 = vmatpush1.msra.mxu0 0.0
        %1779 = vmatprep.subr.mxu0 0.0
        %1780 = vmatpush1.msra.mxu0 0.0
        %1781 = vmatprep.subr.mxu0 0.0
        %1782 = vmatpush1.msra.mxu0 0.0
        %1783 = vmatprep.subr.mxu0 0.0
        %1784 = vmatpush1.msra.mxu0 0.0
        %1785 = vmatprep.subr.mxu0 0.0
        %1786 = vmatpush1.msra.mxu0 0.0
        %1787 = vmatprep.subr.mxu0 0.0
        %1788 = vmatpush1.msra.mxu0 0.0
        %1789 = vmatprep.subr.mxu0 0.0
        %1790 = vmatpush1.msra.mxu0 0.0
        %1791 = vmatprep.subr.mxu0 0.0
        %1792 = vmatpush1.msra.mxu0 0.0
        %1793 = vmatprep.subr.mxu0 0.0
        %1794 = vmatpush1.msra.mxu0 0.0
        %1795 = vmatprep.subr.mxu0 0.0
        %1796 = vmatpush1.msra.mxu0 0.0
        %1797 = vmatprep.subr.mxu0 0.0
        %1798 = vmatpush1.msra.mxu0 0.0
        %1799 = vmatprep.subr.mxu0 0.0
        %1800 = vmatpush1.msra.mxu0 0.0
        %1801 = vmatprep.subr.mxu0 0.0
        %1802 = vmatpush1.msra.mxu0 0.0
        %1803 = vmatprep.subr.mxu0 0.0
        %1804 = vmatpush1.msra.mxu0 0.0
        %1805 = vmatprep.subr.mxu0 0.0
        %1806 = vmatpush1.msra.mxu0 0.0
        %1807 = vmatprep.subr.mxu0 0.0
        %1808 = vmatpush1.msra.mxu0 0.0
        %1809 = vmatprep.subr.mxu0 0.0
        %1810 = vmatpush1.msra.mxu0 0.0
        %1811 = vmatprep.subr.mxu0 0.0
        %1812 = vmatpush1.msra.mxu0 0.0
        %1813 = vmatprep.subr.mxu0 0.0
        %1814 = vmatpush1.msra.mxu0 0.0
        %1815 = vmatprep.subr.mxu0 0.0
        %1816 = vmatpush1.msra.mxu0 0.0
        %1817 = vmatprep.subr.mxu0 0.0
        %1818 = vmatpush1.msra.mxu0 0.0
        %1819 = vmatprep.subr.mxu0 0.0
        %1820 = vmatpush1.msra.mxu0 0.0
        %1821 = vmatprep.subr.mxu0 0.0
        %1822 = vmatpush1.msra.mxu0 0.0
        %1823 = vmatprep.subr.mxu0 0.0
        %1824 = vmatpush1.msra.mxu0 0.0
        %1825 = vmatprep.subr.mxu0 0.0
        %1826 = vmatpush1.msra.mxu0 0.0
        %1827 = vmatprep.subr.mxu0 0.0
        %1828 = vmatpush1.msra.mxu0 0.0
        %1829 = vmatprep.subr.mxu0 0.0
        %1830 = vmatpush1.msra.mxu0 0.0
        %1831 = vmatprep.subr.mxu0 0.0
        %1832 = vmatpush1.msra.mxu0 0.0
        %1833 = vmatprep.subr.mxu0 0.0
        %1834 = vmatpush1.msra.mxu0 0.0
        %1835 = vmatprep.subr.mxu0 0.0
        %1836 = vmatpush1.msra.mxu0 0.0
        %1837 = vmatprep.mubr.f32.mxu0 0.0
        %1838 = vmatmul.mubr.f32.gmra.mrb[0].mxu0 %v1534
        %v1839 = vpop.f32.mrb[0].mxu0
        %v1840 = vadd.f32 0.0, %v1839
        %v1841 = vpop.f32.mrb[0].mxu0
        %v1842 = vadd.f32 0.0, %v1841
        %1843 = vdwg.mxu0
        %v1844 = vadd.f32 %v1466, %v1627
        %v1845 = vadd.f32 %v1467, %v1629
        %v1846 = vadd.f32 %v1468, %v1698
        %v1847 = vadd.f32 %v1469, %v1700
        %v1848 = vadd.f32 %v1470, %v1769
        %v1849 = vadd.f32 %v1471, %v1771
        %v1850 = vadd.f32 %v1472, %v1840
        %v1851 = vadd.f32 %v1473, %v1842
        %v1852 = vld [vmem:[#allocation2] sm:$0xff]
        %v1853 = vld [vmem:[#allocation2 + $0x8] sm:$0xff]
        %v1854 = vld [vmem:[#allocation2 + $0x10] sm:$0xff]
        %v1855 = vld [vmem:[#allocation2 + $0x18] sm:$0xff]
        %v1856 = vld [vmem:[#allocation2 + $0x20] sm:$0xf]
        %s1857 = scalar_lea.vmem %s1, 32
        %v1858 = vld [vmem:[%s1857] sm:$0xff]
        %v1864 = vcombine.high %v1852, %v1852
        %v1865 = vcombine.high %v1853, %v1853
        %v1866 = vcombine.high %v1854, %v1854
        %v1867 = vcombine.high %v1855, %v1855
        %1868 = vrot.lane.b32.xlu0 %v1852, 95
        %v1869 = vpop.permute.xlu0 %1868
        %1870 = vrot.lane.b32.xlu0 %v1864, 95
        %v1871 = vpop.permute.xlu0 %1870
        %1872 = vrot.lane.b32.xlu0 %v1853, 95
        %v1873 = vpop.permute.xlu0 %1872
        %1874 = vrot.lane.b32.xlu0 %v1865, 95
        %v1875 = vpop.permute.xlu0 %1874
        %1876 = vrot.lane.b32.xlu0 %v1854, 95
        %v1877 = vpop.permute.xlu0 %1876
        %1878 = vrot.lane.b32.xlu0 %v1866, 95
        %v1879 = vpop.permute.xlu0 %1878
        %1880 = vrot.lane.b32.xlu0 %v1855, 95
        %v1881 = vpop.permute.xlu0 %1880
        %1882 = vrot.lane.b32.xlu0 %v1867, 95
        %v1883 = vpop.permute.xlu0 %1882
        %1884 = vrot.lane.b32.xlu0 %v1856, 95
        %v1885 = vpop.permute.xlu0 %1884
        %vm1886 = vcmask 777216
        %v1887 = vsel %vm1886, %v1869, %v1871
        %v1888 = vsel %vm1886, %v1871, %v1873
        %v1889 = vsel %vm1886, %v1873, %v1875
        %v1890 = vsel %vm1886, %v1875, %v1877
        %v1891 = vsel %vm1886, %v1877, %v1879
        %v1892 = vsel %vm1886, %v1879, %v1881
        %v1893 = vsel %vm1886, %v1881, %v1883
        %v1894 = vsel %vm1886, %v1883, %v1885
        %v1896 = vsel %vm457, %v1858, 0
        %v1898 = vsel %vm356, %v1887, 0
        %v1900 = vsel %vm356, %v1888, 0
        %v1902 = vsel %vm356, %v1889, 0
        %v1904 = vsel %vm356, %v1890, 0
        %v1906 = vsel %vm356, %v1891, 0
        %v1908 = vsel %vm356, %v1892, 0
        %v1910 = vsel %vm356, %v1893, 0
        %v1912 = vsel %vm356, %v1894, 0
        %1914 = vmatprep.subr.mxu0 %v1900
        %1915 = vmatpush1.msra.mxu0 %v1898
        %1916 = vmatprep.subr.mxu0 0.0
        %1917 = vmatpush1.msra.mxu0 0.0
        %1918 = vmatprep.subr.mxu0 0.0
        %1919 = vmatpush1.msra.mxu0 0.0
        %1920 = vmatprep.subr.mxu0 0.0
        %1921 = vmatpush1.msra.mxu0 0.0
        %1922 = vmatprep.subr.mxu0 0.0
        %1923 = vmatpush1.msra.mxu0 0.0
        %1924 = vmatprep.subr.mxu0 0.0
        %1925 = vmatpush1.msra.mxu0 0.0
        %1926 = vmatprep.subr.mxu0 0.0
        %1927 = vmatpush1.msra.mxu0 0.0
        %1928 = vmatprep.subr.mxu0 0.0
        %1929 = vmatpush1.msra.mxu0 0.0
        %1930 = vmatprep.subr.mxu0 0.0
        %1931 = vmatpush1.msra.mxu0 0.0
        %1932 = vmatprep.subr.mxu0 0.0
        %1933 = vmatpush1.msra.mxu0 0.0
        %1934 = vmatprep.subr.mxu0 0.0
        %1935 = vmatpush1.msra.mxu0 0.0
        %1936 = vmatprep.subr.mxu0 0.0
        %1937 = vmatpush1.msra.mxu0 0.0
        %1938 = vmatprep.subr.mxu0 0.0
        %1939 = vmatpush1.msra.mxu0 0.0
        %1940 = vmatprep.subr.mxu0 0.0
        %1941 = vmatpush1.msra.mxu0 0.0
        %1942 = vmatprep.subr.mxu0 0.0
        %1943 = vmatpush1.msra.mxu0 0.0
        %1944 = vmatprep.subr.mxu0 0.0
        %1945 = vmatpush1.msra.mxu0 0.0
        %1946 = vmatprep.subr.mxu0 0.0
        %1947 = vmatpush1.msra.mxu0 0.0
        %1948 = vmatprep.subr.mxu0 0.0
        %1949 = vmatpush1.msra.mxu0 0.0
        %1950 = vmatprep.subr.mxu0 0.0
        %1951 = vmatpush1.msra.mxu0 0.0
        %1952 = vmatprep.subr.mxu0 0.0
        %1953 = vmatpush1.msra.mxu0 0.0
        %1954 = vmatprep.subr.mxu0 0.0
        %1955 = vmatpush1.msra.mxu0 0.0
        %1956 = vmatprep.subr.mxu0 0.0
        %1957 = vmatpush1.msra.mxu0 0.0
        %1958 = vmatprep.subr.mxu0 0.0
        %1959 = vmatpush1.msra.mxu0 0.0
        %1960 = vmatprep.subr.mxu0 0.0
        %1961 = vmatpush1.msra.mxu0 0.0
        %1962 = vmatprep.subr.mxu0 0.0
        %1963 = vmatpush1.msra.mxu0 0.0
        %1964 = vmatprep.subr.mxu0 0.0
        %1965 = vmatpush1.msra.mxu0 0.0
        %1966 = vmatprep.subr.mxu0 0.0
        %1967 = vmatpush1.msra.mxu0 0.0
        %1968 = vmatprep.subr.mxu0 0.0
        %1969 = vmatpush1.msra.mxu0 0.0
        %1970 = vmatprep.subr.mxu0 0.0
        %1971 = vmatpush1.msra.mxu0 0.0
        %1972 = vmatprep.subr.mxu0 0.0
        %1973 = vmatpush1.msra.mxu0 0.0
        %1974 = vmatprep.subr.mxu0 0.0
        %1975 = vmatpush1.msra.mxu0 0.0
        %1976 = vmatprep.subr.mxu0 0.0
        %1977 = vmatpush1.msra.mxu0 0.0
        %1978 = vmatprep.mubr.f32.mxu0 0.0
        %1979 = vmatmul.mubr.f32.gmra.mrb[0].mxu0 %v1896
        %v1980 = vpop.f32.mrb[0].mxu0
        %v1981 = vadd.f32 0.0, %v1980
        %v1982 = vpop.f32.mrb[0].mxu0
        %v1983 = vadd.f32 0.0, %v1982
        %1984 = vdwg.mxu0
        %1985 = vmatprep.subr.mxu0 %v1904
        %1986 = vmatpush1.msra.mxu0 %v1902
        %1987 = vmatprep.subr.mxu0 0.0
        %1988 = vmatpush1.msra.mxu0 0.0
        %1989 = vmatprep.subr.mxu0 0.0
        %1990 = vmatpush1.msra.mxu0 0.0
        %1991 = vmatprep.subr.mxu0 0.0
        %1992 = vmatpush1.msra.mxu0 0.0
        %1993 = vmatprep.subr.mxu0 0.0
        %1994 = vmatpush1.msra.mxu0 0.0
        %1995 = vmatprep.subr.mxu0 0.0
        %1996 = vmatpush1.msra.mxu0 0.0
        %1997 = vmatprep.subr.mxu0 0.0
        %1998 = vmatpush1.msra.mxu0 0.0
        %1999 = vmatprep.subr.mxu0 0.0
        %2000 = vmatpush1.msra.mxu0 0.0
        %2001 = vmatprep.subr.mxu0 0.0
        %2002 = vmatpush1.msra.mxu0 0.0
        %2003 = vmatprep.subr.mxu0 0.0
        %2004 = vmatpush1.msra.mxu0 0.0
        %2005 = vmatprep.subr.mxu0 0.0
        %2006 = vmatpush1.msra.mxu0 0.0
        %2007 = vmatprep.subr.mxu0 0.0
        %2008 = vmatpush1.msra.mxu0 0.0
        %2009 = vmatprep.subr.mxu0 0.0
        %2010 = vmatpush1.msra.mxu0 0.0
        %2011 = vmatprep.subr.mxu0 0.0
        %2012 = vmatpush1.msra.mxu0 0.0
        %2013 = vmatprep.subr.mxu0 0.0
        %2014 = vmatpush1.msra.mxu0 0.0
        %2015 = vmatprep.subr.mxu0 0.0
        %2016 = vmatpush1.msra.mxu0 0.0
        %2017 = vmatprep.subr.mxu0 0.0
        %2018 = vmatpush1.msra.mxu0 0.0
        %2019 = vmatprep.subr.mxu0 0.0
        %2020 = vmatpush1.msra.mxu0 0.0
        %2021 = vmatprep.subr.mxu0 0.0
        %2022 = vmatpush1.msra.mxu0 0.0
        %2023 = vmatprep.subr.mxu0 0.0
        %2024 = vmatpush1.msra.mxu0 0.0
        %2025 = vmatprep.subr.mxu0 0.0
        %2026 = vmatpush1.msra.mxu0 0.0
        %2027 = vmatprep.subr.mxu0 0.0
        %2028 = vmatpush1.msra.mxu0 0.0
        %2029 = vmatprep.subr.mxu0 0.0
        %2030 = vmatpush1.msra.mxu0 0.0
        %2031 = vmatprep.subr.mxu0 0.0
        %2032 = vmatpush1.msra.mxu0 0.0
        %2033 = vmatprep.subr.mxu0 0.0
        %2034 = vmatpush1.msra.mxu0 0.0
        %2035 = vmatprep.subr.mxu0 0.0
        %2036 = vmatpush1.msra.mxu0 0.0
        %2037 = vmatprep.subr.mxu0 0.0
        %2038 = vmatpush1.msra.mxu0 0.0
        %2039 = vmatprep.subr.mxu0 0.0
        %2040 = vmatpush1.msra.mxu0 0.0
        %2041 = vmatprep.subr.mxu0 0.0
        %2042 = vmatpush1.msra.mxu0 0.0
        %2043 = vmatprep.subr.mxu0 0.0
        %2044 = vmatpush1.msra.mxu0 0.0
        %2045 = vmatprep.subr.mxu0 0.0
        %2046 = vmatpush1.msra.mxu0 0.0
        %2047 = vmatprep.subr.mxu0 0.0
        %2048 = vmatpush1.msra.mxu0 0.0
        %2049 = vmatprep.mubr.f32.mxu0 0.0
        %2050 = vmatmul.mubr.f32.gmra.mrb[0].mxu0 %v1896
        %v2051 = vpop.f32.mrb[0].mxu0
        %v2052 = vadd.f32 0.0, %v2051
        %v2053 = vpop.f32.mrb[0].mxu0
        %v2054 = vadd.f32 0.0, %v2053
        %2055 = vdwg.mxu0
        %2056 = vmatprep.subr.mxu0 %v1908
        %2057 = vmatpush1.msra.mxu0 %v1906
        %2058 = vmatprep.subr.mxu0 0.0
        %2059 = vmatpush1.msra.mxu0 0.0
        %2060 = vmatprep.subr.mxu0 0.0
        %2061 = vmatpush1.msra.mxu0 0.0
        %2062 = vmatprep.subr.mxu0 0.0
        %2063 = vmatpush1.msra.mxu0 0.0
        %2064 = vmatprep.subr.mxu0 0.0
        %2065 = vmatpush1.msra.mxu0 0.0
        %2066 = vmatprep.subr.mxu0 0.0
        %2067 = vmatpush1.msra.mxu0 0.0
        %2068 = vmatprep.subr.mxu0 0.0
        %2069 = vmatpush1.msra.mxu0 0.0
        %2070 = vmatprep.subr.mxu0 0.0
        %2071 = vmatpush1.msra.mxu0 0.0
        %2072 = vmatprep.subr.mxu0 0.0
        %2073 = vmatpush1.msra.mxu0 0.0
        %2074 = vmatprep.subr.mxu0 0.0
        %2075 = vmatpush1.msra.mxu0 0.0
        %2076 = vmatprep.subr.mxu0 0.0
        %2077 = vmatpush1.msra.mxu0 0.0
        %2078 = vmatprep.subr.mxu0 0.0
        %2079 = vmatpush1.msra.mxu0 0.0
        %2080 = vmatprep.subr.mxu0 0.0
        %2081 = vmatpush1.msra.mxu0 0.0
        %2082 = vmatprep.subr.mxu0 0.0
        %2083 = vmatpush1.msra.mxu0 0.0
        %2084 = vmatprep.subr.mxu0 0.0
        %2085 = vmatpush1.msra.mxu0 0.0
        %2086 = vmatprep.subr.mxu0 0.0
        %2087 = vmatpush1.msra.mxu0 0.0
        %2088 = vmatprep.subr.mxu0 0.0
        %2089 = vmatpush1.msra.mxu0 0.0
        %2090 = vmatprep.subr.mxu0 0.0
        %2091 = vmatpush1.msra.mxu0 0.0
        %2092 = vmatprep.subr.mxu0 0.0
        %2093 = vmatpush1.msra.mxu0 0.0
        %2094 = vmatprep.subr.mxu0 0.0
        %2095 = vmatpush1.msra.mxu0 0.0
        %2096 = vmatprep.subr.mxu0 0.0
        %2097 = vmatpush1.msra.mxu0 0.0
        %2098 = vmatprep.subr.mxu0 0.0
        %2099 = vmatpush1.msra.mxu0 0.0
        %2100 = vmatprep.subr.mxu0 0.0
        %2101 = vmatpush1.msra.mxu0 0.0
        %2102 = vmatprep.subr.mxu0 0.0
        %2103 = vmatpush1.msra.mxu0 0.0
        %2104 = vmatprep.subr.mxu0 0.0
        %2105 = vmatpush1.msra.mxu0 0.0
        %2106 = vmatprep.subr.mxu0 0.0
        %2107 = vmatpush1.msra.mxu0 0.0
        %2108 = vmatprep.subr.mxu0 0.0
        %2109 = vmatpush1.msra.mxu0 0.0
        %2110 = vmatprep.subr.mxu0 0.0
        %2111 = vmatpush1.msra.mxu0 0.0
        %2112 = vmatprep.subr.mxu0 0.0
        %2113 = vmatpush1.msra.mxu0 0.0
        %2114 = vmatprep.subr.mxu0 0.0
        %2115 = vmatpush1.msra.mxu0 0.0
        %2116 = vmatprep.subr.mxu0 0.0
        %2117 = vmatpush1.msra.mxu0 0.0
        %2118 = vmatprep.subr.mxu0 0.0
        %2119 = vmatpush1.msra.mxu0 0.0
        %2120 = vmatprep.mubr.f32.mxu0 0.0
        %2121 = vmatmul.mubr.f32.gmra.mrb[0].mxu0 %v1896
        %v2122 = vpop.f32.mrb[0].mxu0
        %v2123 = vadd.f32 0.0, %v2122
        %v2124 = vpop.f32.mrb[0].mxu0
        %v2125 = vadd.f32 0.0, %v2124
        %2126 = vdwg.mxu0
        %2127 = vmatprep.subr.mxu0 %v1912
        %2128 = vmatpush1.msra.mxu0 %v1910
        %2129 = vmatprep.subr.mxu0 0.0
        %2130 = vmatpush1.msra.mxu0 0.0
        %2131 = vmatprep.subr.mxu0 0.0
        %2132 = vmatpush1.msra.mxu0 0.0
        %2133 = vmatprep.subr.mxu0 0.0
        %2134 = vmatpush1.msra.mxu0 0.0
        %2135 = vmatprep.subr.mxu0 0.0
        %2136 = vmatpush1.msra.mxu0 0.0
        %2137 = vmatprep.subr.mxu0 0.0
        %2138 = vmatpush1.msra.mxu0 0.0
        %2139 = vmatprep.subr.mxu0 0.0
        %2140 = vmatpush1.msra.mxu0 0.0
        %2141 = vmatprep.subr.mxu0 0.0
        %2142 = vmatpush1.msra.mxu0 0.0
        %2143 = vmatprep.subr.mxu0 0.0
        %2144 = vmatpush1.msra.mxu0 0.0
        %2145 = vmatprep.subr.mxu0 0.0
        %2146 = vmatpush1.msra.mxu0 0.0
        %2147 = vmatprep.subr.mxu0 0.0
        %2148 = vmatpush1.msra.mxu0 0.0
        %2149 = vmatprep.subr.mxu0 0.0
        %2150 = vmatpush1.msra.mxu0 0.0
        %2151 = vmatprep.subr.mxu0 0.0
        %2152 = vmatpush1.msra.mxu0 0.0
        %2153 = vmatprep.subr.mxu0 0.0
        %2154 = vmatpush1.msra.mxu0 0.0
        %2155 = vmatprep.subr.mxu0 0.0
        %2156 = vmatpush1.msra.mxu0 0.0
        %2157 = vmatprep.subr.mxu0 0.0
        %2158 = vmatpush1.msra.mxu0 0.0
        %2159 = vmatprep.subr.mxu0 0.0
        %2160 = vmatpush1.msra.mxu0 0.0
        %2161 = vmatprep.subr.mxu0 0.0
        %2162 = vmatpush1.msra.mxu0 0.0
        %2163 = vmatprep.subr.mxu0 0.0
        %2164 = vmatpush1.msra.mxu0 0.0
        %2165 = vmatprep.subr.mxu0 0.0
        %2166 = vmatpush1.msra.mxu0 0.0
        %2167 = vmatprep.subr.mxu0 0.0
        %2168 = vmatpush1.msra.mxu0 0.0
        %2169 = vmatprep.subr.mxu0 0.0
        %2170 = vmatpush1.msra.mxu0 0.0
        %2171 = vmatprep.subr.mxu0 0.0
        %2172 = vmatpush1.msra.mxu0 0.0
        %2173 = vmatprep.subr.mxu0 0.0
        %2174 = vmatpush1.msra.mxu0 0.0
        %2175 = vmatprep.subr.mxu0 0.0
        %2176 = vmatpush1.msra.mxu0 0.0
        %2177 = vmatprep.subr.mxu0 0.0
        %2178 = vmatpush1.msra.mxu0 0.0
        %2179 = vmatprep.subr.mxu0 0.0
        %2180 = vmatpush1.msra.mxu0 0.0
        %2181 = vmatprep.subr.mxu0 0.0
        %2182 = vmatpush1.msra.mxu0 0.0
        %2183 = vmatprep.subr.mxu0 0.0
        %2184 = vmatpush1.msra.mxu0 0.0
        %2185 = vmatprep.subr.mxu0 0.0
        %2186 = vmatpush1.msra.mxu0 0.0
        %2187 = vmatprep.subr.mxu0 0.0
        %2188 = vmatpush1.msra.mxu0 0.0
        %2189 = vmatprep.subr.mxu0 0.0
        %2190 = vmatpush1.msra.mxu0 0.0
        %2191 = vmatprep.mubr.f32.mxu0 0.0
        %2192 = vmatmul.mubr.f32.gmra.mrb[0].mxu0 %v1896
        %v2193 = vpop.f32.mrb[0].mxu0
        %v2194 = vadd.f32 0.0, %v2193
        %v2195 = vpop.f32.mrb[0].mxu0
        %v2196 = vadd.f32 0.0, %v2195
        %2197 = vdwg.mxu0
        %v2198 = vadd.f32 %v1844, %v1981
        %v2199 = vadd.f32 %v1845, %v1983
        %v2200 = vadd.f32 %v1846, %v2052
        %v2201 = vadd.f32 %v1847, %v2054
        %v2202 = vadd.f32 %v1848, %v2123
        %v2203 = vadd.f32 %v1849, %v2125
        %v2204 = vadd.f32 %v1850, %v2194
        %v2205 = vadd.f32 %v1851, %v2196
        %v2206 = vld [vmem:[#allocation2] sm:$0xff]
        %v2207 = vld [vmem:[#allocation2 + $0x8] sm:$0xff]
        %v2208 = vld [vmem:[#allocation2 + $0x10] sm:$0xff]
        %v2209 = vld [vmem:[#allocation2 + $0x18] sm:$0xff]
        %v2210 = vld [vmem:[#allocation2 + $0x20] sm:$0xf]
        %v2216 = vcombine.high %v2206, %v2206
        %v2217 = vcombine.high %v2207, %v2207
        %v2218 = vcombine.high %v2208, %v2208
        %v2219 = vcombine.high %v2209, %v2209
        %2220 = vrot.lane.b32.xlu0 %v2206, 94
        %v2221 = vpop.permute.xlu0 %2220
        %2222 = vrot.lane.b32.xlu0 %v2216, 94
        %v2223 = vpop.permute.xlu0 %2222
        %2224 = vrot.lane.b32.xlu0 %v2207, 94
        %v2225 = vpop.permute.xlu0 %2224
        %2226 = vrot.lane.b32.xlu0 %v2217, 94
        %v2227 = vpop.permute.xlu0 %2226
        %2228 = vrot.lane.b32.xlu0 %v2208, 94
        %v2229 = vpop.permute.xlu0 %2228
        %2230 = vrot.lane.b32.xlu0 %v2218, 94
        %v2231 = vpop.permute.xlu0 %2230
        %2232 = vrot.lane.b32.xlu0 %v2209, 94
        %v2233 = vpop.permute.xlu0 %2232
        %2234 = vrot.lane.b32.xlu0 %v2219, 94
        %v2235 = vpop.permute.xlu0 %2234
        %2236 = vrot.lane.b32.xlu0 %v2210, 94
        %v2237 = vpop.permute.xlu0 %2236
        %vm2238 = vcmask 769024
        %v2239 = vsel %vm2238, %v2221, %v2223
        %v2240 = vsel %vm2238, %v2223, %v2225
        %v2241 = vsel %vm2238, %v2225, %v2227
        %v2242 = vsel %vm2238, %v2227, %v2229
        %v2243 = vsel %vm2238, %v2229, %v2231
        %v2244 = vsel %vm2238, %v2231, %v2233
        %v2245 = vsel %vm2238, %v2233, %v2235
        %v2246 = vsel %vm2238, %v2235, %v2237
        %v2255 = vsel %vm1093, %v2239, 0.0
        %v2256 = vsel %vm1094, %v2240, 0.0
        %v2257 = vsel %vm1095, %v2241, 0.0
        %v2258 = vsel %vm1096, %v2242, 0.0
        %v2259 = vsel %vm1097, %v2243, 0.0
        %v2260 = vsel %vm1098, %v2244, 0.0
        %v2261 = vsel %vm1099, %v2245, 0.0
        %v2262 = vsel %vm1100, %v2246, 0.0
        %s2263 = scalar_lea.vmem %s1, 40
        %v2264 = vld [vmem:[%s2263] sm:$0xff]
        %v2266 = vsel %vm457, %v2264, 0
        %v2269 = vsel %vm356, %v2255, 0
        %v2272 = vsel %vm356, %v2256, 0
        %v2275 = vsel %vm356, %v2257, 0
        %v2278 = vsel %vm356, %v2258, 0
        %v2281 = vsel %vm356, %v2259, 0
        %v2284 = vsel %vm356, %v2260, 0
        %v2287 = vsel %vm356, %v2261, 0
        %v2290 = vsel %vm356, %v2262, 0
        %2292 = vmatprep.subr.mxu0 %v2272
        %2293 = vmatpush1.msra.mxu0 %v2269
        %2294 = vmatprep.subr.mxu0 0.0
        %2295 = vmatpush1.msra.mxu0 0.0
        %2296 = vmatprep.subr.mxu0 0.0
        %2297 = vmatpush1.msra.mxu0 0.0
        %2298 = vmatprep.subr.mxu0 0.0
        %2299 = vmatpush1.msra.mxu0 0.0
        %2300 = vmatprep.subr.mxu0 0.0
        %2301 = vmatpush1.msra.mxu0 0.0
        %2302 = vmatprep.subr.mxu0 0.0
        %2303 = vmatpush1.msra.mxu0 0.0
        %2304 = vmatprep.subr.mxu0 0.0
        %2305 = vmatpush1.msra.mxu0 0.0
        %2306 = vmatprep.subr.mxu0 0.0
        %2307 = vmatpush1.msra.mxu0 0.0
        %2308 = vmatprep.subr.mxu0 0.0
        %2309 = vmatpush1.msra.mxu0 0.0
        %2310 = vmatprep.subr.mxu0 0.0
        %2311 = vmatpush1.msra.mxu0 0.0
        %2312 = vmatprep.subr.mxu0 0.0
        %2313 = vmatpush1.msra.mxu0 0.0
        %2314 = vmatprep.subr.mxu0 0.0
        %2315 = vmatpush1.msra.mxu0 0.0
        %2316 = vmatprep.subr.mxu0 0.0
        %2317 = vmatpush1.msra.mxu0 0.0
        %2318 = vmatprep.subr.mxu0 0.0
        %2319 = vmatpush1.msra.mxu0 0.0
        %2320 = vmatprep.subr.mxu0 0.0
        %2321 = vmatpush1.msra.mxu0 0.0
        %2322 = vmatprep.subr.mxu0 0.0
        %2323 = vmatpush1.msra.mxu0 0.0
        %2324 = vmatprep.subr.mxu0 0.0
        %2325 = vmatpush1.msra.mxu0 0.0
        %2326 = vmatprep.subr.mxu0 0.0
        %2327 = vmatpush1.msra.mxu0 0.0
        %2328 = vmatprep.subr.mxu0 0.0
        %2329 = vmatpush1.msra.mxu0 0.0
        %2330 = vmatprep.subr.mxu0 0.0
        %2331 = vmatpush1.msra.mxu0 0.0
        %2332 = vmatprep.subr.mxu0 0.0
        %2333 = vmatpush1.msra.mxu0 0.0
        %2334 = vmatprep.subr.mxu0 0.0
        %2335 = vmatpush1.msra.mxu0 0.0
        %2336 = vmatprep.subr.mxu0 0.0
        %2337 = vmatpush1.msra.mxu0 0.0
        %2338 = vmatprep.subr.mxu0 0.0
        %2339 = vmatpush1.msra.mxu0 0.0
        %2340 = vmatprep.subr.mxu0 0.0
        %2341 = vmatpush1.msra.mxu0 0.0
        %2342 = vmatprep.subr.mxu0 0.0
        %2343 = vmatpush1.msra.mxu0 0.0
        %2344 = vmatprep.subr.mxu0 0.0
        %2345 = vmatpush1.msra.mxu0 0.0
        %2346 = vmatprep.subr.mxu0 0.0
        %2347 = vmatpush1.msra.mxu0 0.0
        %2348 = vmatprep.subr.mxu0 0.0
        %2349 = vmatpush1.msra.mxu0 0.0
        %2350 = vmatprep.subr.mxu0 0.0
        %2351 = vmatpush1.msra.mxu0 0.0
        %2352 = vmatprep.subr.mxu0 0.0
        %2353 = vmatpush1.msra.mxu0 0.0
        %2354 = vmatprep.subr.mxu0 0.0
        %2355 = vmatpush1.msra.mxu0 0.0
        %2356 = vmatprep.mubr.f32.mxu0 0.0
        %2357 = vmatmul.mubr.f32.gmra.mrb[0].mxu0 %v2266
        %v2358 = vpop.f32.mrb[0].mxu0
        %v2359 = vadd.f32 0.0, %v2358
        %v2360 = vpop.f32.mrb[0].mxu0
        %v2361 = vadd.f32 0.0, %v2360
        %2362 = vdwg.mxu0
        %2363 = vmatprep.subr.mxu0 %v2278
        %2364 = vmatpush1.msra.mxu0 %v2275
        %2365 = vmatprep.subr.mxu0 0.0
        %2366 = vmatpush1.msra.mxu0 0.0
        %2367 = vmatprep.subr.mxu0 0.0
        %2368 = vmatpush1.msra.mxu0 0.0
        %2369 = vmatprep.subr.mxu0 0.0
        %2370 = vmatpush1.msra.mxu0 0.0
        %2371 = vmatprep.subr.mxu0 0.0
        %2372 = vmatpush1.msra.mxu0 0.0
        %2373 = vmatprep.subr.mxu0 0.0
        %2374 = vmatpush1.msra.mxu0 0.0
        %2375 = vmatprep.subr.mxu0 0.0
        %2376 = vmatpush1.msra.mxu0 0.0
        %2377 = vmatprep.subr.mxu0 0.0
        %2378 = vmatpush1.msra.mxu0 0.0
        %2379 = vmatprep.subr.mxu0 0.0
        %2380 = vmatpush1.msra.mxu0 0.0
        %2381 = vmatprep.subr.mxu0 0.0
        %2382 = vmatpush1.msra.mxu0 0.0
        %2383 = vmatprep.subr.mxu0 0.0
        %2384 = vmatpush1.msra.mxu0 0.0
        %2385 = vmatprep.subr.mxu0 0.0
        %2386 = vmatpush1.msra.mxu0 0.0
        %2387 = vmatprep.subr.mxu0 0.0
        %2388 = vmatpush1.msra.mxu0 0.0
        %2389 = vmatprep.subr.mxu0 0.0
        %2390 = vmatpush1.msra.mxu0 0.0
        %2391 = vmatprep.subr.mxu0 0.0
        %2392 = vmatpush1.msra.mxu0 0.0
        %2393 = vmatprep.subr.mxu0 0.0
        %2394 = vmatpush1.msra.mxu0 0.0
        %2395 = vmatprep.subr.mxu0 0.0
        %2396 = vmatpush1.msra.mxu0 0.0
        %2397 = vmatprep.subr.mxu0 0.0
        %2398 = vmatpush1.msra.mxu0 0.0
        %2399 = vmatprep.subr.mxu0 0.0
        %2400 = vmatpush1.msra.mxu0 0.0
        %2401 = vmatprep.subr.mxu0 0.0
        %2402 = vmatpush1.msra.mxu0 0.0
        %2403 = vmatprep.subr.mxu0 0.0
        %2404 = vmatpush1.msra.mxu0 0.0
        %2405 = vmatprep.subr.mxu0 0.0
        %2406 = vmatpush1.msra.mxu0 0.0
        %2407 = vmatprep.subr.mxu0 0.0
        %2408 = vmatpush1.msra.mxu0 0.0
        %2409 = vmatprep.subr.mxu0 0.0
        %2410 = vmatpush1.msra.mxu0 0.0
        %2411 = vmatprep.subr.mxu0 0.0
        %2412 = vmatpush1.msra.mxu0 0.0
        %2413 = vmatprep.subr.mxu0 0.0
        %2414 = vmatpush1.msra.mxu0 0.0
        %2415 = vmatprep.subr.mxu0 0.0
        %2416 = vmatpush1.msra.mxu0 0.0
        %2417 = vmatprep.subr.mxu0 0.0
        %2418 = vmatpush1.msra.mxu0 0.0
        %2419 = vmatprep.subr.mxu0 0.0
        %2420 = vmatpush1.msra.mxu0 0.0
        %2421 = vmatprep.subr.mxu0 0.0
        %2422 = vmatpush1.msra.mxu0 0.0
        %2423 = vmatprep.subr.mxu0 0.0
        %2424 = vmatpush1.msra.mxu0 0.0
        %2425 = vmatprep.subr.mxu0 0.0
        %2426 = vmatpush1.msra.mxu0 0.0
        %2427 = vmatprep.mubr.f32.mxu0 0.0
        %2428 = vmatmul.mubr.f32.gmra.mrb[0].mxu0 %v2266
        %v2429 = vpop.f32.mrb[0].mxu0
        %v2430 = vadd.f32 0.0, %v2429
        %v2431 = vpop.f32.mrb[0].mxu0
        %v2432 = vadd.f32 0.0, %v2431
        %2433 = vdwg.mxu0
        %2434 = vmatprep.subr.mxu0 %v2284
        %2435 = vmatpush1.msra.mxu0 %v2281
        %2436 = vmatprep.subr.mxu0 0.0
        %2437 = vmatpush1.msra.mxu0 0.0
        %2438 = vmatprep.subr.mxu0 0.0
        %2439 = vmatpush1.msra.mxu0 0.0
        %2440 = vmatprep.subr.mxu0 0.0
        %2441 = vmatpush1.msra.mxu0 0.0
        %2442 = vmatprep.subr.mxu0 0.0
        %2443 = vmatpush1.msra.mxu0 0.0
        %2444 = vmatprep.subr.mxu0 0.0
        %2445 = vmatpush1.msra.mxu0 0.0
        %2446 = vmatprep.subr.mxu0 0.0
        %2447 = vmatpush1.msra.mxu0 0.0
        %2448 = vmatprep.subr.mxu0 0.0
        %2449 = vmatpush1.msra.mxu0 0.0
        %2450 = vmatprep.subr.mxu0 0.0
        %2451 = vmatpush1.msra.mxu0 0.0
        %2452 = vmatprep.subr.mxu0 0.0
        %2453 = vmatpush1.msra.mxu0 0.0
        %2454 = vmatprep.subr.mxu0 0.0
        %2455 = vmatpush1.msra.mxu0 0.0
        %2456 = vmatprep.subr.mxu0 0.0
        %2457 = vmatpush1.msra.mxu0 0.0
        %2458 = vmatprep.subr.mxu0 0.0
        %2459 = vmatpush1.msra.mxu0 0.0
        %2460 = vmatprep.subr.mxu0 0.0
        %2461 = vmatpush1.msra.mxu0 0.0
        %2462 = vmatprep.subr.mxu0 0.0
        %2463 = vmatpush1.msra.mxu0 0.0
        %2464 = vmatprep.subr.mxu0 0.0
        %2465 = vmatpush1.msra.mxu0 0.0
        %2466 = vmatprep.subr.mxu0 0.0
        %2467 = vmatpush1.msra.mxu0 0.0
        %2468 = vmatprep.subr.mxu0 0.0
        %2469 = vmatpush1.msra.mxu0 0.0
        %2470 = vmatprep.subr.mxu0 0.0
        %2471 = vmatpush1.msra.mxu0 0.0
        %2472 = vmatprep.subr.mxu0 0.0
        %2473 = vmatpush1.msra.mxu0 0.0
        %2474 = vmatprep.subr.mxu0 0.0
        %2475 = vmatpush1.msra.mxu0 0.0
        %2476 = vmatprep.subr.mxu0 0.0
        %2477 = vmatpush1.msra.mxu0 0.0
        %2478 = vmatprep.subr.mxu0 0.0
        %2479 = vmatpush1.msra.mxu0 0.0
        %2480 = vmatprep.subr.mxu0 0.0
        %2481 = vmatpush1.msra.mxu0 0.0
        %2482 = vmatprep.subr.mxu0 0.0
        %2483 = vmatpush1.msra.mxu0 0.0
        %2484 = vmatprep.subr.mxu0 0.0
        %2485 = vmatpush1.msra.mxu0 0.0
        %2486 = vmatprep.subr.mxu0 0.0
        %2487 = vmatpush1.msra.mxu0 0.0
        %2488 = vmatprep.subr.mxu0 0.0
        %2489 = vmatpush1.msra.mxu0 0.0
        %2490 = vmatprep.subr.mxu0 0.0
        %2491 = vmatpush1.msra.mxu0 0.0
        %2492 = vmatprep.subr.mxu0 0.0
        %2493 = vmatpush1.msra.mxu0 0.0
        %2494 = vmatprep.subr.mxu0 0.0
        %2495 = vmatpush1.msra.mxu0 0.0
        %2496 = vmatprep.subr.mxu0 0.0
        %2497 = vmatpush1.msra.mxu0 0.0
        %2498 = vmatprep.mubr.f32.mxu0 0.0
        %2499 = vmatmul.mubr.f32.gmra.mrb[0].mxu0 %v2266
        %v2500 = vpop.f32.mrb[0].mxu0
        %v2501 = vadd.f32 0.0, %v2500
        %v2502 = vpop.f32.mrb[0].mxu0
        %v2503 = vadd.f32 0.0, %v2502
        %2504 = vdwg.mxu0
        %2505 = vmatprep.subr.mxu0 %v2290
        %2506 = vmatpush1.msra.mxu0 %v2287
        %2507 = vmatprep.subr.mxu0 0.0
        %2508 = vmatpush1.msra.mxu0 0.0
        %2509 = vmatprep.subr.mxu0 0.0
        %2510 = vmatpush1.msra.mxu0 0.0
        %2511 = vmatprep.subr.mxu0 0.0
        %2512 = vmatpush1.msra.mxu0 0.0
        %2513 = vmatprep.subr.mxu0 0.0
        %2514 = vmatpush1.msra.mxu0 0.0
        %2515 = vmatprep.subr.mxu0 0.0
        %2516 = vmatpush1.msra.mxu0 0.0
        %2517 = vmatprep.subr.mxu0 0.0
        %2518 = vmatpush1.msra.mxu0 0.0
        %2519 = vmatprep.subr.mxu0 0.0
        %2520 = vmatpush1.msra.mxu0 0.0
        %2521 = vmatprep.subr.mxu0 0.0
        %2522 = vmatpush1.msra.mxu0 0.0
        %2523 = vmatprep.subr.mxu0 0.0
        %2524 = vmatpush1.msra.mxu0 0.0
        %2525 = vmatprep.subr.mxu0 0.0
        %2526 = vmatpush1.msra.mxu0 0.0
        %2527 = vmatprep.subr.mxu0 0.0
        %2528 = vmatpush1.msra.mxu0 0.0
        %2529 = vmatprep.subr.mxu0 0.0
        %2530 = vmatpush1.msra.mxu0 0.0
        %2531 = vmatprep.subr.mxu0 0.0
        %2532 = vmatpush1.msra.mxu0 0.0
        %2533 = vmatprep.subr.mxu0 0.0
        %2534 = vmatpush1.msra.mxu0 0.0
        %2535 = vmatprep.subr.mxu0 0.0
        %2536 = vmatpush1.msra.mxu0 0.0
        %2537 = vmatprep.subr.mxu0 0.0
        %2538 = vmatpush1.msra.mxu0 0.0
        %2539 = vmatprep.subr.mxu0 0.0
        %2540 = vmatpush1.msra.mxu0 0.0
        %2541 = vmatprep.subr.mxu0 0.0
        %2542 = vmatpush1.msra.mxu0 0.0
        %2543 = vmatprep.subr.mxu0 0.0
        %2544 = vmatpush1.msra.mxu0 0.0
        %2545 = vmatprep.subr.mxu0 0.0
        %2546 = vmatpush1.msra.mxu0 0.0
        %2547 = vmatprep.subr.mxu0 0.0
        %2548 = vmatpush1.msra.mxu0 0.0
        %2549 = vmatprep.subr.mxu0 0.0
        %2550 = vmatpush1.msra.mxu0 0.0
        %2551 = vmatprep.subr.mxu0 0.0
        %2552 = vmatpush1.msra.mxu0 0.0
        %2553 = vmatprep.subr.mxu0 0.0
        %2554 = vmatpush1.msra.mxu0 0.0
        %2555 = vmatprep.subr.mxu0 0.0
        %2556 = vmatpush1.msra.mxu0 0.0
        %2557 = vmatprep.subr.mxu0 0.0
        %2558 = vmatpush1.msra.mxu0 0.0
        %2559 = vmatprep.subr.mxu0 0.0
        %2560 = vmatpush1.msra.mxu0 0.0
        %2561 = vmatprep.subr.mxu0 0.0
        %2562 = vmatpush1.msra.mxu0 0.0
        %2563 = vmatprep.subr.mxu0 0.0
        %2564 = vmatpush1.msra.mxu0 0.0
        %2565 = vmatprep.subr.mxu0 0.0
        %2566 = vmatpush1.msra.mxu0 0.0
        %2567 = vmatprep.subr.mxu0 0.0
        %2568 = vmatpush1.msra.mxu0 0.0
        %2569 = vmatprep.mubr.f32.mxu0 0.0
        %2570 = vmatmul.mubr.f32.gmra.mrb[0].mxu0 %v2266
        %v2571 = vpop.f32.mrb[0].mxu0
        %v2572 = vadd.f32 0.0, %v2571
        %v2573 = vpop.f32.mrb[0].mxu0
        %v2574 = vadd.f32 0.0, %v2573
        %2575 = vdwg.mxu0
        %v2576 = vadd.f32 %v2198, %v2359
        %v2577 = vadd.f32 %v2199, %v2361
        %v2578 = vadd.f32 %v2200, %v2430
        %v2579 = vadd.f32 %v2201, %v2432
        %v2580 = vadd.f32 %v2202, %v2501
        %v2581 = vadd.f32 %v2203, %v2503
        %v2582 = vadd.f32 %v2204, %v2572
        %v2583 = vadd.f32 %v2205, %v2574
        %v2584 = vld [vmem:[#allocation2] sm:$0xff]
        %v2585 = vld [vmem:[#allocation2 + $0x8] sm:$0xff]
        %v2586 = vld [vmem:[#allocation2 + $0x10] sm:$0xff]
        %v2587 = vld [vmem:[#allocation2 + $0x18] sm:$0xff]
        %v2588 = vld [vmem:[#allocation2 + $0x20] sm:$0xf]
        %v2594 = vcombine.high %v2584, %v2584
        %v2595 = vcombine.high %v2585, %v2585
        %v2596 = vcombine.high %v2586, %v2586
        %v2597 = vcombine.high %v2587, %v2587
        %2598 = vrot.lane.b32.xlu0 %v2584, 64
        %v2599 = vpop.permute.xlu0 %2598
        %2600 = vrot.lane.b32.xlu0 %v2594, 64
        %v2601 = vpop.permute.xlu0 %2600
        %2602 = vrot.lane.b32.xlu0 %v2585, 64
        %v2603 = vpop.permute.xlu0 %2602
        %2604 = vrot.lane.b32.xlu0 %v2595, 64
        %v2605 = vpop.permute.xlu0 %2604
        %2606 = vrot.lane.b32.xlu0 %v2586, 64
        %v2607 = vpop.permute.xlu0 %2606
        %2608 = vrot.lane.b32.xlu0 %v2596, 64
        %v2609 = vpop.permute.xlu0 %2608
        %2610 = vrot.lane.b32.xlu0 %v2587, 64
        %v2611 = vpop.permute.xlu0 %2610
        %2612 = vrot.lane.b32.xlu0 %v2597, 64
        %v2613 = vpop.permute.xlu0 %2612
        %2614 = vrot.lane.b32.xlu0 %v2588, 64
        %v2615 = vpop.permute.xlu0 %2614
        %vm2616 = vcmask 523264
        %v2617 = vsel %vm2616, %v2599, %v2601
        %v2618 = vsel %vm2616, %v2601, %v2603
        %v2619 = vsel %vm2616, %v2603, %v2605
        %v2620 = vsel %vm2616, %v2605, %v2607
        %v2621 = vsel %vm2616, %v2607, %v2609
        %v2622 = vsel %vm2616, %v2609, %v2611
        %v2623 = vsel %vm2616, %v2611, %v2613
        %v2624 = vsel %vm2616, %v2613, %v2615
        %v2633 = vsel %vm397, %v2617, 0.0
        %v2634 = vsel %vm398, %v2618, 0.0
        %v2635 = vsel %vm399, %v2619, 0.0
        %v2636 = vsel %vm400, %v2620, 0.0
        %v2637 = vsel %vm401, %v2621, 0.0
        %v2638 = vsel %vm402, %v2622, 0.0
        %v2639 = vsel %vm403, %v2623, 0.0
        %v2640 = vsel %vm404, %v2624, 0.0
        %s2641 = scalar_lea.vmem %s1, 48
        %v2642 = vld [vmem:[%s2641] sm:$0xff]
        %v2644 = vsel %vm457, %v2642, 0
        %v2647 = vsel %vm356, %v2633, 0
        %v2650 = vsel %vm356, %v2634, 0
        %v2653 = vsel %vm356, %v2635, 0
        %v2656 = vsel %vm356, %v2636, 0
        %v2659 = vsel %vm356, %v2637, 0
        %v2662 = vsel %vm356, %v2638, 0
        %v2665 = vsel %vm356, %v2639, 0
        %v2668 = vsel %vm356, %v2640, 0
        %2670 = vmatprep.subr.mxu0 %v2650
        %2671 = vmatpush1.msra.mxu0 %v2647
        %2672 = vmatprep.subr.mxu0 0.0
        %2673 = vmatpush1.msra.mxu0 0.0
        %2674 = vmatprep.subr.mxu0 0.0
        %2675 = vmatpush1.msra.mxu0 0.0
        %2676 = vmatprep.subr.mxu0 0.0
        %2677 = vmatpush1.msra.mxu0 0.0
        %2678 = vmatprep.subr.mxu0 0.0
        %2679 = vmatpush1.msra.mxu0 0.0
        %2680 = vmatprep.subr.mxu0 0.0
        %2681 = vmatpush1.msra.mxu0 0.0
        %2682 = vmatprep.subr.mxu0 0.0
        %2683 = vmatpush1.msra.mxu0 0.0
        %2684 = vmatprep.subr.mxu0 0.0
        %2685 = vmatpush1.msra.mxu0 0.0
        %2686 = vmatprep.subr.mxu0 0.0
        %2687 = vmatpush1.msra.mxu0 0.0
        %2688 = vmatprep.subr.mxu0 0.0
        %2689 = vmatpush1.msra.mxu0 0.0
        %2690 = vmatprep.subr.mxu0 0.0
        %2691 = vmatpush1.msra.mxu0 0.0
        %2692 = vmatprep.subr.mxu0 0.0
        %2693 = vmatpush1.msra.mxu0 0.0
        %2694 = vmatprep.subr.mxu0 0.0
        %2695 = vmatpush1.msra.mxu0 0.0
        %2696 = vmatprep.subr.mxu0 0.0
        %2697 = vmatpush1.msra.mxu0 0.0
        %2698 = vmatprep.subr.mxu0 0.0
        %2699 = vmatpush1.msra.mxu0 0.0
        %2700 = vmatprep.subr.mxu0 0.0
        %2701 = vmatpush1.msra.mxu0 0.0
        %2702 = vmatprep.subr.mxu0 0.0
        %2703 = vmatpush1.msra.mxu0 0.0
        %2704 = vmatprep.subr.mxu0 0.0
        %2705 = vmatpush1.msra.mxu0 0.0
        %2706 = vmatprep.subr.mxu0 0.0
        %2707 = vmatpush1.msra.mxu0 0.0
        %2708 = vmatprep.subr.mxu0 0.0
        %2709 = vmatpush1.msra.mxu0 0.0
        %2710 = vmatprep.subr.mxu0 0.0
        %2711 = vmatpush1.msra.mxu0 0.0
        %2712 = vmatprep.subr.mxu0 0.0
        %2713 = vmatpush1.msra.mxu0 0.0
        %2714 = vmatprep.subr.mxu0 0.0
        %2715 = vmatpush1.msra.mxu0 0.0
        %2716 = vmatprep.subr.mxu0 0.0
        %2717 = vmatpush1.msra.mxu0 0.0
        %2718 = vmatprep.subr.mxu0 0.0
        %2719 = vmatpush1.msra.mxu0 0.0
        %2720 = vmatprep.subr.mxu0 0.0
        %2721 = vmatpush1.msra.mxu0 0.0
        %2722 = vmatprep.subr.mxu0 0.0
        %2723 = vmatpush1.msra.mxu0 0.0
        %2724 = vmatprep.subr.mxu0 0.0
        %2725 = vmatpush1.msra.mxu0 0.0
        %2726 = vmatprep.subr.mxu0 0.0
        %2727 = vmatpush1.msra.mxu0 0.0
        %2728 = vmatprep.subr.mxu0 0.0
        %2729 = vmatpush1.msra.mxu0 0.0
        %2730 = vmatprep.subr.mxu0 0.0
        %2731 = vmatpush1.msra.mxu0 0.0
        %2732 = vmatprep.subr.mxu0 0.0
        %2733 = vmatpush1.msra.mxu0 0.0
        %2734 = vmatprep.mubr.f32.mxu0 0.0
        %2735 = vmatmul.mubr.f32.gmra.mrb[0].mxu0 %v2644
        %v2736 = vpop.f32.mrb[0].mxu0
        %v2737 = vadd.f32 0.0, %v2736
        %v2738 = vpop.f32.mrb[0].mxu0
        %v2739 = vadd.f32 0.0, %v2738
        %2740 = vdwg.mxu0
        %2741 = vmatprep.subr.mxu0 %v2656
        %2742 = vmatpush1.msra.mxu0 %v2653
        %2743 = vmatprep.subr.mxu0 0.0
        %2744 = vmatpush1.msra.mxu0 0.0
        %2745 = vmatprep.subr.mxu0 0.0
        %2746 = vmatpush1.msra.mxu0 0.0
        %2747 = vmatprep.subr.mxu0 0.0
        %2748 = vmatpush1.msra.mxu0 0.0
        %2749 = vmatprep.subr.mxu0 0.0
        %2750 = vmatpush1.msra.mxu0 0.0
        %2751 = vmatprep.subr.mxu0 0.0
        %2752 = vmatpush1.msra.mxu0 0.0
        %2753 = vmatprep.subr.mxu0 0.0
        %2754 = vmatpush1.msra.mxu0 0.0
        %2755 = vmatprep.subr.mxu0 0.0
        %2756 = vmatpush1.msra.mxu0 0.0
        %2757 = vmatprep.subr.mxu0 0.0
        %2758 = vmatpush1.msra.mxu0 0.0
        %2759 = vmatprep.subr.mxu0 0.0
        %2760 = vmatpush1.msra.mxu0 0.0
        %2761 = vmatprep.subr.mxu0 0.0
        %2762 = vmatpush1.msra.mxu0 0.0
        %2763 = vmatprep.subr.mxu0 0.0
        %2764 = vmatpush1.msra.mxu0 0.0
        %2765 = vmatprep.subr.mxu0 0.0
        %2766 = vmatpush1.msra.mxu0 0.0
        %2767 = vmatprep.subr.mxu0 0.0
        %2768 = vmatpush1.msra.mxu0 0.0
        %2769 = vmatprep.subr.mxu0 0.0
        %2770 = vmatpush1.msra.mxu0 0.0
        %2771 = vmatprep.subr.mxu0 0.0
        %2772 = vmatpush1.msra.mxu0 0.0
        %2773 = vmatprep.subr.mxu0 0.0
        %2774 = vmatpush1.msra.mxu0 0.0
        %2775 = vmatprep.subr.mxu0 0.0
        %2776 = vmatpush1.msra.mxu0 0.0
        %2777 = vmatprep.subr.mxu0 0.0
        %2778 = vmatpush1.msra.mxu0 0.0
        %2779 = vmatprep.subr.mxu0 0.0
        %2780 = vmatpush1.msra.mxu0 0.0
        %2781 = vmatprep.subr.mxu0 0.0
        %2782 = vmatpush1.msra.mxu0 0.0
        %2783 = vmatprep.subr.mxu0 0.0
        %2784 = vmatpush1.msra.mxu0 0.0
        %2785 = vmatprep.subr.mxu0 0.0
        %2786 = vmatpush1.msra.mxu0 0.0
        %2787 = vmatprep.subr.mxu0 0.0
        %2788 = vmatpush1.msra.mxu0 0.0
        %2789 = vmatprep.subr.mxu0 0.0
        %2790 = vmatpush1.msra.mxu0 0.0
        %2791 = vmatprep.subr.mxu0 0.0
        %2792 = vmatpush1.msra.mxu0 0.0
        %2793 = vmatprep.subr.mxu0 0.0
        %2794 = vmatpush1.msra.mxu0 0.0
        %2795 = vmatprep.subr.mxu0 0.0
        %2796 = vmatpush1.msra.mxu0 0.0
        %2797 = vmatprep.subr.mxu0 0.0
        %2798 = vmatpush1.msra.mxu0 0.0
        %2799 = vmatprep.subr.mxu0 0.0
        %2800 = vmatpush1.msra.mxu0 0.0
        %2801 = vmatprep.subr.mxu0 0.0
        %2802 = vmatpush1.msra.mxu0 0.0
        %2803 = vmatprep.subr.mxu0 0.0
        %2804 = vmatpush1.msra.mxu0 0.0
        %2805 = vmatprep.mubr.f32.mxu0 0.0
        %2806 = vmatmul.mubr.f32.gmra.mrb[0].mxu0 %v2644
        %v2807 = vpop.f32.mrb[0].mxu0
        %v2808 = vadd.f32 0.0, %v2807
        %v2809 = vpop.f32.mrb[0].mxu0
        %v2810 = vadd.f32 0.0, %v2809
        %2811 = vdwg.mxu0
        %2812 = vmatprep.subr.mxu0 %v2662
        %2813 = vmatpush1.msra.mxu0 %v2659
        %2814 = vmatprep.subr.mxu0 0.0
        %2815 = vmatpush1.msra.mxu0 0.0
        %2816 = vmatprep.subr.mxu0 0.0
        %2817 = vmatpush1.msra.mxu0 0.0
        %2818 = vmatprep.subr.mxu0 0.0
        %2819 = vmatpush1.msra.mxu0 0.0
        %2820 = vmatprep.subr.mxu0 0.0
        %2821 = vmatpush1.msra.mxu0 0.0
        %2822 = vmatprep.subr.mxu0 0.0
        %2823 = vmatpush1.msra.mxu0 0.0
        %2824 = vmatprep.subr.mxu0 0.0
        %2825 = vmatpush1.msra.mxu0 0.0
        %2826 = vmatprep.subr.mxu0 0.0
        %2827 = vmatpush1.msra.mxu0 0.0
        %2828 = vmatprep.subr.mxu0 0.0
        %2829 = vmatpush1.msra.mxu0 0.0
        %2830 = vmatprep.subr.mxu0 0.0
        %2831 = vmatpush1.msra.mxu0 0.0
        %2832 = vmatprep.subr.mxu0 0.0
        %2833 = vmatpush1.msra.mxu0 0.0
        %2834 = vmatprep.subr.mxu0 0.0
        %2835 = vmatpush1.msra.mxu0 0.0
        %2836 = vmatprep.subr.mxu0 0.0
        %2837 = vmatpush1.msra.mxu0 0.0
        %2838 = vmatprep.subr.mxu0 0.0
        %2839 = vmatpush1.msra.mxu0 0.0
        %2840 = vmatprep.subr.mxu0 0.0
        %2841 = vmatpush1.msra.mxu0 0.0
        %2842 = vmatprep.subr.mxu0 0.0
        %2843 = vmatpush1.msra.mxu0 0.0
        %2844 = vmatprep.subr.mxu0 0.0
        %2845 = vmatpush1.msra.mxu0 0.0
        %2846 = vmatprep.subr.mxu0 0.0
        %2847 = vmatpush1.msra.mxu0 0.0
        %2848 = vmatprep.subr.mxu0 0.0
        %2849 = vmatpush1.msra.mxu0 0.0
        %2850 = vmatprep.subr.mxu0 0.0
        %2851 = vmatpush1.msra.mxu0 0.0
        %2852 = vmatprep.subr.mxu0 0.0
        %2853 = vmatpush1.msra.mxu0 0.0
        %2854 = vmatprep.subr.mxu0 0.0
        %2855 = vmatpush1.msra.mxu0 0.0
        %2856 = vmatprep.subr.mxu0 0.0
        %2857 = vmatpush1.msra.mxu0 0.0
        %2858 = vmatprep.subr.mxu0 0.0
        %2859 = vmatpush1.msra.mxu0 0.0
        %2860 = vmatprep.subr.mxu0 0.0
        %2861 = vmatpush1.msra.mxu0 0.0
        %2862 = vmatprep.subr.mxu0 0.0
        %2863 = vmatpush1.msra.mxu0 0.0
        %2864 = vmatprep.subr.mxu0 0.0
        %2865 = vmatpush1.msra.mxu0 0.0
        %2866 = vmatprep.subr.mxu0 0.0
        %2867 = vmatpush1.msra.mxu0 0.0
        %2868 = vmatprep.subr.mxu0 0.0
        %2869 = vmatpush1.msra.mxu0 0.0
        %2870 = vmatprep.subr.mxu0 0.0
        %2871 = vmatpush1.msra.mxu0 0.0
        %2872 = vmatprep.subr.mxu0 0.0
        %2873 = vmatpush1.msra.mxu0 0.0
        %2874 = vmatprep.subr.mxu0 0.0
        %2875 = vmatpush1.msra.mxu0 0.0
        %2876 = vmatprep.mubr.f32.mxu0 0.0
        %2877 = vmatmul.mubr.f32.gmra.mrb[0].mxu0 %v2644
        %v2878 = vpop.f32.mrb[0].mxu0
        %v2879 = vadd.f32 0.0, %v2878
        %v2880 = vpop.f32.mrb[0].mxu0
        %v2881 = vadd.f32 0.0, %v2880
        %2882 = vdwg.mxu0
        %2883 = vmatprep.subr.mxu0 %v2668
        %2884 = vmatpush1.msra.mxu0 %v2665
        %2885 = vmatprep.subr.mxu0 0.0
        %2886 = vmatpush1.msra.mxu0 0.0
        %2887 = vmatprep.subr.mxu0 0.0
        %2888 = vmatpush1.msra.mxu0 0.0
        %2889 = vmatprep.subr.mxu0 0.0
        %2890 = vmatpush1.msra.mxu0 0.0
        %2891 = vmatprep.subr.mxu0 0.0
        %2892 = vmatpush1.msra.mxu0 0.0
        %2893 = vmatprep.subr.mxu0 0.0
        %2894 = vmatpush1.msra.mxu0 0.0
        %2895 = vmatprep.subr.mxu0 0.0
        %2896 = vmatpush1.msra.mxu0 0.0
        %2897 = vmatprep.subr.mxu0 0.0
        %2898 = vmatpush1.msra.mxu0 0.0
        %2899 = vmatprep.subr.mxu0 0.0
        %2900 = vmatpush1.msra.mxu0 0.0
        %2901 = vmatprep.subr.mxu0 0.0
        %2902 = vmatpush1.msra.mxu0 0.0
        %2903 = vmatprep.subr.mxu0 0.0
        %2904 = vmatpush1.msra.mxu0 0.0
        %2905 = vmatprep.subr.mxu0 0.0
        %2906 = vmatpush1.msra.mxu0 0.0
        %2907 = vmatprep.subr.mxu0 0.0
        %2908 = vmatpush1.msra.mxu0 0.0
        %2909 = vmatprep.subr.mxu0 0.0
        %2910 = vmatpush1.msra.mxu0 0.0
        %2911 = vmatprep.subr.mxu0 0.0
        %2912 = vmatpush1.msra.mxu0 0.0
        %2913 = vmatprep.subr.mxu0 0.0
        %2914 = vmatpush1.msra.mxu0 0.0
        %2915 = vmatprep.subr.mxu0 0.0
        %2916 = vmatpush1.msra.mxu0 0.0
        %2917 = vmatprep.subr.mxu0 0.0
        %2918 = vmatpush1.msra.mxu0 0.0
        %2919 = vmatprep.subr.mxu0 0.0
        %2920 = vmatpush1.msra.mxu0 0.0
        %2921 = vmatprep.subr.mxu0 0.0
        %2922 = vmatpush1.msra.mxu0 0.0
        %2923 = vmatprep.subr.mxu0 0.0
        %2924 = vmatpush1.msra.mxu0 0.0
        %2925 = vmatprep.subr.mxu0 0.0
        %2926 = vmatpush1.msra.mxu0 0.0
        %2927 = vmatprep.subr.mxu0 0.0
        %2928 = vmatpush1.msra.mxu0 0.0
        %2929 = vmatprep.subr.mxu0 0.0
        %2930 = vmatpush1.msra.mxu0 0.0
        %2931 = vmatprep.subr.mxu0 0.0
        %2932 = vmatpush1.msra.mxu0 0.0
        %2933 = vmatprep.subr.mxu0 0.0
        %2934 = vmatpush1.msra.mxu0 0.0
        %2935 = vmatprep.subr.mxu0 0.0
        %2936 = vmatpush1.msra.mxu0 0.0
        %2937 = vmatprep.subr.mxu0 0.0
        %2938 = vmatpush1.msra.mxu0 0.0
        %2939 = vmatprep.subr.mxu0 0.0
        %2940 = vmatpush1.msra.mxu0 0.0
        %2941 = vmatprep.subr.mxu0 0.0
        %2942 = vmatpush1.msra.mxu0 0.0
        %2943 = vmatprep.subr.mxu0 0.0
        %2944 = vmatpush1.msra.mxu0 0.0
        %2945 = vmatprep.subr.mxu0 0.0
        %2946 = vmatpush1.msra.mxu0 0.0
        %2947 = vmatprep.mubr.f32.mxu0 0.0
        %2948 = vmatmul.mubr.f32.gmra.mrb[0].mxu0 %v2644
        %v2949 = vpop.f32.mrb[0].mxu0
        %v2950 = vadd.f32 0.0, %v2949
        %v2951 = vpop.f32.mrb[0].mxu0
        %v2952 = vadd.f32 0.0, %v2951
        %2953 = vdwg.mxu0
        %v2954 = vadd.f32 %v2576, %v2737
        %v2955 = vadd.f32 %v2577, %v2739
        %v2956 = vadd.f32 %v2578, %v2808
        %v2957 = vadd.f32 %v2579, %v2810
        %v2958 = vadd.f32 %v2580, %v2879
        %v2959 = vadd.f32 %v2581, %v2881
        %v2960 = vadd.f32 %v2582, %v2950
        %v2961 = vadd.f32 %v2583, %v2952
        %v2962 = vld [vmem:[#allocation2] sm:$0xff]
        %v2963 = vld [vmem:[#allocation2 + $0x8] sm:$0xff]
        %v2964 = vld [vmem:[#allocation2 + $0x10] sm:$0xff]
        %v2965 = vld [vmem:[#allocation2 + $0x18] sm:$0xff]
        %v2966 = vld [vmem:[#allocation2 + $0x20] sm:$0xf]
        %s2967 = scalar_lea.vmem %s1, 56
        %v2968 = vld [vmem:[%s2967] sm:$0xff]
        %v2974 = vcombine.high %v2962, %v2962
        %v2975 = vcombine.high %v2963, %v2963
        %v2976 = vcombine.high %v2964, %v2964
        %v2977 = vcombine.high %v2965, %v2965
        %2978 = vrot.lane.b32.xlu0 %v2962, 63
        %v2979 = vpop.permute.xlu0 %2978
        %2980 = vrot.lane.b32.xlu0 %v2974, 63
        %v2981 = vpop.permute.xlu0 %2980
        %2982 = vrot.lane.b32.xlu0 %v2963, 63
        %v2983 = vpop.permute.xlu0 %2982
        %2984 = vrot.lane.b32.xlu0 %v2975, 63
        %v2985 = vpop.permute.xlu0 %2984
        %2986 = vrot.lane.b32.xlu0 %v2964, 63
        %v2987 = vpop.permute.xlu0 %2986
        %2988 = vrot.lane.b32.xlu0 %v2976, 63
        %v2989 = vpop.permute.xlu0 %2988
        %2990 = vrot.lane.b32.xlu0 %v2965, 63
        %v2991 = vpop.permute.xlu0 %2990
        %2992 = vrot.lane.b32.xlu0 %v2977, 63
        %v2993 = vpop.permute.xlu0 %2992
        %2994 = vrot.lane.b32.xlu0 %v2966, 63
        %v2995 = vpop.permute.xlu0 %2994
        %vm2996 = vcmask 515072
        %v2997 = vsel %vm2996, %v2979, %v2981
        %v2998 = vsel %vm2996, %v2981, %v2983
        %v2999 = vsel %vm2996, %v2983, %v2985
        %v3000 = vsel %vm2996, %v2985, %v2987
        %v3001 = vsel %vm2996, %v2987, %v2989
        %v3002 = vsel %vm2996, %v2989, %v2991
        %v3003 = vsel %vm2996, %v2991, %v2993
        %v3004 = vsel %vm2996, %v2993, %v2995
        %v3006 = vsel %vm457, %v2968, 0
        %v3008 = vsel %vm356, %v2997, 0
        %v3010 = vsel %vm356, %v2998, 0
        %v3012 = vsel %vm356, %v2999, 0
        %v3014 = vsel %vm356, %v3000, 0
        %v3016 = vsel %vm356, %v3001, 0
        %v3018 = vsel %vm356, %v3002, 0
        %v3020 = vsel %vm356, %v3003, 0
        %v3022 = vsel %vm356, %v3004, 0
        %3024 = vmatprep.subr.mxu0 %v3010
        %3025 = vmatpush1.msra.mxu0 %v3008
        %3026 = vmatprep.subr.mxu0 0.0
        %3027 = vmatpush1.msra.mxu0 0.0
        %3028 = vmatprep.subr.mxu0 0.0
        %3029 = vmatpush1.msra.mxu0 0.0
        %3030 = vmatprep.subr.mxu0 0.0
        %3031 = vmatpush1.msra.mxu0 0.0
        %3032 = vmatprep.subr.mxu0 0.0
        %3033 = vmatpush1.msra.mxu0 0.0
        %3034 = vmatprep.subr.mxu0 0.0
        %3035 = vmatpush1.msra.mxu0 0.0
        %3036 = vmatprep.subr.mxu0 0.0
        %3037 = vmatpush1.msra.mxu0 0.0
        %3038 = vmatprep.subr.mxu0 0.0
        %3039 = vmatpush1.msra.mxu0 0.0
        %3040 = vmatprep.subr.mxu0 0.0
        %3041 = vmatpush1.msra.mxu0 0.0
        %3042 = vmatprep.subr.mxu0 0.0
        %3043 = vmatpush1.msra.mxu0 0.0
        %3044 = vmatprep.subr.mxu0 0.0
        %3045 = vmatpush1.msra.mxu0 0.0
        %3046 = vmatprep.subr.mxu0 0.0
        %3047 = vmatpush1.msra.mxu0 0.0
        %3048 = vmatprep.subr.mxu0 0.0
        %3049 = vmatpush1.msra.mxu0 0.0
        %3050 = vmatprep.subr.mxu0 0.0
        %3051 = vmatpush1.msra.mxu0 0.0
        %3052 = vmatprep.subr.mxu0 0.0
        %3053 = vmatpush1.msra.mxu0 0.0
        %3054 = vmatprep.subr.mxu0 0.0
        %3055 = vmatpush1.msra.mxu0 0.0
        %3056 = vmatprep.subr.mxu0 0.0
        %3057 = vmatpush1.msra.mxu0 0.0
        %3058 = vmatprep.subr.mxu0 0.0
        %3059 = vmatpush1.msra.mxu0 0.0
        %3060 = vmatprep.subr.mxu0 0.0
        %3061 = vmatpush1.msra.mxu0 0.0
        %3062 = vmatprep.subr.mxu0 0.0
        %3063 = vmatpush1.msra.mxu0 0.0
        %3064 = vmatprep.subr.mxu0 0.0
        %3065 = vmatpush1.msra.mxu0 0.0
        %3066 = vmatprep.subr.mxu0 0.0
        %3067 = vmatpush1.msra.mxu0 0.0
        %3068 = vmatprep.subr.mxu0 0.0
        %3069 = vmatpush1.msra.mxu0 0.0
        %3070 = vmatprep.subr.mxu0 0.0
        %3071 = vmatpush1.msra.mxu0 0.0
        %3072 = vmatprep.subr.mxu0 0.0
        %3073 = vmatpush1.msra.mxu0 0.0
        %3074 = vmatprep.subr.mxu0 0.0
        %3075 = vmatpush1.msra.mxu0 0.0
        %3076 = vmatprep.subr.mxu0 0.0
        %3077 = vmatpush1.msra.mxu0 0.0
        %3078 = vmatprep.subr.mxu0 0.0
        %3079 = vmatpush1.msra.mxu0 0.0
        %3080 = vmatprep.subr.mxu0 0.0
        %3081 = vmatpush1.msra.mxu0 0.0
        %3082 = vmatprep.subr.mxu0 0.0
        %3083 = vmatpush1.msra.mxu0 0.0
        %3084 = vmatprep.subr.mxu0 0.0
        %3085 = vmatpush1.msra.mxu0 0.0
        %3086 = vmatprep.subr.mxu0 0.0
        %3087 = vmatpush1.msra.mxu0 0.0
        %3088 = vmatprep.mubr.f32.mxu0 0.0
        %3089 = vmatmul.mubr.f32.gmra.mrb[0].mxu0 %v3006
        %v3090 = vpop.f32.mrb[0].mxu0
        %v3091 = vadd.f32 0.0, %v3090
        %v3092 = vpop.f32.mrb[0].mxu0
        %v3093 = vadd.f32 0.0, %v3092
        %3094 = vdwg.mxu0
        %3095 = vmatprep.subr.mxu0 %v3014
        %3096 = vmatpush1.msra.mxu0 %v3012
        %3097 = vmatprep.subr.mxu0 0.0
        %3098 = vmatpush1.msra.mxu0 0.0
        %3099 = vmatprep.subr.mxu0 0.0
        %3100 = vmatpush1.msra.mxu0 0.0
        %3101 = vmatprep.subr.mxu0 0.0
        %3102 = vmatpush1.msra.mxu0 0.0
        %3103 = vmatprep.subr.mxu0 0.0
        %3104 = vmatpush1.msra.mxu0 0.0
        %3105 = vmatprep.subr.mxu0 0.0
        %3106 = vmatpush1.msra.mxu0 0.0
        %3107 = vmatprep.subr.mxu0 0.0
        %3108 = vmatpush1.msra.mxu0 0.0
        %3109 = vmatprep.subr.mxu0 0.0
        %3110 = vmatpush1.msra.mxu0 0.0
        %3111 = vmatprep.subr.mxu0 0.0
        %3112 = vmatpush1.msra.mxu0 0.0
        %3113 = vmatprep.subr.mxu0 0.0
        %3114 = vmatpush1.msra.mxu0 0.0
        %3115 = vmatprep.subr.mxu0 0.0
        %3116 = vmatpush1.msra.mxu0 0.0
        %3117 = vmatprep.subr.mxu0 0.0
        %3118 = vmatpush1.msra.mxu0 0.0
        %3119 = vmatprep.subr.mxu0 0.0
        %3120 = vmatpush1.msra.mxu0 0.0
        %3121 = vmatprep.subr.mxu0 0.0
        %3122 = vmatpush1.msra.mxu0 0.0
        %3123 = vmatprep.subr.mxu0 0.0
        %3124 = vmatpush1.msra.mxu0 0.0
        %3125 = vmatprep.subr.mxu0 0.0
        %3126 = vmatpush1.msra.mxu0 0.0
        %3127 = vmatprep.subr.mxu0 0.0
        %3128 = vmatpush1.msra.mxu0 0.0
        %3129 = vmatprep.subr.mxu0 0.0
        %3130 = vmatpush1.msra.mxu0 0.0
        %3131 = vmatprep.subr.mxu0 0.0
        %3132 = vmatpush1.msra.mxu0 0.0
        %3133 = vmatprep.subr.mxu0 0.0
        %3134 = vmatpush1.msra.mxu0 0.0
        %3135 = vmatprep.subr.mxu0 0.0
        %3136 = vmatpush1.msra.mxu0 0.0
        %3137 = vmatprep.subr.mxu0 0.0
        %3138 = vmatpush1.msra.mxu0 0.0
        %3139 = vmatprep.subr.mxu0 0.0
        %3140 = vmatpush1.msra.mxu0 0.0
        %3141 = vmatprep.subr.mxu0 0.0
        %3142 = vmatpush1.msra.mxu0 0.0
        %3143 = vmatprep.subr.mxu0 0.0
        %3144 = vmatpush1.msra.mxu0 0.0
        %3145 = vmatprep.subr.mxu0 0.0
        %3146 = vmatpush1.msra.mxu0 0.0
        %3147 = vmatprep.subr.mxu0 0.0
        %3148 = vmatpush1.msra.mxu0 0.0
        %3149 = vmatprep.subr.mxu0 0.0
        %3150 = vmatpush1.msra.mxu0 0.0
        %3151 = vmatprep.subr.mxu0 0.0
        %3152 = vmatpush1.msra.mxu0 0.0
        %3153 = vmatprep.subr.mxu0 0.0
        %3154 = vmatpush1.msra.mxu0 0.0
        %3155 = vmatprep.subr.mxu0 0.0
        %3156 = vmatpush1.msra.mxu0 0.0
        %3157 = vmatprep.subr.mxu0 0.0
        %3158 = vmatpush1.msra.mxu0 0.0
        %3159 = vmatprep.mubr.f32.mxu0 0.0
        %3160 = vmatmul.mubr.f32.gmra.mrb[0].mxu0 %v3006
        %v3161 = vpop.f32.mrb[0].mxu0
        %v3162 = vadd.f32 0.0, %v3161
        %v3163 = vpop.f32.mrb[0].mxu0
        %v3164 = vadd.f32 0.0, %v3163
        %3165 = vdwg.mxu0
        %3166 = vmatprep.subr.mxu0 %v3018
        %3167 = vmatpush1.msra.mxu0 %v3016
        %3168 = vmatprep.subr.mxu0 0.0
        %3169 = vmatpush1.msra.mxu0 0.0
        %3170 = vmatprep.subr.mxu0 0.0
        %3171 = vmatpush1.msra.mxu0 0.0
        %3172 = vmatprep.subr.mxu0 0.0
        %3173 = vmatpush1.msra.mxu0 0.0
        %3174 = vmatprep.subr.mxu0 0.0
        %3175 = vmatpush1.msra.mxu0 0.0
        %3176 = vmatprep.subr.mxu0 0.0
        %3177 = vmatpush1.msra.mxu0 0.0
        %3178 = vmatprep.subr.mxu0 0.0
        %3179 = vmatpush1.msra.mxu0 0.0
        %3180 = vmatprep.subr.mxu0 0.0
        %3181 = vmatpush1.msra.mxu0 0.0
        %3182 = vmatprep.subr.mxu0 0.0
        %3183 = vmatpush1.msra.mxu0 0.0
        %3184 = vmatprep.subr.mxu0 0.0
        %3185 = vmatpush1.msra.mxu0 0.0
        %3186 = vmatprep.subr.mxu0 0.0
        %3187 = vmatpush1.msra.mxu0 0.0
        %3188 = vmatprep.subr.mxu0 0.0
        %3189 = vmatpush1.msra.mxu0 0.0
        %3190 = vmatprep.subr.mxu0 0.0
        %3191 = vmatpush1.msra.mxu0 0.0
        %3192 = vmatprep.subr.mxu0 0.0
        %3193 = vmatpush1.msra.mxu0 0.0
        %3194 = vmatprep.subr.mxu0 0.0
        %3195 = vmatpush1.msra.mxu0 0.0
        %3196 = vmatprep.subr.mxu0 0.0
        %3197 = vmatpush1.msra.mxu0 0.0
        %3198 = vmatprep.subr.mxu0 0.0
        %3199 = vmatpush1.msra.mxu0 0.0
        %3200 = vmatprep.subr.mxu0 0.0
        %3201 = vmatpush1.msra.mxu0 0.0
        %3202 = vmatprep.subr.mxu0 0.0
        %3203 = vmatpush1.msra.mxu0 0.0
        %3204 = vmatprep.subr.mxu0 0.0
        %3205 = vmatpush1.msra.mxu0 0.0
        %3206 = vmatprep.subr.mxu0 0.0
        %3207 = vmatpush1.msra.mxu0 0.0
        %3208 = vmatprep.subr.mxu0 0.0
        %3209 = vmatpush1.msra.mxu0 0.0
        %3210 = vmatprep.subr.mxu0 0.0
        %3211 = vmatpush1.msra.mxu0 0.0
        %3212 = vmatprep.subr.mxu0 0.0
        %3213 = vmatpush1.msra.mxu0 0.0
        %3214 = vmatprep.subr.mxu0 0.0
        %3215 = vmatpush1.msra.mxu0 0.0
        %3216 = vmatprep.subr.mxu0 0.0
        %3217 = vmatpush1.msra.mxu0 0.0
        %3218 = vmatprep.subr.mxu0 0.0
        %3219 = vmatpush1.msra.mxu0 0.0
        %3220 = vmatprep.subr.mxu0 0.0
        %3221 = vmatpush1.msra.mxu0 0.0
        %3222 = vmatprep.subr.mxu0 0.0
        %3223 = vmatpush1.msra.mxu0 0.0
        %3224 = vmatprep.subr.mxu0 0.0
        %3225 = vmatpush1.msra.mxu0 0.0
        %3226 = vmatprep.subr.mxu0 0.0
        %3227 = vmatpush1.msra.mxu0 0.0
        %3228 = vmatprep.subr.mxu0 0.0
        %3229 = vmatpush1.msra.mxu0 0.0
        %3230 = vmatprep.mubr.f32.mxu0 0.0
        %3231 = vmatmul.mubr.f32.gmra.mrb[0].mxu0 %v3006
        %v3232 = vpop.f32.mrb[0].mxu0
        %v3233 = vadd.f32 0.0, %v3232
        %v3234 = vpop.f32.mrb[0].mxu0
        %v3235 = vadd.f32 0.0, %v3234
        %3236 = vdwg.mxu0
        %3237 = vmatprep.subr.mxu0 %v3022
        %3238 = vmatpush1.msra.mxu0 %v3020
        %3239 = vmatprep.subr.mxu0 0.0
        %3240 = vmatpush1.msra.mxu0 0.0
        %3241 = vmatprep.subr.mxu0 0.0
        %3242 = vmatpush1.msra.mxu0 0.0
        %3243 = vmatprep.subr.mxu0 0.0
        %3244 = vmatpush1.msra.mxu0 0.0
        %3245 = vmatprep.subr.mxu0 0.0
        %3246 = vmatpush1.msra.mxu0 0.0
        %3247 = vmatprep.subr.mxu0 0.0
        %3248 = vmatpush1.msra.mxu0 0.0
        %3249 = vmatprep.subr.mxu0 0.0
        %3250 = vmatpush1.msra.mxu0 0.0
        %3251 = vmatprep.subr.mxu0 0.0
        %3252 = vmatpush1.msra.mxu0 0.0
        %3253 = vmatprep.subr.mxu0 0.0
        %3254 = vmatpush1.msra.mxu0 0.0
        %3255 = vmatprep.subr.mxu0 0.0
        %3256 = vmatpush1.msra.mxu0 0.0
        %3257 = vmatprep.subr.mxu0 0.0
        %3258 = vmatpush1.msra.mxu0 0.0
        %3259 = vmatprep.subr.mxu0 0.0
        %3260 = vmatpush1.msra.mxu0 0.0
        %3261 = vmatprep.subr.mxu0 0.0
        %3262 = vmatpush1.msra.mxu0 0.0
        %3263 = vmatprep.subr.mxu0 0.0
        %3264 = vmatpush1.msra.mxu0 0.0
        %3265 = vmatprep.subr.mxu0 0.0
        %3266 = vmatpush1.msra.mxu0 0.0
        %3267 = vmatprep.subr.mxu0 0.0
        %3268 = vmatpush1.msra.mxu0 0.0
        %3269 = vmatprep.subr.mxu0 0.0
        %3270 = vmatpush1.msra.mxu0 0.0
        %3271 = vmatprep.subr.mxu0 0.0
        %3272 = vmatpush1.msra.mxu0 0.0
        %3273 = vmatprep.subr.mxu0 0.0
        %3274 = vmatpush1.msra.mxu0 0.0
        %3275 = vmatprep.subr.mxu0 0.0
        %3276 = vmatpush1.msra.mxu0 0.0
        %3277 = vmatprep.subr.mxu0 0.0
        %3278 = vmatpush1.msra.mxu0 0.0
        %3279 = vmatprep.subr.mxu0 0.0
        %3280 = vmatpush1.msra.mxu0 0.0
        %3281 = vmatprep.subr.mxu0 0.0
        %3282 = vmatpush1.msra.mxu0 0.0
        %3283 = vmatprep.subr.mxu0 0.0
        %3284 = vmatpush1.msra.mxu0 0.0
        %3285 = vmatprep.subr.mxu0 0.0
        %3286 = vmatpush1.msra.mxu0 0.0
        %3287 = vmatprep.subr.mxu0 0.0
        %3288 = vmatpush1.msra.mxu0 0.0
        %3289 = vmatprep.subr.mxu0 0.0
        %3290 = vmatpush1.msra.mxu0 0.0
        %3291 = vmatprep.subr.mxu0 0.0
        %3292 = vmatpush1.msra.mxu0 0.0
        %3293 = vmatprep.subr.mxu0 0.0
        %3294 = vmatpush1.msra.mxu0 0.0
        %3295 = vmatprep.subr.mxu0 0.0
        %3296 = vmatpush1.msra.mxu0 0.0
        %3297 = vmatprep.subr.mxu0 0.0
        %3298 = vmatpush1.msra.mxu0 0.0
        %3299 = vmatprep.subr.mxu0 0.0
        %3300 = vmatpush1.msra.mxu0 0.0
        %3301 = vmatprep.mubr.f32.mxu0 0.0
        %3302 = vmatmul.mubr.f32.gmra.mrb[0].mxu0 %v3006
        %v3303 = vpop.f32.mrb[0].mxu0
        %v3304 = vadd.f32 0.0, %v3303
        %v3305 = vpop.f32.mrb[0].mxu0
        %v3306 = vadd.f32 0.0, %v3305
        %3307 = vdwg.mxu0
        %v3308 = vadd.f32 %v2954, %v3091
        %v3309 = vadd.f32 %v2955, %v3093
        %v3310 = vadd.f32 %v2956, %v3162
        %v3311 = vadd.f32 %v2957, %v3164
        %v3312 = vadd.f32 %v2958, %v3233
        %v3313 = vadd.f32 %v2959, %v3235
        %v3314 = vadd.f32 %v2960, %v3304
        %v3315 = vadd.f32 %v2961, %v3306
        %v3316 = vld [vmem:[#allocation2] sm:$0xff]
        %v3317 = vld [vmem:[#allocation2 + $0x8] sm:$0xff]
        %v3318 = vld [vmem:[#allocation2 + $0x10] sm:$0xff]
        %v3319 = vld [vmem:[#allocation2 + $0x18] sm:$0xff]
        %v3320 = vld [vmem:[#allocation2 + $0x20] sm:$0xf]
        %v3326 = vcombine.high %v3316, %v3316
        %v3327 = vcombine.high %v3317, %v3317
        %v3328 = vcombine.high %v3318, %v3318
        %v3329 = vcombine.high %v3319, %v3319
        %3330 = vrot.lane.b32.xlu0 %v3316, 62
        %v3331 = vpop.permute.xlu0 %3330
        %3332 = vrot.lane.b32.xlu0 %v3326, 62
        %v3333 = vpop.permute.xlu0 %3332
        %3334 = vrot.lane.b32.xlu0 %v3317, 62
        %v3335 = vpop.permute.xlu0 %3334
        %3336 = vrot.lane.b32.xlu0 %v3327, 62
        %v3337 = vpop.permute.xlu0 %3336
        %3338 = vrot.lane.b32.xlu0 %v3318, 62
        %v3339 = vpop.permute.xlu0 %3338
        %3340 = vrot.lane.b32.xlu0 %v3328, 62
        %v3341 = vpop.permute.xlu0 %3340
        %3342 = vrot.lane.b32.xlu0 %v3319, 62
        %v3343 = vpop.permute.xlu0 %3342
        %3344 = vrot.lane.b32.xlu0 %v3329, 62
        %v3345 = vpop.permute.xlu0 %3344
        %3346 = vrot.lane.b32.xlu0 %v3320, 62
        %v3347 = vpop.permute.xlu0 %3346
        %vm3348 = vcmask 506880
        %v3349 = vsel %vm3348, %v3331, %v3333
        %v3350 = vsel %vm3348, %v3333, %v3335
        %v3351 = vsel %vm3348, %v3335, %v3337
        %v3352 = vsel %vm3348, %v3337, %v3339
        %v3353 = vsel %vm3348, %v3339, %v3341
        %v3354 = vsel %vm3348, %v3341, %v3343
        %v3355 = vsel %vm3348, %v3343, %v3345
        %v3356 = vsel %vm3348, %v3345, %v3347
        %v3365 = vsel %vm1093, %v3349, 0.0
        %v3366 = vsel %vm1094, %v3350, 0.0
        %v3367 = vsel %vm1095, %v3351, 0.0
        %v3368 = vsel %vm1096, %v3352, 0.0
        %v3369 = vsel %vm1097, %v3353, 0.0
        %v3370 = vsel %vm1098, %v3354, 0.0
        %v3371 = vsel %vm1099, %v3355, 0.0
        %v3372 = vsel %vm1100, %v3356, 0.0
        %s3373 = scalar_lea.vmem %s1, 64
        %v3374 = vld [vmem:[%s3373] sm:$0xff]
        %v3376 = vsel %vm457, %v3374, 0
        %v3379 = vsel %vm356, %v3365, 0
        %v3382 = vsel %vm356, %v3366, 0
        %v3385 = vsel %vm356, %v3367, 0
        %v3388 = vsel %vm356, %v3368, 0
        %v3391 = vsel %vm356, %v3369, 0
        %v3394 = vsel %vm356, %v3370, 0
        %v3397 = vsel %vm356, %v3371, 0
        %v3400 = vsel %vm356, %v3372, 0
        %3402 = vmatprep.subr.mxu0 %v3382
        %3403 = vmatpush1.msra.mxu0 %v3379
        %3404 = vmatprep.subr.mxu0 0.0
        %3405 = vmatpush1.msra.mxu0 0.0
        %3406 = vmatprep.subr.mxu0 0.0
        %3407 = vmatpush1.msra.mxu0 0.0
        %3408 = vmatprep.subr.mxu0 0.0
        %3409 = vmatpush1.msra.mxu0 0.0
        %3410 = vmatprep.subr.mxu0 0.0
        %3411 = vmatpush1.msra.mxu0 0.0
        %3412 = vmatprep.subr.mxu0 0.0
        %3413 = vmatpush1.msra.mxu0 0.0
        %3414 = vmatprep.subr.mxu0 0.0
        %3415 = vmatpush1.msra.mxu0 0.0
        %3416 = vmatprep.subr.mxu0 0.0
        %3417 = vmatpush1.msra.mxu0 0.0
        %3418 = vmatprep.subr.mxu0 0.0
        %3419 = vmatpush1.msra.mxu0 0.0
        %3420 = vmatprep.subr.mxu0 0.0
        %3421 = vmatpush1.msra.mxu0 0.0
        %3422 = vmatprep.subr.mxu0 0.0
        %3423 = vmatpush1.msra.mxu0 0.0
        %3424 = vmatprep.subr.mxu0 0.0
        %3425 = vmatpush1.msra.mxu0 0.0
        %3426 = vmatprep.subr.mxu0 0.0
        %3427 = vmatpush1.msra.mxu0 0.0
        %3428 = vmatprep.subr.mxu0 0.0
        %3429 = vmatpush1.msra.mxu0 0.0
        %3430 = vmatprep.subr.mxu0 0.0
        %3431 = vmatpush1.msra.mxu0 0.0
        %3432 = vmatprep.subr.mxu0 0.0
        %3433 = vmatpush1.msra.mxu0 0.0
        %3434 = vmatprep.subr.mxu0 0.0
        %3435 = vmatpush1.msra.mxu0 0.0
        %3436 = vmatprep.subr.mxu0 0.0
        %3437 = vmatpush1.msra.mxu0 0.0
        %3438 = vmatprep.subr.mxu0 0.0
        %3439 = vmatpush1.msra.mxu0 0.0
        %3440 = vmatprep.subr.mxu0 0.0
        %3441 = vmatpush1.msra.mxu0 0.0
        %3442 = vmatprep.subr.mxu0 0.0
        %3443 = vmatpush1.msra.mxu0 0.0
        %3444 = vmatprep.subr.mxu0 0.0
        %3445 = vmatpush1.msra.mxu0 0.0
        %3446 = vmatprep.subr.mxu0 0.0
        %3447 = vmatpush1.msra.mxu0 0.0
        %3448 = vmatprep.subr.mxu0 0.0
        %3449 = vmatpush1.msra.mxu0 0.0
        %3450 = vmatprep.subr.mxu0 0.0
        %3451 = vmatpush1.msra.mxu0 0.0
        %3452 = vmatprep.subr.mxu0 0.0
        %3453 = vmatpush1.msra.mxu0 0.0
        %3454 = vmatprep.subr.mxu0 0.0
        %3455 = vmatpush1.msra.mxu0 0.0
        %3456 = vmatprep.subr.mxu0 0.0
        %3457 = vmatpush1.msra.mxu0 0.0
        %3458 = vmatprep.subr.mxu0 0.0
        %3459 = vmatpush1.msra.mxu0 0.0
        %3460 = vmatprep.subr.mxu0 0.0
        %3461 = vmatpush1.msra.mxu0 0.0
        %3462 = vmatprep.subr.mxu0 0.0
        %3463 = vmatpush1.msra.mxu0 0.0
        %3464 = vmatprep.subr.mxu0 0.0
        %3465 = vmatpush1.msra.mxu0 0.0
        %3466 = vmatprep.mubr.f32.mxu0 0.0
        %3467 = vmatmul.mubr.f32.gmra.mrb[0].mxu0 %v3376
        %v3468 = vpop.f32.mrb[0].mxu0
        %v3469 = vadd.f32 0.0, %v3468
        %v3470 = vpop.f32.mrb[0].mxu0
        %v3471 = vadd.f32 0.0, %v3470
        %3472 = vdwg.mxu0
        %3473 = vmatprep.subr.mxu0 %v3388
        %3474 = vmatpush1.msra.mxu0 %v3385
        %3475 = vmatprep.subr.mxu0 0.0
        %3476 = vmatpush1.msra.mxu0 0.0
        %3477 = vmatprep.subr.mxu0 0.0
        %3478 = vmatpush1.msra.mxu0 0.0
        %3479 = vmatprep.subr.mxu0 0.0
        %3480 = vmatpush1.msra.mxu0 0.0
        %3481 = vmatprep.subr.mxu0 0.0
        %3482 = vmatpush1.msra.mxu0 0.0
        %3483 = vmatprep.subr.mxu0 0.0
        %3484 = vmatpush1.msra.mxu0 0.0
        %3485 = vmatprep.subr.mxu0 0.0
        %3486 = vmatpush1.msra.mxu0 0.0
        %3487 = vmatprep.subr.mxu0 0.0
        %3488 = vmatpush1.msra.mxu0 0.0
        %3489 = vmatprep.subr.mxu0 0.0
        %3490 = vmatpush1.msra.mxu0 0.0
        %3491 = vmatprep.subr.mxu0 0.0
        %3492 = vmatpush1.msra.mxu0 0.0
        %3493 = vmatprep.subr.mxu0 0.0
        %3494 = vmatpush1.msra.mxu0 0.0
        %3495 = vmatprep.subr.mxu0 0.0
        %3496 = vmatpush1.msra.mxu0 0.0
        %3497 = vmatprep.subr.mxu0 0.0
        %3498 = vmatpush1.msra.mxu0 0.0
        %3499 = vmatprep.subr.mxu0 0.0
        %3500 = vmatpush1.msra.mxu0 0.0
        %3501 = vmatprep.subr.mxu0 0.0
        %3502 = vmatpush1.msra.mxu0 0.0
        %3503 = vmatprep.subr.mxu0 0.0
        %3504 = vmatpush1.msra.mxu0 0.0
        %3505 = vmatprep.subr.mxu0 0.0
        %3506 = vmatpush1.msra.mxu0 0.0
        %3507 = vmatprep.subr.mxu0 0.0
        %3508 = vmatpush1.msra.mxu0 0.0
        %3509 = vmatprep.subr.mxu0 0.0
        %3510 = vmatpush1.msra.mxu0 0.0
        %3511 = vmatprep.subr.mxu0 0.0
        %3512 = vmatpush1.msra.mxu0 0.0
        %3513 = vmatprep.subr.mxu0 0.0
        %3514 = vmatpush1.msra.mxu0 0.0
        %3515 = vmatprep.subr.mxu0 0.0
        %3516 = vmatpush1.msra.mxu0 0.0
        %3517 = vmatprep.subr.mxu0 0.0
        %3518 = vmatpush1.msra.mxu0 0.0
        %3519 = vmatprep.subr.mxu0 0.0
        %3520 = vmatpush1.msra.mxu0 0.0
        %3521 = vmatprep.subr.mxu0 0.0
        %3522 = vmatpush1.msra.mxu0 0.0
        %3523 = vmatprep.subr.mxu0 0.0
        %3524 = vmatpush1.msra.mxu0 0.0
        %3525 = vmatprep.subr.mxu0 0.0
        %3526 = vmatpush1.msra.mxu0 0.0
        %3527 = vmatprep.subr.mxu0 0.0
        %3528 = vmatpush1.msra.mxu0 0.0
        %3529 = vmatprep.subr.mxu0 0.0
        %3530 = vmatpush1.msra.mxu0 0.0
        %3531 = vmatprep.subr.mxu0 0.0
        %3532 = vmatpush1.msra.mxu0 0.0
        %3533 = vmatprep.subr.mxu0 0.0
        %3534 = vmatpush1.msra.mxu0 0.0
        %3535 = vmatprep.subr.mxu0 0.0
        %3536 = vmatpush1.msra.mxu0 0.0
        %3537 = vmatprep.mubr.f32.mxu0 0.0
        %3538 = vmatmul.mubr.f32.gmra.mrb[0].mxu0 %v3376
        %v3539 = vpop.f32.mrb[0].mxu0
        %v3540 = vadd.f32 0.0, %v3539
        %v3541 = vpop.f32.mrb[0].mxu0
        %v3542 = vadd.f32 0.0, %v3541
        %3543 = vdwg.mxu0
        %3544 = vmatprep.subr.mxu0 %v3394
        %3545 = vmatpush1.msra.mxu0 %v3391
        %3546 = vmatprep.subr.mxu0 0.0
        %3547 = vmatpush1.msra.mxu0 0.0
        %3548 = vmatprep.subr.mxu0 0.0
        %3549 = vmatpush1.msra.mxu0 0.0
        %3550 = vmatprep.subr.mxu0 0.0
        %3551 = vmatpush1.msra.mxu0 0.0
        %3552 = vmatprep.subr.mxu0 0.0
        %3553 = vmatpush1.msra.mxu0 0.0
        %3554 = vmatprep.subr.mxu0 0.0
        %3555 = vmatpush1.msra.mxu0 0.0
        %3556 = vmatprep.subr.mxu0 0.0
        %3557 = vmatpush1.msra.mxu0 0.0
        %3558 = vmatprep.subr.mxu0 0.0
        %3559 = vmatpush1.msra.mxu0 0.0
        %3560 = vmatprep.subr.mxu0 0.0
        %3561 = vmatpush1.msra.mxu0 0.0
        %3562 = vmatprep.subr.mxu0 0.0
        %3563 = vmatpush1.msra.mxu0 0.0
        %3564 = vmatprep.subr.mxu0 0.0
        %3565 = vmatpush1.msra.mxu0 0.0
        %3566 = vmatprep.subr.mxu0 0.0
        %3567 = vmatpush1.msra.mxu0 0.0
        %3568 = vmatprep.subr.mxu0 0.0
        %3569 = vmatpush1.msra.mxu0 0.0
        %3570 = vmatprep.subr.mxu0 0.0
        %3571 = vmatpush1.msra.mxu0 0.0
        %3572 = vmatprep.subr.mxu0 0.0
        %3573 = vmatpush1.msra.mxu0 0.0
        %3574 = vmatprep.subr.mxu0 0.0
        %3575 = vmatpush1.msra.mxu0 0.0
        %3576 = vmatprep.subr.mxu0 0.0
        %3577 = vmatpush1.msra.mxu0 0.0
        %3578 = vmatprep.subr.mxu0 0.0
        %3579 = vmatpush1.msra.mxu0 0.0
        %3580 = vmatprep.subr.mxu0 0.0
        %3581 = vmatpush1.msra.mxu0 0.0
        %3582 = vmatprep.subr.mxu0 0.0
        %3583 = vmatpush1.msra.mxu0 0.0
        %3584 = vmatprep.subr.mxu0 0.0
        %3585 = vmatpush1.msra.mxu0 0.0
        %3586 = vmatprep.subr.mxu0 0.0
        %3587 = vmatpush1.msra.mxu0 0.0
        %3588 = vmatprep.subr.mxu0 0.0
        %3589 = vmatpush1.msra.mxu0 0.0
        %3590 = vmatprep.subr.mxu0 0.0
        %3591 = vmatpush1.msra.mxu0 0.0
        %3592 = vmatprep.subr.mxu0 0.0
        %3593 = vmatpush1.msra.mxu0 0.0
        %3594 = vmatprep.subr.mxu0 0.0
        %3595 = vmatpush1.msra.mxu0 0.0
        %3596 = vmatprep.subr.mxu0 0.0
        %3597 = vmatpush1.msra.mxu0 0.0
        %3598 = vmatprep.subr.mxu0 0.0
        %3599 = vmatpush1.msra.mxu0 0.0
        %3600 = vmatprep.subr.mxu0 0.0
        %3601 = vmatpush1.msra.mxu0 0.0
        %3602 = vmatprep.subr.mxu0 0.0
        %3603 = vmatpush1.msra.mxu0 0.0
        %3604 = vmatprep.subr.mxu0 0.0
        %3605 = vmatpush1.msra.mxu0 0.0
        %3606 = vmatprep.subr.mxu0 0.0
        %3607 = vmatpush1.msra.mxu0 0.0
        %3608 = vmatprep.mubr.f32.mxu0 0.0
        %3609 = vmatmul.mubr.f32.gmra.mrb[0].mxu0 %v3376
        %v3610 = vpop.f32.mrb[0].mxu0
        %v3611 = vadd.f32 0.0, %v3610
        %v3612 = vpop.f32.mrb[0].mxu0
        %v3613 = vadd.f32 0.0, %v3612
        %3614 = vdwg.mxu0
        %3615 = vmatprep.subr.mxu0 %v3400
        %3616 = vmatpush1.msra.mxu0 %v3397
        %3617 = vmatprep.subr.mxu0 0.0
        %3618 = vmatpush1.msra.mxu0 0.0
        %3619 = vmatprep.subr.mxu0 0.0
        %3620 = vmatpush1.msra.mxu0 0.0
        %3621 = vmatprep.subr.mxu0 0.0
        %3622 = vmatpush1.msra.mxu0 0.0
        %3623 = vmatprep.subr.mxu0 0.0
        %3624 = vmatpush1.msra.mxu0 0.0
        %3625 = vmatprep.subr.mxu0 0.0
        %3626 = vmatpush1.msra.mxu0 0.0
        %3627 = vmatprep.subr.mxu0 0.0
        %3628 = vmatpush1.msra.mxu0 0.0
        %3629 = vmatprep.subr.mxu0 0.0
        %3630 = vmatpush1.msra.mxu0 0.0
        %3631 = vmatprep.subr.mxu0 0.0
        %3632 = vmatpush1.msra.mxu0 0.0
        %3633 = vmatprep.subr.mxu0 0.0
        %3634 = vmatpush1.msra.mxu0 0.0
        %3635 = vmatprep.subr.mxu0 0.0
        %3636 = vmatpush1.msra.mxu0 0.0
        %3637 = vmatprep.subr.mxu0 0.0
        %3638 = vmatpush1.msra.mxu0 0.0
        %3639 = vmatprep.subr.mxu0 0.0
        %3640 = vmatpush1.msra.mxu0 0.0
        %3641 = vmatprep.subr.mxu0 0.0
        %3642 = vmatpush1.msra.mxu0 0.0
        %3643 = vmatprep.subr.mxu0 0.0
        %3644 = vmatpush1.msra.mxu0 0.0
        %3645 = vmatprep.subr.mxu0 0.0
        %3646 = vmatpush1.msra.mxu0 0.0
        %3647 = vmatprep.subr.mxu0 0.0
        %3648 = vmatpush1.msra.mxu0 0.0
        %3649 = vmatprep.subr.mxu0 0.0
        %3650 = vmatpush1.msra.mxu0 0.0
        %3651 = vmatprep.subr.mxu0 0.0
        %3652 = vmatpush1.msra.mxu0 0.0
        %3653 = vmatprep.subr.mxu0 0.0
        %3654 = vmatpush1.msra.mxu0 0.0
        %3655 = vmatprep.subr.mxu0 0.0
        %3656 = vmatpush1.msra.mxu0 0.0
        %3657 = vmatprep.subr.mxu0 0.0
        %3658 = vmatpush1.msra.mxu0 0.0
        %3659 = vmatprep.subr.mxu0 0.0
        %3660 = vmatpush1.msra.mxu0 0.0
        %3661 = vmatprep.subr.mxu0 0.0
        %3662 = vmatpush1.msra.mxu0 0.0
        %3663 = vmatprep.subr.mxu0 0.0
        %3664 = vmatpush1.msra.mxu0 0.0
        %3665 = vmatprep.subr.mxu0 0.0
        %3666 = vmatpush1.msra.mxu0 0.0
        %3667 = vmatprep.subr.mxu0 0.0
        %3668 = vmatpush1.msra.mxu0 0.0
        %3669 = vmatprep.subr.mxu0 0.0
        %3670 = vmatpush1.msra.mxu0 0.0
        %3671 = vmatprep.subr.mxu0 0.0
        %3672 = vmatpush1.msra.mxu0 0.0
        %3673 = vmatprep.subr.mxu0 0.0
        %3674 = vmatpush1.msra.mxu0 0.0
        %3675 = vmatprep.subr.mxu0 0.0
        %3676 = vmatpush1.msra.mxu0 0.0
        %3677 = vmatprep.subr.mxu0 0.0
        %3678 = vmatpush1.msra.mxu0 0.0
        %3679 = vmatprep.mubr.f32.mxu0 0.0
        %3680 = vmatmul.mubr.f32.gmra.mrb[0].mxu0 %v3376
        %v3681 = vpop.f32.mrb[0].mxu0
        %v3682 = vadd.f32 0.0, %v3681
        %v3683 = vpop.f32.mrb[0].mxu0
        %v3684 = vadd.f32 0.0, %v3683
        %3685 = vdwg.mxu0
        %v3686 = vadd.f32 %v3308, %v3469
        %v3687 = vadd.f32 %v3309, %v3471
        %v3688 = vadd.f32 %v3310, %v3540
        %v3689 = vadd.f32 %v3311, %v3542
        %v3690 = vadd.f32 %v3312, %v3611
        %v3691 = vadd.f32 %v3313, %v3613
        %v3692 = vadd.f32 %v3314, %v3682
        %v3693 = vadd.f32 %v3315, %v3684
        %v3694 = vld [vmem:[%s2] sm:$0xff]
        %3696 = vset.pattern.permute.xlu0 0
        %3697 = vperm.xlu0 %3696, %v3694
        %v3698 = vpop.permute.xlu0 %3697
        %v3700 = vadd.f32 %v3686, %v3698
        %v3701 = vadd.f32 %v3687, %v3698
        %v3702 = vadd.f32 %v3688, %v3698
        %v3703 = vadd.f32 %v3689, %v3698
        %v3704 = vadd.f32 %v3690, %v3698
        %v3705 = vadd.f32 %v3691, %v3698
        %v3706 = vadd.f32 %v3692, %v3698
        %v3707 = vadd.f32 %v3693, %v3698
        %v3708 = vmul.f32 %v3700, 0.2
        %v3709 = vmul.f32 %v3701, 0.2
        %v3710 = vmul.f32 %v3702, 0.2
        %v3711 = vmul.f32 %v3703, 0.2
        %v3712 = vmul.f32 %v3704, 0.2
        %v3713 = vmul.f32 %v3705, 0.2
        %v3714 = vmul.f32 %v3706, 0.2
        %v3715 = vmul.f32 %v3707, 0.2
        %v3716 = vmax.f32 %v3700, %v3708
        %v3717 = vmax.f32 %v3701, %v3709
        %v3718 = vmax.f32 %v3702, %v3710
        %v3719 = vmax.f32 %v3703, %v3711
        %v3720 = vmax.f32 %v3704, %v3712
        %v3721 = vmax.f32 %v3705, %v3713
        %v3722 = vmax.f32 %v3706, %v3714
        %v3723 = vmax.f32 %v3707, %v3715
        %v3724 = vmul.f32 %v3716, %v3716
        %v3725 = vmul.f32 %v3717, %v3717
        %v3726 = vmul.f32 %v3718, %v3718
        %v3727 = vmul.f32 %v3719, %v3719
        %v3728 = vmul.f32 %v3720, %v3720
        %v3729 = vmul.f32 %v3721, %v3721
        %v3730 = vmul.f32 %v3722, %v3722
        %v3731 = vmul.f32 %v3723, %v3723
        %v3732 = vrot.slane %v3724, 4
        %v3733 = vadd.f32 %v3724, %v3732
        %v3734 = vrot.slane %v3733, 2
        %v3735 = vadd.f32 %v3733, %v3734
        %v3736 = vrot.slane %v3735, 1
        %v3737 = vadd.f32 %v3735, %v3736
        %v3738 = vrot.slane %v3725, 4
        %v3739 = vadd.f32 %v3725, %v3738
        %v3740 = vrot.slane %v3739, 2
        %v3741 = vadd.f32 %v3739, %v3740
        %v3742 = vrot.slane %v3741, 1
        %v3743 = vadd.f32 %v3741, %v3742
        %v3744 = vrot.slane %v3726, 4
        %v3745 = vadd.f32 %v3726, %v3744
        %v3746 = vrot.slane %v3745, 2
        %v3747 = vadd.f32 %v3745, %v3746
        %v3748 = vrot.slane %v3747, 1
        %v3749 = vadd.f32 %v3747, %v3748
        %v3750 = vrot.slane %v3727, 4
        %v3751 = vadd.f32 %v3727, %v3750
        %v3752 = vrot.slane %v3751, 2
        %v3753 = vadd.f32 %v3751, %v3752
        %v3754 = vrot.slane %v3753, 1
        %v3755 = vadd.f32 %v3753, %v3754
        %v3756 = vrot.slane %v3728, 4
        %v3757 = vadd.f32 %v3728, %v3756
        %v3758 = vrot.slane %v3757, 2
        %v3759 = vadd.f32 %v3757, %v3758
        %v3760 = vrot.slane %v3759, 1
        %v3761 = vadd.f32 %v3759, %v3760
        %v3762 = vrot.slane %v3729, 4
        %v3763 = vadd.f32 %v3729, %v3762
        %v3764 = vrot.slane %v3763, 2
        %v3765 = vadd.f32 %v3763, %v3764
        %v3766 = vrot.slane %v3765, 1
        %v3767 = vadd.f32 %v3765, %v3766
        %v3768 = vrot.slane %v3730, 4
        %v3769 = vadd.f32 %v3730, %v3768
        %v3770 = vrot.slane %v3769, 2
        %v3771 = vadd.f32 %v3769, %v3770
        %v3772 = vrot.slane %v3771, 1
        %v3773 = vadd.f32 %v3771, %v3772
        %v3774 = vrot.slane %v3731, 4
        %v3775 = vadd.f32 %v3731, %v3774
        %v3776 = vrot.slane %v3775, 2
        %v3777 = vadd.f32 %v3775, %v3776
        %v3778 = vrot.slane %v3777, 1
        %v3779 = vadd.f32 %v3777, %v3778
        %v3780 = vrcp.pop 8.0
        %v3781 = vmul.f32 %v3737, %v3780
        %v3782 = vmul.f32 %v3743, %v3780
        %v3783 = vmul.f32 %v3749, %v3780
        %v3784 = vmul.f32 %v3755, %v3780
        %v3785 = vmul.f32 %v3761, %v3780
        %v3786 = vmul.f32 %v3767, %v3780
        %v3787 = vmul.f32 %v3773, %v3780
        %v3788 = vmul.f32 %v3779, %v3780
        %v3789 = vadd.f32 %v3781, 1e-08
        %v3790 = vadd.f32 %v3782, 1e-08
        %v3791 = vadd.f32 %v3783, 1e-08
        %v3792 = vadd.f32 %v3784, 1e-08
        %v3793 = vadd.f32 %v3785, 1e-08
        %v3794 = vadd.f32 %v3786, 1e-08
        %v3795 = vadd.f32 %v3787, 1e-08
        %v3796 = vadd.f32 %v3788, 1e-08
        %v3797 = vrsqrt.pop %v3789
        %v3798 = vrsqrt.pop %v3790
        %v3799 = vrsqrt.pop %v3791
        %v3800 = vrsqrt.pop %v3792
        %v3801 = vrsqrt.pop %v3793
        %v3802 = vrsqrt.pop %v3794
        %v3803 = vrsqrt.pop %v3795
        %v3804 = vrsqrt.pop %v3796
        %v3805 = vmul.f32 %v3716, %v3797
        %v3806 = vmul.f32 %v3717, %v3798
        %v3807 = vmul.f32 %v3718, %v3799
        %v3808 = vmul.f32 %v3719, %v3800
        %v3809 = vmul.f32 %v3720, %v3801
        %v3810 = vmul.f32 %v3721, %v3802
        %v3811 = vmul.f32 %v3722, %v3803
        %v3812 = vmul.f32 %v3723, %v3804
        %3813 = vst [vmem:[#allocation3] sm:$0xff] 0.0
        %3814 = vst [vmem:[#allocation3 + $0x8] sm:$0xff] 0.0
        %3815 = vst [vmem:[#allocation3 + $0x10] sm:$0xff] 0.0
        %3816 = vst [vmem:[#allocation3 + $0x18] sm:$0xff] 0.0
        %3817 = vst [vmem:[#allocation3 + $0x20] sm:$0xff] 0.0
        %3818 = vst [vmem:[#allocation3 + $0x28] sm:$0xff] 0.0
        %3819 = vst [vmem:[#allocation3 + $0x30] sm:$0xff] 0.0
        %3820 = vst [vmem:[#allocation3 + $0x38] sm:$0xff] 0.0
        %vm3821 = vcmask 539648
        %3822 = vst.msk [vmem:[#allocation3 + $0x40] sm:$0xff] %vm3821, 0.0
        %3831 = vrot.lane.b32.xlu0 %v3805, 33
        %v3832 = vpop.permute.xlu0 %3831
        %3833 = vrot.lane.b32.xlu0 %v3806, 33
        %v3834 = vpop.permute.xlu0 %3833
        %3835 = vrot.lane.b32.xlu0 %v3807, 33
        %v3836 = vpop.permute.xlu0 %3835
        %3837 = vrot.lane.b32.xlu0 %v3808, 33
        %v3838 = vpop.permute.xlu0 %3837
        %3839 = vrot.lane.b32.xlu0 %v3809, 33
        %v3840 = vpop.permute.xlu0 %3839
        %3841 = vrot.lane.b32.xlu0 %v3810, 33
        %v3842 = vpop.permute.xlu0 %3841
        %3843 = vrot.lane.b32.xlu0 %v3811, 33
        %v3844 = vpop.permute.xlu0 %3843
        %3845 = vrot.lane.b32.xlu0 %v3812, 33
        %v3846 = vpop.permute.xlu0 %3845
        %v3847 = vsel %vm354, %v3832, %v3834
        %v3848 = vsel %vm354, %v3834, %v3836
        %v3849 = vsel %vm354, %v3836, %v3838
        %v3850 = vsel %vm354, %v3838, %v3840
        %v3851 = vsel %vm354, %v3840, %v3842
        %v3852 = vsel %vm354, %v3842, %v3844
        %v3853 = vsel %vm354, %v3844, %v3846
        %vm3863 = vcmask 1047816
        %3864 = vst.msk [vmem:[#allocation3] sm:$0xff] %vm3863, %v3832
        %3865 = vst [vmem:[#allocation3 + $0x8] sm:$0xff] %v3847
        %3866 = vst [vmem:[#allocation3 + $0x10] sm:$0xff] %v3848
        %3867 = vst [vmem:[#allocation3 + $0x18] sm:$0xff] %v3849
        %3868 = vst [vmem:[#allocation3 + $0x20] sm:$0xff] %v3850
        %3869 = vst [vmem:[#allocation3 + $0x28] sm:$0xff] %v3851
        %3870 = vst [vmem:[#allocation3 + $0x30] sm:$0xff] %v3852
        %3871 = vst [vmem:[#allocation3 + $0x38] sm:$0xff] %v3853
        %3872 = vst.msk [vmem:[#allocation3 + $0x40] sm:$0xff] %vm354, %v3846
        %v3873 = vld [vmem:[#allocation3] sm:$0xff]
        %v3874 = vld [vmem:[#allocation3 + $0x8] sm:$0xff]
        %v3875 = vld [vmem:[#allocation3 + $0x10] sm:$0xff]
        %v3876 = vld [vmem:[#allocation3 + $0x18] sm:$0xff]
        %v3877 = vld [vmem:[#allocation3 + $0x20] sm:$0xff]
        %v3878 = vld [vmem:[#allocation3 + $0x28] sm:$0xff]
        %v3879 = vld [vmem:[#allocation3 + $0x30] sm:$0xff]
        %v3880 = vld [vmem:[#allocation3 + $0x38] sm:$0xff]
        %v3881 = vsel %vm397, %v3873, 0.0
        %v3882 = vsel %vm398, %v3874, 0.0
        %v3883 = vsel %vm399, %v3875, 0.0
        %v3884 = vsel %vm400, %v3876, 0.0
        %v3885 = vsel %vm401, %v3877, 0.0
        %v3886 = vsel %vm402, %v3878, 0.0
        %v3887 = vsel %vm403, %v3879, 0.0
        %v3888 = vsel %vm404, %v3880, 0.0
        %v3889 = vld [vmem:[%s3] sm:$0xff]
        %v3890 = vld [vmem:[#allocation3 + $0x40] sm:$0xff]
        %s3891 = scalar_lea.vmem %s3, 8
        %v3892 = vld [vmem:[%s3891] sm:$0xff]
        %3902 = vrot.lane.b32.xlu0 %v3873, 127
        %v3903 = vpop.permute.xlu0 %3902
        %3904 = vrot.lane.b32.xlu0 %v3874, 127
        %v3905 = vpop.permute.xlu0 %3904
        %3906 = vrot.lane.b32.xlu0 %v3875, 127
        %v3907 = vpop.permute.xlu0 %3906
        %3908 = vrot.lane.b32.xlu0 %v3876, 127
        %v3909 = vpop.permute.xlu0 %3908
        %3910 = vrot.lane.b32.xlu0 %v3877, 127
        %v3911 = vpop.permute.xlu0 %3910
        %3912 = vrot.lane.b32.xlu0 %v3878, 127
        %v3913 = vpop.permute.xlu0 %3912
        %3914 = vrot.lane.b32.xlu0 %v3879, 127
        %v3915 = vpop.permute.xlu0 %3914
        %3916 = vrot.lane.b32.xlu0 %v3880, 127
        %v3917 = vpop.permute.xlu0 %3916
        %3918 = vrot.lane.b32.xlu0 %v3890, 127
        %v3919 = vpop.permute.xlu0 %3918
        %v3920 = vsel %vm448, %v3903, %v3905
        %v3921 = vsel %vm448, %v3905, %v3907
        %v3922 = vsel %vm448, %v3907, %v3909
        %v3923 = vsel %vm448, %v3909, %v3911
        %v3924 = vsel %vm448, %v3911, %v3913
        %v3925 = vsel %vm448, %v3913, %v3915
        %v3926 = vsel %vm448, %v3915, %v3917
        %v3927 = vsel %vm448, %v3917, %v3919
        %vm3936 = vcmask 64512
        %v3938 = vsel %vm3936, %v3892, 0
        %3940 = vmatprep.subr.mxu0 %v3921
        %3941 = vmatpush1.msra.mxu0 %v3920
        %3942 = vmatprep.subr.mxu0 0.0
        %3943 = vmatpush1.msra.mxu0 0.0
        %3944 = vmatprep.subr.mxu0 0.0
        %3945 = vmatpush1.msra.mxu0 0.0
        %3946 = vmatprep.subr.mxu0 0.0
        %3947 = vmatpush1.msra.mxu0 0.0
        %3948 = vmatprep.subr.mxu0 0.0
        %3949 = vmatpush1.msra.mxu0 0.0
        %3950 = vmatprep.subr.mxu0 0.0
        %3951 = vmatpush1.msra.mxu0 0.0
        %3952 = vmatprep.subr.mxu0 0.0
        %3953 = vmatpush1.msra.mxu0 0.0
        %3954 = vmatprep.subr.mxu0 0.0
        %3955 = vmatpush1.msra.mxu0 0.0
        %3956 = vmatprep.subr.mxu0 0.0
        %3957 = vmatpush1.msra.mxu0 0.0
        %3958 = vmatprep.subr.mxu0 0.0
        %3959 = vmatpush1.msra.mxu0 0.0
        %3960 = vmatprep.subr.mxu0 0.0
        %3961 = vmatpush1.msra.mxu0 0.0
        %3962 = vmatprep.subr.mxu0 0.0
        %3963 = vmatpush1.msra.mxu0 0.0
        %3964 = vmatprep.subr.mxu0 0.0
        %3965 = vmatpush1.msra.mxu0 0.0
        %3966 = vmatprep.subr.mxu0 0.0
        %3967 = vmatpush1.msra.mxu0 0.0
        %3968 = vmatprep.subr.mxu0 0.0
        %3969 = vmatpush1.msra.mxu0 0.0
        %3970 = vmatprep.subr.mxu0 0.0
        %3971 = vmatpush1.msra.mxu0 0.0
        %3972 = vmatprep.subr.mxu0 0.0
        %3973 = vmatpush1.msra.mxu0 0.0
        %3974 = vmatprep.subr.mxu0 0.0
        %3975 = vmatpush1.msra.mxu0 0.0
        %3976 = vmatprep.subr.mxu0 0.0
        %3977 = vmatpush1.msra.mxu0 0.0
        %3978 = vmatprep.subr.mxu0 0.0
        %3979 = vmatpush1.msra.mxu0 0.0
        %3980 = vmatprep.subr.mxu0 0.0
        %3981 = vmatpush1.msra.mxu0 0.0
        %3982 = vmatprep.subr.mxu0 0.0
        %3983 = vmatpush1.msra.mxu0 0.0
        %3984 = vmatprep.subr.mxu0 0.0
        %3985 = vmatpush1.msra.mxu0 0.0
        %3986 = vmatprep.subr.mxu0 0.0
        %3987 = vmatpush1.msra.mxu0 0.0
        %3988 = vmatprep.subr.mxu0 0.0
        %3989 = vmatpush1.msra.mxu0 0.0
        %3990 = vmatprep.subr.mxu0 0.0
        %3991 = vmatpush1.msra.mxu0 0.0
        %3992 = vmatprep.subr.mxu0 0.0
        %3993 = vmatpush1.msra.mxu0 0.0
        %3994 = vmatprep.subr.mxu0 0.0
        %3995 = vmatpush1.msra.mxu0 0.0
        %3996 = vmatprep.subr.mxu0 0.0
        %3997 = vmatpush1.msra.mxu0 0.0
        %3998 = vmatprep.subr.mxu0 0.0
        %3999 = vmatpush1.msra.mxu0 0.0
        %4000 = vmatprep.subr.mxu0 0.0
        %4001 = vmatpush1.msra.mxu0 0.0
        %4002 = vmatprep.subr.mxu0 0.0
        %4003 = vmatpush1.msra.mxu0 0.0
        %4004 = vmatprep.mubr.f32.mxu0 0.0
        %4005 = vmatmul.mubr.f32.gmra.mrb[0].mxu0 %v3938
        %v4006 = vpop.f32.mrb[0].mxu0
        %v4007 = vadd.f32 0.0, %v4006
        %v4008 = vpop.f32.mrb[0].mxu0
        %v4009 = vadd.f32 0.0, %v4008
        %4010 = vdwg.mxu0
        %4011 = vmatprep.subr.mxu0 %v3923
        %4012 = vmatpush1.msra.mxu0 %v3922
        %4013 = vmatprep.subr.mxu0 0.0
        %4014 = vmatpush1.msra.mxu0 0.0
        %4015 = vmatprep.subr.mxu0 0.0
        %4016 = vmatpush1.msra.mxu0 0.0
        %4017 = vmatprep.subr.mxu0 0.0
        %4018 = vmatpush1.msra.mxu0 0.0
        %4019 = vmatprep.subr.mxu0 0.0
        %4020 = vmatpush1.msra.mxu0 0.0
        %4021 = vmatprep.subr.mxu0 0.0
        %4022 = vmatpush1.msra.mxu0 0.0
        %4023 = vmatprep.subr.mxu0 0.0
        %4024 = vmatpush1.msra.mxu0 0.0
        %4025 = vmatprep.subr.mxu0 0.0
        %4026 = vmatpush1.msra.mxu0 0.0
        %4027 = vmatprep.subr.mxu0 0.0
        %4028 = vmatpush1.msra.mxu0 0.0
        %4029 = vmatprep.subr.mxu0 0.0
        %4030 = vmatpush1.msra.mxu0 0.0
        %4031 = vmatprep.subr.mxu0 0.0
        %4032 = vmatpush1.msra.mxu0 0.0
        %4033 = vmatprep.subr.mxu0 0.0
        %4034 = vmatpush1.msra.mxu0 0.0
        %4035 = vmatprep.subr.mxu0 0.0
        %4036 = vmatpush1.msra.mxu0 0.0
        %4037 = vmatprep.subr.mxu0 0.0
        %4038 = vmatpush1.msra.mxu0 0.0
        %4039 = vmatprep.subr.mxu0 0.0
        %4040 = vmatpush1.msra.mxu0 0.0
        %4041 = vmatprep.subr.mxu0 0.0
        %4042 = vmatpush1.msra.mxu0 0.0
        %4043 = vmatprep.subr.mxu0 0.0
        %4044 = vmatpush1.msra.mxu0 0.0
        %4045 = vmatprep.subr.mxu0 0.0
        %4046 = vmatpush1.msra.mxu0 0.0
        %4047 = vmatprep.subr.mxu0 0.0
        %4048 = vmatpush1.msra.mxu0 0.0
        %4049 = vmatprep.subr.mxu0 0.0
        %4050 = vmatpush1.msra.mxu0 0.0
        %4051 = vmatprep.subr.mxu0 0.0
        %4052 = vmatpush1.msra.mxu0 0.0
        %4053 = vmatprep.subr.mxu0 0.0
        %4054 = vmatpush1.msra.mxu0 0.0
        %4055 = vmatprep.subr.mxu0 0.0
        %4056 = vmatpush1.msra.mxu0 0.0
        %4057 = vmatprep.subr.mxu0 0.0
        %4058 = vmatpush1.msra.mxu0 0.0
        %4059 = vmatprep.subr.mxu0 0.0
        %4060 = vmatpush1.msra.mxu0 0.0
        %4061 = vmatprep.subr.mxu0 0.0
        %4062 = vmatpush1.msra.mxu0 0.0
        %4063 = vmatprep.subr.mxu0 0.0
        %4064 = vmatpush1.msra.mxu0 0.0
        %4065 = vmatprep.subr.mxu0 0.0
        %4066 = vmatpush1.msra.mxu0 0.0
        %4067 = vmatprep.subr.mxu0 0.0
        %4068 = vmatpush1.msra.mxu0 0.0
        %4069 = vmatprep.subr.mxu0 0.0
        %4070 = vmatpush1.msra.mxu0 0.0
        %4071 = vmatprep.subr.mxu0 0.0
        %4072 = vmatpush1.msra.mxu0 0.0
        %4073 = vmatprep.subr.mxu0 0.0
        %4074 = vmatpush1.msra.mxu0 0.0
        %4075 = vmatprep.mubr.f32.mxu0 0.0
        %4076 = vmatmul.mubr.f32.gmra.mrb[0].mxu0 %v3938
        %v4077 = vpop.f32.mrb[0].mxu0
        %v4078 = vadd.f32 0.0, %v4077
        %v4079 = vpop.f32.mrb[0].mxu0
        %v4080 = vadd.f32 0.0, %v4079
        %4081 = vdwg.mxu0
        %4082 = vmatprep.subr.mxu0 %v3925
        %4083 = vmatpush1.msra.mxu0 %v3924
        %4084 = vmatprep.subr.mxu0 0.0
        %4085 = vmatpush1.msra.mxu0 0.0
        %4086 = vmatprep.subr.mxu0 0.0
        %4087 = vmatpush1.msra.mxu0 0.0
        %4088 = vmatprep.subr.mxu0 0.0
        %4089 = vmatpush1.msra.mxu0 0.0
        %4090 = vmatprep.subr.mxu0 0.0
        %4091 = vmatpush1.msra.mxu0 0.0
        %4092 = vmatprep.subr.mxu0 0.0
        %4093 = vmatpush1.msra.mxu0 0.0
        %4094 = vmatprep.subr.mxu0 0.0
        %4095 = vmatpush1.msra.mxu0 0.0
        %4096 = vmatprep.subr.mxu0 0.0
        %4097 = vmatpush1.msra.mxu0 0.0
        %4098 = vmatprep.subr.mxu0 0.0
        %4099 = vmatpush1.msra.mxu0 0.0
        %4100 = vmatprep.subr.mxu0 0.0
        %4101 = vmatpush1.msra.mxu0 0.0
        %4102 = vmatprep.subr.mxu0 0.0
        %4103 = vmatpush1.msra.mxu0 0.0
        %4104 = vmatprep.subr.mxu0 0.0
        %4105 = vmatpush1.msra.mxu0 0.0
        %4106 = vmatprep.subr.mxu0 0.0
        %4107 = vmatpush1.msra.mxu0 0.0
        %4108 = vmatprep.subr.mxu0 0.0
        %4109 = vmatpush1.msra.mxu0 0.0
        %4110 = vmatprep.subr.mxu0 0.0
        %4111 = vmatpush1.msra.mxu0 0.0
        %4112 = vmatprep.subr.mxu0 0.0
        %4113 = vmatpush1.msra.mxu0 0.0
        %4114 = vmatprep.subr.mxu0 0.0
        %4115 = vmatpush1.msra.mxu0 0.0
        %4116 = vmatprep.subr.mxu0 0.0
        %4117 = vmatpush1.msra.mxu0 0.0
        %4118 = vmatprep.subr.mxu0 0.0
        %4119 = vmatpush1.msra.mxu0 0.0
        %4120 = vmatprep.subr.mxu0 0.0
        %4121 = vmatpush1.msra.mxu0 0.0
        %4122 = vmatprep.subr.mxu0 0.0
        %4123 = vmatpush1.msra.mxu0 0.0
        %4124 = vmatprep.subr.mxu0 0.0
        %4125 = vmatpush1.msra.mxu0 0.0
        %4126 = vmatprep.subr.mxu0 0.0
        %4127 = vmatpush1.msra.mxu0 0.0
        %4128 = vmatprep.subr.mxu0 0.0
        %4129 = vmatpush1.msra.mxu0 0.0
        %4130 = vmatprep.subr.mxu0 0.0
        %4131 = vmatpush1.msra.mxu0 0.0
        %4132 = vmatprep.subr.mxu0 0.0
        %4133 = vmatpush1.msra.mxu0 0.0
        %4134 = vmatprep.subr.mxu0 0.0
        %4135 = vmatpush1.msra.mxu0 0.0
        %4136 = vmatprep.subr.mxu0 0.0
        %4137 = vmatpush1.msra.mxu0 0.0
        %4138 = vmatprep.subr.mxu0 0.0
        %4139 = vmatpush1.msra.mxu0 0.0
        %4140 = vmatprep.subr.mxu0 0.0
        %4141 = vmatpush1.msra.mxu0 0.0
        %4142 = vmatprep.subr.mxu0 0.0
        %4143 = vmatpush1.msra.mxu0 0.0
        %4144 = vmatprep.subr.mxu0 0.0
        %4145 = vmatpush1.msra.mxu0 0.0
        %4146 = vmatprep.mubr.f32.mxu0 0.0
        %4147 = vmatmul.mubr.f32.gmra.mrb[0].mxu0 %v3938
        %v4148 = vpop.f32.mrb[0].mxu0
        %v4149 = vadd.f32 0.0, %v4148
        %v4150 = vpop.f32.mrb[0].mxu0
        %v4151 = vadd.f32 0.0, %v4150
        %4152 = vdwg.mxu0
        %4153 = vmatprep.subr.mxu0 %v3927
        %4154 = vmatpush1.msra.mxu0 %v3926
        %4155 = vmatprep.subr.mxu0 0.0
        %4156 = vmatpush1.msra.mxu0 0.0
        %4157 = vmatprep.subr.mxu0 0.0
        %4158 = vmatpush1.msra.mxu0 0.0
        %4159 = vmatprep.subr.mxu0 0.0
        %4160 = vmatpush1.msra.mxu0 0.0
        %4161 = vmatprep.subr.mxu0 0.0
        %4162 = vmatpush1.msra.mxu0 0.0
        %4163 = vmatprep.subr.mxu0 0.0
        %4164 = vmatpush1.msra.mxu0 0.0
        %4165 = vmatprep.subr.mxu0 0.0
        %4166 = vmatpush1.msra.mxu0 0.0
        %4167 = vmatprep.subr.mxu0 0.0
        %4168 = vmatpush1.msra.mxu0 0.0
        %4169 = vmatprep.subr.mxu0 0.0
        %4170 = vmatpush1.msra.mxu0 0.0
        %4171 = vmatprep.subr.mxu0 0.0
        %4172 = vmatpush1.msra.mxu0 0.0
        %4173 = vmatprep.subr.mxu0 0.0
        %4174 = vmatpush1.msra.mxu0 0.0
        %4175 = vmatprep.subr.mxu0 0.0
        %4176 = vmatpush1.msra.mxu0 0.0
        %4177 = vmatprep.subr.mxu0 0.0
        %4178 = vmatpush1.msra.mxu0 0.0
        %4179 = vmatprep.subr.mxu0 0.0
        %4180 = vmatpush1.msra.mxu0 0.0
        %4181 = vmatprep.subr.mxu0 0.0
        %4182 = vmatpush1.msra.mxu0 0.0
        %4183 = vmatprep.subr.mxu0 0.0
        %4184 = vmatpush1.msra.mxu0 0.0
        %4185 = vmatprep.subr.mxu0 0.0
        %4186 = vmatpush1.msra.mxu0 0.0
        %4187 = vmatprep.subr.mxu0 0.0
        %4188 = vmatpush1.msra.mxu0 0.0
        %4189 = vmatprep.subr.mxu0 0.0
        %4190 = vmatpush1.msra.mxu0 0.0
        %4191 = vmatprep.subr.mxu0 0.0
        %4192 = vmatpush1.msra.mxu0 0.0
        %4193 = vmatprep.subr.mxu0 0.0
        %4194 = vmatpush1.msra.mxu0 0.0
        %4195 = vmatprep.subr.mxu0 0.0
        %4196 = vmatpush1.msra.mxu0 0.0
        %4197 = vmatprep.subr.mxu0 0.0
        %4198 = vmatpush1.msra.mxu0 0.0
        %4199 = vmatprep.subr.mxu0 0.0
        %4200 = vmatpush1.msra.mxu0 0.0
        %4201 = vmatprep.subr.mxu0 0.0
        %4202 = vmatpush1.msra.mxu0 0.0
        %4203 = vmatprep.subr.mxu0 0.0
        %4204 = vmatpush1.msra.mxu0 0.0
        %4205 = vmatprep.subr.mxu0 0.0
        %4206 = vmatpush1.msra.mxu0 0.0
        %4207 = vmatprep.subr.mxu0 0.0
        %4208 = vmatpush1.msra.mxu0 0.0
        %4209 = vmatprep.subr.mxu0 0.0
        %4210 = vmatpush1.msra.mxu0 0.0
        %4211 = vmatprep.subr.mxu0 0.0
        %4212 = vmatpush1.msra.mxu0 0.0
        %4213 = vmatprep.subr.mxu0 0.0
        %4214 = vmatpush1.msra.mxu0 0.0
        %4215 = vmatprep.subr.mxu0 0.0
        %4216 = vmatpush1.msra.mxu0 0.0
        %4217 = vmatprep.mubr.f32.mxu0 0.0
        %4218 = vmatmul.mubr.f32.gmra.mrb[0].mxu0 %v3938
        %v4219 = vpop.f32.mrb[0].mxu0
        %v4220 = vadd.f32 0.0, %v4219
        %v4221 = vpop.f32.mrb[0].mxu0
        %v4222 = vadd.f32 0.0, %v4221
        %4223 = vdwg.mxu0
        %v4225 = vsel %vm3936, %v3889, 0
        %4227 = vmatprep.subr.mxu0 %v3882
        %4228 = vmatpush1.msra.mxu0 %v3881
        %4229 = vmatprep.subr.mxu0 0.0
        %4230 = vmatpush1.msra.mxu0 0.0
        %4231 = vmatprep.subr.mxu0 0.0
        %4232 = vmatpush1.msra.mxu0 0.0
        %4233 = vmatprep.subr.mxu0 0.0
        %4234 = vmatpush1.msra.mxu0 0.0
        %4235 = vmatprep.subr.mxu0 0.0
        %4236 = vmatpush1.msra.mxu0 0.0
        %4237 = vmatprep.subr.mxu0 0.0
        %4238 = vmatpush1.msra.mxu0 0.0
        %4239 = vmatprep.subr.mxu0 0.0
        %4240 = vmatpush1.msra.mxu0 0.0
        %4241 = vmatprep.subr.mxu0 0.0
        %4242 = vmatpush1.msra.mxu0 0.0
        %4243 = vmatprep.subr.mxu0 0.0
        %4244 = vmatpush1.msra.mxu0 0.0
        %4245 = vmatprep.subr.mxu0 0.0
        %4246 = vmatpush1.msra.mxu0 0.0
        %4247 = vmatprep.subr.mxu0 0.0
        %4248 = vmatpush1.msra.mxu0 0.0
        %4249 = vmatprep.subr.mxu0 0.0
        %4250 = vmatpush1.msra.mxu0 0.0
        %4251 = vmatprep.subr.mxu0 0.0
        %4252 = vmatpush1.msra.mxu0 0.0
        %4253 = vmatprep.subr.mxu0 0.0
        %4254 = vmatpush1.msra.mxu0 0.0
        %4255 = vmatprep.subr.mxu0 0.0
        %4256 = vmatpush1.msra.mxu0 0.0
        %4257 = vmatprep.subr.mxu0 0.0
        %4258 = vmatpush1.msra.mxu0 0.0
        %4259 = vmatprep.subr.mxu0 0.0
        %4260 = vmatpush1.msra.mxu0 0.0
        %4261 = vmatprep.subr.mxu0 0.0
        %4262 = vmatpush1.msra.mxu0 0.0
        %4263 = vmatprep.subr.mxu0 0.0
        %4264 = vmatpush1.msra.mxu0 0.0
        %4265 = vmatprep.subr.mxu0 0.0
        %4266 = vmatpush1.msra.mxu0 0.0
        %4267 = vmatprep.subr.mxu0 0.0
        %4268 = vmatpush1.msra.mxu0 0.0
        %4269 = vmatprep.subr.mxu0 0.0
        %4270 = vmatpush1.msra.mxu0 0.0
        %4271 = vmatprep.subr.mxu0 0.0
        %4272 = vmatpush1.msra.mxu0 0.0
        %4273 = vmatprep.subr.mxu0 0.0
        %4274 = vmatpush1.msra.mxu0 0.0
        %4275 = vmatprep.subr.mxu0 0.0
        %4276 = vmatpush1.msra.mxu0 0.0
        %4277 = vmatprep.subr.mxu0 0.0
        %4278 = vmatpush1.msra.mxu0 0.0
        %4279 = vmatprep.subr.mxu0 0.0
        %4280 = vmatpush1.msra.mxu0 0.0
        %4281 = vmatprep.subr.mxu0 0.0
        %4282 = vmatpush1.msra.mxu0 0.0
        %4283 = vmatprep.subr.mxu0 0.0
        %4284 = vmatpush1.msra.mxu0 0.0
        %4285 = vmatprep.subr.mxu0 0.0
        %4286 = vmatpush1.msra.mxu0 0.0
        %4287 = vmatprep.subr.mxu0 0.0
        %4288 = vmatpush1.msra.mxu0 0.0
        %4289 = vmatprep.subr.mxu0 0.0
        %4290 = vmatpush1.msra.mxu0 0.0
        %4291 = vmatprep.mubr.f32.mxu0 0.0
        %4292 = vmatmul.mubr.f32.gmra.mrb[0].mxu0 %v4225
        %v4293 = vpop.f32.mrb[0].mxu0
        %v4294 = vadd.f32 %v4007, %v4293
        %v4295 = vpop.f32.mrb[0].mxu0
        %v4296 = vadd.f32 %v4009, %v4295
        %4297 = vdwg.mxu0
        %4298 = vmatprep.subr.mxu0 %v3884
        %4299 = vmatpush1.msra.mxu0 %v3883
        %4300 = vmatprep.subr.mxu0 0.0
        %4301 = vmatpush1.msra.mxu0 0.0
        %4302 = vmatprep.subr.mxu0 0.0
        %4303 = vmatpush1.msra.mxu0 0.0
        %4304 = vmatprep.subr.mxu0 0.0
        %4305 = vmatpush1.msra.mxu0 0.0
        %4306 = vmatprep.subr.mxu0 0.0
        %4307 = vmatpush1.msra.mxu0 0.0
        %4308 = vmatprep.subr.mxu0 0.0
        %4309 = vmatpush1.msra.mxu0 0.0
        %4310 = vmatprep.subr.mxu0 0.0
        %4311 = vmatpush1.msra.mxu0 0.0
        %4312 = vmatprep.subr.mxu0 0.0
        %4313 = vmatpush1.msra.mxu0 0.0
        %4314 = vmatprep.subr.mxu0 0.0
        %4315 = vmatpush1.msra.mxu0 0.0
        %4316 = vmatprep.subr.mxu0 0.0
        %4317 = vmatpush1.msra.mxu0 0.0
        %4318 = vmatprep.subr.mxu0 0.0
        %4319 = vmatpush1.msra.mxu0 0.0
        %4320 = vmatprep.subr.mxu0 0.0
        %4321 = vmatpush1.msra.mxu0 0.0
        %4322 = vmatprep.subr.mxu0 0.0
        %4323 = vmatpush1.msra.mxu0 0.0
        %4324 = vmatprep.subr.mxu0 0.0
        %4325 = vmatpush1.msra.mxu0 0.0
        %4326 = vmatprep.subr.mxu0 0.0
        %4327 = vmatpush1.msra.mxu0 0.0
        %4328 = vmatprep.subr.mxu0 0.0
        %4329 = vmatpush1.msra.mxu0 0.0
        %4330 = vmatprep.subr.mxu0 0.0
        %4331 = vmatpush1.msra.mxu0 0.0
        %4332 = vmatprep.subr.mxu0 0.0
        %4333 = vmatpush1.msra.mxu0 0.0
        %4334 = vmatprep.subr.mxu0 0.0
        %4335 = vmatpush1.msra.mxu0 0.0
        %4336 = vmatprep.subr.mxu0 0.0
        %4337 = vmatpush1.msra.mxu0 0.0
        %4338 = vmatprep.subr.mxu0 0.0
        %4339 = vmatpush1.msra.mxu0 0.0
        %4340 = vmatprep.subr.mxu0 0.0
        %4341 = vmatpush1.msra.mxu0 0.0
        %4342 = vmatprep.subr.mxu0 0.0
        %4343 = vmatpush1.msra.mxu0 0.0
        %4344 = vmatprep.subr.mxu0 0.0
        %4345 = vmatpush1.msra.mxu0 0.0
        %4346 = vmatprep.subr.mxu0 0.0
        %4347 = vmatpush1.msra.mxu0 0.0
        %4348 = vmatprep.subr.mxu0 0.0
        %4349 = vmatpush1.msra.mxu0 0.0
        %4350 = vmatprep.subr.mxu0 0.0
        %4351 = vmatpush1.msra.mxu0 0.0
        %4352 = vmatprep.subr.mxu0 0.0
        %4353 = vmatpush1.msra.mxu0 0.0
        %4354 = vmatprep.subr.mxu0 0.0
        %4355 = vmatpush1.msra.mxu0 0.0
        %4356 = vmatprep.subr.mxu0 0.0
        %4357 = vmatpush1.msra.mxu0 0.0
        %4358 = vmatprep.subr.mxu0 0.0
        %4359 = vmatpush1.msra.mxu0 0.0
        %4360 = vmatprep.subr.mxu0 0.0
        %4361 = vmatpush1.msra.mxu0 0.0
        %4362 = vmatprep.mubr.f32.mxu0 0.0
        %4363 = vmatmul.mubr.f32.gmra.mrb[0].mxu0 %v4225
        %v4364 = vpop.f32.mrb[0].mxu0
        %v4365 = vadd.f32 %v4078, %v4364
        %v4366 = vpop.f32.mrb[0].mxu0
        %v4367 = vadd.f32 %v4080, %v4366
        %4368 = vdwg.mxu0
        %4369 = vmatprep.subr.mxu0 %v3886
        %4370 = vmatpush1.msra.mxu0 %v3885
        %4371 = vmatprep.subr.mxu0 0.0
        %4372 = vmatpush1.msra.mxu0 0.0
        %4373 = vmatprep.subr.mxu0 0.0
        %4374 = vmatpush1.msra.mxu0 0.0
        %4375 = vmatprep.subr.mxu0 0.0
        %4376 = vmatpush1.msra.mxu0 0.0
        %4377 = vmatprep.subr.mxu0 0.0
        %4378 = vmatpush1.msra.mxu0 0.0
        %4379 = vmatprep.subr.mxu0 0.0
        %4380 = vmatpush1.msra.mxu0 0.0
        %4381 = vmatprep.subr.mxu0 0.0
        %4382 = vmatpush1.msra.mxu0 0.0
        %4383 = vmatprep.subr.mxu0 0.0
        %4384 = vmatpush1.msra.mxu0 0.0
        %4385 = vmatprep.subr.mxu0 0.0
        %4386 = vmatpush1.msra.mxu0 0.0
        %4387 = vmatprep.subr.mxu0 0.0
        %4388 = vmatpush1.msra.mxu0 0.0
        %4389 = vmatprep.subr.mxu0 0.0
        %4390 = vmatpush1.msra.mxu0 0.0
        %4391 = vmatprep.subr.mxu0 0.0
        %4392 = vmatpush1.msra.mxu0 0.0
        %4393 = vmatprep.subr.mxu0 0.0
        %4394 = vmatpush1.msra.mxu0 0.0
        %4395 = vmatprep.subr.mxu0 0.0
        %4396 = vmatpush1.msra.mxu0 0.0
        %4397 = vmatprep.subr.mxu0 0.0
        %4398 = vmatpush1.msra.mxu0 0.0
        %4399 = vmatprep.subr.mxu0 0.0
        %4400 = vmatpush1.msra.mxu0 0.0
        %4401 = vmatprep.subr.mxu0 0.0
        %4402 = vmatpush1.msra.mxu0 0.0
        %4403 = vmatprep.subr.mxu0 0.0
        %4404 = vmatpush1.msra.mxu0 0.0
        %4405 = vmatprep.subr.mxu0 0.0
        %4406 = vmatpush1.msra.mxu0 0.0
        %4407 = vmatprep.subr.mxu0 0.0
        %4408 = vmatpush1.msra.mxu0 0.0
        %4409 = vmatprep.subr.mxu0 0.0
        %4410 = vmatpush1.msra.mxu0 0.0
        %4411 = vmatprep.subr.mxu0 0.0
        %4412 = vmatpush1.msra.mxu0 0.0
        %4413 = vmatprep.subr.mxu0 0.0
        %4414 = vmatpush1.msra.mxu0 0.0
        %4415 = vmatprep.subr.mxu0 0.0
        %4416 = vmatpush1.msra.mxu0 0.0
        %4417 = vmatprep.subr.mxu0 0.0
        %4418 = vmatpush1.msra.mxu0 0.0
        %4419 = vmatprep.subr.mxu0 0.0
        %4420 = vmatpush1.msra.mxu0 0.0
        %4421 = vmatprep.subr.mxu0 0.0
        %4422 = vmatpush1.msra.mxu0 0.0
        %4423 = vmatprep.subr.mxu0 0.0
        %4424 = vmatpush1.msra.mxu0 0.0
        %4425 = vmatprep.subr.mxu0 0.0
        %4426 = vmatpush1.msra.mxu0 0.0
        %4427 = vmatprep.subr.mxu0 0.0
        %4428 = vmatpush1.msra.mxu0 0.0
        %4429 = vmatprep.subr.mxu0 0.0
        %4430 = vmatpush1.msra.mxu0 0.0
        %4431 = vmatprep.subr.mxu0 0.0
        %4432 = vmatpush1.msra.mxu0 0.0
        %4433 = vmatprep.mubr.f32.mxu0 0.0
        %4434 = vmatmul.mubr.f32.gmra.mrb[0].mxu0 %v4225
        %v4435 = vpop.f32.mrb[0].mxu0
        %v4436 = vadd.f32 %v4149, %v4435
        %v4437 = vpop.f32.mrb[0].mxu0
        %v4438 = vadd.f32 %v4151, %v4437
        %4439 = vdwg.mxu0
        %4440 = vmatprep.subr.mxu0 %v3888
        %4441 = vmatpush1.msra.mxu0 %v3887
        %4442 = vmatprep.subr.mxu0 0.0
        %4443 = vmatpush1.msra.mxu0 0.0
        %4444 = vmatprep.subr.mxu0 0.0
        %4445 = vmatpush1.msra.mxu0 0.0
        %4446 = vmatprep.subr.mxu0 0.0
        %4447 = vmatpush1.msra.mxu0 0.0
        %4448 = vmatprep.subr.mxu0 0.0
        %4449 = vmatpush1.msra.mxu0 0.0
        %4450 = vmatprep.subr.mxu0 0.0
        %4451 = vmatpush1.msra.mxu0 0.0
        %4452 = vmatprep.subr.mxu0 0.0
        %4453 = vmatpush1.msra.mxu0 0.0
        %4454 = vmatprep.subr.mxu0 0.0
        %4455 = vmatpush1.msra.mxu0 0.0
        %4456 = vmatprep.subr.mxu0 0.0
        %4457 = vmatpush1.msra.mxu0 0.0
        %4458 = vmatprep.subr.mxu0 0.0
        %4459 = vmatpush1.msra.mxu0 0.0
        %4460 = vmatprep.subr.mxu0 0.0
        %4461 = vmatpush1.msra.mxu0 0.0
        %4462 = vmatprep.subr.mxu0 0.0
        %4463 = vmatpush1.msra.mxu0 0.0
        %4464 = vmatprep.subr.mxu0 0.0
        %4465 = vmatpush1.msra.mxu0 0.0
        %4466 = vmatprep.subr.mxu0 0.0
        %4467 = vmatpush1.msra.mxu0 0.0
        %4468 = vmatprep.subr.mxu0 0.0
        %4469 = vmatpush1.msra.mxu0 0.0
        %4470 = vmatprep.subr.mxu0 0.0
        %4471 = vmatpush1.msra.mxu0 0.0
        %4472 = vmatprep.subr.mxu0 0.0
        %4473 = vmatpush1.msra.mxu0 0.0
        %4474 = vmatprep.subr.mxu0 0.0
        %4475 = vmatpush1.msra.mxu0 0.0
        %4476 = vmatprep.subr.mxu0 0.0
        %4477 = vmatpush1.msra.mxu0 0.0
        %4478 = vmatprep.subr.mxu0 0.0
        %4479 = vmatpush1.msra.mxu0 0.0
        %4480 = vmatprep.subr.mxu0 0.0
        %4481 = vmatpush1.msra.mxu0 0.0
        %4482 = vmatprep.subr.mxu0 0.0
        %4483 = vmatpush1.msra.mxu0 0.0
        %4484 = vmatprep.subr.mxu0 0.0
        %4485 = vmatpush1.msra.mxu0 0.0
        %4486 = vmatprep.subr.mxu0 0.0
        %4487 = vmatpush1.msra.mxu0 0.0
        %4488 = vmatprep.subr.mxu0 0.0
        %4489 = vmatpush1.msra.mxu0 0.0
        %4490 = vmatprep.subr.mxu0 0.0
        %4491 = vmatpush1.msra.mxu0 0.0
        %4492 = vmatprep.subr.mxu0 0.0
        %4493 = vmatpush1.msra.mxu0 0.0
        %4494 = vmatprep.subr.mxu0 0.0
        %4495 = vmatpush1.msra.mxu0 0.0
        %4496 = vmatprep.subr.mxu0 0.0
        %4497 = vmatpush1.msra.mxu0 0.0
        %4498 = vmatprep.subr.mxu0 0.0
        %4499 = vmatpush1.msra.mxu0 0.0
        %4500 = vmatprep.subr.mxu0 0.0
        %4501 = vmatpush1.msra.mxu0 0.0
        %4502 = vmatprep.subr.mxu0 0.0
        %4503 = vmatpush1.msra.mxu0 0.0
        %4504 = vmatprep.mubr.f32.mxu0 0.0
        %4505 = vmatmul.mubr.f32.gmra.mrb[0].mxu0 %v4225
        %v4506 = vpop.f32.mrb[0].mxu0
        %v4507 = vadd.f32 %v4220, %v4506
        %v4508 = vpop.f32.mrb[0].mxu0
        %v4509 = vadd.f32 %v4222, %v4508
        %4510 = vdwg.mxu0
        %4511 = vrot.lane.b32.xlu0 %v3873, 126
        %v4512 = vpop.permute.xlu0 %4511
        %4513 = vrot.lane.b32.xlu0 %v3874, 126
        %v4514 = vpop.permute.xlu0 %4513
        %4515 = vrot.lane.b32.xlu0 %v3875, 126
        %v4516 = vpop.permute.xlu0 %4515
        %4517 = vrot.lane.b32.xlu0 %v3876, 126
        %v4518 = vpop.permute.xlu0 %4517
        %4519 = vrot.lane.b32.xlu0 %v3877, 126
        %v4520 = vpop.permute.xlu0 %4519
        %4521 = vrot.lane.b32.xlu0 %v3878, 126
        %v4522 = vpop.permute.xlu0 %4521
        %4523 = vrot.lane.b32.xlu0 %v3879, 126
        %v4524 = vpop.permute.xlu0 %4523
        %4525 = vrot.lane.b32.xlu0 %v3880, 126
        %v4526 = vpop.permute.xlu0 %4525
        %4527 = vrot.lane.b32.xlu0 %v3890, 126
        %v4528 = vpop.permute.xlu0 %4527
        %v4529 = vsel %vm1128, %v4512, %v4514
        %v4530 = vsel %vm1128, %v4514, %v4516
        %v4531 = vsel %vm1128, %v4516, %v4518
        %v4532 = vsel %vm1128, %v4518, %v4520
        %v4533 = vsel %vm1128, %v4520, %v4522
        %v4534 = vsel %vm1128, %v4522, %v4524
        %v4535 = vsel %vm1128, %v4524, %v4526
        %v4536 = vsel %vm1128, %v4526, %v4528
        %v4545 = vsel %vm1093, %v4529, 0.0
        %v4546 = vsel %vm1094, %v4530, 0.0
        %v4547 = vsel %vm1095, %v4531, 0.0
        %v4548 = vsel %vm1096, %v4532, 0.0
        %v4549 = vsel %vm1097, %v4533, 0.0
        %v4550 = vsel %vm1098, %v4534, 0.0
        %v4551 = vsel %vm1099, %v4535, 0.0
        %v4552 = vsel %vm1100, %v4536, 0.0
        %s4553 = scalar_lea.vmem %s3, 16
        %v4554 = vld [vmem:[%s4553] sm:$0xff]
        %v4556 = vsel %vm3936, %v4554, 0
        %4558 = vmatprep.subr.mxu0 %v4546
        %4559 = vmatpush1.msra.mxu0 %v4545
        %4560 = vmatprep.subr.mxu0 0.0
        %4561 = vmatpush1.msra.mxu0 0.0
        %4562 = vmatprep.subr.mxu0 0.0
        %4563 = vmatpush1.msra.mxu0 0.0
        %4564 = vmatprep.subr.mxu0 0.0
        %4565 = vmatpush1.msra.mxu0 0.0
        %4566 = vmatprep.subr.mxu0 0.0
        %4567 = vmatpush1.msra.mxu0 0.0
        %4568 = vmatprep.subr.mxu0 0.0
        %4569 = vmatpush1.msra.mxu0 0.0
        %4570 = vmatprep.subr.mxu0 0.0
        %4571 = vmatpush1.msra.mxu0 0.0
        %4572 = vmatprep.subr.mxu0 0.0
        %4573 = vmatpush1.msra.mxu0 0.0
        %4574 = vmatprep.subr.mxu0 0.0
        %4575 = vmatpush1.msra.mxu0 0.0
        %4576 = vmatprep.subr.mxu0 0.0
        %4577 = vmatpush1.msra.mxu0 0.0
        %4578 = vmatprep.subr.mxu0 0.0
        %4579 = vmatpush1.msra.mxu0 0.0
        %4580 = vmatprep.subr.mxu0 0.0
        %4581 = vmatpush1.msra.mxu0 0.0
        %4582 = vmatprep.subr.mxu0 0.0
        %4583 = vmatpush1.msra.mxu0 0.0
        %4584 = vmatprep.subr.mxu0 0.0
        %4585 = vmatpush1.msra.mxu0 0.0
        %4586 = vmatprep.subr.mxu0 0.0
        %4587 = vmatpush1.msra.mxu0 0.0
        %4588 = vmatprep.subr.mxu0 0.0
        %4589 = vmatpush1.msra.mxu0 0.0
        %4590 = vmatprep.subr.mxu0 0.0
        %4591 = vmatpush1.msra.mxu0 0.0
        %4592 = vmatprep.subr.mxu0 0.0
        %4593 = vmatpush1.msra.mxu0 0.0
        %4594 = vmatprep.subr.mxu0 0.0
        %4595 = vmatpush1.msra.mxu0 0.0
        %4596 = vmatprep.subr.mxu0 0.0
        %4597 = vmatpush1.msra.mxu0 0.0
        %4598 = vmatprep.subr.mxu0 0.0
        %4599 = vmatpush1.msra.mxu0 0.0
        %4600 = vmatprep.subr.mxu0 0.0
        %4601 = vmatpush1.msra.mxu0 0.0
        %4602 = vmatprep.subr.mxu0 0.0
        %4603 = vmatpush1.msra.mxu0 0.0
        %4604 = vmatprep.subr.mxu0 0.0
        %4605 = vmatpush1.msra.mxu0 0.0
        %4606 = vmatprep.subr.mxu0 0.0
        %4607 = vmatpush1.msra.mxu0 0.0
        %4608 = vmatprep.subr.mxu0 0.0
        %4609 = vmatpush1.msra.mxu0 0.0
        %4610 = vmatprep.subr.mxu0 0.0
        %4611 = vmatpush1.msra.mxu0 0.0
        %4612 = vmatprep.subr.mxu0 0.0
        %4613 = vmatpush1.msra.mxu0 0.0
        %4614 = vmatprep.subr.mxu0 0.0
        %4615 = vmatpush1.msra.mxu0 0.0
        %4616 = vmatprep.subr.mxu0 0.0
        %4617 = vmatpush1.msra.mxu0 0.0
        %4618 = vmatprep.subr.mxu0 0.0
        %4619 = vmatpush1.msra.mxu0 0.0
        %4620 = vmatprep.subr.mxu0 0.0
        %4621 = vmatpush1.msra.mxu0 0.0
        %4622 = vmatprep.mubr.f32.mxu0 0.0
        %4623 = vmatmul.mubr.f32.gmra.mrb[0].mxu0 %v4556
        %v4624 = vpop.f32.mrb[0].mxu0
        %v4625 = vadd.f32 0.0, %v4624
        %v4626 = vpop.f32.mrb[0].mxu0
        %v4627 = vadd.f32 0.0, %v4626
        %4628 = vdwg.mxu0
        %4629 = vmatprep.subr.mxu0 %v4548
        %4630 = vmatpush1.msra.mxu0 %v4547
        %4631 = vmatprep.subr.mxu0 0.0
        %4632 = vmatpush1.msra.mxu0 0.0
        %4633 = vmatprep.subr.mxu0 0.0
        %4634 = vmatpush1.msra.mxu0 0.0
        %4635 = vmatprep.subr.mxu0 0.0
        %4636 = vmatpush1.msra.mxu0 0.0
        %4637 = vmatprep.subr.mxu0 0.0
        %4638 = vmatpush1.msra.mxu0 0.0
        %4639 = vmatprep.subr.mxu0 0.0
        %4640 = vmatpush1.msra.mxu0 0.0
        %4641 = vmatprep.subr.mxu0 0.0
        %4642 = vmatpush1.msra.mxu0 0.0
        %4643 = vmatprep.subr.mxu0 0.0
        %4644 = vmatpush1.msra.mxu0 0.0
        %4645 = vmatprep.subr.mxu0 0.0
        %4646 = vmatpush1.msra.mxu0 0.0
        %4647 = vmatprep.subr.mxu0 0.0
        %4648 = vmatpush1.msra.mxu0 0.0
        %4649 = vmatprep.subr.mxu0 0.0
        %4650 = vmatpush1.msra.mxu0 0.0
        %4651 = vmatprep.subr.mxu0 0.0
        %4652 = vmatpush1.msra.mxu0 0.0
        %4653 = vmatprep.subr.mxu0 0.0
        %4654 = vmatpush1.msra.mxu0 0.0
        %4655 = vmatprep.subr.mxu0 0.0
        %4656 = vmatpush1.msra.mxu0 0.0
        %4657 = vmatprep.subr.mxu0 0.0
        %4658 = vmatpush1.msra.mxu0 0.0
        %4659 = vmatprep.subr.mxu0 0.0
        %4660 = vmatpush1.msra.mxu0 0.0
        %4661 = vmatprep.subr.mxu0 0.0
        %4662 = vmatpush1.msra.mxu0 0.0
        %4663 = vmatprep.subr.mxu0 0.0
        %4664 = vmatpush1.msra.mxu0 0.0
        %4665 = vmatprep.subr.mxu0 0.0
        %4666 = vmatpush1.msra.mxu0 0.0
        %4667 = vmatprep.subr.mxu0 0.0
        %4668 = vmatpush1.msra.mxu0 0.0
        %4669 = vmatprep.subr.mxu0 0.0
        %4670 = vmatpush1.msra.mxu0 0.0
        %4671 = vmatprep.subr.mxu0 0.0
        %4672 = vmatpush1.msra.mxu0 0.0
        %4673 = vmatprep.subr.mxu0 0.0
        %4674 = vmatpush1.msra.mxu0 0.0
        %4675 = vmatprep.subr.mxu0 0.0
        %4676 = vmatpush1.msra.mxu0 0.0
        %4677 = vmatprep.subr.mxu0 0.0
        %4678 = vmatpush1.msra.mxu0 0.0
        %4679 = vmatprep.subr.mxu0 0.0
        %4680 = vmatpush1.msra.mxu0 0.0
        %4681 = vmatprep.subr.mxu0 0.0
        %4682 = vmatpush1.msra.mxu0 0.0
        %4683 = vmatprep.subr.mxu0 0.0
        %4684 = vmatpush1.msra.mxu0 0.0
        %4685 = vmatprep.subr.mxu0 0.0
        %4686 = vmatpush1.msra.mxu0 0.0
        %4687 = vmatprep.subr.mxu0 0.0
        %4688 = vmatpush1.msra.mxu0 0.0
        %4689 = vmatprep.subr.mxu0 0.0
        %4690 = vmatpush1.msra.mxu0 0.0
        %4691 = vmatprep.subr.mxu0 0.0
        %4692 = vmatpush1.msra.mxu0 0.0
        %4693 = vmatprep.mubr.f32.mxu0 0.0
        %4694 = vmatmul.mubr.f32.gmra.mrb[0].mxu0 %v4556
        %v4695 = vpop.f32.mrb[0].mxu0
        %v4696 = vadd.f32 0.0, %v4695
        %v4697 = vpop.f32.mrb[0].mxu0
        %v4698 = vadd.f32 0.0, %v4697
        %4699 = vdwg.mxu0
        %4700 = vmatprep.subr.mxu0 %v4550
        %4701 = vmatpush1.msra.mxu0 %v4549
        %4702 = vmatprep.subr.mxu0 0.0
        %4703 = vmatpush1.msra.mxu0 0.0
        %4704 = vmatprep.subr.mxu0 0.0
        %4705 = vmatpush1.msra.mxu0 0.0
        %4706 = vmatprep.subr.mxu0 0.0
        %4707 = vmatpush1.msra.mxu0 0.0
        %4708 = vmatprep.subr.mxu0 0.0
        %4709 = vmatpush1.msra.mxu0 0.0
        %4710 = vmatprep.subr.mxu0 0.0
        %4711 = vmatpush1.msra.mxu0 0.0
        %4712 = vmatprep.subr.mxu0 0.0
        %4713 = vmatpush1.msra.mxu0 0.0
        %4714 = vmatprep.subr.mxu0 0.0
        %4715 = vmatpush1.msra.mxu0 0.0
        %4716 = vmatprep.subr.mxu0 0.0
        %4717 = vmatpush1.msra.mxu0 0.0
        %4718 = vmatprep.subr.mxu0 0.0
        %4719 = vmatpush1.msra.mxu0 0.0
        %4720 = vmatprep.subr.mxu0 0.0
        %4721 = vmatpush1.msra.mxu0 0.0
        %4722 = vmatprep.subr.mxu0 0.0
        %4723 = vmatpush1.msra.mxu0 0.0
        %4724 = vmatprep.subr.mxu0 0.0
        %4725 = vmatpush1.msra.mxu0 0.0
        %4726 = vmatprep.subr.mxu0 0.0
        %4727 = vmatpush1.msra.mxu0 0.0
        %4728 = vmatprep.subr.mxu0 0.0
        %4729 = vmatpush1.msra.mxu0 0.0
        %4730 = vmatprep.subr.mxu0 0.0
        %4731 = vmatpush1.msra.mxu0 0.0
        %4732 = vmatprep.subr.mxu0 0.0
        %4733 = vmatpush1.msra.mxu0 0.0
        %4734 = vmatprep.subr.mxu0 0.0
        %4735 = vmatpush1.msra.mxu0 0.0
        %4736 = vmatprep.subr.mxu0 0.0
        %4737 = vmatpush1.msra.mxu0 0.0
        %4738 = vmatprep.subr.mxu0 0.0
        %4739 = vmatpush1.msra.mxu0 0.0
        %4740 = vmatprep.subr.mxu0 0.0
        %4741 = vmatpush1.msra.mxu0 0.0
        %4742 = vmatprep.subr.mxu0 0.0
        %4743 = vmatpush1.msra.mxu0 0.0
        %4744 = vmatprep.subr.mxu0 0.0
        %4745 = vmatpush1.msra.mxu0 0.0
        %4746 = vmatprep.subr.mxu0 0.0
        %4747 = vmatpush1.msra.mxu0 0.0
        %4748 = vmatprep.subr.mxu0 0.0
        %4749 = vmatpush1.msra.mxu0 0.0
        %4750 = vmatprep.subr.mxu0 0.0
        %4751 = vmatpush1.msra.mxu0 0.0
        %4752 = vmatprep.subr.mxu0 0.0
        %4753 = vmatpush1.msra.mxu0 0.0
        %4754 = vmatprep.subr.mxu0 0.0
        %4755 = vmatpush1.msra.mxu0 0.0
        %4756 = vmatprep.subr.mxu0 0.0
        %4757 = vmatpush1.msra.mxu0 0.0
        %4758 = vmatprep.subr.mxu0 0.0
        %4759 = vmatpush1.msra.mxu0 0.0
        %4760 = vmatprep.subr.mxu0 0.0
        %4761 = vmatpush1.msra.mxu0 0.0
        %4762 = vmatprep.subr.mxu0 0.0
        %4763 = vmatpush1.msra.mxu0 0.0
        %4764 = vmatprep.mubr.f32.mxu0 0.0
        %4765 = vmatmul.mubr.f32.gmra.mrb[0].mxu0 %v4556
        %v4766 = vpop.f32.mrb[0].mxu0
        %v4767 = vadd.f32 0.0, %v4766
        %v4768 = vpop.f32.mrb[0].mxu0
        %v4769 = vadd.f32 0.0, %v4768
        %4770 = vdwg.mxu0
        %4771 = vmatprep.subr.mxu0 %v4552
        %4772 = vmatpush1.msra.mxu0 %v4551
        %4773 = vmatprep.subr.mxu0 0.0
        %4774 = vmatpush1.msra.mxu0 0.0
        %4775 = vmatprep.subr.mxu0 0.0
        %4776 = vmatpush1.msra.mxu0 0.0
        %4777 = vmatprep.subr.mxu0 0.0
        %4778 = vmatpush1.msra.mxu0 0.0
        %4779 = vmatprep.subr.mxu0 0.0
        %4780 = vmatpush1.msra.mxu0 0.0
        %4781 = vmatprep.subr.mxu0 0.0
        %4782 = vmatpush1.msra.mxu0 0.0
        %4783 = vmatprep.subr.mxu0 0.0
        %4784 = vmatpush1.msra.mxu0 0.0
        %4785 = vmatprep.subr.mxu0 0.0
        %4786 = vmatpush1.msra.mxu0 0.0
        %4787 = vmatprep.subr.mxu0 0.0
        %4788 = vmatpush1.msra.mxu0 0.0
        %4789 = vmatprep.subr.mxu0 0.0
        %4790 = vmatpush1.msra.mxu0 0.0
        %4791 = vmatprep.subr.mxu0 0.0
        %4792 = vmatpush1.msra.mxu0 0.0
        %4793 = vmatprep.subr.mxu0 0.0
        %4794 = vmatpush1.msra.mxu0 0.0
        %4795 = vmatprep.subr.mxu0 0.0
        %4796 = vmatpush1.msra.mxu0 0.0
        %4797 = vmatprep.subr.mxu0 0.0
        %4798 = vmatpush1.msra.mxu0 0.0
        %4799 = vmatprep.subr.mxu0 0.0
        %4800 = vmatpush1.msra.mxu0 0.0
        %4801 = vmatprep.subr.mxu0 0.0
        %4802 = vmatpush1.msra.mxu0 0.0
        %4803 = vmatprep.subr.mxu0 0.0
        %4804 = vmatpush1.msra.mxu0 0.0
        %4805 = vmatprep.subr.mxu0 0.0
        %4806 = vmatpush1.msra.mxu0 0.0
        %4807 = vmatprep.subr.mxu0 0.0
        %4808 = vmatpush1.msra.mxu0 0.0
        %4809 = vmatprep.subr.mxu0 0.0
        %4810 = vmatpush1.msra.mxu0 0.0
        %4811 = vmatprep.subr.mxu0 0.0
        %4812 = vmatpush1.msra.mxu0 0.0
        %4813 = vmatprep.subr.mxu0 0.0
        %4814 = vmatpush1.msra.mxu0 0.0
        %4815 = vmatprep.subr.mxu0 0.0
        %4816 = vmatpush1.msra.mxu0 0.0
        %4817 = vmatprep.subr.mxu0 0.0
        %4818 = vmatpush1.msra.mxu0 0.0
        %4819 = vmatprep.subr.mxu0 0.0
        %4820 = vmatpush1.msra.mxu0 0.0
        %4821 = vmatprep.subr.mxu0 0.0
        %4822 = vmatpush1.msra.mxu0 0.0
        %4823 = vmatprep.subr.mxu0 0.0
        %4824 = vmatpush1.msra.mxu0 0.0
        %4825 = vmatprep.subr.mxu0 0.0
        %4826 = vmatpush1.msra.mxu0 0.0
        %4827 = vmatprep.subr.mxu0 0.0
        %4828 = vmatpush1.msra.mxu0 0.0
        %4829 = vmatprep.subr.mxu0 0.0
        %4830 = vmatpush1.msra.mxu0 0.0
        %4831 = vmatprep.subr.mxu0 0.0
        %4832 = vmatpush1.msra.mxu0 0.0
        %4833 = vmatprep.subr.mxu0 0.0
        %4834 = vmatpush1.msra.mxu0 0.0
        %4835 = vmatprep.mubr.f32.mxu0 0.0
        %4836 = vmatmul.mubr.f32.gmra.mrb[0].mxu0 %v4556
        %v4837 = vpop.f32.mrb[0].mxu0
        %v4838 = vadd.f32 0.0, %v4837
        %v4839 = vpop.f32.mrb[0].mxu0
        %v4840 = vadd.f32 0.0, %v4839
        %4841 = vdwg.mxu0
        %v4842 = vadd.f32 %v4294, %v4625
        %v4843 = vadd.f32 %v4296, %v4627
        %v4844 = vadd.f32 %v4365, %v4696
        %v4845 = vadd.f32 %v4367, %v4698
        %v4846 = vadd.f32 %v4436, %v4767
        %v4847 = vadd.f32 %v4438, %v4769
        %v4848 = vadd.f32 %v4507, %v4838
        %v4849 = vadd.f32 %v4509, %v4840
        %4850 = vrot.lane.b32.xlu0 %v3873, 96
        %v4851 = vpop.permute.xlu0 %4850
        %4852 = vrot.lane.b32.xlu0 %v3874, 96
        %v4853 = vpop.permute.xlu0 %4852
        %4854 = vrot.lane.b32.xlu0 %v3875, 96
        %v4855 = vpop.permute.xlu0 %4854
        %4856 = vrot.lane.b32.xlu0 %v3876, 96
        %v4857 = vpop.permute.xlu0 %4856
        %4858 = vrot.lane.b32.xlu0 %v3877, 96
        %v4859 = vpop.permute.xlu0 %4858
        %4860 = vrot.lane.b32.xlu0 %v3878, 96
        %v4861 = vpop.permute.xlu0 %4860
        %4862 = vrot.lane.b32.xlu0 %v3879, 96
        %v4863 = vpop.permute.xlu0 %4862
        %4864 = vrot.lane.b32.xlu0 %v3880, 96
        %v4865 = vpop.permute.xlu0 %4864
        %4866 = vrot.lane.b32.xlu0 %v3890, 96
        %v4867 = vpop.permute.xlu0 %4866
        %v4868 = vsel %vm1506, %v4851, %v4853
        %v4869 = vsel %vm1506, %v4853, %v4855
        %v4870 = vsel %vm1506, %v4855, %v4857
        %v4871 = vsel %vm1506, %v4857, %v4859
        %v4872 = vsel %vm1506, %v4859, %v4861
        %v4873 = vsel %vm1506, %v4861, %v4863
        %v4874 = vsel %vm1506, %v4863, %v4865
        %v4875 = vsel %vm1506, %v4865, %v4867
        %v4884 = vsel %vm397, %v4868, 0.0
        %v4885 = vsel %vm398, %v4869, 0.0
        %v4886 = vsel %vm399, %v4870, 0.0
        %v4887 = vsel %vm400, %v4871, 0.0
        %v4888 = vsel %vm401, %v4872, 0.0
        %v4889 = vsel %vm402, %v4873, 0.0
        %v4890 = vsel %vm403, %v4874, 0.0
        %v4891 = vsel %vm404, %v4875, 0.0
        %s4892 = scalar_lea.vmem %s3, 24
        %v4893 = vld [vmem:[%s4892] sm:$0xff]
        %v4895 = vsel %vm3936, %v4893, 0
        %4897 = vmatprep.subr.mxu0 %v4885
        %4898 = vmatpush1.msra.mxu0 %v4884
        %4899 = vmatprep.subr.mxu0 0.0
        %4900 = vmatpush1.msra.mxu0 0.0
        %4901 = vmatprep.subr.mxu0 0.0
        %4902 = vmatpush1.msra.mxu0 0.0
        %4903 = vmatprep.subr.mxu0 0.0
        %4904 = vmatpush1.msra.mxu0 0.0
        %4905 = vmatprep.subr.mxu0 0.0
        %4906 = vmatpush1.msra.mxu0 0.0
        %4907 = vmatprep.subr.mxu0 0.0
        %4908 = vmatpush1.msra.mxu0 0.0
        %4909 = vmatprep.subr.mxu0 0.0
        %4910 = vmatpush1.msra.mxu0 0.0
        %4911 = vmatprep.subr.mxu0 0.0
        %4912 = vmatpush1.msra.mxu0 0.0
        %4913 = vmatprep.subr.mxu0 0.0
        %4914 = vmatpush1.msra.mxu0 0.0
        %4915 = vmatprep.subr.mxu0 0.0
        %4916 = vmatpush1.msra.mxu0 0.0
        %4917 = vmatprep.subr.mxu0 0.0
        %4918 = vmatpush1.msra.mxu0 0.0
        %4919 = vmatprep.subr.mxu0 0.0
        %4920 = vmatpush1.msra.mxu0 0.0
        %4921 = vmatprep.subr.mxu0 0.0
        %4922 = vmatpush1.msra.mxu0 0.0
        %4923 = vmatprep.subr.mxu0 0.0
        %4924 = vmatpush1.msra.mxu0 0.0
        %4925 = vmatprep.subr.mxu0 0.0
        %4926 = vmatpush1.msra.mxu0 0.0
        %4927 = vmatprep.subr.mxu0 0.0
        %4928 = vmatpush1.msra.mxu0 0.0
        %4929 = vmatprep.subr.mxu0 0.0
        %4930 = vmatpush1.msra.mxu0 0.0
        %4931 = vmatprep.subr.mxu0 0.0
        %4932 = vmatpush1.msra.mxu0 0.0
        %4933 = vmatprep.subr.mxu0 0.0
        %4934 = vmatpush1.msra.mxu0 0.0
        %4935 = vmatprep.subr.mxu0 0.0
        %4936 = vmatpush1.msra.mxu0 0.0
        %4937 = vmatprep.subr.mxu0 0.0
        %4938 = vmatpush1.msra.mxu0 0.0
        %4939 = vmatprep.subr.mxu0 0.0
        %4940 = vmatpush1.msra.mxu0 0.0
        %4941 = vmatprep.subr.mxu0 0.0
        %4942 = vmatpush1.msra.mxu0 0.0
        %4943 = vmatprep.subr.mxu0 0.0
        %4944 = vmatpush1.msra.mxu0 0.0
        %4945 = vmatprep.subr.mxu0 0.0
        %4946 = vmatpush1.msra.mxu0 0.0
        %4947 = vmatprep.subr.mxu0 0.0
        %4948 = vmatpush1.msra.mxu0 0.0
        %4949 = vmatprep.subr.mxu0 0.0
        %4950 = vmatpush1.msra.mxu0 0.0
        %4951 = vmatprep.subr.mxu0 0.0
        %4952 = vmatpush1.msra.mxu0 0.0
        %4953 = vmatprep.subr.mxu0 0.0
        %4954 = vmatpush1.msra.mxu0 0.0
        %4955 = vmatprep.subr.mxu0 0.0
        %4956 = vmatpush1.msra.mxu0 0.0
        %4957 = vmatprep.subr.mxu0 0.0
        %4958 = vmatpush1.msra.mxu0 0.0
        %4959 = vmatprep.subr.mxu0 0.0
        %4960 = vmatpush1.msra.mxu0 0.0
        %4961 = vmatprep.mubr.f32.mxu0 0.0
        %4962 = vmatmul.mubr.f32.gmra.mrb[0].mxu0 %v4895
        %v4963 = vpop.f32.mrb[0].mxu0
        %v4964 = vadd.f32 0.0, %v4963
        %v4965 = vpop.f32.mrb[0].mxu0
        %v4966 = vadd.f32 0.0, %v4965
        %4967 = vdwg.mxu0
        %4968 = vmatprep.subr.mxu0 %v4887
        %4969 = vmatpush1.msra.mxu0 %v4886
        %4970 = vmatprep.subr.mxu0 0.0
        %4971 = vmatpush1.msra.mxu0 0.0
        %4972 = vmatprep.subr.mxu0 0.0
        %4973 = vmatpush1.msra.mxu0 0.0
        %4974 = vmatprep.subr.mxu0 0.0
        %4975 = vmatpush1.msra.mxu0 0.0
        %4976 = vmatprep.subr.mxu0 0.0
        %4977 = vmatpush1.msra.mxu0 0.0
        %4978 = vmatprep.subr.mxu0 0.0
        %4979 = vmatpush1.msra.mxu0 0.0
        %4980 = vmatprep.subr.mxu0 0.0
        %4981 = vmatpush1.msra.mxu0 0.0
        %4982 = vmatprep.subr.mxu0 0.0
        %4983 = vmatpush1.msra.mxu0 0.0
        %4984 = vmatprep.subr.mxu0 0.0
        %4985 = vmatpush1.msra.mxu0 0.0
        %4986 = vmatprep.subr.mxu0 0.0
        %4987 = vmatpush1.msra.mxu0 0.0
        %4988 = vmatprep.subr.mxu0 0.0
        %4989 = vmatpush1.msra.mxu0 0.0
        %4990 = vmatprep.subr.mxu0 0.0
        %4991 = vmatpush1.msra.mxu0 0.0
        %4992 = vmatprep.subr.mxu0 0.0
        %4993 = vmatpush1.msra.mxu0 0.0
        %4994 = vmatprep.subr.mxu0 0.0
        %4995 = vmatpush1.msra.mxu0 0.0
        %4996 = vmatprep.subr.mxu0 0.0
        %4997 = vmatpush1.msra.mxu0 0.0
        %4998 = vmatprep.subr.mxu0 0.0
        %4999 = vmatpush1.msra.mxu0 0.0
        %5000 = vmatprep.subr.mxu0 0.0
        %5001 = vmatpush1.msra.mxu0 0.0
        %5002 = vmatprep.subr.mxu0 0.0
        %5003 = vmatpush1.msra.mxu0 0.0
        %5004 = vmatprep.subr.mxu0 0.0
        %5005 = vmatpush1.msra.mxu0 0.0
        %5006 = vmatprep.subr.mxu0 0.0
        %5007 = vmatpush1.msra.mxu0 0.0
        %5008 = vmatprep.subr.mxu0 0.0
        %5009 = vmatpush1.msra.mxu0 0.0
        %5010 = vmatprep.subr.mxu0 0.0
        %5011 = vmatpush1.msra.mxu0 0.0
        %5012 = vmatprep.subr.mxu0 0.0
        %5013 = vmatpush1.msra.mxu0 0.0
        %5014 = vmatprep.subr.mxu0 0.0
        %5015 = vmatpush1.msra.mxu0 0.0
        %5016 = vmatprep.subr.mxu0 0.0
        %5017 = vmatpush1.msra.mxu0 0.0
        %5018 = vmatprep.subr.mxu0 0.0
        %5019 = vmatpush1.msra.mxu0 0.0
        %5020 = vmatprep.subr.mxu0 0.0
        %5021 = vmatpush1.msra.mxu0 0.0
        %5022 = vmatprep.subr.mxu0 0.0
        %5023 = vmatpush1.msra.mxu0 0.0
        %5024 = vmatprep.subr.mxu0 0.0
        %5025 = vmatpush1.msra.mxu0 0.0
        %5026 = vmatprep.subr.mxu0 0.0
        %5027 = vmatpush1.msra.mxu0 0.0
        %5028 = vmatprep.subr.mxu0 0.0
        %5029 = vmatpush1.msra.mxu0 0.0
        %5030 = vmatprep.subr.mxu0 0.0
        %5031 = vmatpush1.msra.mxu0 0.0
        %5032 = vmatprep.mubr.f32.mxu0 0.0
        %5033 = vmatmul.mubr.f32.gmra.mrb[0].mxu0 %v4895
        %v5034 = vpop.f32.mrb[0].mxu0
        %v5035 = vadd.f32 0.0, %v5034
        %v5036 = vpop.f32.mrb[0].mxu0
        %v5037 = vadd.f32 0.0, %v5036
        %5038 = vdwg.mxu0
        %5039 = vmatprep.subr.mxu0 %v4889
        %5040 = vmatpush1.msra.mxu0 %v4888
        %5041 = vmatprep.subr.mxu0 0.0
        %5042 = vmatpush1.msra.mxu0 0.0
        %5043 = vmatprep.subr.mxu0 0.0
        %5044 = vmatpush1.msra.mxu0 0.0
        %5045 = vmatprep.subr.mxu0 0.0
        %5046 = vmatpush1.msra.mxu0 0.0
        %5047 = vmatprep.subr.mxu0 0.0
        %5048 = vmatpush1.msra.mxu0 0.0
        %5049 = vmatprep.subr.mxu0 0.0
        %5050 = vmatpush1.msra.mxu0 0.0
        %5051 = vmatprep.subr.mxu0 0.0
        %5052 = vmatpush1.msra.mxu0 0.0
        %5053 = vmatprep.subr.mxu0 0.0
        %5054 = vmatpush1.msra.mxu0 0.0
        %5055 = vmatprep.subr.mxu0 0.0
        %5056 = vmatpush1.msra.mxu0 0.0
        %5057 = vmatprep.subr.mxu0 0.0
        %5058 = vmatpush1.msra.mxu0 0.0
        %5059 = vmatprep.subr.mxu0 0.0
        %5060 = vmatpush1.msra.mxu0 0.0
        %5061 = vmatprep.subr.mxu0 0.0
        %5062 = vmatpush1.msra.mxu0 0.0
        %5063 = vmatprep.subr.mxu0 0.0
        %5064 = vmatpush1.msra.mxu0 0.0
        %5065 = vmatprep.subr.mxu0 0.0
        %5066 = vmatpush1.msra.mxu0 0.0
        %5067 = vmatprep.subr.mxu0 0.0
        %5068 = vmatpush1.msra.mxu0 0.0
        %5069 = vmatprep.subr.mxu0 0.0
        %5070 = vmatpush1.msra.mxu0 0.0
        %5071 = vmatprep.subr.mxu0 0.0
        %5072 = vmatpush1.msra.mxu0 0.0
        %5073 = vmatprep.subr.mxu0 0.0
        %5074 = vmatpush1.msra.mxu0 0.0
        %5075 = vmatprep.subr.mxu0 0.0
        %5076 = vmatpush1.msra.mxu0 0.0
        %5077 = vmatprep.subr.mxu0 0.0
        %5078 = vmatpush1.msra.mxu0 0.0
        %5079 = vmatprep.subr.mxu0 0.0
        %5080 = vmatpush1.msra.mxu0 0.0
        %5081 = vmatprep.subr.mxu0 0.0
        %5082 = vmatpush1.msra.mxu0 0.0
        %5083 = vmatprep.subr.mxu0 0.0
        %5084 = vmatpush1.msra.mxu0 0.0
        %5085 = vmatprep.subr.mxu0 0.0
        %5086 = vmatpush1.msra.mxu0 0.0
        %5087 = vmatprep.subr.mxu0 0.0
        %5088 = vmatpush1.msra.mxu0 0.0
        %5089 = vmatprep.subr.mxu0 0.0
        %5090 = vmatpush1.msra.mxu0 0.0
        %5091 = vmatprep.subr.mxu0 0.0
        %5092 = vmatpush1.msra.mxu0 0.0
        %5093 = vmatprep.subr.mxu0 0.0
        %5094 = vmatpush1.msra.mxu0 0.0
        %5095 = vmatprep.subr.mxu0 0.0
        %5096 = vmatpush1.msra.mxu0 0.0
        %5097 = vmatprep.subr.mxu0 0.0
        %5098 = vmatpush1.msra.mxu0 0.0
        %5099 = vmatprep.subr.mxu0 0.0
        %5100 = vmatpush1.msra.mxu0 0.0
        %5101 = vmatprep.subr.mxu0 0.0
        %5102 = vmatpush1.msra.mxu0 0.0
        %5103 = vmatprep.mubr.f32.mxu0 0.0
        %5104 = vmatmul.mubr.f32.gmra.mrb[0].mxu0 %v4895
        %v5105 = vpop.f32.mrb[0].mxu0
        %v5106 = vadd.f32 0.0, %v5105
        %v5107 = vpop.f32.mrb[0].mxu0
        %v5108 = vadd.f32 0.0, %v5107
        %5109 = vdwg.mxu0
        %5110 = vmatprep.subr.mxu0 %v4891
        %5111 = vmatpush1.msra.mxu0 %v4890
        %5112 = vmatprep.subr.mxu0 0.0
        %5113 = vmatpush1.msra.mxu0 0.0
        %5114 = vmatprep.subr.mxu0 0.0
        %5115 = vmatpush1.msra.mxu0 0.0
        %5116 = vmatprep.subr.mxu0 0.0
        %5117 = vmatpush1.msra.mxu0 0.0
        %5118 = vmatprep.subr.mxu0 0.0
        %5119 = vmatpush1.msra.mxu0 0.0
        %5120 = vmatprep.subr.mxu0 0.0
        %5121 = vmatpush1.msra.mxu0 0.0
        %5122 = vmatprep.subr.mxu0 0.0
        %5123 = vmatpush1.msra.mxu0 0.0
        %5124 = vmatprep.subr.mxu0 0.0
        %5125 = vmatpush1.msra.mxu0 0.0
        %5126 = vmatprep.subr.mxu0 0.0
        %5127 = vmatpush1.msra.mxu0 0.0
        %5128 = vmatprep.subr.mxu0 0.0
        %5129 = vmatpush1.msra.mxu0 0.0
        %5130 = vmatprep.subr.mxu0 0.0
        %5131 = vmatpush1.msra.mxu0 0.0
        %5132 = vmatprep.subr.mxu0 0.0
        %5133 = vmatpush1.msra.mxu0 0.0
        %5134 = vmatprep.subr.mxu0 0.0
        %5135 = vmatpush1.msra.mxu0 0.0
        %5136 = vmatprep.subr.mxu0 0.0
        %5137 = vmatpush1.msra.mxu0 0.0
        %5138 = vmatprep.subr.mxu0 0.0
        %5139 = vmatpush1.msra.mxu0 0.0
        %5140 = vmatprep.subr.mxu0 0.0
        %5141 = vmatpush1.msra.mxu0 0.0
        %5142 = vmatprep.subr.mxu0 0.0
        %5143 = vmatpush1.msra.mxu0 0.0
        %5144 = vmatprep.subr.mxu0 0.0
        %5145 = vmatpush1.msra.mxu0 0.0
        %5146 = vmatprep.subr.mxu0 0.0
        %5147 = vmatpush1.msra.mxu0 0.0
        %5148 = vmatprep.subr.mxu0 0.0
        %5149 = vmatpush1.msra.mxu0 0.0
        %5150 = vmatprep.subr.mxu0 0.0
        %5151 = vmatpush1.msra.mxu0 0.0
        %5152 = vmatprep.subr.mxu0 0.0
        %5153 = vmatpush1.msra.mxu0 0.0
        %5154 = vmatprep.subr.mxu0 0.0
        %5155 = vmatpush1.msra.mxu0 0.0
        %5156 = vmatprep.subr.mxu0 0.0
        %5157 = vmatpush1.msra.mxu0 0.0
        %5158 = vmatprep.subr.mxu0 0.0
        %5159 = vmatpush1.msra.mxu0 0.0
        %5160 = vmatprep.subr.mxu0 0.0
        %5161 = vmatpush1.msra.mxu0 0.0
        %5162 = vmatprep.subr.mxu0 0.0
        %5163 = vmatpush1.msra.mxu0 0.0
        %5164 = vmatprep.subr.mxu0 0.0
        %5165 = vmatpush1.msra.mxu0 0.0
        %5166 = vmatprep.subr.mxu0 0.0
        %5167 = vmatpush1.msra.mxu0 0.0
        %5168 = vmatprep.subr.mxu0 0.0
        %5169 = vmatpush1.msra.mxu0 0.0
        %5170 = vmatprep.subr.mxu0 0.0
        %5171 = vmatpush1.msra.mxu0 0.0
        %5172 = vmatprep.subr.mxu0 0.0
        %5173 = vmatpush1.msra.mxu0 0.0
        %5174 = vmatprep.mubr.f32.mxu0 0.0
        %5175 = vmatmul.mubr.f32.gmra.mrb[0].mxu0 %v4895
        %v5176 = vpop.f32.mrb[0].mxu0
        %v5177 = vadd.f32 0.0, %v5176
        %v5178 = vpop.f32.mrb[0].mxu0
        %v5179 = vadd.f32 0.0, %v5178
        %5180 = vdwg.mxu0
        %v5181 = vadd.f32 %v4842, %v4964
        %v5182 = vadd.f32 %v4843, %v4966
        %v5183 = vadd.f32 %v4844, %v5035
        %v5184 = vadd.f32 %v4845, %v5037
        %v5185 = vadd.f32 %v4846, %v5106
        %v5186 = vadd.f32 %v4847, %v5108
        %v5187 = vadd.f32 %v4848, %v5177
        %v5188 = vadd.f32 %v4849, %v5179
        %s5189 = scalar_lea.vmem %s3, 32
        %v5190 = vld [vmem:[%s5189] sm:$0xff]
        %5191 = vrot.lane.b32.xlu0 %v3873, 95
        %v5192 = vpop.permute.xlu0 %5191
        %5193 = vrot.lane.b32.xlu0 %v3874, 95
        %v5194 = vpop.permute.xlu0 %5193
        %5195 = vrot.lane.b32.xlu0 %v3875, 95
        %v5196 = vpop.permute.xlu0 %5195
        %5197 = vrot.lane.b32.xlu0 %v3876, 95
        %v5198 = vpop.permute.xlu0 %5197
        %5199 = vrot.lane.b32.xlu0 %v3877, 95
        %v5200 = vpop.permute.xlu0 %5199
        %5201 = vrot.lane.b32.xlu0 %v3878, 95
        %v5202 = vpop.permute.xlu0 %5201
        %5203 = vrot.lane.b32.xlu0 %v3879, 95
        %v5204 = vpop.permute.xlu0 %5203
        %5205 = vrot.lane.b32.xlu0 %v3880, 95
        %v5206 = vpop.permute.xlu0 %5205
        %5207 = vrot.lane.b32.xlu0 %v3890, 95
        %v5208 = vpop.permute.xlu0 %5207
        %v5209 = vsel %vm1886, %v5192, %v5194
        %v5210 = vsel %vm1886, %v5194, %v5196
        %v5211 = vsel %vm1886, %v5196, %v5198
        %v5212 = vsel %vm1886, %v5198, %v5200
        %v5213 = vsel %vm1886, %v5200, %v5202
        %v5214 = vsel %vm1886, %v5202, %v5204
        %v5215 = vsel %vm1886, %v5204, %v5206
        %v5216 = vsel %vm1886, %v5206, %v5208
        %v5226 = vsel %vm3936, %v5190, 0
        %5228 = vmatprep.subr.mxu0 %v5210
        %5229 = vmatpush1.msra.mxu0 %v5209
        %5230 = vmatprep.subr.mxu0 0.0
        %5231 = vmatpush1.msra.mxu0 0.0
        %5232 = vmatprep.subr.mxu0 0.0
        %5233 = vmatpush1.msra.mxu0 0.0
        %5234 = vmatprep.subr.mxu0 0.0
        %5235 = vmatpush1.msra.mxu0 0.0
        %5236 = vmatprep.subr.mxu0 0.0
        %5237 = vmatpush1.msra.mxu0 0.0
        %5238 = vmatprep.subr.mxu0 0.0
        %5239 = vmatpush1.msra.mxu0 0.0
        %5240 = vmatprep.subr.mxu0 0.0
        %5241 = vmatpush1.msra.mxu0 0.0
        %5242 = vmatprep.subr.mxu0 0.0
        %5243 = vmatpush1.msra.mxu0 0.0
        %5244 = vmatprep.subr.mxu0 0.0
        %5245 = vmatpush1.msra.mxu0 0.0
        %5246 = vmatprep.subr.mxu0 0.0
        %5247 = vmatpush1.msra.mxu0 0.0
        %5248 = vmatprep.subr.mxu0 0.0
        %5249 = vmatpush1.msra.mxu0 0.0
        %5250 = vmatprep.subr.mxu0 0.0
        %5251 = vmatpush1.msra.mxu0 0.0
        %5252 = vmatprep.subr.mxu0 0.0
        %5253 = vmatpush1.msra.mxu0 0.0
        %5254 = vmatprep.subr.mxu0 0.0
        %5255 = vmatpush1.msra.mxu0 0.0
        %5256 = vmatprep.subr.mxu0 0.0
        %5257 = vmatpush1.msra.mxu0 0.0
        %5258 = vmatprep.subr.mxu0 0.0
        %5259 = vmatpush1.msra.mxu0 0.0
        %5260 = vmatprep.subr.mxu0 0.0
        %5261 = vmatpush1.msra.mxu0 0.0
        %5262 = vmatprep.subr.mxu0 0.0
        %5263 = vmatpush1.msra.mxu0 0.0
        %5264 = vmatprep.subr.mxu0 0.0
        %5265 = vmatpush1.msra.mxu0 0.0
        %5266 = vmatprep.subr.mxu0 0.0
        %5267 = vmatpush1.msra.mxu0 0.0
        %5268 = vmatprep.subr.mxu0 0.0
        %5269 = vmatpush1.msra.mxu0 0.0
        %5270 = vmatprep.subr.mxu0 0.0
        %5271 = vmatpush1.msra.mxu0 0.0
        %5272 = vmatprep.subr.mxu0 0.0
        %5273 = vmatpush1.msra.mxu0 0.0
        %5274 = vmatprep.subr.mxu0 0.0
        %5275 = vmatpush1.msra.mxu0 0.0
        %5276 = vmatprep.subr.mxu0 0.0
        %5277 = vmatpush1.msra.mxu0 0.0
        %5278 = vmatprep.subr.mxu0 0.0
        %5279 = vmatpush1.msra.mxu0 0.0
        %5280 = vmatprep.subr.mxu0 0.0
        %5281 = vmatpush1.msra.mxu0 0.0
        %5282 = vmatprep.subr.mxu0 0.0
        %5283 = vmatpush1.msra.mxu0 0.0
        %5284 = vmatprep.subr.mxu0 0.0
        %5285 = vmatpush1.msra.mxu0 0.0
        %5286 = vmatprep.subr.mxu0 0.0
        %5287 = vmatpush1.msra.mxu0 0.0
        %5288 = vmatprep.subr.mxu0 0.0
        %5289 = vmatpush1.msra.mxu0 0.0
        %5290 = vmatprep.subr.mxu0 0.0
        %5291 = vmatpush1.msra.mxu0 0.0
        %5292 = vmatprep.mubr.f32.mxu0 0.0
        %5293 = vmatmul.mubr.f32.gmra.mrb[0].mxu0 %v5226
        %v5294 = vpop.f32.mrb[0].mxu0
        %v5295 = vadd.f32 0.0, %v5294
        %v5296 = vpop.f32.mrb[0].mxu0
        %v5297 = vadd.f32 0.0, %v5296
        %5298 = vdwg.mxu0
        %5299 = vmatprep.subr.mxu0 %v5212
        %5300 = vmatpush1.msra.mxu0 %v5211
        %5301 = vmatprep.subr.mxu0 0.0
        %5302 = vmatpush1.msra.mxu0 0.0
        %5303 = vmatprep.subr.mxu0 0.0
        %5304 = vmatpush1.msra.mxu0 0.0
        %5305 = vmatprep.subr.mxu0 0.0
        %5306 = vmatpush1.msra.mxu0 0.0
        %5307 = vmatprep.subr.mxu0 0.0
        %5308 = vmatpush1.msra.mxu0 0.0
        %5309 = vmatprep.subr.mxu0 0.0
        %5310 = vmatpush1.msra.mxu0 0.0
        %5311 = vmatprep.subr.mxu0 0.0
        %5312 = vmatpush1.msra.mxu0 0.0
        %5313 = vmatprep.subr.mxu0 0.0
        %5314 = vmatpush1.msra.mxu0 0.0
        %5315 = vmatprep.subr.mxu0 0.0
        %5316 = vmatpush1.msra.mxu0 0.0
        %5317 = vmatprep.subr.mxu0 0.0
        %5318 = vmatpush1.msra.mxu0 0.0
        %5319 = vmatprep.subr.mxu0 0.0
        %5320 = vmatpush1.msra.mxu0 0.0
        %5321 = vmatprep.subr.mxu0 0.0
        %5322 = vmatpush1.msra.mxu0 0.0
        %5323 = vmatprep.subr.mxu0 0.0
        %5324 = vmatpush1.msra.mxu0 0.0
        %5325 = vmatprep.subr.mxu0 0.0
        %5326 = vmatpush1.msra.mxu0 0.0
        %5327 = vmatprep.subr.mxu0 0.0
        %5328 = vmatpush1.msra.mxu0 0.0
        %5329 = vmatprep.subr.mxu0 0.0
        %5330 = vmatpush1.msra.mxu0 0.0
        %5331 = vmatprep.subr.mxu0 0.0
        %5332 = vmatpush1.msra.mxu0 0.0
        %5333 = vmatprep.subr.mxu0 0.0
        %5334 = vmatpush1.msra.mxu0 0.0
        %5335 = vmatprep.subr.mxu0 0.0
        %5336 = vmatpush1.msra.mxu0 0.0
        %5337 = vmatprep.subr.mxu0 0.0
        %5338 = vmatpush1.msra.mxu0 0.0
        %5339 = vmatprep.subr.mxu0 0.0
        %5340 = vmatpush1.msra.mxu0 0.0
        %5341 = vmatprep.subr.mxu0 0.0
        %5342 = vmatpush1.msra.mxu0 0.0
        %5343 = vmatprep.subr.mxu0 0.0
        %5344 = vmatpush1.msra.mxu0 0.0
        %5345 = vmatprep.subr.mxu0 0.0
        %5346 = vmatpush1.msra.mxu0 0.0
        %5347 = vmatprep.subr.mxu0 0.0
        %5348 = vmatpush1.msra.mxu0 0.0
        %5349 = vmatprep.subr.mxu0 0.0
        %5350 = vmatpush1.msra.mxu0 0.0
        %5351 = vmatprep.subr.mxu0 0.0
        %5352 = vmatpush1.msra.mxu0 0.0
        %5353 = vmatprep.subr.mxu0 0.0
        %5354 = vmatpush1.msra.mxu0 0.0
        %5355 = vmatprep.subr.mxu0 0.0
        %5356 = vmatpush1.msra.mxu0 0.0
        %5357 = vmatprep.subr.mxu0 0.0
        %5358 = vmatpush1.msra.mxu0 0.0
        %5359 = vmatprep.subr.mxu0 0.0
        %5360 = vmatpush1.msra.mxu0 0.0
        %5361 = vmatprep.subr.mxu0 0.0
        %5362 = vmatpush1.msra.mxu0 0.0
        %5363 = vmatprep.mubr.f32.mxu0 0.0
        %5364 = vmatmul.mubr.f32.gmra.mrb[0].mxu0 %v5226
        %v5365 = vpop.f32.mrb[0].mxu0
        %v5366 = vadd.f32 0.0, %v5365
        %v5367 = vpop.f32.mrb[0].mxu0
        %v5368 = vadd.f32 0.0, %v5367
        %5369 = vdwg.mxu0
        %5370 = vmatprep.subr.mxu0 %v5214
        %5371 = vmatpush1.msra.mxu0 %v5213
        %5372 = vmatprep.subr.mxu0 0.0
        %5373 = vmatpush1.msra.mxu0 0.0
        %5374 = vmatprep.subr.mxu0 0.0
        %5375 = vmatpush1.msra.mxu0 0.0
        %5376 = vmatprep.subr.mxu0 0.0
        %5377 = vmatpush1.msra.mxu0 0.0
        %5378 = vmatprep.subr.mxu0 0.0
        %5379 = vmatpush1.msra.mxu0 0.0
        %5380 = vmatprep.subr.mxu0 0.0
        %5381 = vmatpush1.msra.mxu0 0.0
        %5382 = vmatprep.subr.mxu0 0.0
        %5383 = vmatpush1.msra.mxu0 0.0
        %5384 = vmatprep.subr.mxu0 0.0
        %5385 = vmatpush1.msra.mxu0 0.0
        %5386 = vmatprep.subr.mxu0 0.0
        %5387 = vmatpush1.msra.mxu0 0.0
        %5388 = vmatprep.subr.mxu0 0.0
        %5389 = vmatpush1.msra.mxu0 0.0
        %5390 = vmatprep.subr.mxu0 0.0
        %5391 = vmatpush1.msra.mxu0 0.0
        %5392 = vmatprep.subr.mxu0 0.0
        %5393 = vmatpush1.msra.mxu0 0.0
        %5394 = vmatprep.subr.mxu0 0.0
        %5395 = vmatpush1.msra.mxu0 0.0
        %5396 = vmatprep.subr.mxu0 0.0
        %5397 = vmatpush1.msra.mxu0 0.0
        %5398 = vmatprep.subr.mxu0 0.0
        %5399 = vmatpush1.msra.mxu0 0.0
        %5400 = vmatprep.subr.mxu0 0.0
        %5401 = vmatpush1.msra.mxu0 0.0
        %5402 = vmatprep.subr.mxu0 0.0
        %5403 = vmatpush1.msra.mxu0 0.0
        %5404 = vmatprep.subr.mxu0 0.0
        %5405 = vmatpush1.msra.mxu0 0.0
        %5406 = vmatprep.subr.mxu0 0.0
        %5407 = vmatpush1.msra.mxu0 0.0
        %5408 = vmatprep.subr.mxu0 0.0
        %5409 = vmatpush1.msra.mxu0 0.0
        %5410 = vmatprep.subr.mxu0 0.0
        %5411 = vmatpush1.msra.mxu0 0.0
        %5412 = vmatprep.subr.mxu0 0.0
        %5413 = vmatpush1.msra.mxu0 0.0
        %5414 = vmatprep.subr.mxu0 0.0
        %5415 = vmatpush1.msra.mxu0 0.0
        %5416 = vmatprep.subr.mxu0 0.0
        %5417 = vmatpush1.msra.mxu0 0.0
        %5418 = vmatprep.subr.mxu0 0.0
        %5419 = vmatpush1.msra.mxu0 0.0
        %5420 = vmatprep.subr.mxu0 0.0
        %5421 = vmatpush1.msra.mxu0 0.0
        %5422 = vmatprep.subr.mxu0 0.0
        %5423 = vmatpush1.msra.mxu0 0.0
        %5424 = vmatprep.subr.mxu0 0.0
        %5425 = vmatpush1.msra.mxu0 0.0
        %5426 = vmatprep.subr.mxu0 0.0
        %5427 = vmatpush1.msra.mxu0 0.0
        %5428 = vmatprep.subr.mxu0 0.0
        %5429 = vmatpush1.msra.mxu0 0.0
        %5430 = vmatprep.subr.mxu0 0.0
        %5431 = vmatpush1.msra.mxu0 0.0
        %5432 = vmatprep.subr.mxu0 0.0
        %5433 = vmatpush1.msra.mxu0 0.0
        %5434 = vmatprep.mubr.f32.mxu0 0.0
        %5435 = vmatmul.mubr.f32.gmra.mrb[0].mxu0 %v5226
        %v5436 = vpop.f32.mrb[0].mxu0
        %v5437 = vadd.f32 0.0, %v5436
        %v5438 = vpop.f32.mrb[0].mxu0
        %v5439 = vadd.f32 0.0, %v5438
        %5440 = vdwg.mxu0
        %5441 = vmatprep.subr.mxu0 %v5216
        %5442 = vmatpush1.msra.mxu0 %v5215
        %5443 = vmatprep.subr.mxu0 0.0
        %5444 = vmatpush1.msra.mxu0 0.0
        %5445 = vmatprep.subr.mxu0 0.0
        %5446 = vmatpush1.msra.mxu0 0.0
        %5447 = vmatprep.subr.mxu0 0.0
        %5448 = vmatpush1.msra.mxu0 0.0
        %5449 = vmatprep.subr.mxu0 0.0
        %5450 = vmatpush1.msra.mxu0 0.0
        %5451 = vmatprep.subr.mxu0 0.0
        %5452 = vmatpush1.msra.mxu0 0.0
        %5453 = vmatprep.subr.mxu0 0.0
        %5454 = vmatpush1.msra.mxu0 0.0
        %5455 = vmatprep.subr.mxu0 0.0
        %5456 = vmatpush1.msra.mxu0 0.0
        %5457 = vmatprep.subr.mxu0 0.0
        %5458 = vmatpush1.msra.mxu0 0.0
        %5459 = vmatprep.subr.mxu0 0.0
        %5460 = vmatpush1.msra.mxu0 0.0
        %5461 = vmatprep.subr.mxu0 0.0
        %5462 = vmatpush1.msra.mxu0 0.0
        %5463 = vmatprep.subr.mxu0 0.0
        %5464 = vmatpush1.msra.mxu0 0.0
        %5465 = vmatprep.subr.mxu0 0.0
        %5466 = vmatpush1.msra.mxu0 0.0
        %5467 = vmatprep.subr.mxu0 0.0
        %5468 = vmatpush1.msra.mxu0 0.0
        %5469 = vmatprep.subr.mxu0 0.0
        %5470 = vmatpush1.msra.mxu0 0.0
        %5471 = vmatprep.subr.mxu0 0.0
        %5472 = vmatpush1.msra.mxu0 0.0
        %5473 = vmatprep.subr.mxu0 0.0
        %5474 = vmatpush1.msra.mxu0 0.0
        %5475 = vmatprep.subr.mxu0 0.0
        %5476 = vmatpush1.msra.mxu0 0.0
        %5477 = vmatprep.subr.mxu0 0.0
        %5478 = vmatpush1.msra.mxu0 0.0
        %5479 = vmatprep.subr.mxu0 0.0
        %5480 = vmatpush1.msra.mxu0 0.0
        %5481 = vmatprep.subr.mxu0 0.0
        %5482 = vmatpush1.msra.mxu0 0.0
        %5483 = vmatprep.subr.mxu0 0.0
        %5484 = vmatpush1.msra.mxu0 0.0
        %5485 = vmatprep.subr.mxu0 0.0
        %5486 = vmatpush1.msra.mxu0 0.0
        %5487 = vmatprep.subr.mxu0 0.0
        %5488 = vmatpush1.msra.mxu0 0.0
        %5489 = vmatprep.subr.mxu0 0.0
        %5490 = vmatpush1.msra.mxu0 0.0
        %5491 = vmatprep.subr.mxu0 0.0
        %5492 = vmatpush1.msra.mxu0 0.0
        %5493 = vmatprep.subr.mxu0 0.0
        %5494 = vmatpush1.msra.mxu0 0.0
        %5495 = vmatprep.subr.mxu0 0.0
        %5496 = vmatpush1.msra.mxu0 0.0
        %5497 = vmatprep.subr.mxu0 0.0
        %5498 = vmatpush1.msra.mxu0 0.0
        %5499 = vmatprep.subr.mxu0 0.0
        %5500 = vmatpush1.msra.mxu0 0.0
        %5501 = vmatprep.subr.mxu0 0.0
        %5502 = vmatpush1.msra.mxu0 0.0
        %5503 = vmatprep.subr.mxu0 0.0
        %5504 = vmatpush1.msra.mxu0 0.0
        %5505 = vmatprep.mubr.f32.mxu0 0.0
        %5506 = vmatmul.mubr.f32.gmra.mrb[0].mxu0 %v5226
        %v5507 = vpop.f32.mrb[0].mxu0
        %v5508 = vadd.f32 0.0, %v5507
        %v5509 = vpop.f32.mrb[0].mxu0
        %v5510 = vadd.f32 0.0, %v5509
        %5511 = vdwg.mxu0
        %v5512 = vadd.f32 %v5181, %v5295
        %v5513 = vadd.f32 %v5182, %v5297
        %v5514 = vadd.f32 %v5183, %v5366
        %v5515 = vadd.f32 %v5184, %v5368
        %v5516 = vadd.f32 %v5185, %v5437
        %v5517 = vadd.f32 %v5186, %v5439
        %v5518 = vadd.f32 %v5187, %v5508
        %v5519 = vadd.f32 %v5188, %v5510
        %5520 = vrot.lane.b32.xlu0 %v3873, 94
        %v5521 = vpop.permute.xlu0 %5520
        %5522 = vrot.lane.b32.xlu0 %v3874, 94
        %v5523 = vpop.permute.xlu0 %5522
        %5524 = vrot.lane.b32.xlu0 %v3875, 94
        %v5525 = vpop.permute.xlu0 %5524
        %5526 = vrot.lane.b32.xlu0 %v3876, 94
        %v5527 = vpop.permute.xlu0 %5526
        %5528 = vrot.lane.b32.xlu0 %v3877, 94
        %v5529 = vpop.permute.xlu0 %5528
        %5530 = vrot.lane.b32.xlu0 %v3878, 94
        %v5531 = vpop.permute.xlu0 %5530
        %5532 = vrot.lane.b32.xlu0 %v3879, 94
        %v5533 = vpop.permute.xlu0 %5532
        %5534 = vrot.lane.b32.xlu0 %v3880, 94
        %v5535 = vpop.permute.xlu0 %5534
        %5536 = vrot.lane.b32.xlu0 %v3890, 94
        %v5537 = vpop.permute.xlu0 %5536
        %v5538 = vsel %vm2238, %v5521, %v5523
        %v5539 = vsel %vm2238, %v5523, %v5525
        %v5540 = vsel %vm2238, %v5525, %v5527
        %v5541 = vsel %vm2238, %v5527, %v5529
        %v5542 = vsel %vm2238, %v5529, %v5531
        %v5543 = vsel %vm2238, %v5531, %v5533
        %v5544 = vsel %vm2238, %v5533, %v5535
        %v5545 = vsel %vm2238, %v5535, %v5537
        %v5554 = vsel %vm1093, %v5538, 0.0
        %v5555 = vsel %vm1094, %v5539, 0.0
        %v5556 = vsel %vm1095, %v5540, 0.0
        %v5557 = vsel %vm1096, %v5541, 0.0
        %v5558 = vsel %vm1097, %v5542, 0.0
        %v5559 = vsel %vm1098, %v5543, 0.0
        %v5560 = vsel %vm1099, %v5544, 0.0
        %v5561 = vsel %vm1100, %v5545, 0.0
        %s5562 = scalar_lea.vmem %s3, 40
        %v5563 = vld [vmem:[%s5562] sm:$0xff]
        %v5565 = vsel %vm3936, %v5563, 0
        %5567 = vmatprep.subr.mxu0 %v5555
        %5568 = vmatpush1.msra.mxu0 %v5554
        %5569 = vmatprep.subr.mxu0 0.0
        %5570 = vmatpush1.msra.mxu0 0.0
        %5571 = vmatprep.subr.mxu0 0.0
        %5572 = vmatpush1.msra.mxu0 0.0
        %5573 = vmatprep.subr.mxu0 0.0
        %5574 = vmatpush1.msra.mxu0 0.0
        %5575 = vmatprep.subr.mxu0 0.0
        %5576 = vmatpush1.msra.mxu0 0.0
        %5577 = vmatprep.subr.mxu0 0.0
        %5578 = vmatpush1.msra.mxu0 0.0
        %5579 = vmatprep.subr.mxu0 0.0
        %5580 = vmatpush1.msra.mxu0 0.0
        %5581 = vmatprep.subr.mxu0 0.0
        %5582 = vmatpush1.msra.mxu0 0.0
        %5583 = vmatprep.subr.mxu0 0.0
        %5584 = vmatpush1.msra.mxu0 0.0
        %5585 = vmatprep.subr.mxu0 0.0
        %5586 = vmatpush1.msra.mxu0 0.0
        %5587 = vmatprep.subr.mxu0 0.0
        %5588 = vmatpush1.msra.mxu0 0.0
        %5589 = vmatprep.subr.mxu0 0.0
        %5590 = vmatpush1.msra.mxu0 0.0
        %5591 = vmatprep.subr.mxu0 0.0
        %5592 = vmatpush1.msra.mxu0 0.0
        %5593 = vmatprep.subr.mxu0 0.0
        %5594 = vmatpush1.msra.mxu0 0.0
        %5595 = vmatprep.subr.mxu0 0.0
        %5596 = vmatpush1.msra.mxu0 0.0
        %5597 = vmatprep.subr.mxu0 0.0
        %5598 = vmatpush1.msra.mxu0 0.0
        %5599 = vmatprep.subr.mxu0 0.0
        %5600 = vmatpush1.msra.mxu0 0.0
        %5601 = vmatprep.subr.mxu0 0.0
        %5602 = vmatpush1.msra.mxu0 0.0
        %5603 = vmatprep.subr.mxu0 0.0
        %5604 = vmatpush1.msra.mxu0 0.0
        %5605 = vmatprep.subr.mxu0 0.0
        %5606 = vmatpush1.msra.mxu0 0.0
        %5607 = vmatprep.subr.mxu0 0.0
        %5608 = vmatpush1.msra.mxu0 0.0
        %5609 = vmatprep.subr.mxu0 0.0
        %5610 = vmatpush1.msra.mxu0 0.0
        %5611 = vmatprep.subr.mxu0 0.0
        %5612 = vmatpush1.msra.mxu0 0.0
        %5613 = vmatprep.subr.mxu0 0.0
        %5614 = vmatpush1.msra.mxu0 0.0
        %5615 = vmatprep.subr.mxu0 0.0
        %5616 = vmatpush1.msra.mxu0 0.0
        %5617 = vmatprep.subr.mxu0 0.0
        %5618 = vmatpush1.msra.mxu0 0.0
        %5619 = vmatprep.subr.mxu0 0.0
        %5620 = vmatpush1.msra.mxu0 0.0
        %5621 = vmatprep.subr.mxu0 0.0
        %5622 = vmatpush1.msra.mxu0 0.0
        %5623 = vmatprep.subr.mxu0 0.0
        %5624 = vmatpush1.msra.mxu0 0.0
        %5625 = vmatprep.subr.mxu0 0.0
        %5626 = vmatpush1.msra.mxu0 0.0
        %5627 = vmatprep.subr.mxu0 0.0
        %5628 = vmatpush1.msra.mxu0 0.0
        %5629 = vmatprep.subr.mxu0 0.0
        %5630 = vmatpush1.msra.mxu0 0.0
        %5631 = vmatprep.mubr.f32.mxu0 0.0
        %5632 = vmatmul.mubr.f32.gmra.mrb[0].mxu0 %v5565
        %v5633 = vpop.f32.mrb[0].mxu0
        %v5634 = vadd.f32 0.0, %v5633
        %v5635 = vpop.f32.mrb[0].mxu0
        %v5636 = vadd.f32 0.0, %v5635
        %5637 = vdwg.mxu0
        %5638 = vmatprep.subr.mxu0 %v5557
        %5639 = vmatpush1.msra.mxu0 %v5556
        %5640 = vmatprep.subr.mxu0 0.0
        %5641 = vmatpush1.msra.mxu0 0.0
        %5642 = vmatprep.subr.mxu0 0.0
        %5643 = vmatpush1.msra.mxu0 0.0
        %5644 = vmatprep.subr.mxu0 0.0
        %5645 = vmatpush1.msra.mxu0 0.0
        %5646 = vmatprep.subr.mxu0 0.0
        %5647 = vmatpush1.msra.mxu0 0.0
        %5648 = vmatprep.subr.mxu0 0.0
        %5649 = vmatpush1.msra.mxu0 0.0
        %5650 = vmatprep.subr.mxu0 0.0
        %5651 = vmatpush1.msra.mxu0 0.0
        %5652 = vmatprep.subr.mxu0 0.0
        %5653 = vmatpush1.msra.mxu0 0.0
        %5654 = vmatprep.subr.mxu0 0.0
        %5655 = vmatpush1.msra.mxu0 0.0
        %5656 = vmatprep.subr.mxu0 0.0
        %5657 = vmatpush1.msra.mxu0 0.0
        %5658 = vmatprep.subr.mxu0 0.0
        %5659 = vmatpush1.msra.mxu0 0.0
        %5660 = vmatprep.subr.mxu0 0.0
        %5661 = vmatpush1.msra.mxu0 0.0
        %5662 = vmatprep.subr.mxu0 0.0
        %5663 = vmatpush1.msra.mxu0 0.0
        %5664 = vmatprep.subr.mxu0 0.0
        %5665 = vmatpush1.msra.mxu0 0.0
        %5666 = vmatprep.subr.mxu0 0.0
        %5667 = vmatpush1.msra.mxu0 0.0
        %5668 = vmatprep.subr.mxu0 0.0
        %5669 = vmatpush1.msra.mxu0 0.0
        %5670 = vmatprep.subr.mxu0 0.0
        %5671 = vmatpush1.msra.mxu0 0.0
        %5672 = vmatprep.subr.mxu0 0.0
        %5673 = vmatpush1.msra.mxu0 0.0
        %5674 = vmatprep.subr.mxu0 0.0
        %5675 = vmatpush1.msra.mxu0 0.0
        %5676 = vmatprep.subr.mxu0 0.0
        %5677 = vmatpush1.msra.mxu0 0.0
        %5678 = vmatprep.subr.mxu0 0.0
        %5679 = vmatpush1.msra.mxu0 0.0
        %5680 = vmatprep.subr.mxu0 0.0
        %5681 = vmatpush1.msra.mxu0 0.0
        %5682 = vmatprep.subr.mxu0 0.0
        %5683 = vmatpush1.msra.mxu0 0.0
        %5684 = vmatprep.subr.mxu0 0.0
        %5685 = vmatpush1.msra.mxu0 0.0
        %5686 = vmatprep.subr.mxu0 0.0
        %5687 = vmatpush1.msra.mxu0 0.0
        %5688 = vmatprep.subr.mxu0 0.0
        %5689 = vmatpush1.msra.mxu0 0.0
        %5690 = vmatprep.subr.mxu0 0.0
        %5691 = vmatpush1.msra.mxu0 0.0
        %5692 = vmatprep.subr.mxu0 0.0
        %5693 = vmatpush1.msra.mxu0 0.0
        %5694 = vmatprep.subr.mxu0 0.0
        %5695 = vmatpush1.msra.mxu0 0.0
        %5696 = vmatprep.subr.mxu0 0.0
        %5697 = vmatpush1.msra.mxu0 0.0
        %5698 = vmatprep.subr.mxu0 0.0
        %5699 = vmatpush1.msra.mxu0 0.0
        %5700 = vmatprep.subr.mxu0 0.0
        %5701 = vmatpush1.msra.mxu0 0.0
        %5702 = vmatprep.mubr.f32.mxu0 0.0
        %5703 = vmatmul.mubr.f32.gmra.mrb[0].mxu0 %v5565
        %v5704 = vpop.f32.mrb[0].mxu0
        %v5705 = vadd.f32 0.0, %v5704
        %v5706 = vpop.f32.mrb[0].mxu0
        %v5707 = vadd.f32 0.0, %v5706
        %5708 = vdwg.mxu0
        %5709 = vmatprep.subr.mxu0 %v5559
        %5710 = vmatpush1.msra.mxu0 %v5558
        %5711 = vmatprep.subr.mxu0 0.0
        %5712 = vmatpush1.msra.mxu0 0.0
        %5713 = vmatprep.subr.mxu0 0.0
        %5714 = vmatpush1.msra.mxu0 0.0
        %5715 = vmatprep.subr.mxu0 0.0
        %5716 = vmatpush1.msra.mxu0 0.0
        %5717 = vmatprep.subr.mxu0 0.0
        %5718 = vmatpush1.msra.mxu0 0.0
        %5719 = vmatprep.subr.mxu0 0.0
        %5720 = vmatpush1.msra.mxu0 0.0
        %5721 = vmatprep.subr.mxu0 0.0
        %5722 = vmatpush1.msra.mxu0 0.0
        %5723 = vmatprep.subr.mxu0 0.0
        %5724 = vmatpush1.msra.mxu0 0.0
        %5725 = vmatprep.subr.mxu0 0.0
        %5726 = vmatpush1.msra.mxu0 0.0
        %5727 = vmatprep.subr.mxu0 0.0
        %5728 = vmatpush1.msra.mxu0 0.0
        %5729 = vmatprep.subr.mxu0 0.0
        %5730 = vmatpush1.msra.mxu0 0.0
        %5731 = vmatprep.subr.mxu0 0.0
        %5732 = vmatpush1.msra.mxu0 0.0
        %5733 = vmatprep.subr.mxu0 0.0
        %5734 = vmatpush1.msra.mxu0 0.0
        %5735 = vmatprep.subr.mxu0 0.0
        %5736 = vmatpush1.msra.mxu0 0.0
        %5737 = vmatprep.subr.mxu0 0.0
        %5738 = vmatpush1.msra.mxu0 0.0
        %5739 = vmatprep.subr.mxu0 0.0
        %5740 = vmatpush1.msra.mxu0 0.0
        %5741 = vmatprep.subr.mxu0 0.0
        %5742 = vmatpush1.msra.mxu0 0.0
        %5743 = vmatprep.subr.mxu0 0.0
        %5744 = vmatpush1.msra.mxu0 0.0
        %5745 = vmatprep.subr.mxu0 0.0
        %5746 = vmatpush1.msra.mxu0 0.0
        %5747 = vmatprep.subr.mxu0 0.0
        %5748 = vmatpush1.msra.mxu0 0.0
        %5749 = vmatprep.subr.mxu0 0.0
        %5750 = vmatpush1.msra.mxu0 0.0
        %5751 = vmatprep.subr.mxu0 0.0
        %5752 = vmatpush1.msra.mxu0 0.0
        %5753 = vmatprep.subr.mxu0 0.0
        %5754 = vmatpush1.msra.mxu0 0.0
        %5755 = vmatprep.subr.mxu0 0.0
        %5756 = vmatpush1.msra.mxu0 0.0
        %5757 = vmatprep.subr.mxu0 0.0
        %5758 = vmatpush1.msra.mxu0 0.0
        %5759 = vmatprep.subr.mxu0 0.0
        %5760 = vmatpush1.msra.mxu0 0.0
        %5761 = vmatprep.subr.mxu0 0.0
        %5762 = vmatpush1.msra.mxu0 0.0
        %5763 = vmatprep.subr.mxu0 0.0
        %5764 = vmatpush1.msra.mxu0 0.0
        %5765 = vmatprep.subr.mxu0 0.0
        %5766 = vmatpush1.msra.mxu0 0.0
        %5767 = vmatprep.subr.mxu0 0.0
        %5768 = vmatpush1.msra.mxu0 0.0
        %5769 = vmatprep.subr.mxu0 0.0
        %5770 = vmatpush1.msra.mxu0 0.0
        %5771 = vmatprep.subr.mxu0 0.0
        %5772 = vmatpush1.msra.mxu0 0.0
        %5773 = vmatprep.mubr.f32.mxu0 0.0
        %5774 = vmatmul.mubr.f32.gmra.mrb[0].mxu0 %v5565
        %v5775 = vpop.f32.mrb[0].mxu0
        %v5776 = vadd.f32 0.0, %v5775
        %v5777 = vpop.f32.mrb[0].mxu0
        %v5778 = vadd.f32 0.0, %v5777
        %5779 = vdwg.mxu0
        %5780 = vmatprep.subr.mxu0 %v5561
        %5781 = vmatpush1.msra.mxu0 %v5560
        %5782 = vmatprep.subr.mxu0 0.0
        %5783 = vmatpush1.msra.mxu0 0.0
        %5784 = vmatprep.subr.mxu0 0.0
        %5785 = vmatpush1.msra.mxu0 0.0
        %5786 = vmatprep.subr.mxu0 0.0
        %5787 = vmatpush1.msra.mxu0 0.0
        %5788 = vmatprep.subr.mxu0 0.0
        %5789 = vmatpush1.msra.mxu0 0.0
        %5790 = vmatprep.subr.mxu0 0.0
        %5791 = vmatpush1.msra.mxu0 0.0
        %5792 = vmatprep.subr.mxu0 0.0
        %5793 = vmatpush1.msra.mxu0 0.0
        %5794 = vmatprep.subr.mxu0 0.0
        %5795 = vmatpush1.msra.mxu0 0.0
        %5796 = vmatprep.subr.mxu0 0.0
        %5797 = vmatpush1.msra.mxu0 0.0
        %5798 = vmatprep.subr.mxu0 0.0
        %5799 = vmatpush1.msra.mxu0 0.0
        %5800 = vmatprep.subr.mxu0 0.0
        %5801 = vmatpush1.msra.mxu0 0.0
        %5802 = vmatprep.subr.mxu0 0.0
        %5803 = vmatpush1.msra.mxu0 0.0
        %5804 = vmatprep.subr.mxu0 0.0
        %5805 = vmatpush1.msra.mxu0 0.0
        %5806 = vmatprep.subr.mxu0 0.0
        %5807 = vmatpush1.msra.mxu0 0.0
        %5808 = vmatprep.subr.mxu0 0.0
        %5809 = vmatpush1.msra.mxu0 0.0
        %5810 = vmatprep.subr.mxu0 0.0
        %5811 = vmatpush1.msra.mxu0 0.0
        %5812 = vmatprep.subr.mxu0 0.0
        %5813 = vmatpush1.msra.mxu0 0.0
        %5814 = vmatprep.subr.mxu0 0.0
        %5815 = vmatpush1.msra.mxu0 0.0
        %5816 = vmatprep.subr.mxu0 0.0
        %5817 = vmatpush1.msra.mxu0 0.0
        %5818 = vmatprep.subr.mxu0 0.0
        %5819 = vmatpush1.msra.mxu0 0.0
        %5820 = vmatprep.subr.mxu0 0.0
        %5821 = vmatpush1.msra.mxu0 0.0
        %5822 = vmatprep.subr.mxu0 0.0
        %5823 = vmatpush1.msra.mxu0 0.0
        %5824 = vmatprep.subr.mxu0 0.0
        %5825 = vmatpush1.msra.mxu0 0.0
        %5826 = vmatprep.subr.mxu0 0.0
        %5827 = vmatpush1.msra.mxu0 0.0
        %5828 = vmatprep.subr.mxu0 0.0
        %5829 = vmatpush1.msra.mxu0 0.0
        %5830 = vmatprep.subr.mxu0 0.0
        %5831 = vmatpush1.msra.mxu0 0.0
        %5832 = vmatprep.subr.mxu0 0.0
        %5833 = vmatpush1.msra.mxu0 0.0
        %5834 = vmatprep.subr.mxu0 0.0
        %5835 = vmatpush1.msra.mxu0 0.0
        %5836 = vmatprep.subr.mxu0 0.0
        %5837 = vmatpush1.msra.mxu0 0.0
        %5838 = vmatprep.subr.mxu0 0.0
        %5839 = vmatpush1.msra.mxu0 0.0
        %5840 = vmatprep.subr.mxu0 0.0
        %5841 = vmatpush1.msra.mxu0 0.0
        %5842 = vmatprep.subr.mxu0 0.0
        %5843 = vmatpush1.msra.mxu0 0.0
        %5844 = vmatprep.mubr.f32.mxu0 0.0
        %5845 = vmatmul.mubr.f32.gmra.mrb[0].mxu0 %v5565
        %v5846 = vpop.f32.mrb[0].mxu0
        %v5847 = vadd.f32 0.0, %v5846
        %v5848 = vpop.f32.mrb[0].mxu0
        %v5849 = vadd.f32 0.0, %v5848
        %5850 = vdwg.mxu0
        %v5851 = vadd.f32 %v5512, %v5634
        %v5852 = vadd.f32 %v5513, %v5636
        %v5853 = vadd.f32 %v5514, %v5705
        %v5854 = vadd.f32 %v5515, %v5707
        %v5855 = vadd.f32 %v5516, %v5776
        %v5856 = vadd.f32 %v5517, %v5778
        %v5857 = vadd.f32 %v5518, %v5847
        %v5858 = vadd.f32 %v5519, %v5849
        %5859 = vrot.lane.b32.xlu0 %v3873, 64
        %v5860 = vpop.permute.xlu0 %5859
        %5861 = vrot.lane.b32.xlu0 %v3874, 64
        %v5862 = vpop.permute.xlu0 %5861
        %5863 = vrot.lane.b32.xlu0 %v3875, 64
        %v5864 = vpop.permute.xlu0 %5863
        %5865 = vrot.lane.b32.xlu0 %v3876, 64
        %v5866 = vpop.permute.xlu0 %5865
        %5867 = vrot.lane.b32.xlu0 %v3877, 64
        %v5868 = vpop.permute.xlu0 %5867
        %5869 = vrot.lane.b32.xlu0 %v3878, 64
        %v5870 = vpop.permute.xlu0 %5869
        %5871 = vrot.lane.b32.xlu0 %v3879, 64
        %v5872 = vpop.permute.xlu0 %5871
        %5873 = vrot.lane.b32.xlu0 %v3880, 64
        %v5874 = vpop.permute.xlu0 %5873
        %5875 = vrot.lane.b32.xlu0 %v3890, 64
        %v5876 = vpop.permute.xlu0 %5875
        %v5877 = vsel %vm2616, %v5860, %v5862
        %v5878 = vsel %vm2616, %v5862, %v5864
        %v5879 = vsel %vm2616, %v5864, %v5866
        %v5880 = vsel %vm2616, %v5866, %v5868
        %v5881 = vsel %vm2616, %v5868, %v5870
        %v5882 = vsel %vm2616, %v5870, %v5872
        %v5883 = vsel %vm2616, %v5872, %v5874
        %v5884 = vsel %vm2616, %v5874, %v5876
        %v5893 = vsel %vm397, %v5877, 0.0
        %v5894 = vsel %vm398, %v5878, 0.0
        %v5895 = vsel %vm399, %v5879, 0.0
        %v5896 = vsel %vm400, %v5880, 0.0
        %v5897 = vsel %vm401, %v5881, 0.0
        %v5898 = vsel %vm402, %v5882, 0.0
        %v5899 = vsel %vm403, %v5883, 0.0
        %v5900 = vsel %vm404, %v5884, 0.0
        %s5901 = scalar_lea.vmem %s3, 48
        %v5902 = vld [vmem:[%s5901] sm:$0xff]
        %v5904 = vsel %vm3936, %v5902, 0
        %5906 = vmatprep.subr.mxu0 %v5894
        %5907 = vmatpush1.msra.mxu0 %v5893
        %5908 = vmatprep.subr.mxu0 0.0
        %5909 = vmatpush1.msra.mxu0 0.0
        %5910 = vmatprep.subr.mxu0 0.0
        %5911 = vmatpush1.msra.mxu0 0.0
        %5912 = vmatprep.subr.mxu0 0.0
        %5913 = vmatpush1.msra.mxu0 0.0
        %5914 = vmatprep.subr.mxu0 0.0
        %5915 = vmatpush1.msra.mxu0 0.0
        %5916 = vmatprep.subr.mxu0 0.0
        %5917 = vmatpush1.msra.mxu0 0.0
        %5918 = vmatprep.subr.mxu0 0.0
        %5919 = vmatpush1.msra.mxu0 0.0
        %5920 = vmatprep.subr.mxu0 0.0
        %5921 = vmatpush1.msra.mxu0 0.0
        %5922 = vmatprep.subr.mxu0 0.0
        %5923 = vmatpush1.msra.mxu0 0.0
        %5924 = vmatprep.subr.mxu0 0.0
        %5925 = vmatpush1.msra.mxu0 0.0
        %5926 = vmatprep.subr.mxu0 0.0
        %5927 = vmatpush1.msra.mxu0 0.0
        %5928 = vmatprep.subr.mxu0 0.0
        %5929 = vmatpush1.msra.mxu0 0.0
        %5930 = vmatprep.subr.mxu0 0.0
        %5931 = vmatpush1.msra.mxu0 0.0
        %5932 = vmatprep.subr.mxu0 0.0
        %5933 = vmatpush1.msra.mxu0 0.0
        %5934 = vmatprep.subr.mxu0 0.0
        %5935 = vmatpush1.msra.mxu0 0.0
        %5936 = vmatprep.subr.mxu0 0.0
        %5937 = vmatpush1.msra.mxu0 0.0
        %5938 = vmatprep.subr.mxu0 0.0
        %5939 = vmatpush1.msra.mxu0 0.0
        %5940 = vmatprep.subr.mxu0 0.0
        %5941 = vmatpush1.msra.mxu0 0.0
        %5942 = vmatprep.subr.mxu0 0.0
        %5943 = vmatpush1.msra.mxu0 0.0
        %5944 = vmatprep.subr.mxu0 0.0
        %5945 = vmatpush1.msra.mxu0 0.0
        %5946 = vmatprep.subr.mxu0 0.0
        %5947 = vmatpush1.msra.mxu0 0.0
        %5948 = vmatprep.subr.mxu0 0.0
        %5949 = vmatpush1.msra.mxu0 0.0
        %5950 = vmatprep.subr.mxu0 0.0
        %5951 = vmatpush1.msra.mxu0 0.0
        %5952 = vmatprep.subr.mxu0 0.0
        %5953 = vmatpush1.msra.mxu0 0.0
        %5954 = vmatprep.subr.mxu0 0.0
        %5955 = vmatpush1.msra.mxu0 0.0
        %5956 = vmatprep.subr.mxu0 0.0
        %5957 = vmatpush1.msra.mxu0 0.0
        %5958 = vmatprep.subr.mxu0 0.0
        %5959 = vmatpush1.msra.mxu0 0.0
        %5960 = vmatprep.subr.mxu0 0.0
        %5961 = vmatpush1.msra.mxu0 0.0
        %5962 = vmatprep.subr.mxu0 0.0
        %5963 = vmatpush1.msra.mxu0 0.0
        %5964 = vmatprep.subr.mxu0 0.0
        %5965 = vmatpush1.msra.mxu0 0.0
        %5966 = vmatprep.subr.mxu0 0.0
        %5967 = vmatpush1.msra.mxu0 0.0
        %5968 = vmatprep.subr.mxu0 0.0
        %5969 = vmatpush1.msra.mxu0 0.0
        %5970 = vmatprep.mubr.f32.mxu0 0.0
        %5971 = vmatmul.mubr.f32.gmra.mrb[0].mxu0 %v5904
        %v5972 = vpop.f32.mrb[0].mxu0
        %v5973 = vadd.f32 0.0, %v5972
        %v5974 = vpop.f32.mrb[0].mxu0
        %v5975 = vadd.f32 0.0, %v5974
        %5976 = vdwg.mxu0
        %5977 = vmatprep.subr.mxu0 %v5896
        %5978 = vmatpush1.msra.mxu0 %v5895
        %5979 = vmatprep.subr.mxu0 0.0
        %5980 = vmatpush1.msra.mxu0 0.0
        %5981 = vmatprep.subr.mxu0 0.0
        %5982 = vmatpush1.msra.mxu0 0.0
        %5983 = vmatprep.subr.mxu0 0.0
        %5984 = vmatpush1.msra.mxu0 0.0
        %5985 = vmatprep.subr.mxu0 0.0
        %5986 = vmatpush1.msra.mxu0 0.0
        %5987 = vmatprep.subr.mxu0 0.0
        %5988 = vmatpush1.msra.mxu0 0.0
        %5989 = vmatprep.subr.mxu0 0.0
        %5990 = vmatpush1.msra.mxu0 0.0
        %5991 = vmatprep.subr.mxu0 0.0
        %5992 = vmatpush1.msra.mxu0 0.0
        %5993 = vmatprep.subr.mxu0 0.0
        %5994 = vmatpush1.msra.mxu0 0.0
        %5995 = vmatprep.subr.mxu0 0.0
        %5996 = vmatpush1.msra.mxu0 0.0
        %5997 = vmatprep.subr.mxu0 0.0
        %5998 = vmatpush1.msra.mxu0 0.0
        %5999 = vmatprep.subr.mxu0 0.0
        %6000 = vmatpush1.msra.mxu0 0.0
        %6001 = vmatprep.subr.mxu0 0.0
        %6002 = vmatpush1.msra.mxu0 0.0
        %6003 = vmatprep.subr.mxu0 0.0
        %6004 = vmatpush1.msra.mxu0 0.0
        %6005 = vmatprep.subr.mxu0 0.0
        %6006 = vmatpush1.msra.mxu0 0.0
        %6007 = vmatprep.subr.mxu0 0.0
        %6008 = vmatpush1.msra.mxu0 0.0
        %6009 = vmatprep.subr.mxu0 0.0
        %6010 = vmatpush1.msra.mxu0 0.0
        %6011 = vmatprep.subr.mxu0 0.0
        %6012 = vmatpush1.msra.mxu0 0.0
        %6013 = vmatprep.subr.mxu0 0.0
        %6014 = vmatpush1.msra.mxu0 0.0
        %6015 = vmatprep.subr.mxu0 0.0
        %6016 = vmatpush1.msra.mxu0 0.0
        %6017 = vmatprep.subr.mxu0 0.0
        %6018 = vmatpush1.msra.mxu0 0.0
        %6019 = vmatprep.subr.mxu0 0.0
        %6020 = vmatpush1.msra.mxu0 0.0
        %6021 = vmatprep.subr.mxu0 0.0
        %6022 = vmatpush1.msra.mxu0 0.0
        %6023 = vmatprep.subr.mxu0 0.0
        %6024 = vmatpush1.msra.mxu0 0.0
        %6025 = vmatprep.subr.mxu0 0.0
        %6026 = vmatpush1.msra.mxu0 0.0
        %6027 = vmatprep.subr.mxu0 0.0
        %6028 = vmatpush1.msra.mxu0 0.0
        %6029 = vmatprep.subr.mxu0 0.0
        %6030 = vmatpush1.msra.mxu0 0.0
        %6031 = vmatprep.subr.mxu0 0.0
        %6032 = vmatpush1.msra.mxu0 0.0
        %6033 = vmatprep.subr.mxu0 0.0
        %6034 = vmatpush1.msra.mxu0 0.0
        %6035 = vmatprep.subr.mxu0 0.0
        %6036 = vmatpush1.msra.mxu0 0.0
        %6037 = vmatprep.subr.mxu0 0.0
        %6038 = vmatpush1.msra.mxu0 0.0
        %6039 = vmatprep.subr.mxu0 0.0
        %6040 = vmatpush1.msra.mxu0 0.0
        %6041 = vmatprep.mubr.f32.mxu0 0.0
        %6042 = vmatmul.mubr.f32.gmra.mrb[0].mxu0 %v5904
        %v6043 = vpop.f32.mrb[0].mxu0
        %v6044 = vadd.f32 0.0, %v6043
        %v6045 = vpop.f32.mrb[0].mxu0
        %v6046 = vadd.f32 0.0, %v6045
        %6047 = vdwg.mxu0
        %6048 = vmatprep.subr.mxu0 %v5898
        %6049 = vmatpush1.msra.mxu0 %v5897
        %6050 = vmatprep.subr.mxu0 0.0
        %6051 = vmatpush1.msra.mxu0 0.0
        %6052 = vmatprep.subr.mxu0 0.0
        %6053 = vmatpush1.msra.mxu0 0.0
        %6054 = vmatprep.subr.mxu0 0.0
        %6055 = vmatpush1.msra.mxu0 0.0
        %6056 = vmatprep.subr.mxu0 0.0
        %6057 = vmatpush1.msra.mxu0 0.0
        %6058 = vmatprep.subr.mxu0 0.0
        %6059 = vmatpush1.msra.mxu0 0.0
        %6060 = vmatprep.subr.mxu0 0.0
        %6061 = vmatpush1.msra.mxu0 0.0
        %6062 = vmatprep.subr.mxu0 0.0
        %6063 = vmatpush1.msra.mxu0 0.0
        %6064 = vmatprep.subr.mxu0 0.0
        %6065 = vmatpush1.msra.mxu0 0.0
        %6066 = vmatprep.subr.mxu0 0.0
        %6067 = vmatpush1.msra.mxu0 0.0
        %6068 = vmatprep.subr.mxu0 0.0
        %6069 = vmatpush1.msra.mxu0 0.0
        %6070 = vmatprep.subr.mxu0 0.0
        %6071 = vmatpush1.msra.mxu0 0.0
        %6072 = vmatprep.subr.mxu0 0.0
        %6073 = vmatpush1.msra.mxu0 0.0
        %6074 = vmatprep.subr.mxu0 0.0
        %6075 = vmatpush1.msra.mxu0 0.0
        %6076 = vmatprep.subr.mxu0 0.0
        %6077 = vmatpush1.msra.mxu0 0.0
        %6078 = vmatprep.subr.mxu0 0.0
        %6079 = vmatpush1.msra.mxu0 0.0
        %6080 = vmatprep.subr.mxu0 0.0
        %6081 = vmatpush1.msra.mxu0 0.0
        %6082 = vmatprep.subr.mxu0 0.0
        %6083 = vmatpush1.msra.mxu0 0.0
        %6084 = vmatprep.subr.mxu0 0.0
        %6085 = vmatpush1.msra.mxu0 0.0
        %6086 = vmatprep.subr.mxu0 0.0
        %6087 = vmatpush1.msra.mxu0 0.0
        %6088 = vmatprep.subr.mxu0 0.0
        %6089 = vmatpush1.msra.mxu0 0.0
        %6090 = vmatprep.subr.mxu0 0.0
        %6091 = vmatpush1.msra.mxu0 0.0
        %6092 = vmatprep.subr.mxu0 0.0
        %6093 = vmatpush1.msra.mxu0 0.0
        %6094 = vmatprep.subr.mxu0 0.0
        %6095 = vmatpush1.msra.mxu0 0.0
        %6096 = vmatprep.subr.mxu0 0.0
        %6097 = vmatpush1.msra.mxu0 0.0
        %6098 = vmatprep.subr.mxu0 0.0
        %6099 = vmatpush1.msra.mxu0 0.0
        %6100 = vmatprep.subr.mxu0 0.0
        %6101 = vmatpush1.msra.mxu0 0.0
        %6102 = vmatprep.subr.mxu0 0.0
        %6103 = vmatpush1.msra.mxu0 0.0
        %6104 = vmatprep.subr.mxu0 0.0
        %6105 = vmatpush1.msra.mxu0 0.0
        %6106 = vmatprep.subr.mxu0 0.0
        %6107 = vmatpush1.msra.mxu0 0.0
        %6108 = vmatprep.subr.mxu0 0.0
        %6109 = vmatpush1.msra.mxu0 0.0
        %6110 = vmatprep.subr.mxu0 0.0
        %6111 = vmatpush1.msra.mxu0 0.0
        %6112 = vmatprep.mubr.f32.mxu0 0.0
        %6113 = vmatmul.mubr.f32.gmra.mrb[0].mxu0 %v5904
        %v6114 = vpop.f32.mrb[0].mxu0
        %v6115 = vadd.f32 0.0, %v6114
        %v6116 = vpop.f32.mrb[0].mxu0
        %v6117 = vadd.f32 0.0, %v6116
        %6118 = vdwg.mxu0
        %6119 = vmatprep.subr.mxu0 %v5900
        %6120 = vmatpush1.msra.mxu0 %v5899
        %6121 = vmatprep.subr.mxu0 0.0
        %6122 = vmatpush1.msra.mxu0 0.0
        %6123 = vmatprep.subr.mxu0 0.0
        %6124 = vmatpush1.msra.mxu0 0.0
        %6125 = vmatprep.subr.mxu0 0.0
        %6126 = vmatpush1.msra.mxu0 0.0
        %6127 = vmatprep.subr.mxu0 0.0
        %6128 = vmatpush1.msra.mxu0 0.0
        %6129 = vmatprep.subr.mxu0 0.0
        %6130 = vmatpush1.msra.mxu0 0.0
        %6131 = vmatprep.subr.mxu0 0.0
        %6132 = vmatpush1.msra.mxu0 0.0
        %6133 = vmatprep.subr.mxu0 0.0
        %6134 = vmatpush1.msra.mxu0 0.0
        %6135 = vmatprep.subr.mxu0 0.0
        %6136 = vmatpush1.msra.mxu0 0.0
        %6137 = vmatprep.subr.mxu0 0.0
        %6138 = vmatpush1.msra.mxu0 0.0
        %6139 = vmatprep.subr.mxu0 0.0
        %6140 = vmatpush1.msra.mxu0 0.0
        %6141 = vmatprep.subr.mxu0 0.0
        %6142 = vmatpush1.msra.mxu0 0.0
        %6143 = vmatprep.subr.mxu0 0.0
        %6144 = vmatpush1.msra.mxu0 0.0
        %6145 = vmatprep.subr.mxu0 0.0
        %6146 = vmatpush1.msra.mxu0 0.0
        %6147 = vmatprep.subr.mxu0 0.0
        %6148 = vmatpush1.msra.mxu0 0.0
        %6149 = vmatprep.subr.mxu0 0.0
        %6150 = vmatpush1.msra.mxu0 0.0
        %6151 = vmatprep.subr.mxu0 0.0
        %6152 = vmatpush1.msra.mxu0 0.0
        %6153 = vmatprep.subr.mxu0 0.0
        %6154 = vmatpush1.msra.mxu0 0.0
        %6155 = vmatprep.subr.mxu0 0.0
        %6156 = vmatpush1.msra.mxu0 0.0
        %6157 = vmatprep.subr.mxu0 0.0
        %6158 = vmatpush1.msra.mxu0 0.0
        %6159 = vmatprep.subr.mxu0 0.0
        %6160 = vmatpush1.msra.mxu0 0.0
        %6161 = vmatprep.subr.mxu0 0.0
        %6162 = vmatpush1.msra.mxu0 0.0
        %6163 = vmatprep.subr.mxu0 0.0
        %6164 = vmatpush1.msra.mxu0 0.0
        %6165 = vmatprep.subr.mxu0 0.0
        %6166 = vmatpush1.msra.mxu0 0.0
        %6167 = vmatprep.subr.mxu0 0.0
        %6168 = vmatpush1.msra.mxu0 0.0
        %6169 = vmatprep.subr.mxu0 0.0
        %6170 = vmatpush1.msra.mxu0 0.0
        %6171 = vmatprep.subr.mxu0 0.0
        %6172 = vmatpush1.msra.mxu0 0.0
        %6173 = vmatprep.subr.mxu0 0.0
        %6174 = vmatpush1.msra.mxu0 0.0
        %6175 = vmatprep.subr.mxu0 0.0
        %6176 = vmatpush1.msra.mxu0 0.0
        %6177 = vmatprep.subr.mxu0 0.0
        %6178 = vmatpush1.msra.mxu0 0.0
        %6179 = vmatprep.subr.mxu0 0.0
        %6180 = vmatpush1.msra.mxu0 0.0
        %6181 = vmatprep.subr.mxu0 0.0
        %6182 = vmatpush1.msra.mxu0 0.0
        %6183 = vmatprep.mubr.f32.mxu0 0.0
        %6184 = vmatmul.mubr.f32.gmra.mrb[0].mxu0 %v5904
        %v6185 = vpop.f32.mrb[0].mxu0
        %v6186 = vadd.f32 0.0, %v6185
        %v6187 = vpop.f32.mrb[0].mxu0
        %v6188 = vadd.f32 0.0, %v6187
        %6189 = vdwg.mxu0
        %v6190 = vadd.f32 %v5851, %v5973
        %v6191 = vadd.f32 %v5852, %v5975
        %v6192 = vadd.f32 %v5853, %v6044
        %v6193 = vadd.f32 %v5854, %v6046
        %v6194 = vadd.f32 %v5855, %v6115
        %v6195 = vadd.f32 %v5856, %v6117
        %v6196 = vadd.f32 %v5857, %v6186
        %v6197 = vadd.f32 %v5858, %v6188
        %s6198 = scalar_lea.vmem %s3, 56
        %v6199 = vld [vmem:[%s6198] sm:$0xff]
        %6200 = vrot.lane.b32.xlu0 %v3873, 63
        %v6201 = vpop.permute.xlu0 %6200
        %6202 = vrot.lane.b32.xlu0 %v3874, 63
        %v6203 = vpop.permute.xlu0 %6202
        %6204 = vrot.lane.b32.xlu0 %v3875, 63
        %v6205 = vpop.permute.xlu0 %6204
        %6206 = vrot.lane.b32.xlu0 %v3876, 63
        %v6207 = vpop.permute.xlu0 %6206
        %6208 = vrot.lane.b32.xlu0 %v3877, 63
        %v6209 = vpop.permute.xlu0 %6208
        %6210 = vrot.lane.b32.xlu0 %v3878, 63
        %v6211 = vpop.permute.xlu0 %6210
        %6212 = vrot.lane.b32.xlu0 %v3879, 63
        %v6213 = vpop.permute.xlu0 %6212
        %6214 = vrot.lane.b32.xlu0 %v3880, 63
        %v6215 = vpop.permute.xlu0 %6214
        %6216 = vrot.lane.b32.xlu0 %v3890, 63
        %v6217 = vpop.permute.xlu0 %6216
        %v6218 = vsel %vm2996, %v6201, %v6203
        %v6219 = vsel %vm2996, %v6203, %v6205
        %v6220 = vsel %vm2996, %v6205, %v6207
        %v6221 = vsel %vm2996, %v6207, %v6209
        %v6222 = vsel %vm2996, %v6209, %v6211
        %v6223 = vsel %vm2996, %v6211, %v6213
        %v6224 = vsel %vm2996, %v6213, %v6215
        %v6225 = vsel %vm2996, %v6215, %v6217
        %v6235 = vsel %vm3936, %v6199, 0
        %6237 = vmatprep.subr.mxu0 %v6219
        %6238 = vmatpush1.msra.mxu0 %v6218
        %6239 = vmatprep.subr.mxu0 0.0
        %6240 = vmatpush1.msra.mxu0 0.0
        %6241 = vmatprep.subr.mxu0 0.0
        %6242 = vmatpush1.msra.mxu0 0.0
        %6243 = vmatprep.subr.mxu0 0.0
        %6244 = vmatpush1.msra.mxu0 0.0
        %6245 = vmatprep.subr.mxu0 0.0
        %6246 = vmatpush1.msra.mxu0 0.0
        %6247 = vmatprep.subr.mxu0 0.0
        %6248 = vmatpush1.msra.mxu0 0.0
        %6249 = vmatprep.subr.mxu0 0.0
        %6250 = vmatpush1.msra.mxu0 0.0
        %6251 = vmatprep.subr.mxu0 0.0
        %6252 = vmatpush1.msra.mxu0 0.0
        %6253 = vmatprep.subr.mxu0 0.0
        %6254 = vmatpush1.msra.mxu0 0.0
        %6255 = vmatprep.subr.mxu0 0.0
        %6256 = vmatpush1.msra.mxu0 0.0
        %6257 = vmatprep.subr.mxu0 0.0
        %6258 = vmatpush1.msra.mxu0 0.0
        %6259 = vmatprep.subr.mxu0 0.0
        %6260 = vmatpush1.msra.mxu0 0.0
        %6261 = vmatprep.subr.mxu0 0.0
        %6262 = vmatpush1.msra.mxu0 0.0
        %6263 = vmatprep.subr.mxu0 0.0
        %6264 = vmatpush1.msra.mxu0 0.0
        %6265 = vmatprep.subr.mxu0 0.0
        %6266 = vmatpush1.msra.mxu0 0.0
        %6267 = vmatprep.subr.mxu0 0.0
        %6268 = vmatpush1.msra.mxu0 0.0
        %6269 = vmatprep.subr.mxu0 0.0
        %6270 = vmatpush1.msra.mxu0 0.0
        %6271 = vmatprep.subr.mxu0 0.0
        %6272 = vmatpush1.msra.mxu0 0.0
        %6273 = vmatprep.subr.mxu0 0.0
        %6274 = vmatpush1.msra.mxu0 0.0
        %6275 = vmatprep.subr.mxu0 0.0
        %6276 = vmatpush1.msra.mxu0 0.0
        %6277 = vmatprep.subr.mxu0 0.0
        %6278 = vmatpush1.msra.mxu0 0.0
        %6279 = vmatprep.subr.mxu0 0.0
        %6280 = vmatpush1.msra.mxu0 0.0
        %6281 = vmatprep.subr.mxu0 0.0
        %6282 = vmatpush1.msra.mxu0 0.0
        %6283 = vmatprep.subr.mxu0 0.0
        %6284 = vmatpush1.msra.mxu0 0.0
        %6285 = vmatprep.subr.mxu0 0.0
        %6286 = vmatpush1.msra.mxu0 0.0
        %6287 = vmatprep.subr.mxu0 0.0
        %6288 = vmatpush1.msra.mxu0 0.0
        %6289 = vmatprep.subr.mxu0 0.0
        %6290 = vmatpush1.msra.mxu0 0.0
        %6291 = vmatprep.subr.mxu0 0.0
        %6292 = vmatpush1.msra.mxu0 0.0
        %6293 = vmatprep.subr.mxu0 0.0
        %6294 = vmatpush1.msra.mxu0 0.0
        %6295 = vmatprep.subr.mxu0 0.0
        %6296 = vmatpush1.msra.mxu0 0.0
        %6297 = vmatprep.subr.mxu0 0.0
        %6298 = vmatpush1.msra.mxu0 0.0
        %6299 = vmatprep.subr.mxu0 0.0
        %6300 = vmatpush1.msra.mxu0 0.0
        %6301 = vmatprep.mubr.f32.mxu0 0.0
        %6302 = vmatmul.mubr.f32.gmra.mrb[0].mxu0 %v6235
        %v6303 = vpop.f32.mrb[0].mxu0
        %v6304 = vadd.f32 0.0, %v6303
        %v6305 = vpop.f32.mrb[0].mxu0
        %v6306 = vadd.f32 0.0, %v6305
        %6307 = vdwg.mxu0
        %6308 = vmatprep.subr.mxu0 %v6221
        %6309 = vmatpush1.msra.mxu0 %v6220
        %6310 = vmatprep.subr.mxu0 0.0
        %6311 = vmatpush1.msra.mxu0 0.0
        %6312 = vmatprep.subr.mxu0 0.0
        %6313 = vmatpush1.msra.mxu0 0.0
        %6314 = vmatprep.subr.mxu0 0.0
        %6315 = vmatpush1.msra.mxu0 0.0
        %6316 = vmatprep.subr.mxu0 0.0
        %6317 = vmatpush1.msra.mxu0 0.0
        %6318 = vmatprep.subr.mxu0 0.0
        %6319 = vmatpush1.msra.mxu0 0.0
        %6320 = vmatprep.subr.mxu0 0.0
        %6321 = vmatpush1.msra.mxu0 0.0
        %6322 = vmatprep.subr.mxu0 0.0
        %6323 = vmatpush1.msra.mxu0 0.0
        %6324 = vmatprep.subr.mxu0 0.0
        %6325 = vmatpush1.msra.mxu0 0.0
        %6326 = vmatprep.subr.mxu0 0.0
        %6327 = vmatpush1.msra.mxu0 0.0
        %6328 = vmatprep.subr.mxu0 0.0
        %6329 = vmatpush1.msra.mxu0 0.0
        %6330 = vmatprep.subr.mxu0 0.0
        %6331 = vmatpush1.msra.mxu0 0.0
        %6332 = vmatprep.subr.mxu0 0.0
        %6333 = vmatpush1.msra.mxu0 0.0
        %6334 = vmatprep.subr.mxu0 0.0
        %6335 = vmatpush1.msra.mxu0 0.0
        %6336 = vmatprep.subr.mxu0 0.0
        %6337 = vmatpush1.msra.mxu0 0.0
        %6338 = vmatprep.subr.mxu0 0.0
        %6339 = vmatpush1.msra.mxu0 0.0
        %6340 = vmatprep.subr.mxu0 0.0
        %6341 = vmatpush1.msra.mxu0 0.0
        %6342 = vmatprep.subr.mxu0 0.0
        %6343 = vmatpush1.msra.mxu0 0.0
        %6344 = vmatprep.subr.mxu0 0.0
        %6345 = vmatpush1.msra.mxu0 0.0
        %6346 = vmatprep.subr.mxu0 0.0
        %6347 = vmatpush1.msra.mxu0 0.0
        %6348 = vmatprep.subr.mxu0 0.0
        %6349 = vmatpush1.msra.mxu0 0.0
        %6350 = vmatprep.subr.mxu0 0.0
        %6351 = vmatpush1.msra.mxu0 0.0
        %6352 = vmatprep.subr.mxu0 0.0
        %6353 = vmatpush1.msra.mxu0 0.0
        %6354 = vmatprep.subr.mxu0 0.0
        %6355 = vmatpush1.msra.mxu0 0.0
        %6356 = vmatprep.subr.mxu0 0.0
        %6357 = vmatpush1.msra.mxu0 0.0
        %6358 = vmatprep.subr.mxu0 0.0
        %6359 = vmatpush1.msra.mxu0 0.0
        %6360 = vmatprep.subr.mxu0 0.0
        %6361 = vmatpush1.msra.mxu0 0.0
        %6362 = vmatprep.subr.mxu0 0.0
        %6363 = vmatpush1.msra.mxu0 0.0
        %6364 = vmatprep.subr.mxu0 0.0
        %6365 = vmatpush1.msra.mxu0 0.0
        %6366 = vmatprep.subr.mxu0 0.0
        %6367 = vmatpush1.msra.mxu0 0.0
        %6368 = vmatprep.subr.mxu0 0.0
        %6369 = vmatpush1.msra.mxu0 0.0
        %6370 = vmatprep.subr.mxu0 0.0
        %6371 = vmatpush1.msra.mxu0 0.0
        %6372 = vmatprep.mubr.f32.mxu0 0.0
        %6373 = vmatmul.mubr.f32.gmra.mrb[0].mxu0 %v6235
        %v6374 = vpop.f32.mrb[0].mxu0
        %v6375 = vadd.f32 0.0, %v6374
        %v6376 = vpop.f32.mrb[0].mxu0
        %v6377 = vadd.f32 0.0, %v6376
        %6378 = vdwg.mxu0
        %6379 = vmatprep.subr.mxu0 %v6223
        %6380 = vmatpush1.msra.mxu0 %v6222
        %6381 = vmatprep.subr.mxu0 0.0
        %6382 = vmatpush1.msra.mxu0 0.0
        %6383 = vmatprep.subr.mxu0 0.0
        %6384 = vmatpush1.msra.mxu0 0.0
        %6385 = vmatprep.subr.mxu0 0.0
        %6386 = vmatpush1.msra.mxu0 0.0
        %6387 = vmatprep.subr.mxu0 0.0
        %6388 = vmatpush1.msra.mxu0 0.0
        %6389 = vmatprep.subr.mxu0 0.0
        %6390 = vmatpush1.msra.mxu0 0.0
        %6391 = vmatprep.subr.mxu0 0.0
        %6392 = vmatpush1.msra.mxu0 0.0
        %6393 = vmatprep.subr.mxu0 0.0
        %6394 = vmatpush1.msra.mxu0 0.0
        %6395 = vmatprep.subr.mxu0 0.0
        %6396 = vmatpush1.msra.mxu0 0.0
        %6397 = vmatprep.subr.mxu0 0.0
        %6398 = vmatpush1.msra.mxu0 0.0
        %6399 = vmatprep.subr.mxu0 0.0
        %6400 = vmatpush1.msra.mxu0 0.0
        %6401 = vmatprep.subr.mxu0 0.0
        %6402 = vmatpush1.msra.mxu0 0.0
        %6403 = vmatprep.subr.mxu0 0.0
        %6404 = vmatpush1.msra.mxu0 0.0
        %6405 = vmatprep.subr.mxu0 0.0
        %6406 = vmatpush1.msra.mxu0 0.0
        %6407 = vmatprep.subr.mxu0 0.0
        %6408 = vmatpush1.msra.mxu0 0.0
        %6409 = vmatprep.subr.mxu0 0.0
        %6410 = vmatpush1.msra.mxu0 0.0
        %6411 = vmatprep.subr.mxu0 0.0
        %6412 = vmatpush1.msra.mxu0 0.0
        %6413 = vmatprep.subr.mxu0 0.0
        %6414 = vmatpush1.msra.mxu0 0.0
        %6415 = vmatprep.subr.mxu0 0.0
        %6416 = vmatpush1.msra.mxu0 0.0
        %6417 = vmatprep.subr.mxu0 0.0
        %6418 = vmatpush1.msra.mxu0 0.0
        %6419 = vmatprep.subr.mxu0 0.0
        %6420 = vmatpush1.msra.mxu0 0.0
        %6421 = vmatprep.subr.mxu0 0.0
        %6422 = vmatpush1.msra.mxu0 0.0
        %6423 = vmatprep.subr.mxu0 0.0
        %6424 = vmatpush1.msra.mxu0 0.0
        %6425 = vmatprep.subr.mxu0 0.0
        %6426 = vmatpush1.msra.mxu0 0.0
        %6427 = vmatprep.subr.mxu0 0.0
        %6428 = vmatpush1.msra.mxu0 0.0
        %6429 = vmatprep.subr.mxu0 0.0
        %6430 = vmatpush1.msra.mxu0 0.0
        %6431 = vmatprep.subr.mxu0 0.0
        %6432 = vmatpush1.msra.mxu0 0.0
        %6433 = vmatprep.subr.mxu0 0.0
        %6434 = vmatpush1.msra.mxu0 0.0
        %6435 = vmatprep.subr.mxu0 0.0
        %6436 = vmatpush1.msra.mxu0 0.0
        %6437 = vmatprep.subr.mxu0 0.0
        %6438 = vmatpush1.msra.mxu0 0.0
        %6439 = vmatprep.subr.mxu0 0.0
        %6440 = vmatpush1.msra.mxu0 0.0
        %6441 = vmatprep.subr.mxu0 0.0
        %6442 = vmatpush1.msra.mxu0 0.0
        %6443 = vmatprep.mubr.f32.mxu0 0.0
        %6444 = vmatmul.mubr.f32.gmra.mrb[0].mxu0 %v6235
        %v6445 = vpop.f32.mrb[0].mxu0
        %v6446 = vadd.f32 0.0, %v6445
        %v6447 = vpop.f32.mrb[0].mxu0
        %v6448 = vadd.f32 0.0, %v6447
        %6449 = vdwg.mxu0
        %6450 = vmatprep.subr.mxu0 %v6225
        %6451 = vmatpush1.msra.mxu0 %v6224
        %6452 = vmatprep.subr.mxu0 0.0
        %6453 = vmatpush1.msra.mxu0 0.0
        %6454 = vmatprep.subr.mxu0 0.0
        %6455 = vmatpush1.msra.mxu0 0.0
        %6456 = vmatprep.subr.mxu0 0.0
        %6457 = vmatpush1.msra.mxu0 0.0
        %6458 = vmatprep.subr.mxu0 0.0
        %6459 = vmatpush1.msra.mxu0 0.0
        %6460 = vmatprep.subr.mxu0 0.0
        %6461 = vmatpush1.msra.mxu0 0.0
        %6462 = vmatprep.subr.mxu0 0.0
        %6463 = vmatpush1.msra.mxu0 0.0
        %6464 = vmatprep.subr.mxu0 0.0
        %6465 = vmatpush1.msra.mxu0 0.0
        %6466 = vmatprep.subr.mxu0 0.0
        %6467 = vmatpush1.msra.mxu0 0.0
        %6468 = vmatprep.subr.mxu0 0.0
        %6469 = vmatpush1.msra.mxu0 0.0
        %6470 = vmatprep.subr.mxu0 0.0
        %6471 = vmatpush1.msra.mxu0 0.0
        %6472 = vmatprep.subr.mxu0 0.0
        %6473 = vmatpush1.msra.mxu0 0.0
        %6474 = vmatprep.subr.mxu0 0.0
        %6475 = vmatpush1.msra.mxu0 0.0
        %6476 = vmatprep.subr.mxu0 0.0
        %6477 = vmatpush1.msra.mxu0 0.0
        %6478 = vmatprep.subr.mxu0 0.0
        %6479 = vmatpush1.msra.mxu0 0.0
        %6480 = vmatprep.subr.mxu0 0.0
        %6481 = vmatpush1.msra.mxu0 0.0
        %6482 = vmatprep.subr.mxu0 0.0
        %6483 = vmatpush1.msra.mxu0 0.0
        %6484 = vmatprep.subr.mxu0 0.0
        %6485 = vmatpush1.msra.mxu0 0.0
        %6486 = vmatprep.subr.mxu0 0.0
        %6487 = vmatpush1.msra.mxu0 0.0
        %6488 = vmatprep.subr.mxu0 0.0
        %6489 = vmatpush1.msra.mxu0 0.0
        %6490 = vmatprep.subr.mxu0 0.0
        %6491 = vmatpush1.msra.mxu0 0.0
        %6492 = vmatprep.subr.mxu0 0.0
        %6493 = vmatpush1.msra.mxu0 0.0
        %6494 = vmatprep.subr.mxu0 0.0
        %6495 = vmatpush1.msra.mxu0 0.0
        %6496 = vmatprep.subr.mxu0 0.0
        %6497 = vmatpush1.msra.mxu0 0.0
        %6498 = vmatprep.subr.mxu0 0.0
        %6499 = vmatpush1.msra.mxu0 0.0
        %6500 = vmatprep.subr.mxu0 0.0
        %6501 = vmatpush1.msra.mxu0 0.0
        %6502 = vmatprep.subr.mxu0 0.0
        %6503 = vmatpush1.msra.mxu0 0.0
        %6504 = vmatprep.subr.mxu0 0.0
        %6505 = vmatpush1.msra.mxu0 0.0
        %6506 = vmatprep.subr.mxu0 0.0
        %6507 = vmatpush1.msra.mxu0 0.0
        %6508 = vmatprep.subr.mxu0 0.0
        %6509 = vmatpush1.msra.mxu0 0.0
        %6510 = vmatprep.subr.mxu0 0.0
        %6511 = vmatpush1.msra.mxu0 0.0
        %6512 = vmatprep.subr.mxu0 0.0
        %6513 = vmatpush1.msra.mxu0 0.0
        %6514 = vmatprep.mubr.f32.mxu0 0.0
        %6515 = vmatmul.mubr.f32.gmra.mrb[0].mxu0 %v6235
        %v6516 = vpop.f32.mrb[0].mxu0
        %v6517 = vadd.f32 0.0, %v6516
        %v6518 = vpop.f32.mrb[0].mxu0
        %v6519 = vadd.f32 0.0, %v6518
        %6520 = vdwg.mxu0
        %v6521 = vadd.f32 %v6190, %v6304
        %v6522 = vadd.f32 %v6191, %v6306
        %v6523 = vadd.f32 %v6192, %v6375
        %v6524 = vadd.f32 %v6193, %v6377
        %v6525 = vadd.f32 %v6194, %v6446
        %v6526 = vadd.f32 %v6195, %v6448
        %v6527 = vadd.f32 %v6196, %v6517
        %v6528 = vadd.f32 %v6197, %v6519
        %6529 = vrot.lane.b32.xlu0 %v3873, 62
        %v6530 = vpop.permute.xlu0 %6529
        %6531 = vrot.lane.b32.xlu0 %v3874, 62
        %v6532 = vpop.permute.xlu0 %6531
        %6533 = vrot.lane.b32.xlu0 %v3875, 62
        %v6534 = vpop.permute.xlu0 %6533
        %6535 = vrot.lane.b32.xlu0 %v3876, 62
        %v6536 = vpop.permute.xlu0 %6535
        %6537 = vrot.lane.b32.xlu0 %v3877, 62
        %v6538 = vpop.permute.xlu0 %6537
        %6539 = vrot.lane.b32.xlu0 %v3878, 62
        %v6540 = vpop.permute.xlu0 %6539
        %6541 = vrot.lane.b32.xlu0 %v3879, 62
        %v6542 = vpop.permute.xlu0 %6541
        %6543 = vrot.lane.b32.xlu0 %v3880, 62
        %v6544 = vpop.permute.xlu0 %6543
        %6545 = vrot.lane.b32.xlu0 %v3890, 62
        %v6546 = vpop.permute.xlu0 %6545
        %v6547 = vsel %vm3348, %v6530, %v6532
        %v6548 = vsel %vm3348, %v6532, %v6534
        %v6549 = vsel %vm3348, %v6534, %v6536
        %v6550 = vsel %vm3348, %v6536, %v6538
        %v6551 = vsel %vm3348, %v6538, %v6540
        %v6552 = vsel %vm3348, %v6540, %v6542
        %v6553 = vsel %vm3348, %v6542, %v6544
        %v6554 = vsel %vm3348, %v6544, %v6546
        %v6563 = vsel %vm1093, %v6547, 0.0
        %v6564 = vsel %vm1094, %v6548, 0.0
        %v6565 = vsel %vm1095, %v6549, 0.0
        %v6566 = vsel %vm1096, %v6550, 0.0
        %v6567 = vsel %vm1097, %v6551, 0.0
        %v6568 = vsel %vm1098, %v6552, 0.0
        %v6569 = vsel %vm1099, %v6553, 0.0
        %v6570 = vsel %vm1100, %v6554, 0.0
        %s6571 = scalar_lea.vmem %s3, 64
        %v6572 = vld [vmem:[%s6571] sm:$0xff]
        %v6574 = vsel %vm3936, %v6572, 0
        %6576 = vmatprep.subr.mxu0 %v6564
        %6577 = vmatpush1.msra.mxu0 %v6563
        %6578 = vmatprep.subr.mxu0 0.0
        %6579 = vmatpush1.msra.mxu0 0.0
        %6580 = vmatprep.subr.mxu0 0.0
        %6581 = vmatpush1.msra.mxu0 0.0
        %6582 = vmatprep.subr.mxu0 0.0
        %6583 = vmatpush1.msra.mxu0 0.0
        %6584 = vmatprep.subr.mxu0 0.0
        %6585 = vmatpush1.msra.mxu0 0.0
        %6586 = vmatprep.subr.mxu0 0.0
        %6587 = vmatpush1.msra.mxu0 0.0
        %6588 = vmatprep.subr.mxu0 0.0
        %6589 = vmatpush1.msra.mxu0 0.0
        %6590 = vmatprep.subr.mxu0 0.0
        %6591 = vmatpush1.msra.mxu0 0.0
        %6592 = vmatprep.subr.mxu0 0.0
        %6593 = vmatpush1.msra.mxu0 0.0
        %6594 = vmatprep.subr.mxu0 0.0
        %6595 = vmatpush1.msra.mxu0 0.0
        %6596 = vmatprep.subr.mxu0 0.0
        %6597 = vmatpush1.msra.mxu0 0.0
        %6598 = vmatprep.subr.mxu0 0.0
        %6599 = vmatpush1.msra.mxu0 0.0
        %6600 = vmatprep.subr.mxu0 0.0
        %6601 = vmatpush1.msra.mxu0 0.0
        %6602 = vmatprep.subr.mxu0 0.0
        %6603 = vmatpush1.msra.mxu0 0.0
        %6604 = vmatprep.subr.mxu0 0.0
        %6605 = vmatpush1.msra.mxu0 0.0
        %6606 = vmatprep.subr.mxu0 0.0
        %6607 = vmatpush1.msra.mxu0 0.0
        %6608 = vmatprep.subr.mxu0 0.0
        %6609 = vmatpush1.msra.mxu0 0.0
        %6610 = vmatprep.subr.mxu0 0.0
        %6611 = vmatpush1.msra.mxu0 0.0
        %6612 = vmatprep.subr.mxu0 0.0
        %6613 = vmatpush1.msra.mxu0 0.0
        %6614 = vmatprep.subr.mxu0 0.0
        %6615 = vmatpush1.msra.mxu0 0.0
        %6616 = vmatprep.subr.mxu0 0.0
        %6617 = vmatpush1.msra.mxu0 0.0
        %6618 = vmatprep.subr.mxu0 0.0
        %6619 = vmatpush1.msra.mxu0 0.0
        %6620 = vmatprep.subr.mxu0 0.0
        %6621 = vmatpush1.msra.mxu0 0.0
        %6622 = vmatprep.subr.mxu0 0.0
        %6623 = vmatpush1.msra.mxu0 0.0
        %6624 = vmatprep.subr.mxu0 0.0
        %6625 = vmatpush1.msra.mxu0 0.0
        %6626 = vmatprep.subr.mxu0 0.0
        %6627 = vmatpush1.msra.mxu0 0.0
        %6628 = vmatprep.subr.mxu0 0.0
        %6629 = vmatpush1.msra.mxu0 0.0
        %6630 = vmatprep.subr.mxu0 0.0
        %6631 = vmatpush1.msra.mxu0 0.0
        %6632 = vmatprep.subr.mxu0 0.0
        %6633 = vmatpush1.msra.mxu0 0.0
        %6634 = vmatprep.subr.mxu0 0.0
        %6635 = vmatpush1.msra.mxu0 0.0
        %6636 = vmatprep.subr.mxu0 0.0
        %6637 = vmatpush1.msra.mxu0 0.0
        %6638 = vmatprep.subr.mxu0 0.0
        %6639 = vmatpush1.msra.mxu0 0.0
        %6640 = vmatprep.mubr.f32.mxu0 0.0
        %6641 = vmatmul.mubr.f32.gmra.mrb[0].mxu0 %v6574
        %v6642 = vpop.f32.mrb[0].mxu0
        %v6643 = vadd.f32 0.0, %v6642
        %v6644 = vpop.f32.mrb[0].mxu0
        %v6645 = vadd.f32 0.0, %v6644
        %6646 = vdwg.mxu0
        %6647 = vmatprep.subr.mxu0 %v6566
        %6648 = vmatpush1.msra.mxu0 %v6565
        %6649 = vmatprep.subr.mxu0 0.0
        %6650 = vmatpush1.msra.mxu0 0.0
        %6651 = vmatprep.subr.mxu0 0.0
        %6652 = vmatpush1.msra.mxu0 0.0
        %6653 = vmatprep.subr.mxu0 0.0
        %6654 = vmatpush1.msra.mxu0 0.0
        %6655 = vmatprep.subr.mxu0 0.0
        %6656 = vmatpush1.msra.mxu0 0.0
        %6657 = vmatprep.subr.mxu0 0.0
        %6658 = vmatpush1.msra.mxu0 0.0
        %6659 = vmatprep.subr.mxu0 0.0
        %6660 = vmatpush1.msra.mxu0 0.0
        %6661 = vmatprep.subr.mxu0 0.0
        %6662 = vmatpush1.msra.mxu0 0.0
        %6663 = vmatprep.subr.mxu0 0.0
        %6664 = vmatpush1.msra.mxu0 0.0
        %6665 = vmatprep.subr.mxu0 0.0
        %6666 = vmatpush1.msra.mxu0 0.0
        %6667 = vmatprep.subr.mxu0 0.0
        %6668 = vmatpush1.msra.mxu0 0.0
        %6669 = vmatprep.subr.mxu0 0.0
        %6670 = vmatpush1.msra.mxu0 0.0
        %6671 = vmatprep.subr.mxu0 0.0
        %6672 = vmatpush1.msra.mxu0 0.0
        %6673 = vmatprep.subr.mxu0 0.0
        %6674 = vmatpush1.msra.mxu0 0.0
        %6675 = vmatprep.subr.mxu0 0.0
        %6676 = vmatpush1.msra.mxu0 0.0
        %6677 = vmatprep.subr.mxu0 0.0
        %6678 = vmatpush1.msra.mxu0 0.0
        %6679 = vmatprep.subr.mxu0 0.0
        %6680 = vmatpush1.msra.mxu0 0.0
        %6681 = vmatprep.subr.mxu0 0.0
        %6682 = vmatpush1.msra.mxu0 0.0
        %6683 = vmatprep.subr.mxu0 0.0
        %6684 = vmatpush1.msra.mxu0 0.0
        %6685 = vmatprep.subr.mxu0 0.0
        %6686 = vmatpush1.msra.mxu0 0.0
        %6687 = vmatprep.subr.mxu0 0.0
        %6688 = vmatpush1.msra.mxu0 0.0
        %6689 = vmatprep.subr.mxu0 0.0
        %6690 = vmatpush1.msra.mxu0 0.0
        %6691 = vmatprep.subr.mxu0 0.0
        %6692 = vmatpush1.msra.mxu0 0.0
        %6693 = vmatprep.subr.mxu0 0.0
        %6694 = vmatpush1.msra.mxu0 0.0
        %6695 = vmatprep.subr.mxu0 0.0
        %6696 = vmatpush1.msra.mxu0 0.0
        %6697 = vmatprep.subr.mxu0 0.0
        %6698 = vmatpush1.msra.mxu0 0.0
        %6699 = vmatprep.subr.mxu0 0.0
        %6700 = vmatpush1.msra.mxu0 0.0
        %6701 = vmatprep.subr.mxu0 0.0
        %6702 = vmatpush1.msra.mxu0 0.0
        %6703 = vmatprep.subr.mxu0 0.0
        %6704 = vmatpush1.msra.mxu0 0.0
        %6705 = vmatprep.subr.mxu0 0.0
        %6706 = vmatpush1.msra.mxu0 0.0
        %6707 = vmatprep.subr.mxu0 0.0
        %6708 = vmatpush1.msra.mxu0 0.0
        %6709 = vmatprep.subr.mxu0 0.0
        %6710 = vmatpush1.msra.mxu0 0.0
        %6711 = vmatprep.mubr.f32.mxu0 0.0
        %6712 = vmatmul.mubr.f32.gmra.mrb[0].mxu0 %v6574
        %v6713 = vpop.f32.mrb[0].mxu0
        %v6714 = vadd.f32 0.0, %v6713
        %v6715 = vpop.f32.mrb[0].mxu0
        %v6716 = vadd.f32 0.0, %v6715
        %6717 = vdwg.mxu0
        %6718 = vmatprep.subr.mxu0 %v6568
        %6719 = vmatpush1.msra.mxu0 %v6567
        %6720 = vmatprep.subr.mxu0 0.0
        %6721 = vmatpush1.msra.mxu0 0.0
        %6722 = vmatprep.subr.mxu0 0.0
        %6723 = vmatpush1.msra.mxu0 0.0
        %6724 = vmatprep.subr.mxu0 0.0
        %6725 = vmatpush1.msra.mxu0 0.0
        %6726 = vmatprep.subr.mxu0 0.0
        %6727 = vmatpush1.msra.mxu0 0.0
        %6728 = vmatprep.subr.mxu0 0.0
        %6729 = vmatpush1.msra.mxu0 0.0
        %6730 = vmatprep.subr.mxu0 0.0
        %6731 = vmatpush1.msra.mxu0 0.0
        %6732 = vmatprep.subr.mxu0 0.0
        %6733 = vmatpush1.msra.mxu0 0.0
        %6734 = vmatprep.subr.mxu0 0.0
        %6735 = vmatpush1.msra.mxu0 0.0
        %6736 = vmatprep.subr.mxu0 0.0
        %6737 = vmatpush1.msra.mxu0 0.0
        %6738 = vmatprep.subr.mxu0 0.0
        %6739 = vmatpush1.msra.mxu0 0.0
        %6740 = vmatprep.subr.mxu0 0.0
        %6741 = vmatpush1.msra.mxu0 0.0
        %6742 = vmatprep.subr.mxu0 0.0
        %6743 = vmatpush1.msra.mxu0 0.0
        %6744 = vmatprep.subr.mxu0 0.0
        %6745 = vmatpush1.msra.mxu0 0.0
        %6746 = vmatprep.subr.mxu0 0.0
        %6747 = vmatpush1.msra.mxu0 0.0
        %6748 = vmatprep.subr.mxu0 0.0
        %6749 = vmatpush1.msra.mxu0 0.0
        %6750 = vmatprep.subr.mxu0 0.0
        %6751 = vmatpush1.msra.mxu0 0.0
        %6752 = vmatprep.subr.mxu0 0.0
        %6753 = vmatpush1.msra.mxu0 0.0
        %6754 = vmatprep.subr.mxu0 0.0
        %6755 = vmatpush1.msra.mxu0 0.0
        %6756 = vmatprep.subr.mxu0 0.0
        %6757 = vmatpush1.msra.mxu0 0.0
        %6758 = vmatprep.subr.mxu0 0.0
        %6759 = vmatpush1.msra.mxu0 0.0
        %6760 = vmatprep.subr.mxu0 0.0
        %6761 = vmatpush1.msra.mxu0 0.0
        %6762 = vmatprep.subr.mxu0 0.0
        %6763 = vmatpush1.msra.mxu0 0.0
        %6764 = vmatprep.subr.mxu0 0.0
        %6765 = vmatpush1.msra.mxu0 0.0
        %6766 = vmatprep.subr.mxu0 0.0
        %6767 = vmatpush1.msra.mxu0 0.0
        %6768 = vmatprep.subr.mxu0 0.0
        %6769 = vmatpush1.msra.mxu0 0.0
        %6770 = vmatprep.subr.mxu0 0.0
        %6771 = vmatpush1.msra.mxu0 0.0
        %6772 = vmatprep.subr.mxu0 0.0
        %6773 = vmatpush1.msra.mxu0 0.0
        %6774 = vmatprep.subr.mxu0 0.0
        %6775 = vmatpush1.msra.mxu0 0.0
        %6776 = vmatprep.subr.mxu0 0.0
        %6777 = vmatpush1.msra.mxu0 0.0
        %6778 = vmatprep.subr.mxu0 0.0
        %6779 = vmatpush1.msra.mxu0 0.0
        %6780 = vmatprep.subr.mxu0 0.0
        %6781 = vmatpush1.msra.mxu0 0.0
        %6782 = vmatprep.mubr.f32.mxu0 0.0
        %6783 = vmatmul.mubr.f32.gmra.mrb[0].mxu0 %v6574
        %v6784 = vpop.f32.mrb[0].mxu0
        %v6785 = vadd.f32 0.0, %v6784
        %v6786 = vpop.f32.mrb[0].mxu0
        %v6787 = vadd.f32 0.0, %v6786
        %6788 = vdwg.mxu0
        %6789 = vmatprep.subr.mxu0 %v6570
        %6790 = vmatpush1.msra.mxu0 %v6569
        %6791 = vmatprep.subr.mxu0 0.0
        %6792 = vmatpush1.msra.mxu0 0.0
        %6793 = vmatprep.subr.mxu0 0.0
        %6794 = vmatpush1.msra.mxu0 0.0
        %6795 = vmatprep.subr.mxu0 0.0
        %6796 = vmatpush1.msra.mxu0 0.0
        %6797 = vmatprep.subr.mxu0 0.0
        %6798 = vmatpush1.msra.mxu0 0.0
        %6799 = vmatprep.subr.mxu0 0.0
        %6800 = vmatpush1.msra.mxu0 0.0
        %6801 = vmatprep.subr.mxu0 0.0
        %6802 = vmatpush1.msra.mxu0 0.0
        %6803 = vmatprep.subr.mxu0 0.0
        %6804 = vmatpush1.msra.mxu0 0.0
        %6805 = vmatprep.subr.mxu0 0.0
        %6806 = vmatpush1.msra.mxu0 0.0
        %6807 = vmatprep.subr.mxu0 0.0
        %6808 = vmatpush1.msra.mxu0 0.0
        %6809 = vmatprep.subr.mxu0 0.0
        %6810 = vmatpush1.msra.mxu0 0.0
        %6811 = vmatprep.subr.mxu0 0.0
        %6812 = vmatpush1.msra.mxu0 0.0
        %6813 = vmatprep.subr.mxu0 0.0
        %6814 = vmatpush1.msra.mxu0 0.0
        %6815 = vmatprep.subr.mxu0 0.0
        %6816 = vmatpush1.msra.mxu0 0.0
        %6817 = vmatprep.subr.mxu0 0.0
        %6818 = vmatpush1.msra.mxu0 0.0
        %6819 = vmatprep.subr.mxu0 0.0
        %6820 = vmatpush1.msra.mxu0 0.0
        %6821 = vmatprep.subr.mxu0 0.0
        %6822 = vmatpush1.msra.mxu0 0.0
        %6823 = vmatprep.subr.mxu0 0.0
        %6824 = vmatpush1.msra.mxu0 0.0
        %6825 = vmatprep.subr.mxu0 0.0
        %6826 = vmatpush1.msra.mxu0 0.0
        %6827 = vmatprep.subr.mxu0 0.0
        %6828 = vmatpush1.msra.mxu0 0.0
        %6829 = vmatprep.subr.mxu0 0.0
        %6830 = vmatpush1.msra.mxu0 0.0
        %6831 = vmatprep.subr.mxu0 0.0
        %6832 = vmatpush1.msra.mxu0 0.0
        %6833 = vmatprep.subr.mxu0 0.0
        %6834 = vmatpush1.msra.mxu0 0.0
        %6835 = vmatprep.subr.mxu0 0.0
        %6836 = vmatpush1.msra.mxu0 0.0
        %6837 = vmatprep.subr.mxu0 0.0
        %6838 = vmatpush1.msra.mxu0 0.0
        %6839 = vmatprep.subr.mxu0 0.0
        %6840 = vmatpush1.msra.mxu0 0.0
        %6841 = vmatprep.subr.mxu0 0.0
        %6842 = vmatpush1.msra.mxu0 0.0
        %6843 = vmatprep.subr.mxu0 0.0
        %6844 = vmatpush1.msra.mxu0 0.0
        %6845 = vmatprep.subr.mxu0 0.0
        %6846 = vmatpush1.msra.mxu0 0.0
        %6847 = vmatprep.subr.mxu0 0.0
        %6848 = vmatpush1.msra.mxu0 0.0
        %6849 = vmatprep.subr.mxu0 0.0
        %6850 = vmatpush1.msra.mxu0 0.0
        %6851 = vmatprep.subr.mxu0 0.0
        %6852 = vmatpush1.msra.mxu0 0.0
        %6853 = vmatprep.mubr.f32.mxu0 0.0
        %6854 = vmatmul.mubr.f32.gmra.mrb[0].mxu0 %v6574
        %v6855 = vpop.f32.mrb[0].mxu0
        %v6856 = vadd.f32 0.0, %v6855
        %v6857 = vpop.f32.mrb[0].mxu0
        %v6858 = vadd.f32 0.0, %v6857
        %6859 = vdwg.mxu0
        %v6860 = vadd.f32 %v6521, %v6643
        %v6861 = vadd.f32 %v6522, %v6645
        %v6862 = vadd.f32 %v6523, %v6714
        %v6863 = vadd.f32 %v6524, %v6716
        %v6864 = vadd.f32 %v6525, %v6785
        %v6865 = vadd.f32 %v6526, %v6787
        %v6866 = vadd.f32 %v6527, %v6856
        %v6867 = vadd.f32 %v6528, %v6858
        %v6868 = vld [vmem:[%s4] sm:$0xff]
        %6870 = vset.pattern.permute.xlu0 0
        %6871 = vperm.xlu0 %6870, %v6868
        %v6872 = vpop.permute.xlu0 %6871
        %v6874 = vadd.f32 %v6860, %v6872
        %v6875 = vadd.f32 %v6861, %v6872
        %v6876 = vadd.f32 %v6862, %v6872
        %v6877 = vadd.f32 %v6863, %v6872
        %v6878 = vadd.f32 %v6864, %v6872
        %v6879 = vadd.f32 %v6865, %v6872
        %v6880 = vadd.f32 %v6866, %v6872
        %v6881 = vadd.f32 %v6867, %v6872
        %v6882 = vmul.f32 %v6874, 0.2
        %v6883 = vmul.f32 %v6875, 0.2
        %v6884 = vmul.f32 %v6876, 0.2
        %v6885 = vmul.f32 %v6877, 0.2
        %v6886 = vmul.f32 %v6878, 0.2
        %v6887 = vmul.f32 %v6879, 0.2
        %v6888 = vmul.f32 %v6880, 0.2
        %v6889 = vmul.f32 %v6881, 0.2
        %v6890 = vmax.f32 %v6874, %v6882
        %v6891 = vmax.f32 %v6875, %v6883
        %v6892 = vmax.f32 %v6876, %v6884
        %v6893 = vmax.f32 %v6877, %v6885
        %v6894 = vmax.f32 %v6878, %v6886
        %v6895 = vmax.f32 %v6879, %v6887
        %v6896 = vmax.f32 %v6880, %v6888
        %v6897 = vmax.f32 %v6881, %v6889
        %v6898 = vmul.f32 %v6890, %v6890
        %v6899 = vmul.f32 %v6891, %v6891
        %v6900 = vmul.f32 %v6892, %v6892
        %v6901 = vmul.f32 %v6893, %v6893
        %v6902 = vmul.f32 %v6894, %v6894
        %v6903 = vmul.f32 %v6895, %v6895
        %v6904 = vmul.f32 %v6896, %v6896
        %v6905 = vmul.f32 %v6897, %v6897
        %v6906 = vrot.slane %v6898, 4
        %v6907 = vadd.f32 %v6898, %v6906
        %v6908 = vrot.slane %v6907, 2
        %v6909 = vadd.f32 %v6907, %v6908
        %v6910 = vrot.slane %v6909, 1
        %v6911 = vadd.f32 %v6909, %v6910
        %v6912 = vrot.slane %v6899, 4
        %v6913 = vadd.f32 %v6899, %v6912
        %v6914 = vrot.slane %v6913, 2
        %v6915 = vadd.f32 %v6913, %v6914
        %v6916 = vrot.slane %v6915, 1
        %v6917 = vadd.f32 %v6915, %v6916
        %v6918 = vrot.slane %v6900, 4
        %v6919 = vadd.f32 %v6900, %v6918
        %v6920 = vrot.slane %v6919, 2
        %v6921 = vadd.f32 %v6919, %v6920
        %v6922 = vrot.slane %v6921, 1
        %v6923 = vadd.f32 %v6921, %v6922
        %v6924 = vrot.slane %v6901, 4
        %v6925 = vadd.f32 %v6901, %v6924
        %v6926 = vrot.slane %v6925, 2
        %v6927 = vadd.f32 %v6925, %v6926
        %v6928 = vrot.slane %v6927, 1
        %v6929 = vadd.f32 %v6927, %v6928
        %v6930 = vrot.slane %v6902, 4
        %v6931 = vadd.f32 %v6902, %v6930
        %v6932 = vrot.slane %v6931, 2
        %v6933 = vadd.f32 %v6931, %v6932
        %v6934 = vrot.slane %v6933, 1
        %v6935 = vadd.f32 %v6933, %v6934
        %v6936 = vrot.slane %v6903, 4
        %v6937 = vadd.f32 %v6903, %v6936
        %v6938 = vrot.slane %v6937, 2
        %v6939 = vadd.f32 %v6937, %v6938
        %v6940 = vrot.slane %v6939, 1
        %v6941 = vadd.f32 %v6939, %v6940
        %v6942 = vrot.slane %v6904, 4
        %v6943 = vadd.f32 %v6904, %v6942
        %v6944 = vrot.slane %v6943, 2
        %v6945 = vadd.f32 %v6943, %v6944
        %v6946 = vrot.slane %v6945, 1
        %v6947 = vadd.f32 %v6945, %v6946
        %v6948 = vrot.slane %v6905, 4
        %v6949 = vadd.f32 %v6905, %v6948
        %v6950 = vrot.slane %v6949, 2
        %v6951 = vadd.f32 %v6949, %v6950
        %v6952 = vrot.slane %v6951, 1
        %v6953 = vadd.f32 %v6951, %v6952
        %v6954 = vmul.f32 %v6911, %v3780
        %v6955 = vmul.f32 %v6917, %v3780
        %v6956 = vmul.f32 %v6923, %v3780
        %v6957 = vmul.f32 %v6929, %v3780
        %v6958 = vmul.f32 %v6935, %v3780
        %v6959 = vmul.f32 %v6941, %v3780
        %v6960 = vmul.f32 %v6947, %v3780
        %v6961 = vmul.f32 %v6953, %v3780
        %v6962 = vadd.f32 %v6954, 1e-08
        %v6963 = vadd.f32 %v6955, 1e-08
        %v6964 = vadd.f32 %v6956, 1e-08
        %v6965 = vadd.f32 %v6957, 1e-08
        %v6966 = vadd.f32 %v6958, 1e-08
        %v6967 = vadd.f32 %v6959, 1e-08
        %v6968 = vadd.f32 %v6960, 1e-08
        %v6969 = vadd.f32 %v6961, 1e-08
        %v6970 = vrsqrt.pop %v6962
        %v6971 = vrsqrt.pop %v6963
        %v6972 = vrsqrt.pop %v6964
        %v6973 = vrsqrt.pop %v6965
        %v6974 = vrsqrt.pop %v6966
        %v6975 = vrsqrt.pop %v6967
        %v6976 = vrsqrt.pop %v6968
        %v6977 = vrsqrt.pop %v6969
        %v6978 = vmul.f32 %v6890, %v6970
        %v6979 = vmul.f32 %v6891, %v6971
        %v6980 = vmul.f32 %v6892, %v6972
        %v6981 = vmul.f32 %v6893, %v6973
        %v6982 = vmul.f32 %v6894, %v6974
        %v6983 = vmul.f32 %v6895, %v6975
        %v6984 = vmul.f32 %v6896, %v6976
        %v6985 = vmul.f32 %v6897, %v6977
        %6986 = vst [vmem:[%s217] sm:$0xff] %v6978
        %6987 = vst [vmem:[%s217 + $0x8] sm:$0xff] %v6979
        %6988 = vst [vmem:[%s217 + $0x10] sm:$0xff] %v6980
        %6989 = vst [vmem:[%s217 + $0x18] sm:$0xff] %v6981
        %6990 = vst [vmem:[%s217 + $0x20] sm:$0xff] %v6982
        %6991 = vst [vmem:[%s217 + $0x28] sm:$0xff] %v6983
        %6992 = vst [vmem:[%s217 + $0x30] sm:$0xff] %v6984
        %6993 = vst [vmem:[%s217 + $0x38] sm:$0xff] %v6985
        %s6994 = sand.u32 %s137, 1
        %s6995 = scalar_lea.sflag [#allocation5], %s6994
        %s6996 = sand.u32 %s137, 1
        %s6997 = smul.addr %s6996, 64
        %s6998 = scalar_lea.vmem [#allocation4], %s6997
        // Predicated region
        $region41: #{tpu_custom_call.1} parent=39 // pred_check
          %p6999 = pneg %p147
        $region42: #{tpu_custom_call.1} parent=39 // pred_check_branch
          %7001 = sbr.rel (%p6999) target = $region44
        $region43: #{tpu_custom_call.1} parent=39 // pred_region
          %s7003 = ssub.s32 1024, 1024
          %7004 = vsyncadd %s6995, %s7003
          %s7005 = smul.addr %s19, 8
          %s7006 = smul.addr %s7005, 128
          %s7007 = scalar_lea.hbm %s5, %s7006
          %s7009 = sshll.u32 %s6998, 4
          %s7010 = int_to_ptr.vmem [resolvable:$true] %s7009
          %7012 = dma.vmem_to_hbm [thread:$0]  %s7010, 1024, %s7007, %s6995
        $region44: #{tpu_custom_call.1} parent=39 // pred_fallthru
          _
      $region40: #{tpu_custom_call.1} parent=5 // pred_fallthru
        _
      %p7013 = scmp.le.s32.totalorder 2, %s14
      // Predicated region
      $region45: #{tpu_custom_call.1} parent=5 // pred_check
        %p7014 = pneg %p7013
      $region46: #{tpu_custom_call.1} parent=5 // pred_check_branch
        %7016 = sbr.rel (%p7014) target = $region48
      $region47: #{tpu_custom_call.1} parent=5 // pred_region
        %s7017 = ssub.s32 %s14, 2
        // Predicated region
        $region49: #{tpu_custom_call.1} parent=47 // pred_check
          %p7018 = pneg %p153
        $region50: #{tpu_custom_call.1} parent=47 // pred_check_branch
          %7020 = sbr.rel (%p7018) target = $region52
        $region51: #{tpu_custom_call.1} parent=47 // pred_region
          %s7021 = sand.u32 %s138, 1
          %s7022 = scalar_lea.sflag [#allocation5], %s7021
          %s7023 = sand.u32 %s138, 1
          %s7024 = smul.addr %s7023, 64
          %s7025 = scalar_lea.vmem [#allocation4], %s7024
          %7026 = dma.done %s7022, 1024
        $region52: #{tpu_custom_call.1} parent=47 // pred_fallthru
          _
      $region48: #{tpu_custom_call.1} parent=5 // pred_fallthru
        _
    $region6: #{tpu_custom_call.1} parent=1 // loop_footer
      %s18 = sadd.s32 1, %s14
    $region7: #{tpu_custom_call.1} parent=1 // loop_footer_branch
      %13 = sbr.rel target = $region3
    $region8: #{tpu_custom_call.1} parent=1 // loop_exit
      _
    %7027 = vsyncpa [#allocation5], 1
    %s7028 = scalar_lea.sflag [#allocation5], 1
    %7029 = vsyncpa %s7028, 1

</llo_original>
